<compile_context>
chip_gen: v6e
topology: v6e:2x2x1
jax: 0.10.0
libtpu: 0.0.40
codegen_flags: <defaults>
</compile_context>

<pallas_src>
import functools

import jax
import jax.numpy as jnp
from jax import lax
from jax.experimental import pallas as pl
from jax.experimental.pallas import tpu as pltpu


def _vmem_limit_bytes():
    # Per-core VMEM: 128 MiB on v5e/v6e, 64 MiB on v7x.  Leave headroom for the
    # compiler's own scratch: 96 MiB on the 128 MiB parts, 40 MiB on v7x.
    try:
        cap = pltpu.get_tpu_info().vmem_capacity_bytes
    except Exception:  # interpret mode / API drift -> conservative default
        cap = 64 * 1024 * 1024
    return max(32 * 1024 * 1024, min(cap - 24 * 1024 * 1024, 96 * 1024 * 1024))


_VMEM_LIMIT = _vmem_limit_bytes()


def _choose_tile(dim, preferred, align):
    """Largest tile <= preferred that divides dim and is a multiple of align
    (falls back to the full dim, which is always legal for a BlockSpec)."""
    if dim <= preferred:
        return dim
    t = (preferred // align) * align
    while t >= align:
        if dim % t == 0:
            return t
        t -= align
    return dim


def _choose_time_block(T, preferred=16):
    """Time-block size for the LSTM grid: multiple of 8 dividing T (or T)."""
    if T <= preferred:
        return T
    t = (preferred // 8) * 8
    while t >= 8:
        if T % t == 0:
            return t
        t -= 8
    return T


# --------------------- fused Linear (+ optional "threshold") ---------------------
def _linear_kernel(x_ref, w_ref, b_ref, o_ref, *, apply_threshold):
    # bf16 operands (activations already bf16), f32 accumulation on the MXU.
    acc = jnp.dot(x_ref[...], w_ref[...], preferred_element_type=jnp.float32)
    acc = acc + b_ref[...]
    if apply_threshold:
        # torch.nn.functional.threshold(x, 0, 20): x where x > 0, else 20
        acc = jnp.where(acc > 0.0, acc, jnp.float32(20.0))
    o_ref[...] = acc.astype(o_ref.dtype)


def linear(x, w, b, *, apply_threshold=False, out_dtype=jnp.bfloat16):
    # x: (M, K) bf16, w: (K, N) bf16, b: (N,) f32 -> (M, N) out_dtype
    M, K = x.shape
    K2, N = w.shape
    assert K == K2
    tm = _choose_tile(M, 256, 8)
    # Large tn (full N for the square layers) => activation tiles are re-read
    # from HBM at most N/tn times (1x for 2048-wide, 4x for the 8192-wide
    # LSTM input projection) instead of 4-16x.
    tn = _choose_tile(N, 2048, 128)
    b2 = b.reshape(1, N)
    kernel = functools.partial(_linear_kernel, apply_threshold=apply_threshold)
    # When the weight/bias block index is grid-constant, single-buffer it so
    # only one copy of the (K, tn) slab lives in VMEM (critical on v7x).
    wb_kwargs = dict(pipeline_mode=pl.Buffered(1)) if tn == N else {}
    return pl.pallas_call(
        kernel,
        out_shape=jax.ShapeDtypeStruct((M, N), out_dtype),
        grid_spec=pltpu.PrefetchScalarGridSpec(
            num_scalar_prefetch=0,
            # Weight-tile index is the OUTER grid axis: each weight tile is
            # DMA'd from HBM once while activation tiles stream on the inner
            # axis (weight read exactly one full pass).
            grid=(N // tn, M // tm),
            in_specs=[
                pl.BlockSpec((tm, K), lambda j, i: (i, 0)),
                pl.BlockSpec((K, tn), lambda j, i: (0, j), **wb_kwargs),
                pl.BlockSpec((1, tn), lambda j, i: (0, j), **wb_kwargs),
            ],
            out_specs=pl.BlockSpec((tm, tn), lambda j, i: (i, j)),
        ),
        compiler_params=pltpu.CompilerParams(
            dimension_semantics=("parallel", "parallel"),
            vmem_limit_bytes=_VMEM_LIMIT),
    )(x, w, b2)


# --------------------- fused final Linear + log_softmax ---------------------
def _linear_logsoftmax_kernel(x_ref, w_ref, b_ref, o_ref):
    z = jnp.dot(x_ref[...], w_ref[...], preferred_element_type=jnp.float32)
    z = z + b_ref[...]
    m = jnp.max(z, axis=-1, keepdims=True)
    lse = jnp.log(jnp.sum(jnp.exp(z - m), axis=-1, keepdims=True))
    o_ref[...] = (z - m - lse).astype(o_ref.dtype)


def linear_logsoftmax(x, w, b):
    # w/b are already lane-padded to a multiple of 128 columns (pad bias=-1e30),
    # so both the MXU result tile and the output store are lane-dense.
    M, K = x.shape
    _, N = w.shape
    tm = _choose_tile(M, 256, 8)
    b2 = b.reshape(1, N)
    return pl.pallas_call(
        _linear_logsoftmax_kernel,
        out_shape=jax.ShapeDtypeStruct((M, N), jnp.float32),
        grid_spec=pltpu.PrefetchScalarGridSpec(
            num_scalar_prefetch=0,
            grid=(M // tm,),
            in_specs=[
                pl.BlockSpec((tm, K), lambda i: (i, 0)),
                # Grid-constant weight/bias: single-buffered.
                pl.BlockSpec((K, N), lambda i: (0, 0),
                             pipeline_mode=pl.Buffered(1)),
                pl.BlockSpec((1, N), lambda i: (0, 0),
                             pipeline_mode=pl.Buffered(1)),
            ],
            out_specs=pl.BlockSpec((tm, N), lambda i: (i, 0)),
        ),
        compiler_params=pltpu.CompilerParams(
            dimension_semantics=("parallel",),
            vmem_limit_bytes=_VMEM_LIMIT),
    )(x, w, b2)


# --------------------------------- LSTM ---------------------------------
def _lstm_kernel(xw_ref, whhT_ref, h0_ref, c0_ref,
                 hs_ref, hN_ref, cN_ref, h_sc, c_sc, *, H, Tc):
    tb = pl.program_id(0)
    B = xw_ref.shape[0]

    @pl.when(tb == 0)
    def _():
        h_sc[...] = h0_ref[...]
        c_sc[...] = c0_ref[...]

    w = whhT_ref[...]          # (H, 4H) bf16, single-buffered + grid-resident

    def step(tc, carry):
        h, c = carry
        x_t = xw_ref[:, pl.ds(tc, 1), :].reshape(B, 4 * H)   # (B, 4H) bf16
        gates = x_t.astype(jnp.float32) + jnp.dot(
            h.astype(jnp.bfloat16), w, preferred_element_type=jnp.float32)
        # Gates are packed (i, f, o, g): one wide sigmoid over (B, 3H) and one
        # tanh over (B, H) -> fewer dispatches on the single EUP slot.
        # TODO(synk): on v6e/v7x compute the gate nonlinearities / elementwise
        # updates in bf16 (bf16 VPU/EUP); keep f32 on v5e (no bf16 VPU/EUP).
        ifo = jax.nn.sigmoid(gates[:, :3 * H])
        g = jnp.tanh(gates[:, 3 * H:])
        i = ifo[:, 0 * H:1 * H]
        f = ifo[:, 1 * H:2 * H]
        o = ifo[:, 2 * H:3 * H]
        c = f * c + i * g
        h = o * jnp.tanh(c)
        hs_ref[:, pl.ds(tc, 1), :] = h[:, None, :].astype(hs_ref.dtype)
        return h, c

    # fori_loop(unroll=True): amortizes per-grid-step overhead over Tc steps
    # while keeping live ranges bounded (no vreg blow-up at Tc=16, H=2048).
    h, c = lax.fori_loop(0, Tc, step, (h_sc[...], c_sc[...]), unroll=True)

    h_sc[...] = h
    c_sc[...] = c

    # Only write the final-state outputs on the last grid step.
    @pl.when(tb == pl.num_programs(0) - 1)
    def _():
        hN_ref[...] = h.astype(hN_ref.dtype)
        cN_ref[...] = c.astype(cN_ref.dtype)


def lstm(xw, w_hh_t, h0, c0):
    # xw: (B, T, 4H) bf16 = x @ w_ih^T + b_ih + b_hh (precomputed, batch-first)
    # w_hh_t: (H, 4H) bf16 (pre-transposed, gates packed i,f,o,g)
    # h0/c0: (B, H) f32
    B, T, G = xw.shape
    H = G // 4
    Tc = _choose_time_block(T)
    kernel = functools.partial(_lstm_kernel, H=H, Tc=Tc)
    # TODO(synk): at production H=2048 on v7x (64 MiB VMEM) stream the resident
    # bf16 recurrent weight per-gate via manual DMA (memory_space=pl.ANY +
    # make_async_copy double-buffering); kept resident (single-buffered) here.
    # TODO(synk): for large B on v7x, add a leading "parallel" batch grid axis
    # so the recurrence is split across both TensorCores.
    hs, hN, cN = pl.pallas_call(
        kernel,
        out_shape=(jax.ShapeDtypeStruct((B, T, H), jnp.bfloat16),
                   jax.ShapeDtypeStruct((B, H), jnp.float32),
                   jax.ShapeDtypeStruct((B, H), jnp.float32)),
        grid_spec=pltpu.PrefetchScalarGridSpec(
            num_scalar_prefetch=0,
            grid=(T // Tc,),
            in_specs=[
                pl.BlockSpec((B, Tc, 4 * H), lambda t: (0, t, 0)),  # batch-first
                # Grid-constant inputs: single-buffered (halves the resident
                # recurrent-weight footprint; fatal otherwise on v7x at H=2048).
                pl.BlockSpec((H, 4 * H), lambda t: (0, 0),
                             pipeline_mode=pl.Buffered(1)),
                pl.BlockSpec((B, H), lambda t: (0, 0),
                             pipeline_mode=pl.Buffered(1)),
                pl.BlockSpec((B, H), lambda t: (0, 0),
                             pipeline_mode=pl.Buffered(1)),
            ],
            out_specs=(
                pl.BlockSpec((B, Tc, H), lambda t: (0, t, 0)),      # batch-first
                pl.BlockSpec((B, H), lambda t: (0, 0)),
                pl.BlockSpec((B, H), lambda t: (0, 0)),
            ),
            scratch_shapes=[pltpu.VMEM((B, H), jnp.float32),
                            pltpu.VMEM((B, H), jnp.float32)],
        ),
        compiler_params=pltpu.CompilerParams(
            dimension_semantics=("arbitrary",),
            vmem_limit_bytes=_VMEM_LIMIT),
    )(xw, w_hh_t, h0, c0)
    return hs, hN, cN


# ------------------------------ DeepSpeech ------------------------------
def init_params(key, in_dim, hidden, out_dim, *, wdtype=jnp.bfloat16):
    """Weights stored pre-transposed / pre-padded / bf16; biases f32."""
    keys = jax.random.split(key, 14)

    def lin(kw, kb, fan_in, fan_out):
        bound = 1.0 / (fan_in ** 0.5)
        w = jax.random.uniform(kw, (fan_in, fan_out), jnp.float32, -bound, bound)
        b = jax.random.uniform(kb, (fan_out,), jnp.float32, -bound, bound)
        return w, b

    p = {}
    # layer_1: pad the contraction dim 494 -> 512 with zero rows (lane-dense MXU).
    w1, b1 = lin(keys[0], keys[1], in_dim, hidden)
    k_pad = ((in_dim + 127) // 128) * 128
    p["w1"] = jnp.pad(w1, ((0, k_pad - in_dim), (0, 0))).astype(wdtype)
    p["b1"] = b1
    w2, b2 = lin(keys[2], keys[3], hidden, hidden)
    p["w2"], p["b2"] = w2.astype(wdtype), b2
    w3, b3 = lin(keys[4], keys[5], hidden, hidden)
    p["w3"], p["b3"] = w3.astype(wdtype), b3

    bound = 1.0 / (hidden ** 0.5)
    w_ih = jax.random.uniform(keys[6], (4 * hidden, hidden), jnp.float32, -bound, bound)
    w_hh = jax.random.uniform(keys[7], (4 * hidden, hidden), jnp.float32, -bound, bound)
    b_ih = jax.random.uniform(keys[8], (4 * hidden,), jnp.float32, -bound, bound)
    b_hh = jax.random.uniform(keys[9], (4 * hidden,), jnp.float32, -bound, bound)

    def reorder_gates(m):
        # PyTorch packs gates as (i, f, g, o) along the 4H axis; the kernel
        # wants (i, f, o, g) so the three sigmoid gates are one contiguous
        # (B, 3H) slab.  When importing PyTorch weights, apply this SAME
        # permutation or the LSTM silently computes the wrong gates.
        i, f, g, o = jnp.split(m, 4, axis=0)
        return jnp.concatenate([i, f, o, g], axis=0)

    # Pre-transposed (no runtime w.T, which would materialize big HBM copies).
    p["w_ih_t"] = reorder_gates(w_ih).T.astype(wdtype)     # (H, 4H)
    p["w_hh_t"] = reorder_gates(w_hh).T.astype(wdtype)     # (H, 4H)
    p["b_lstm"] = reorder_gates(b_ih + b_hh)               # (4H,)

    w5, b5 = lin(keys[10], keys[11], hidden, hidden)
    p["w5"], p["b5"] = w5.astype(wdtype), b5

    # layer_6: pad the 29-way vocab to 128 lanes; pad bias = -1e30 so the
    # padded logits vanish from the log_softmax; sliced back in the wrapper.
    w6, b6 = lin(keys[12], keys[13], hidden, out_dim)
    n_pad = ((out_dim + 127) // 128) * 128
    p["w6"] = jnp.pad(w6, ((0, 0), (0, n_pad - out_dim))).astype(wdtype)
    p["b6"] = jnp.pad(b6, (0, n_pad - out_dim), constant_values=-1e30)
    return p


@functools.partial(jax.jit, static_argnames=("out_dim",))
def deepspeech_forward(params, x, prev_h, prev_c, *, out_dim):
    B, T, F = x.shape
    H = params["w2"].shape[0]
    k_pad = params["w1"].shape[0]

    h = x.reshape(B * T, F)
    if k_pad != F:
        h = jnp.pad(h, ((0, 0), (0, k_pad - F)))      # match zero-padded w1 rows
    h = h.astype(jnp.bfloat16)                        # bf16 activations end-to-end
    h = linear(h, params["w1"], params["b1"], apply_threshold=True)
    h = linear(h, params["w2"], params["b2"], apply_threshold=True)
    h = linear(h, params["w3"], params["b3"], apply_threshold=True)

    # LSTM input projection (the matmul hot path) via the fused linear kernel;
    # result stays batch-first bf16 (B, T, 4H) — no host transposes, half the
    # HBM traffic into the recurrence.
    xw = linear(h, params["w_ih_t"], params["b_lstm"]).reshape(B, T, 4 * H)
    hs, new_h, new_c = lstm(xw, params["w_hh_t"], prev_h, prev_c)

    h = linear(hs.reshape(B * T, H), params["w5"], params["b5"],
               apply_threshold=True)
    out = linear_logsoftmax(h, params["w6"], params["b6"])[:, :out_dim]
    return out.reshape(B, T, out_dim), (new_h, new_c)


if __name__ == "__main__":
    # Real module uses in_dim=(9+1+9)*26=494, hidden=2048, out=29.
    # Run at small-but-consistent shapes: keep in_dim=494 and out=29, shrink hidden.
    B, T = 2, 8
    IN_DIM = (9 + 1 + 9) * 26   # 494
    HIDDEN = 256
    OUT_DIM = 29

    key = jax.random.PRNGKey(0)
    k_x, k_h, k_c, k_p = jax.random.split(key, 4)
    x = jax.random.normal(k_x, (B, T, IN_DIM), jnp.float32)
    prev_h = jax.random.normal(k_h, (B, HIDDEN), jnp.float32)
    prev_c = jax.random.normal(k_c, (B, HIDDEN), jnp.float32)
    params = init_params(k_p, IN_DIM, HIDDEN, OUT_DIM)

    logp, (new_h, new_c) = deepspeech_forward(params, x, prev_h, prev_c,
                                              out_dim=OUT_DIM)
    jax.block_until_ready((logp, new_h, new_c))

    assert logp.shape == (B, T, OUT_DIM)
    assert new_h.shape == (B, HIDDEN) and new_c.shape == (B, HIDDEN)
    print("KERNEL_OK")
</pallas_src>

<mosaic_0001>
module attributes {stable_mosaic.version = 11 : i64} {
  func.func @_linear_kernel(%arg0: i32, %arg1: i32, %arg2: memref<16x512xbf16, #tpu.memory_space<vmem>>, %arg3: memref<512x256xbf16, #tpu.memory_space<vmem>>, %arg4: memref<1x256xf32, #tpu.memory_space<vmem>>, %arg5: memref<16x256xbf16, #tpu.memory_space<vmem>>) attributes {dimension_semantics = [#tpu.dimension_semantics<parallel>, #tpu.dimension_semantics<parallel>], iteration_bounds = array<i64: 1, 1>, scalar_prefetch = 0 : i64, scratch_operands = 0 : i64, tpu.core_type = #tpu.core_type<tc>, window_params = [{transform_indices = @transform_0, window_bounds = array<i64: 16, 512>}, {pipeline_mode = #tpu.pipeline_mode<synchronous>, transform_indices = @transform_1, window_bounds = array<i64: 512, 256>}, {pipeline_mode = #tpu.pipeline_mode<synchronous>, transform_indices = @transform_2, window_bounds = array<i64: 1, 256>}, {transform_indices = @transform_3, window_bounds = array<i64: 16, 256>}]} {
    %c0 = arith.constant 0 : index
    %c0_0 = arith.constant 0 : index
    %0 = vector.load %arg2[%c0, %c0_0] : memref<16x512xbf16, #tpu.memory_space<vmem>>, vector<16x512xbf16>
    %c0_1 = arith.constant 0 : index
    %c0_2 = arith.constant 0 : index
    %1 = vector.load %arg3[%c0_1, %c0_2] : memref<512x256xbf16, #tpu.memory_space<vmem>>, vector<512x256xbf16>
    %cst = arith.constant dense<0.000000e+00> : vector<16x256xf32>
    %2 = tpu.matmul %0, %1, %cst {dimension_numbers = #tpu.dot_dimension_numbers<[1], [0], [0], [1], [0, 0, 1, 1], [], []>} : vector<16x512xbf16>, vector<512x256xbf16>, vector<16x256xf32> -> vector<16x256xf32>
    %c0_3 = arith.constant 0 : index
    %c0_4 = arith.constant 0 : index
    %3 = vector.load %arg4[%c0_3, %c0_4] : memref<1x256xf32, #tpu.memory_space<vmem>>, vector<1x256xf32>
    %4 = vector.broadcast %3 : vector<1x256xf32> to vector<16x256xf32>
    %5 = arith.addf %2, %4 : vector<16x256xf32>
    %cst_5 = arith.constant 0.000000e+00 : f32
    %6 = vector.broadcast %cst_5 : f32 to vector<16x256xf32>
    %7 = arith.cmpf ogt, %5, %6 : vector<16x256xf32>
    %cst_6 = arith.constant 2.000000e+01 : f32
    %8 = vector.broadcast %cst_6 : f32 to vector<16x256xf32>
    %9 = arith.select %7, %5, %8 : vector<16x256xi1>, vector<16x256xf32>
    %10 = arith.truncf %9 : vector<16x256xf32> to vector<16x256xbf16>
    %c0_7 = arith.constant 0 : index
    %c0_8 = arith.constant 0 : index
    %11 = vector.load %arg5[%c0_7, %c0_8] : memref<16x256xbf16, #tpu.memory_space<vmem>>, vector<16x256xbf16>
    tpu.vector_store %arg5[%c0_7, %c0_8], %10 {strides = array<i32>} : memref<16x256xbf16, #tpu.memory_space<vmem>>, vector<16x256xbf16>,
    return
  }
  func.func @transform_0(%arg0: i32, %arg1: i32) -> (i32, i32) {
    %c0_i32 = arith.constant 0 : i32
    %c0_i32_0 = arith.constant 0 : i32
    return %arg1, %c0_i32 : i32, i32
  }
  func.func @transform_1(%arg0: i32, %arg1: i32) -> (i32, i32) {
    %c0_i32 = arith.constant 0 : i32
    %c0_i32_0 = arith.constant 0 : i32
    return %c0_i32, %arg0 : i32, i32
  }
  func.func @transform_2(%arg0: i32, %arg1: i32) -> (i32, i32) {
    %c0_i32 = arith.constant 0 : i32
    %c0_i32_0 = arith.constant 0 : i32
    return %c0_i32, %arg0 : i32, i32
  }
  func.func @transform_3(%arg0: i32, %arg1: i32) -> (i32, i32) {
    %c0_i32 = arith.constant 0 : i32
    return %arg1, %arg0 : i32, i32
  }
}

module attributes {stable_mosaic.version = 11 : i64} {
  func.func @_linear_kernel(%arg0: i32, %arg1: i32, %arg2: memref<16x256xbf16, #tpu.memory_space<vmem>>, %arg3: memref<256x256xbf16, #tpu.memory_space<vmem>>, %arg4: memref<1x256xf32, #tpu.memory_space<vmem>>, %arg5: memref<16x256xbf16, #tpu.memory_space<vmem>>) attributes {dimension_semantics = [#tpu.dimension_semantics<parallel>, #tpu.dimension_semantics<parallel>], iteration_bounds = array<i64: 1, 1>, scalar_prefetch = 0 : i64, scratch_operands = 0 : i64, tpu.core_type = #tpu.core_type<tc>, window_params = [{transform_indices = @transform_0, window_bounds = array<i64: 16, 256>}, {pipeline_mode = #tpu.pipeline_mode<synchronous>, transform_indices = @transform_1, window_bounds = array<i64: 256, 256>}, {pipeline_mode = #tpu.pipeline_mode<synchronous>, transform_indices = @transform_2, window_bounds = array<i64: 1, 256>}, {transform_indices = @transform_3, window_bounds = array<i64: 16, 256>}]} {
    %c0 = arith.constant 0 : index
    %c0_0 = arith.constant 0 : index
    %0 = vector.load %arg2[%c0, %c0_0] : memref<16x256xbf16, #tpu.memory_space<vmem>>, vector<16x256xbf16>
    %c0_1 = arith.constant 0 : index
    %c0_2 = arith.constant 0 : index
    %1 = vector.load %arg3[%c0_1, %c0_2] : memref<256x256xbf16, #tpu.memory_space<vmem>>, vector<256x256xbf16>
    %cst = arith.constant dense<0.000000e+00> : vector<16x256xf32>
    %2 = tpu.matmul %0, %1, %cst {dimension_numbers = #tpu.dot_dimension_numbers<[1], [0], [0], [1], [0, 0, 1, 1], [], []>} : vector<16x256xbf16>, vector<256x256xbf16>, vector<16x256xf32> -> vector<16x256xf32>
    %c0_3 = arith.constant 0 : index
    %c0_4 = arith.constant 0 : index
    %3 = vector.load %arg4[%c0_3, %c0_4] : memref<1x256xf32, #tpu.memory_space<vmem>>, vector<1x256xf32>
    %4 = vector.broadcast %3 : vector<1x256xf32> to vector<16x256xf32>
    %5 = arith.addf %2, %4 : vector<16x256xf32>
    %cst_5 = arith.constant 0.000000e+00 : f32
    %6 = vector.broadcast %cst_5 : f32 to vector<16x256xf32>
    %7 = arith.cmpf ogt, %5, %6 : vector<16x256xf32>
    %cst_6 = arith.constant 2.000000e+01 : f32
    %8 = vector.broadcast %cst_6 : f32 to vector<16x256xf32>
    %9 = arith.select %7, %5, %8 : vector<16x256xi1>, vector<16x256xf32>
    %10 = arith.truncf %9 : vector<16x256xf32> to vector<16x256xbf16>
    %c0_7 = arith.constant 0 : index
    %c0_8 = arith.constant 0 : index
    %11 = vector.load %arg5[%c0_7, %c0_8] : memref<16x256xbf16, #tpu.memory_space<vmem>>, vector<16x256xbf16>
    tpu.vector_store %arg5[%c0_7, %c0_8], %10 {strides = array<i32>} : memref<16x256xbf16, #tpu.memory_space<vmem>>, vector<16x256xbf16>,
    return
  }
  func.func @transform_0(%arg0: i32, %arg1: i32) -> (i32, i32) {
    %c0_i32 = arith.constant 0 : i32
    %c0_i32_0 = arith.constant 0 : i32
    return %arg1, %c0_i32 : i32, i32
  }
  func.func @transform_1(%arg0: i32, %arg1: i32) -> (i32, i32) {
    %c0_i32 = arith.constant 0 : i32
    %c0_i32_0 = arith.constant 0 : i32
    return %c0_i32, %arg0 : i32, i32
  }
  func.func @transform_2(%arg0: i32, %arg1: i32) -> (i32, i32) {
    %c0_i32 = arith.constant 0 : i32
    %c0_i32_0 = arith.constant 0 : i32
    return %c0_i32, %arg0 : i32, i32
  }
  func.func @transform_3(%arg0: i32, %arg1: i32) -> (i32, i32) {
    %c0_i32 = arith.constant 0 : i32
    return %arg1, %arg0 : i32, i32
  }
}

module attributes {stable_mosaic.version = 11 : i64} {
  func.func @_linear_kernel(%arg0: i32, %arg1: i32, %arg2: memref<16x256xbf16, #tpu.memory_space<vmem>>, %arg3: memref<256x256xbf16, #tpu.memory_space<vmem>>, %arg4: memref<1x256xf32, #tpu.memory_space<vmem>>, %arg5: memref<16x256xbf16, #tpu.memory_space<vmem>>) attributes {dimension_semantics = [#tpu.dimension_semantics<parallel>, #tpu.dimension_semantics<parallel>], iteration_bounds = array<i64: 1, 1>, scalar_prefetch = 0 : i64, scratch_operands = 0 : i64, tpu.core_type = #tpu.core_type<tc>, window_params = [{transform_indices = @transform_0, window_bounds = array<i64: 16, 256>}, {pipeline_mode = #tpu.pipeline_mode<synchronous>, transform_indices = @transform_1, window_bounds = array<i64: 256, 256>}, {pipeline_mode = #tpu.pipeline_mode<synchronous>, transform_indices = @transform_2, window_bounds = array<i64: 1, 256>}, {transform_indices = @transform_3, window_bounds = array<i64: 16, 256>}]} {
    %c0 = arith.constant 0 : index
    %c0_0 = arith.constant 0 : index
    %0 = vector.load %arg2[%c0, %c0_0] : memref<16x256xbf16, #tpu.memory_space<vmem>>, vector<16x256xbf16>
    %c0_1 = arith.constant 0 : index
    %c0_2 = arith.constant 0 : index
    %1 = vector.load %arg3[%c0_1, %c0_2] : memref<256x256xbf16, #tpu.memory_space<vmem>>, vector<256x256xbf16>
    %cst = arith.constant dense<0.000000e+00> : vector<16x256xf32>
    %2 = tpu.matmul %0, %1, %cst {dimension_numbers = #tpu.dot_dimension_numbers<[1], [0], [0], [1], [0, 0, 1, 1], [], []>} : vector<16x256xbf16>, vector<256x256xbf16>, vector<16x256xf32> -> vector<16x256xf32>
    %c0_3 = arith.constant 0 : index
    %c0_4 = arith.constant 0 : index
    %3 = vector.load %arg4[%c0_3, %c0_4] : memref<1x256xf32, #tpu.memory_space<vmem>>, vector<1x256xf32>
    %4 = vector.broadcast %3 : vector<1x256xf32> to vector<16x256xf32>
    %5 = arith.addf %2, %4 : vector<16x256xf32>
    %cst_5 = arith.constant 0.000000e+00 : f32
    %6 = vector.broadcast %cst_5 : f32 to vector<16x256xf32>
    %7 = arith.cmpf ogt, %5, %6 : vector<16x256xf32>
    %cst_6 = arith.constant 2.000000e+01 : f32
    %8 = vector.broadcast %cst_6 : f32 to vector<16x256xf32>
    %9 = arith.select %7, %5, %8 : vector<16x256xi1>, vector<16x256xf32>
    %10 = arith.truncf %9 : vector<16x256xf32> to vector<16x256xbf16>
    %c0_7 = arith.constant 0 : index
    %c0_8 = arith.constant 0 : index
    %11 = vector.load %arg5[%c0_7, %c0_8] : memref<16x256xbf16, #tpu.memory_space<vmem>>, vector<16x256xbf16>
    tpu.vector_store %arg5[%c0_7, %c0_8], %10 {strides = array<i32>} : memref<16x256xbf16, #tpu.memory_space<vmem>>, vector<16x256xbf16>,
    return
  }
  func.func @transform_0(%arg0: i32, %arg1: i32) -> (i32, i32) {
    %c0_i32 = arith.constant 0 : i32
    %c0_i32_0 = arith.constant 0 : i32
    return %arg1, %c0_i32 : i32, i32
  }
  func.func @transform_1(%arg0: i32, %arg1: i32) -> (i32, i32) {
    %c0_i32 = arith.constant 0 : i32
    %c0_i32_0 = arith.constant 0 : i32
    return %c0_i32, %arg0 : i32, i32
  }
  func.func @transform_2(%arg0: i32, %arg1: i32) -> (i32, i32) {
    %c0_i32 = arith.constant 0 : i32
    %c0_i32_0 = arith.constant 0 : i32
    return %c0_i32, %arg0 : i32, i32
  }
  func.func @transform_3(%arg0: i32, %arg1: i32) -> (i32, i32) {
    %c0_i32 = arith.constant 0 : i32
    return %arg1, %arg0 : i32, i32
  }
}

module attributes {stable_mosaic.version = 11 : i64} {
  func.func @_linear_kernel(%arg0: i32, %arg1: i32, %arg2: memref<16x256xbf16, #tpu.memory_space<vmem>>, %arg3: memref<256x1024xbf16, #tpu.memory_space<vmem>>, %arg4: memref<1x1024xf32, #tpu.memory_space<vmem>>, %arg5: memref<16x1024xbf16, #tpu.memory_space<vmem>>) attributes {dimension_semantics = [#tpu.dimension_semantics<parallel>, #tpu.dimension_semantics<parallel>], iteration_bounds = array<i64: 1, 1>, scalar_prefetch = 0 : i64, scratch_operands = 0 : i64, tpu.core_type = #tpu.core_type<tc>, window_params = [{transform_indices = @transform_0, window_bounds = array<i64: 16, 256>}, {pipeline_mode = #tpu.pipeline_mode<synchronous>, transform_indices = @transform_1, window_bounds = array<i64: 256, 1024>}, {pipeline_mode = #tpu.pipeline_mode<synchronous>, transform_indices = @transform_2, window_bounds = array<i64: 1, 1024>}, {transform_indices = @transform_3, window_bounds = array<i64: 16, 1024>}]} {
    %c0 = arith.constant 0 : index
    %c0_0 = arith.constant 0 : index
    %0 = vector.load %arg2[%c0, %c0_0] : memref<16x256xbf16, #tpu.memory_space<vmem>>, vector<16x256xbf16>
    %c0_1 = arith.constant 0 : index
    %c0_2 = arith.constant 0 : index
    %1 = vector.load %arg3[%c0_1, %c0_2] : memref<256x1024xbf16, #tpu.memory_space<vmem>>, vector<256x1024xbf16>
    %cst = arith.constant dense<0.000000e+00> : vector<16x1024xf32>
    %2 = tpu.matmul %0, %1, %cst {dimension_numbers = #tpu.dot_dimension_numbers<[1], [0], [0], [1], [0, 0, 1, 1], [], []>} : vector<16x256xbf16>, vector<256x1024xbf16>, vector<16x1024xf32> -> vector<16x1024xf32>
    %c0_3 = arith.constant 0 : index
    %c0_4 = arith.constant 0 : index
    %3 = vector.load %arg4[%c0_3, %c0_4] : memref<1x1024xf32, #tpu.memory_space<vmem>>, vector<1x1024xf32>
    %4 = vector.broadcast %3 : vector<1x1024xf32> to vector<16x1024xf32>
    %5 = arith.addf %2, %4 : vector<16x1024xf32>
    %6 = arith.truncf %5 : vector<16x1024xf32> to vector<16x1024xbf16>
    %c0_5 = arith.constant 0 : index
    %c0_6 = arith.constant 0 : index
    %7 = vector.load %arg5[%c0_5, %c0_6] : memref<16x1024xbf16, #tpu.memory_space<vmem>>, vector<16x1024xbf16>
    tpu.vector_store %arg5[%c0_5, %c0_6], %6 {strides = array<i32>} : memref<16x1024xbf16, #tpu.memory_space<vmem>>, vector<16x1024xbf16>,
    return
  }
  func.func @transform_0(%arg0: i32, %arg1: i32) -> (i32, i32) {
    %c0_i32 = arith.constant 0 : i32
    %c0_i32_0 = arith.constant 0 : i32
    return %arg1, %c0_i32 : i32, i32
  }
  func.func @transform_1(%arg0: i32, %arg1: i32) -> (i32, i32) {
    %c0_i32 = arith.constant 0 : i32
    %c0_i32_0 = arith.constant 0 : i32
    return %c0_i32, %arg0 : i32, i32
  }
  func.func @transform_2(%arg0: i32, %arg1: i32) -> (i32, i32) {
    %c0_i32 = arith.constant 0 : i32
    %c0_i32_0 = arith.constant 0 : i32
    return %c0_i32, %arg0 : i32, i32
  }
  func.func @transform_3(%arg0: i32, %arg1: i32) -> (i32, i32) {
    %c0_i32 = arith.constant 0 : i32
    return %arg1, %arg0 : i32, i32
  }
}

module attributes {stable_mosaic.version = 11 : i64} {
  func.func @_linear_kernel(%arg0: i32, %arg1: i32, %arg2: memref<16x256xbf16, #tpu.memory_space<vmem>>, %arg3: memref<256x256xbf16, #tpu.memory_space<vmem>>, %arg4: memref<1x256xf32, #tpu.memory_space<vmem>>, %arg5: memref<16x256xbf16, #tpu.memory_space<vmem>>) attributes {dimension_semantics = [#tpu.dimension_semantics<parallel>, #tpu.dimension_semantics<parallel>], iteration_bounds = array<i64: 1, 1>, scalar_prefetch = 0 : i64, scratch_operands = 0 : i64, tpu.core_type = #tpu.core_type<tc>, window_params = [{transform_indices = @transform_0, window_bounds = array<i64: 16, 256>}, {pipeline_mode = #tpu.pipeline_mode<synchronous>, transform_indices = @transform_1, window_bounds = array<i64: 256, 256>}, {pipeline_mode = #tpu.pipeline_mode<synchronous>, transform_indices = @transform_2, window_bounds = array<i64: 1, 256>}, {transform_indices = @transform_3, window_bounds = array<i64: 16, 256>}]} {
    %c0 = arith.constant 0 : index
    %c0_0 = arith.constant 0 : index
    %0 = vector.load %arg2[%c0, %c0_0] : memref<16x256xbf16, #tpu.memory_space<vmem>>, vector<16x256xbf16>
    %c0_1 = arith.constant 0 : index
    %c0_2 = arith.constant 0 : index
    %1 = vector.load %arg3[%c0_1, %c0_2] : memref<256x256xbf16, #tpu.memory_space<vmem>>, vector<256x256xbf16>
    %cst = arith.constant dense<0.000000e+00> : vector<16x256xf32>
    %2 = tpu.matmul %0, %1, %cst {dimension_numbers = #tpu.dot_dimension_numbers<[1], [0], [0], [1], [0, 0, 1, 1], [], []>} : vector<16x256xbf16>, vector<256x256xbf16>, vector<16x256xf32> -> vector<16x256xf32>
    %c0_3 = arith.constant 0 : index
    %c0_4 = arith.constant 0 : index
    %3 = vector.load %arg4[%c0_3, %c0_4] : memref<1x256xf32, #tpu.memory_space<vmem>>, vector<1x256xf32>
    %4 = vector.broadcast %3 : vector<1x256xf32> to vector<16x256xf32>
    %5 = arith.addf %2, %4 : vector<16x256xf32>
    %cst_5 = arith.constant 0.000000e+00 : f32
    %6 = vector.broadcast %cst_5 : f32 to vector<16x256xf32>
    %7 = arith.cmpf ogt, %5, %6 : vector<16x256xf32>
    %cst_6 = arith.constant 2.000000e+01 : f32
    %8 = vector.broadcast %cst_6 : f32 to vector<16x256xf32>
    %9 = arith.select %7, %5, %8 : vector<16x256xi1>, vector<16x256xf32>
    %10 = arith.truncf %9 : vector<16x256xf32> to vector<16x256xbf16>
    %c0_7 = arith.constant 0 : index
    %c0_8 = arith.constant 0 : index
    %11 = vector.load %arg5[%c0_7, %c0_8] : memref<16x256xbf16, #tpu.memory_space<vmem>>, vector<16x256xbf16>
    tpu.vector_store %arg5[%c0_7, %c0_8], %10 {strides = array<i32>} : memref<16x256xbf16, #tpu.memory_space<vmem>>, vector<16x256xbf16>,
    return
  }
  func.func @transform_0(%arg0: i32, %arg1: i32) -> (i32, i32) {
    %c0_i32 = arith.constant 0 : i32
    %c0_i32_0 = arith.constant 0 : i32
    return %arg1, %c0_i32 : i32, i32
  }
  func.func @transform_1(%arg0: i32, %arg1: i32) -> (i32, i32) {
    %c0_i32 = arith.constant 0 : i32
    %c0_i32_0 = arith.constant 0 : i32
    return %c0_i32, %arg0 : i32, i32
  }
  func.func @transform_2(%arg0: i32, %arg1: i32) -> (i32, i32) {
    %c0_i32 = arith.constant 0 : i32
    %c0_i32_0 = arith.constant 0 : i32
    return %c0_i32, %arg0 : i32, i32
  }
  func.func @transform_3(%arg0: i32, %arg1: i32) -> (i32, i32) {
    %c0_i32 = arith.constant 0 : i32
    return %arg1, %arg0 : i32, i32
  }
}

module attributes {stable_mosaic.version = 11 : i64} {
  func.func @_linear_logsoftmax_kernel(%arg0: i32, %arg1: memref<16x256xbf16, #tpu.memory_space<vmem>>, %arg2: memref<256x128xbf16, #tpu.memory_space<vmem>>, %arg3: memref<1x128xf32, #tpu.memory_space<vmem>>, %arg4: memref<16x128xf32, #tpu.memory_space<vmem>>) attributes {dimension_semantics = [#tpu.dimension_semantics<parallel>], iteration_bounds = array<i64: 1>, scalar_prefetch = 0 : i64, scratch_operands = 0 : i64, tpu.core_type = #tpu.core_type<tc>, window_params = [{transform_indices = @transform_0, window_bounds = array<i64: 16, 256>}, {pipeline_mode = #tpu.pipeline_mode<synchronous>, transform_indices = @transform_1, window_bounds = array<i64: 256, 128>}, {pipeline_mode = #tpu.pipeline_mode<synchronous>, transform_indices = @transform_2, window_bounds = array<i64: 1, 128>}, {transform_indices = @transform_3, window_bounds = array<i64: 16, 128>}]} {
    %c0 = arith.constant 0 : index
    %c0_0 = arith.constant 0 : index
    %0 = vector.load %arg1[%c0, %c0_0] : memref<16x256xbf16, #tpu.memory_space<vmem>>, vector<16x256xbf16>
    %c0_1 = arith.constant 0 : index
    %c0_2 = arith.constant 0 : index
    %1 = vector.load %arg2[%c0_1, %c0_2] : memref<256x128xbf16, #tpu.memory_space<vmem>>, vector<256x128xbf16>
    %cst = arith.constant dense<0.000000e+00> : vector<16x128xf32>
    %2 = tpu.matmul %0, %1, %cst {dimension_numbers = #tpu.dot_dimension_numbers<[1], [0], [0], [1], [0, 0, 1, 1], [], []>} : vector<16x256xbf16>, vector<256x128xbf16>, vector<16x128xf32> -> vector<16x128xf32>
    %c0_3 = arith.constant 0 : index
    %c0_4 = arith.constant 0 : index
    %3 = vector.load %arg3[%c0_3, %c0_4] : memref<1x128xf32, #tpu.memory_space<vmem>>, vector<1x128xf32>
    %4 = vector.broadcast %3 : vector<1x128xf32> to vector<16x128xf32>
    %5 = arith.addf %2, %4 : vector<16x128xf32>
    %cst_5 = arith.constant dense<0xFF800000> : vector<16xf32>
    %6 = vector.multi_reduction <maximumf>, %5, %cst_5 [1] : vector<16x128xf32> to vector<16xf32>
    %7 = vector.shape_cast %6 : vector<16xf32> to vector<16x1xf32>
    %8 = vector.broadcast %7 : vector<16x1xf32> to vector<16x128xf32>
    %9 = arith.subf %5, %8 : vector<16x128xf32>
    %10 = math.exp %9 : vector<16x128xf32>
    %cst_6 = arith.constant dense<0.000000e+00> : vector<16xf32>
    %11 = vector.multi_reduction <add>, %10, %cst_6 [1] : vector<16x128xf32> to vector<16xf32>
    %12 = vector.shape_cast %11 : vector<16xf32> to vector<16x1xf32>
    %13 = math.log %12 : vector<16x1xf32>
    %14 = vector.broadcast %7 : vector<16x1xf32> to vector<16x128xf32>
    %15 = arith.subf %5, %14 : vector<16x128xf32>
    %16 = vector.broadcast %13 : vector<16x1xf32> to vector<16x128xf32>
    %17 = arith.subf %15, %16 : vector<16x128xf32>
    %c0_7 = arith.constant 0 : index
    %c0_8 = arith.constant 0 : index
    %18 = vector.load %arg4[%c0_7, %c0_8] : memref<16x128xf32, #tpu.memory_space<vmem>>, vector<16x128xf32>
    tpu.vector_store %arg4[%c0_7, %c0_8], %17 {strides = array<i32>} : memref<16x128xf32, #tpu.memory_space<vmem>>, vector<16x128xf32>,
    return
  }
  func.func @transform_0(%arg0: i32) -> (i32, i32) {
    %c0_i32 = arith.constant 0 : i32
    %c0_i32_0 = arith.constant 0 : i32
    return %arg0, %c0_i32 : i32, i32
  }
  func.func @transform_1(%arg0: i32) -> (i32, i32) {
    %c0_i32 = arith.constant 0 : i32
    %c0_i32_0 = arith.constant 0 : i32
    %c0_i32_1 = arith.constant 0 : i32
    return %c0_i32, %c0_i32_0 : i32, i32
  }
  func.func @transform_2(%arg0: i32) -> (i32, i32) {
    %c0_i32 = arith.constant 0 : i32
    %c0_i32_0 = arith.constant 0 : i32
    %c0_i32_1 = arith.constant 0 : i32
    return %c0_i32, %c0_i32_0 : i32, i32
  }
  func.func @transform_3(%arg0: i32) -> (i32, i32) {
    %c0_i32 = arith.constant 0 : i32
    %c0_i32_0 = arith.constant 0 : i32
    return %arg0, %c0_i32 : i32, i32
  }
}

module attributes {stable_mosaic.version = 11 : i64} {
  func.func @_lstm_kernel(%arg0: i32, %arg1: memref<2x8x1024xbf16, #tpu.memory_space<vmem>>, %arg2: memref<256x1024xbf16, #tpu.memory_space<vmem>>, %arg3: memref<2x256xf32, #tpu.memory_space<vmem>>, %arg4: memref<2x256xf32, #tpu.memory_space<vmem>>, %arg5: memref<2x8x256xbf16, #tpu.memory_space<vmem>>, %arg6: memref<2x256xf32, #tpu.memory_space<vmem>>, %arg7: memref<2x256xf32, #tpu.memory_space<vmem>>, %arg8: memref<2x256xf32, #tpu.memory_space<vmem>>, %arg9: memref<2x256xf32, #tpu.memory_space<vmem>>) attributes {dimension_semantics = [#tpu.dimension_semantics<arbitrary>], iteration_bounds = array<i64: 1>, scalar_prefetch = 0 : i64, scratch_operands = 2 : i64, tpu.core_type = #tpu.core_type<tc>, window_params = [{transform_indices = @transform_0, window_bounds = array<i64: 2, 8, 1024>}, {pipeline_mode = #tpu.pipeline_mode<synchronous>, transform_indices = @transform_1, window_bounds = array<i64: 256, 1024>}, {pipeline_mode = #tpu.pipeline_mode<synchronous>, transform_indices = @transform_2, window_bounds = array<i64: 2, 256>}, {pipeline_mode = #tpu.pipeline_mode<synchronous>, transform_indices = @transform_3, window_bounds = array<i64: 2, 256>}, {transform_indices = @transform_4, window_bounds = array<i64: 2, 8, 256>}, {pipeline_mode = #tpu.pipeline_mode<synchronous>, transform_indices = @transform_5, window_bounds = array<i64: 2, 256>}, {pipeline_mode = #tpu.pipeline_mode<synchronous>, transform_indices = @transform_6, window_bounds = array<i64: 2, 256>}]} {
    %c0_i32 = arith.constant 0 : i32
    %0 = arith.cmpi eq, %arg0, %c0_i32 : i32
    %1 = arith.extui %0 : i1 to i32
    %c0_i32_0 = arith.constant 0 : i32
    %2 = arith.cmpi ne, %1, %c0_i32_0 : i32
    scf.if %2 {
      %c0_60 = arith.constant 0 : index
      %c0_61 = arith.constant 0 : index
      %227 = vector.load %arg3[%c0_60, %c0_61] : memref<2x256xf32, #tpu.memory_space<vmem>>, vector<2x256xf32>
      %c0_62 = arith.constant 0 : index
      %c0_63 = arith.constant 0 : index
      %228 = vector.load %arg8[%c0_62, %c0_63] : memref<2x256xf32, #tpu.memory_space<vmem>>, vector<2x256xf32>
      tpu.vector_store %arg8[%c0_62, %c0_63], %227 {strides = array<i32>} : memref<2x256xf32, #tpu.memory_space<vmem>>, vector<2x256xf32>,
      %c0_64 = arith.constant 0 : index
      %c0_65 = arith.constant 0 : index
      %229 = vector.load %arg4[%c0_64, %c0_65] : memref<2x256xf32, #tpu.memory_space<vmem>>, vector<2x256xf32>
      %c0_66 = arith.constant 0 : index
      %c0_67 = arith.constant 0 : index
      %230 = vector.load %arg9[%c0_66, %c0_67] : memref<2x256xf32, #tpu.memory_space<vmem>>, vector<2x256xf32>
      tpu.vector_store %arg9[%c0_66, %c0_67], %229 {strides = array<i32>} : memref<2x256xf32, #tpu.memory_space<vmem>>, vector<2x256xf32>,
    } else {
    }
    %c0 = arith.constant 0 : index
    %c0_1 = arith.constant 0 : index
    %3 = vector.load %arg2[%c0, %c0_1] : memref<256x1024xbf16, #tpu.memory_space<vmem>>, vector<256x1024xbf16>
    %c0_2 = arith.constant 0 : index
    %c0_3 = arith.constant 0 : index
    %4 = vector.load %arg8[%c0_2, %c0_3] : memref<2x256xf32, #tpu.memory_space<vmem>>, vector<2x256xf32>
    %c0_4 = arith.constant 0 : index
    %c0_5 = arith.constant 0 : index
    %5 = vector.load %arg9[%c0_4, %c0_5] : memref<2x256xf32, #tpu.memory_space<vmem>>, vector<2x256xf32>
    %c0_i32_6 = arith.constant 0 : i32
    %c0_7 = arith.constant 0 : index
    %6 = arith.index_cast %c0_i32_6 : i32 to index
    %c0_8 = arith.constant 0 : index
    %7 = vector.load %arg1[%c0_7, %6, %c0_8] : memref<2x8x1024xbf16, #tpu.memory_space<vmem>>, vector<2x1x1024xbf16>
    %8 = vector.shape_cast %7 : vector<2x1x1024xbf16> to vector<2x1024xbf16>
    %9 = arith.extf %8 : vector<2x1024xbf16> to vector<2x1024xf32>
    %10 = arith.truncf %4 : vector<2x256xf32> to vector<2x256xbf16>
    %cst = arith.constant dense<0.000000e+00> : vector<2x1024xf32>
    %11 = tpu.matmul %10, %3, %cst {dimension_numbers = #tpu.dot_dimension_numbers<[1], [0], [0], [1], [0, 0, 1, 1], [], []>} : vector<2x256xbf16>, vector<256x1024xbf16>, vector<2x1024xf32> -> vector<2x1024xf32>
    %12 = arith.addf %9, %11 : vector<2x1024xf32>
    %13 = vector.extract_strided_slice %12 {offsets = [0, 0], sizes = [2, 768], strides = [1, 1]} : vector<2x1024xf32> to vector<2x768xf32>
    %14 = arith.negf %13 : vector<2x768xf32>
    %15 = math.exp %14 : vector<2x768xf32>
    %cst_9 = arith.constant 1.000000e+00 : f32
    %16 = vector.broadcast %cst_9 : f32 to vector<2x768xf32>
    %17 = arith.addf %16, %15 : vector<2x768xf32>
    %18 = arith.divf %16, %17 : vector<2x768xf32>
    %19 = vector.extract_strided_slice %12 {offsets = [0, 768], sizes = [2, 256], strides = [1, 1]} : vector<2x1024xf32> to vector<2x256xf32>
    %20 = math.tanh %19 : vector<2x256xf32>
    %21 = vector.extract_strided_slice %18 {offsets = [0, 0], sizes = [2, 256], strides = [1, 1]} : vector<2x768xf32> to vector<2x256xf32>
    %22 = vector.extract_strided_slice %18 {offsets = [0, 256], sizes = [2, 256], strides = [1, 1]} : vector<2x768xf32> to vector<2x256xf32>
    %23 = vector.extract_strided_slice %18 {offsets = [0, 512], sizes = [2, 256], strides = [1, 1]} : vector<2x768xf32> to vector<2x256xf32>
    %24 = arith.mulf %22, %5 : vector<2x256xf32>
    %25 = arith.mulf %21, %20 : vector<2x256xf32>
    %26 = arith.addf %24, %25 : vector<2x256xf32>
    %27 = math.tanh %26 : vector<2x256xf32>
    %28 = arith.mulf %23, %27 : vector<2x256xf32>
    %29 = vector.shape_cast %28 : vector<2x256xf32> to vector<2x1x256xf32>
    %30 = arith.truncf %29 : vector<2x1x256xf32> to vector<2x1x256xbf16>
    %c0_10 = arith.constant 0 : index
    %31 = arith.index_cast %c0_i32_6 : i32 to index
    %c0_11 = arith.constant 0 : index
    %32 = vector.load %arg5[%c0_10, %31, %c0_11] : memref<2x8x256xbf16, #tpu.memory_space<vmem>>, vector<2x1x256xbf16>
    tpu.vector_store %arg5[%c0_10, %31, %c0_11], %30 {strides = array<i32>} : memref<2x8x256xbf16, #tpu.memory_space<vmem>>, vector<2x1x256xbf16>,
    %c1_i32 = arith.constant 1 : i32
    %c0_12 = arith.constant 0 : index
    %33 = arith.index_cast %c1_i32 : i32 to index
    %c0_13 = arith.constant 0 : index
    %34 = vector.load %arg1[%c0_12, %33, %c0_13] : memref<2x8x1024xbf16, #tpu.memory_space<vmem>>, vector<2x1x1024xbf16>
    %35 = vector.shape_cast %34 : vector<2x1x1024xbf16> to vector<2x1024xbf16>
    %36 = arith.extf %35 : vector<2x1024xbf16> to vector<2x1024xf32>
    %37 = arith.truncf %28 : vector<2x256xf32> to vector<2x256xbf16>
    %cst_14 = arith.constant dense<0.000000e+00> : vector<2x1024xf32>
    %38 = tpu.matmul %37, %3, %cst_14 {dimension_numbers = #tpu.dot_dimension_numbers<[1], [0], [0], [1], [0, 0, 1, 1], [], []>} : vector<2x256xbf16>, vector<256x1024xbf16>, vector<2x1024xf32> -> vector<2x1024xf32>
    %39 = arith.addf %36, %38 : vector<2x1024xf32>
    %40 = vector.extract_strided_slice %39 {offsets = [0, 0], sizes = [2, 768], strides = [1, 1]} : vector<2x1024xf32> to vector<2x768xf32>
    %41 = arith.negf %40 : vector<2x768xf32>
    %42 = math.exp %41 : vector<2x768xf32>
    %cst_15 = arith.constant 1.000000e+00 : f32
    %43 = vector.broadcast %cst_15 : f32 to vector<2x768xf32>
    %44 = arith.addf %43, %42 : vector<2x768xf32>
    %45 = arith.divf %43, %44 : vector<2x768xf32>
    %46 = vector.extract_strided_slice %39 {offsets = [0, 768], sizes = [2, 256], strides = [1, 1]} : vector<2x1024xf32> to vector<2x256xf32>
    %47 = math.tanh %46 : vector<2x256xf32>
    %48 = vector.extract_strided_slice %45 {offsets = [0, 0], sizes = [2, 256], strides = [1, 1]} : vector<2x768xf32> to vector<2x256xf32>
    %49 = vector.extract_strided_slice %45 {offsets = [0, 256], sizes = [2, 256], strides = [1, 1]} : vector<2x768xf32> to vector<2x256xf32>
    %50 = vector.extract_strided_slice %45 {offsets = [0, 512], sizes = [2, 256], strides = [1, 1]} : vector<2x768xf32> to vector<2x256xf32>
    %51 = arith.mulf %49, %26 : vector<2x256xf32>
    %52 = arith.mulf %48, %47 : vector<2x256xf32>
    %53 = arith.addf %51, %52 : vector<2x256xf32>
    %54 = math.tanh %53 : vector<2x256xf32>
    %55 = arith.mulf %50, %54 : vector<2x256xf32>
    %56 = vector.shape_cast %55 : vector<2x256xf32> to vector<2x1x256xf32>
    %57 = arith.truncf %56 : vector<2x1x256xf32> to vector<2x1x256xbf16>
    %c0_16 = arith.constant 0 : index
    %58 = arith.index_cast %c1_i32 : i32 to index
    %c0_17 = arith.constant 0 : index
    %59 = vector.load %arg5[%c0_16, %58, %c0_17] : memref<2x8x256xbf16, #tpu.memory_space<vmem>>, vector<2x1x256xbf16>
    tpu.vector_store %arg5[%c0_16, %58, %c0_17], %57 {strides = array<i32>} : memref<2x8x256xbf16, #tpu.memory_space<vmem>>, vector<2x1x256xbf16>,
    %c2_i32 = arith.constant 2 : i32
    %c0_18 = arith.constant 0 : index
    %60 = arith.index_cast %c2_i32 : i32 to index
    %c0_19 = arith.constant 0 : index
    %61 = vector.load %arg1[%c0_18, %60, %c0_19] : memref<2x8x1024xbf16, #tpu.memory_space<vmem>>, vector<2x1x1024xbf16>
    %62 = vector.shape_cast %61 : vector<2x1x1024xbf16> to vector<2x1024xbf16>
    %63 = arith.extf %62 : vector<2x1024xbf16> to vector<2x1024xf32>
    %64 = arith.truncf %55 : vector<2x256xf32> to vector<2x256xbf16>
    %cst_20 = arith.constant dense<0.000000e+00> : vector<2x1024xf32>
    %65 = tpu.matmul %64, %3, %cst_20 {dimension_numbers = #tpu.dot_dimension_numbers<[1], [0], [0], [1], [0, 0, 1, 1], [], []>} : vector<2x256xbf16>, vector<256x1024xbf16>, vector<2x1024xf32> -> vector<2x1024xf32>
    %66 = arith.addf %63, %65 : vector<2x1024xf32>
    %67 = vector.extract_strided_slice %66 {offsets = [0, 0], sizes = [2, 768], strides = [1, 1]} : vector<2x1024xf32> to vector<2x768xf32>
    %68 = arith.negf %67 : vector<2x768xf32>
    %69 = math.exp %68 : vector<2x768xf32>
    %cst_21 = arith.constant 1.000000e+00 : f32
    %70 = vector.broadcast %cst_21 : f32 to vector<2x768xf32>
    %71 = arith.addf %70, %69 : vector<2x768xf32>
    %72 = arith.divf %70, %71 : vector<2x768xf32>
    %73 = vector.extract_strided_slice %66 {offsets = [0, 768], sizes = [2, 256], strides = [1, 1]} : vector<2x1024xf32> to vector<2x256xf32>
    %74 = math.tanh %73 : vector<2x256xf32>
    %75 = vector.extract_strided_slice %72 {offsets = [0, 0], sizes = [2, 256], strides = [1, 1]} : vector<2x768xf32> to vector<2x256xf32>
    %76 = vector.extract_strided_slice %72 {offsets = [0, 256], sizes = [2, 256], strides = [1, 1]} : vector<2x768xf32> to vector<2x256xf32>
    %77 = vector.extract_strided_slice %72 {offsets = [0, 512], sizes = [2, 256], strides = [1, 1]} : vector<2x768xf32> to vector<2x256xf32>
    %78 = arith.mulf %76, %53 : vector<2x256xf32>
    %79 = arith.mulf %75, %74 : vector<2x256xf32>
    %80 = arith.addf %78, %79 : vector<2x256xf32>
    %81 = math.tanh %80 : vector<2x256xf32>
    %82 = arith.mulf %77, %81 : vector<2x256xf32>
    %83 = vector.shape_cast %82 : vector<2x256xf32> to vector<2x1x256xf32>
    %84 = arith.truncf %83 : vector<2x1x256xf32> to vector<2x1x256xbf16>
    %c0_22 = arith.constant 0 : index
    %85 = arith.index_cast %c2_i32 : i32 to index
    %c0_23 = arith.constant 0 : index
    %86 = vector.load %arg5[%c0_22, %85, %c0_23] : memref<2x8x256xbf16, #tpu.memory_space<vmem>>, vector<2x1x256xbf16>
    tpu.vector_store %arg5[%c0_22, %85, %c0_23], %84 {strides = array<i32>} : memref<2x8x256xbf16, #tpu.memory_space<vmem>>, vector<2x1x256xbf16>,
    %c3_i32 = arith.constant 3 : i32
    %c0_24 = arith.constant 0 : index
    %87 = arith.index_cast %c3_i32 : i32 to index
    %c0_25 = arith.constant 0 : index
    %88 = vector.load %arg1[%c0_24, %87, %c0_25] : memref<2x8x1024xbf16, #tpu.memory_space<vmem>>, vector<2x1x1024xbf16>
    %89 = vector.shape_cast %88 : vector<2x1x1024xbf16> to vector<2x1024xbf16>
    %90 = arith.extf %89 : vector<2x1024xbf16> to vector<2x1024xf32>
    %91 = arith.truncf %82 : vector<2x256xf32> to vector<2x256xbf16>
    %cst_26 = arith.constant dense<0.000000e+00> : vector<2x1024xf32>
    %92 = tpu.matmul %91, %3, %cst_26 {dimension_numbers = #tpu.dot_dimension_numbers<[1], [0], [0], [1], [0, 0, 1, 1], [], []>} : vector<2x256xbf16>, vector<256x1024xbf16>, vector<2x1024xf32> -> vector<2x1024xf32>
    %93 = arith.addf %90, %92 : vector<2x1024xf32>
    %94 = vector.extract_strided_slice %93 {offsets = [0, 0], sizes = [2, 768], strides = [1, 1]} : vector<2x1024xf32> to vector<2x768xf32>
    %95 = arith.negf %94 : vector<2x768xf32>
    %96 = math.exp %95 : vector<2x768xf32>
    %cst_27 = arith.constant 1.000000e+00 : f32
    %97 = vector.broadcast %cst_27 : f32 to vector<2x768xf32>
    %98 = arith.addf %97, %96 : vector<2x768xf32>
    %99 = arith.divf %97, %98 : vector<2x768xf32>
    %100 = vector.extract_strided_slice %93 {offsets = [0, 768], sizes = [2, 256], strides = [1, 1]} : vector<2x1024xf32> to vector<2x256xf32>
    %101 = math.tanh %100 : vector<2x256xf32>
    %102 = vector.extract_strided_slice %99 {offsets = [0, 0], sizes = [2, 256], strides = [1, 1]} : vector<2x768xf32> to vector<2x256xf32>
    %103 = vector.extract_strided_slice %99 {offsets = [0, 256], sizes = [2, 256], strides = [1, 1]} : vector<2x768xf32> to vector<2x256xf32>
    %104 = vector.extract_strided_slice %99 {offsets = [0, 512], sizes = [2, 256], strides = [1, 1]} : vector<2x768xf32> to vector<2x256xf32>
    %105 = arith.mulf %103, %80 : vector<2x256xf32>
    %106 = arith.mulf %102, %101 : vector<2x256xf32>
    %107 = arith.addf %105, %106 : vector<2x256xf32>
    %108 = math.tanh %107 : vector<2x256xf32>
    %109 = arith.mulf %104, %108 : vector<2x256xf32>
    %110 = vector.shape_cast %109 : vector<2x256xf32> to vector<2x1x256xf32>
    %111 = arith.truncf %110 : vector<2x1x256xf32> to vector<2x1x256xbf16>
    %c0_28 = arith.constant 0 : index
    %112 = arith.index_cast %c3_i32 : i32 to index
    %c0_29 = arith.constant 0 : index
    %113 = vector.load %arg5[%c0_28, %112, %c0_29] : memref<2x8x256xbf16, #tpu.memory_space<vmem>>, vector<2x1x256xbf16>
    tpu.vector_store %arg5[%c0_28, %112, %c0_29], %111 {strides = array<i32>} : memref<2x8x256xbf16, #tpu.memory_space<vmem>>, vector<2x1x256xbf16>,
    %c4_i32 = arith.constant 4 : i32
    %c0_30 = arith.constant 0 : index
    %114 = arith.index_cast %c4_i32 : i32 to index
    %c0_31 = arith.constant 0 : index
    %115 = vector.load %arg1[%c0_30, %114, %c0_31] : memref<2x8x1024xbf16, #tpu.memory_space<vmem>>, vector<2x1x1024xbf16>
    %116 = vector.shape_cast %115 : vector<2x1x1024xbf16> to vector<2x1024xbf16>
    %117 = arith.extf %116 : vector<2x1024xbf16> to vector<2x1024xf32>
    %118 = arith.truncf %109 : vector<2x256xf32> to vector<2x256xbf16>
    %cst_32 = arith.constant dense<0.000000e+00> : vector<2x1024xf32>
    %119 = tpu.matmul %118, %3, %cst_32 {dimension_numbers = #tpu.dot_dimension_numbers<[1], [0], [0], [1], [0, 0, 1, 1], [], []>} : vector<2x256xbf16>, vector<256x1024xbf16>, vector<2x1024xf32> -> vector<2x1024xf32>
    %120 = arith.addf %117, %119 : vector<2x1024xf32>
    %121 = vector.extract_strided_slice %120 {offsets = [0, 0], sizes = [2, 768], strides = [1, 1]} : vector<2x1024xf32> to vector<2x768xf32>
    %122 = arith.negf %121 : vector<2x768xf32>
    %123 = math.exp %122 : vector<2x768xf32>
    %cst_33 = arith.constant 1.000000e+00 : f32
    %124 = vector.broadcast %cst_33 : f32 to vector<2x768xf32>
    %125 = arith.addf %124, %123 : vector<2x768xf32>
    %126 = arith.divf %124, %125 : vector<2x768xf32>
    %127 = vector.extract_strided_slice %120 {offsets = [0, 768], sizes = [2, 256], strides = [1, 1]} : vector<2x1024xf32> to vector<2x256xf32>
    %128 = math.tanh %127 : vector<2x256xf32>
    %129 = vector.extract_strided_slice %126 {offsets = [0, 0], sizes = [2, 256], strides = [1, 1]} : vector<2x768xf32> to vector<2x256xf32>
    %130 = vector.extract_strided_slice %126 {offsets = [0, 256], sizes = [2, 256], strides = [1, 1]} : vector<2x768xf32> to vector<2x256xf32>
    %131 = vector.extract_strided_slice %126 {offsets = [0, 512], sizes = [2, 256], strides = [1, 1]} : vector<2x768xf32> to vector<2x256xf32>
    %132 = arith.mulf %130, %107 : vector<2x256xf32>
    %133 = arith.mulf %129, %128 : vector<2x256xf32>
    %134 = arith.addf %132, %133 : vector<2x256xf32>
    %135 = math.tanh %134 : vector<2x256xf32>
    %136 = arith.mulf %131, %135 : vector<2x256xf32>
    %137 = vector.shape_cast %136 : vector<2x256xf32> to vector<2x1x256xf32>
    %138 = arith.truncf %137 : vector<2x1x256xf32> to vector<2x1x256xbf16>
    %c0_34 = arith.constant 0 : index
    %139 = arith.index_cast %c4_i32 : i32 to index
    %c0_35 = arith.constant 0 : index
    %140 = vector.load %arg5[%c0_34, %139, %c0_35] : memref<2x8x256xbf16, #tpu.memory_space<vmem>>, vector<2x1x256xbf16>
    tpu.vector_store %arg5[%c0_34, %139, %c0_35], %138 {strides = array<i32>} : memref<2x8x256xbf16, #tpu.memory_space<vmem>>, vector<2x1x256xbf16>,
    %c5_i32 = arith.constant 5 : i32
    %c0_36 = arith.constant 0 : index
    %141 = arith.index_cast %c5_i32 : i32 to index
    %c0_37 = arith.constant 0 : index
    %142 = vector.load %arg1[%c0_36, %141, %c0_37] : memref<2x8x1024xbf16, #tpu.memory_space<vmem>>, vector<2x1x1024xbf16>
    %143 = vector.shape_cast %142 : vector<2x1x1024xbf16> to vector<2x1024xbf16>
    %144 = arith.extf %143 : vector<2x1024xbf16> to vector<2x1024xf32>
    %145 = arith.truncf %136 : vector<2x256xf32> to vector<2x256xbf16>
    %cst_38 = arith.constant dense<0.000000e+00> : vector<2x1024xf32>
    %146 = tpu.matmul %145, %3, %cst_38 {dimension_numbers = #tpu.dot_dimension_numbers<[1], [0], [0], [1], [0, 0, 1, 1], [], []>} : vector<2x256xbf16>, vector<256x1024xbf16>, vector<2x1024xf32> -> vector<2x1024xf32>
    %147 = arith.addf %144, %146 : vector<2x1024xf32>
    %148 = vector.extract_strided_slice %147 {offsets = [0, 0], sizes = [2, 768], strides = [1, 1]} : vector<2x1024xf32> to vector<2x768xf32>
    %149 = arith.negf %148 : vector<2x768xf32>
    %150 = math.exp %149 : vector<2x768xf32>
    %cst_39 = arith.constant 1.000000e+00 : f32
    %151 = vector.broadcast %cst_39 : f32 to vector<2x768xf32>
    %152 = arith.addf %151, %150 : vector<2x768xf32>
    %153 = arith.divf %151, %152 : vector<2x768xf32>
    %154 = vector.extract_strided_slice %147 {offsets = [0, 768], sizes = [2, 256], strides = [1, 1]} : vector<2x1024xf32> to vector<2x256xf32>
    %155 = math.tanh %154 : vector<2x256xf32>
    %156 = vector.extract_strided_slice %153 {offsets = [0, 0], sizes = [2, 256], strides = [1, 1]} : vector<2x768xf32> to vector<2x256xf32>
    %157 = vector.extract_strided_slice %153 {offsets = [0, 256], sizes = [2, 256], strides = [1, 1]} : vector<2x768xf32> to vector<2x256xf32>
    %158 = vector.extract_strided_slice %153 {offsets = [0, 512], sizes = [2, 256], strides = [1, 1]} : vector<2x768xf32> to vector<2x256xf32>
    %159 = arith.mulf %157, %134 : vector<2x256xf32>
    %160 = arith.mulf %156, %155 : vector<2x256xf32>
    %161 = arith.addf %159, %160 : vector<2x256xf32>
    %162 = math.tanh %161 : vector<2x256xf32>
    %163 = arith.mulf %158, %162 : vector<2x256xf32>
    %164 = vector.shape_cast %163 : vector<2x256xf32> to vector<2x1x256xf32>
    %165 = arith.truncf %164 : vector<2x1x256xf32> to vector<2x1x256xbf16>
    %c0_40 = arith.constant 0 : index
    %166 = arith.index_cast %c5_i32 : i32 to index
    %c0_41 = arith.constant 0 : index
    %167 = vector.load %arg5[%c0_40, %166, %c0_41] : memref<2x8x256xbf16, #tpu.memory_space<vmem>>, vector<2x1x256xbf16>
    tpu.vector_store %arg5[%c0_40, %166, %c0_41], %165 {strides = array<i32>} : memref<2x8x256xbf16, #tpu.memory_space<vmem>>, vector<2x1x256xbf16>,
    %c6_i32 = arith.constant 6 : i32
    %c0_42 = arith.constant 0 : index
    %168 = arith.index_cast %c6_i32 : i32 to index
    %c0_43 = arith.constant 0 : index
    %169 = vector.load %arg1[%c0_42, %168, %c0_43] : memref<2x8x1024xbf16, #tpu.memory_space<vmem>>, vector<2x1x1024xbf16>
    %170 = vector.shape_cast %169 : vector<2x1x1024xbf16> to vector<2x1024xbf16>
    %171 = arith.extf %170 : vector<2x1024xbf16> to vector<2x1024xf32>
    %172 = arith.truncf %163 : vector<2x256xf32> to vector<2x256xbf16>
    %cst_44 = arith.constant dense<0.000000e+00> : vector<2x1024xf32>
    %173 = tpu.matmul %172, %3, %cst_44 {dimension_numbers = #tpu.dot_dimension_numbers<[1], [0], [0], [1], [0, 0, 1, 1], [], []>} : vector<2x256xbf16>, vector<256x1024xbf16>, vector<2x1024xf32> -> vector<2x1024xf32>
    %174 = arith.addf %171, %173 : vector<2x1024xf32>
    %175 = vector.extract_strided_slice %174 {offsets = [0, 0], sizes = [2, 768], strides = [1, 1]} : vector<2x1024xf32> to vector<2x768xf32>
    %176 = arith.negf %175 : vector<2x768xf32>
    %177 = math.exp %176 : vector<2x768xf32>
    %cst_45 = arith.constant 1.000000e+00 : f32
    %178 = vector.broadcast %cst_45 : f32 to vector<2x768xf32>
    %179 = arith.addf %178, %177 : vector<2x768xf32>
    %180 = arith.divf %178, %179 : vector<2x768xf32>
    %181 = vector.extract_strided_slice %174 {offsets = [0, 768], sizes = [2, 256], strides = [1, 1]} : vector<2x1024xf32> to vector<2x256xf32>
    %182 = math.tanh %181 : vector<2x256xf32>
    %183 = vector.extract_strided_slice %180 {offsets = [0, 0], sizes = [2, 256], strides = [1, 1]} : vector<2x768xf32> to vector<2x256xf32>
    %184 = vector.extract_strided_slice %180 {offsets = [0, 256], sizes = [2, 256], strides = [1, 1]} : vector<2x768xf32> to vector<2x256xf32>
    %185 = vector.extract_strided_slice %180 {offsets = [0, 512], sizes = [2, 256], strides = [1, 1]} : vector<2x768xf32> to vector<2x256xf32>
    %186 = arith.mulf %184, %161 : vector<2x256xf32>
    %187 = arith.mulf %183, %182 : vector<2x256xf32>
    %188 = arith.addf %186, %187 : vector<2x256xf32>
    %189 = math.tanh %188 : vector<2x256xf32>
    %190 = arith.mulf %185, %189 : vector<2x256xf32>
    %191 = vector.shape_cast %190 : vector<2x256xf32> to vector<2x1x256xf32>
    %192 = arith.truncf %191 : vector<2x1x256xf32> to vector<2x1x256xbf16>
    %c0_46 = arith.constant 0 : index
    %193 = arith.index_cast %c6_i32 : i32 to index
    %c0_47 = arith.constant 0 : index
    %194 = vector.load %arg5[%c0_46, %193, %c0_47] : memref<2x8x256xbf16, #tpu.memory_space<vmem>>, vector<2x1x256xbf16>
    tpu.vector_store %arg5[%c0_46, %193, %c0_47], %192 {strides = array<i32>} : memref<2x8x256xbf16, #tpu.memory_space<vmem>>, vector<2x1x256xbf16>,
    %c7_i32 = arith.constant 7 : i32
    %c0_48 = arith.constant 0 : index
    %195 = arith.index_cast %c7_i32 : i32 to index
    %c0_49 = arith.constant 0 : index
    %196 = vector.load %arg1[%c0_48, %195, %c0_49] : memref<2x8x1024xbf16, #tpu.memory_space<vmem>>, vector<2x1x1024xbf16>
    %197 = vector.shape_cast %196 : vector<2x1x1024xbf16> to vector<2x1024xbf16>
    %198 = arith.extf %197 : vector<2x1024xbf16> to vector<2x1024xf32>
    %199 = arith.truncf %190 : vector<2x256xf32> to vector<2x256xbf16>
    %cst_50 = arith.constant dense<0.000000e+00> : vector<2x1024xf32>
    %200 = tpu.matmul %199, %3, %cst_50 {dimension_numbers = #tpu.dot_dimension_numbers<[1], [0], [0], [1], [0, 0, 1, 1], [], []>} : vector<2x256xbf16>, vector<256x1024xbf16>, vector<2x1024xf32> -> vector<2x1024xf32>
    %201 = arith.addf %198, %200 : vector<2x1024xf32>
    %202 = vector.extract_strided_slice %201 {offsets = [0, 0], sizes = [2, 768], strides = [1, 1]} : vector<2x1024xf32> to vector<2x768xf32>
    %203 = arith.negf %202 : vector<2x768xf32>
    %204 = math.exp %203 : vector<2x768xf32>
    %cst_51 = arith.constant 1.000000e+00 : f32
    %205 = vector.broadcast %cst_51 : f32 to vector<2x768xf32>
    %206 = arith.addf %205, %204 : vector<2x768xf32>
    %207 = arith.divf %205, %206 : vector<2x768xf32>
    %208 = vector.extract_strided_slice %201 {offsets = [0, 768], sizes = [2, 256], strides = [1, 1]} : vector<2x1024xf32> to vector<2x256xf32>
    %209 = math.tanh %208 : vector<2x256xf32>
    %210 = vector.extract_strided_slice %207 {offsets = [0, 0], sizes = [2, 256], strides = [1, 1]} : vector<2x768xf32> to vector<2x256xf32>
    %211 = vector.extract_strided_slice %207 {offsets = [0, 256], sizes = [2, 256], strides = [1, 1]} : vector<2x768xf32> to vector<2x256xf32>
    %212 = vector.extract_strided_slice %207 {offsets = [0, 512], sizes = [2, 256], strides = [1, 1]} : vector<2x768xf32> to vector<2x256xf32>
    %213 = arith.mulf %211, %188 : vector<2x256xf32>
    %214 = arith.mulf %210, %209 : vector<2x256xf32>
    %215 = arith.addf %213, %214 : vector<2x256xf32>
    %216 = math.tanh %215 : vector<2x256xf32>
    %217 = arith.mulf %212, %216 : vector<2x256xf32>
    %218 = vector.shape_cast %217 : vector<2x256xf32> to vector<2x1x256xf32>
    %219 = arith.truncf %218 : vector<2x1x256xf32> to vector<2x1x256xbf16>
    %c0_52 = arith.constant 0 : index
    %220 = arith.index_cast %c7_i32 : i32 to index
    %c0_53 = arith.constant 0 : index
    %221 = vector.load %arg5[%c0_52, %220, %c0_53] : memref<2x8x256xbf16, #tpu.memory_space<vmem>>, vector<2x1x256xbf16>
    tpu.vector_store %arg5[%c0_52, %220, %c0_53], %219 {strides = array<i32>} : memref<2x8x256xbf16, #tpu.memory_space<vmem>>, vector<2x1x256xbf16>,
    %c8_i32 = arith.constant 8 : i32
    %c0_54 = arith.constant 0 : index
    %c0_55 = arith.constant 0 : index
    %222 = vector.load %arg8[%c0_54, %c0_55] : memref<2x256xf32, #tpu.memory_space<vmem>>, vector<2x256xf32>
    tpu.vector_store %arg8[%c0_54, %c0_55], %217 {strides = array<i32>} : memref<2x256xf32, #tpu.memory_space<vmem>>, vector<2x256xf32>,
    %c0_56 = arith.constant 0 : index
    %c0_57 = arith.constant 0 : index
    %223 = vector.load %arg9[%c0_56, %c0_57] : memref<2x256xf32, #tpu.memory_space<vmem>>, vector<2x256xf32>
    tpu.vector_store %arg9[%c0_56, %c0_57], %215 {strides = array<i32>} : memref<2x256xf32, #tpu.memory_space<vmem>>, vector<2x256xf32>,
    %c0_i32_58 = arith.constant 0 : i32
    %224 = arith.cmpi eq, %arg0, %c0_i32_58 : i32
    %225 = arith.extui %224 : i1 to i32
    %c0_i32_59 = arith.constant 0 : i32
    %226 = arith.cmpi ne, %225, %c0_i32_59 : i32
    scf.if %226 {
      %c0_60 = arith.constant 0 : index
      %c0_61 = arith.constant 0 : index
      %227 = vector.load %arg6[%c0_60, %c0_61] : memref<2x256xf32, #tpu.memory_space<vmem>>, vector<2x256xf32>
      tpu.vector_store %arg6[%c0_60, %c0_61], %217 {strides = array<i32>} : memref<2x256xf32, #tpu.memory_space<vmem>>, vector<2x256xf32>,
      %c0_62 = arith.constant 0 : index
      %c0_63 = arith.constant 0 : index
      %228 = vector.load %arg7[%c0_62, %c0_63] : memref<2x256xf32, #tpu.memory_space<vmem>>, vector<2x256xf32>
      tpu.vector_store %arg7[%c0_62, %c0_63], %215 {strides = array<i32>} : memref<2x256xf32, #tpu.memory_space<vmem>>, vector<2x256xf32>,
    } else {
    }
    return
  }
  func.func @transform_0(%arg0: i32) -> (i32, i32, i32) {
    %c0_i32 = arith.constant 0 : i32
    %c0_i32_0 = arith.constant 0 : i32
    %c0_i32_1 = arith.constant 0 : i32
    return %c0_i32, %arg0, %c0_i32_0 : i32, i32, i32
  }
  func.func @transform_1(%arg0: i32) -> (i32, i32) {
    %c0_i32 = arith.constant 0 : i32
    %c0_i32_0 = arith.constant 0 : i32
    %c0_i32_1 = arith.constant 0 : i32
    return %c0_i32, %c0_i32_0 : i32, i32
  }
  func.func @transform_2(%arg0: i32) -> (i32, i32) {
    %c0_i32 = arith.constant 0 : i32
    %c0_i32_0 = arith.constant 0 : i32
    %c0_i32_1 = arith.constant 0 : i32
    return %c0_i32, %c0_i32_0 : i32, i32
  }
  func.func @transform_3(%arg0: i32) -> (i32, i32) {
    %c0_i32 = arith.constant 0 : i32
    %c0_i32_0 = arith.constant 0 : i32
    %c0_i32_1 = arith.constant 0 : i32
    return %c0_i32, %c0_i32_0 : i32, i32
  }
  func.func @transform_4(%arg0: i32) -> (i32, i32, i32) {
    %c0_i32 = arith.constant 0 : i32
    %c0_i32_0 = arith.constant 0 : i32
    %c0_i32_1 = arith.constant 0 : i32
    return %c0_i32, %arg0, %c0_i32_0 : i32, i32, i32
  }
  func.func @transform_5(%arg0: i32) -> (i32, i32) {
    %c0_i32 = arith.constant 0 : i32
    %c0_i32_0 = arith.constant 0 : i32
    %c0_i32_1 = arith.constant 0 : i32
    return %c0_i32, %c0_i32_0 : i32, i32
  }
  func.func @transform_6(%arg0: i32) -> (i32, i32) {
    %c0_i32 = arith.constant 0 : i32
    %c0_i32_0 = arith.constant 0 : i32
    %c0_i32_1 = arith.constant 0 : i32
    return %c0_i32, %c0_i32_0 : i32, i32
  }
}

</mosaic_0001>

<llo_original>
// kernel: deepspeech_forward.9
$region0: #{deepspeech_forward.9}
  #allocation0 [shape = 'u32[]', space=smem, size = 0x4, offset = 0x4, fixed_abs, tag = 'smem constant byte address 0x4 - core index']
  #allocation1 [shape = 'u32[144,128]{1,0:T(1,128)}', space=vmem, size = 0x12000, scoped, tag = 'internal scratch']
  %s0 = inlined_call_operand.vmem [shape: bf16[16,256], index: 0, kind: input, shape index: {}]
  %s1 = inlined_call_operand.hbm [shape: bf16[256,256], index: 1, kind: input, shape index: {}]
  %s2 = inlined_call_operand.vmem [shape: f32[1,256], index: 2, kind: input, shape index: {}]
  %s3 = inlined_call_operand.vmem [shape: bf16[16,256], index: 3, kind: output, shape index: {}]
  %s4 = sld [smem:[#allocation0]]
  $region26: #{deepspeech_forward.9} parent=0
    _
  %s6 = ssub.s32 1, %s4
  %s7 = scalar_select 0, %s6, %s4
  $region1: #{deepspeech_forward.9} parent=0
    #allocation2 [shape = 'u8[131072]{0}', space=vmem, size = 0x20000, scoped, tag = 'input window, operand 1, single buffered']
    #allocation3 [shape = 's32[1]{0}', space=sflag, size = 0x4, scoped, tag = 'scoped memory for deepspeech_forward.9']
    %8 = vsyncpa [#allocation3], 0
    // Predicated region
    $region2: #{deepspeech_forward.9} parent=1 // pred_check
      _
    $region3: #{deepspeech_forward.9} parent=1 // pred_check_branch
      %10 = sbr.rel (0) target = $region5
    $region4: #{deepspeech_forward.9} parent=1 // pred_region
      _
    $region5: #{deepspeech_forward.9} parent=1 // pred_fallthru
      _
    // Predicated region
    $region6: #{deepspeech_forward.9} parent=1 // pred_check
      _
    $region7: #{deepspeech_forward.9} parent=1 // pred_check_branch
      %12 = sbr.rel (0) target = $region9
    $region8: #{deepspeech_forward.9} parent=1 // pred_region
      %s14 = ssub.s32 4096, 4096
      %15 = vsyncadd [#allocation3], %s14
      %s16 = sshll.u32 [#allocation2], 4
      %s17 = int_to_ptr.vmem [resolvable:$true] %s16
      %22 = dma.hbm_to_vmem [thread:$0]  %s1, 4096, %s17, [#allocation3], 128, 128, 8
    $region9: #{deepspeech_forward.9} parent=1 // pred_fallthru
      _
    // Predicated region
    $region10: #{deepspeech_forward.9} parent=1 // pred_check
      _
    $region11: #{deepspeech_forward.9} parent=1 // pred_check_branch
      %24 = sbr.rel (0) target = $region13
    $region12: #{deepspeech_forward.9} parent=1 // pred_region
      _
    $region13: #{deepspeech_forward.9} parent=1 // pred_fallthru
      _
    // Predicated region
    $region14: #{deepspeech_forward.9} parent=1 // pred_check
      _
    $region15: #{deepspeech_forward.9} parent=1 // pred_check_branch
      %26 = sbr.rel (0) target = $region17
    $region16: #{deepspeech_forward.9} parent=1 // pred_region
      %27 = dma.done [#allocation3], 4096
    $region17: #{deepspeech_forward.9} parent=1 // pred_fallthru
      _
    %v28 = vld [vmem:[%s0] sm:$0xff]
    %v29 = vld [vmem:[%s0 + $0x8] sm:$0xff]
    %v30 = vld [vmem:[#allocation2] sm:$0xff]
    %v31 = vld [vmem:[#allocation2 + $0x8] sm:$0xff]
    %v32 = vld [vmem:[#allocation2 + $0x10] sm:$0xff]
    %v33 = vld [vmem:[#allocation2 + $0x18] sm:$0xff]
    %v34 = vld [vmem:[#allocation2 + $0x20] sm:$0xff]
    %v35 = vld [vmem:[#allocation2 + $0x28] sm:$0xff]
    %v36 = vld [vmem:[#allocation2 + $0x30] sm:$0xff]
    %v37 = vld [vmem:[#allocation2 + $0x38] sm:$0xff]
    %v38 = vld [vmem:[#allocation2 + $0x40] sm:$0xff]
    %v39 = vld [vmem:[#allocation2 + $0x48] sm:$0xff]
    %v40 = vld [vmem:[#allocation2 + $0x50] sm:$0xff]
    %v41 = vld [vmem:[#allocation2 + $0x58] sm:$0xff]
    %v42 = vld [vmem:[#allocation2 + $0x60] sm:$0xff]
    %v43 = vld [vmem:[#allocation2 + $0x68] sm:$0xff]
    %v44 = vld [vmem:[#allocation2 + $0x70] sm:$0xff]
    %v45 = vld [vmem:[#allocation2 + $0x78] sm:$0xff]
    %v46 = vld [vmem:[#allocation2 + $0x80] sm:$0xff]
    %v47 = vld [vmem:[#allocation2 + $0x88] sm:$0xff]
    %v48 = vld [vmem:[#allocation2 + $0x90] sm:$0xff]
    %v49 = vld [vmem:[#allocation2 + $0x98] sm:$0xff]
    %v50 = vld [vmem:[#allocation2 + $0xa0] sm:$0xff]
    %v51 = vld [vmem:[#allocation2 + $0xa8] sm:$0xff]
    %v52 = vld [vmem:[#allocation2 + $0xb0] sm:$0xff]
    %v53 = vld [vmem:[#allocation2 + $0xb8] sm:$0xff]
    %v54 = vld [vmem:[#allocation2 + $0xc0] sm:$0xff]
    %v55 = vld [vmem:[#allocation2 + $0xc8] sm:$0xff]
    %v56 = vld [vmem:[#allocation2 + $0xd0] sm:$0xff]
    %v57 = vld [vmem:[#allocation2 + $0xd8] sm:$0xff]
    %v58 = vld [vmem:[#allocation2 + $0xe0] sm:$0xff]
    %v59 = vld [vmem:[#allocation2 + $0xe8] sm:$0xff]
    %v60 = vld [vmem:[#allocation2 + $0xf0] sm:$0xff]
    %v61 = vld [vmem:[#allocation2 + $0xf8] sm:$0xff]
    %v62 = vld [vmem:[%s2] sm:$0x3]
    %v64 = vlaneseq
    %v65 = vshrl.u32 %v64, 7
    %v66 = vsub.s32 0, %v65
    %v67 = vrot.slane %v62, %v66
    %v68 = vlaneseq
    %v69 = vshrl.u32 %v68, 7
    %v70 = vsub.s32 1, %v69
    %v71 = vrot.slane %v62, %v70
    %v76 = vunpack.c.l.b16 %v28
    %v77 = vunpack.c.h.b16 %v28
    %v78 = vunpack.c.l.b16 %v29
    %v79 = vunpack.c.h.b16 %v29
    %v80 = vpack.c.b16 %v78, %v76
    %v81 = vpack.c.b16 %v79, %v77
    %v116 = vunpack.c.l.b16 %v30
    %v117 = vunpack.c.h.b16 %v30
    %v118 = vunpack.c.l.b16 %v31
    %v119 = vunpack.c.h.b16 %v31
    %v120 = vunpack.c.l.b16 %v32
    %v121 = vunpack.c.h.b16 %v32
    %v122 = vunpack.c.l.b16 %v33
    %v123 = vunpack.c.h.b16 %v33
    %v124 = vunpack.c.l.b16 %v34
    %v125 = vunpack.c.h.b16 %v34
    %v126 = vunpack.c.l.b16 %v35
    %v127 = vunpack.c.h.b16 %v35
    %v128 = vunpack.c.l.b16 %v36
    %v129 = vunpack.c.h.b16 %v36
    %v130 = vunpack.c.l.b16 %v37
    %v131 = vunpack.c.h.b16 %v37
    %v132 = vunpack.c.l.b16 %v38
    %v133 = vunpack.c.h.b16 %v38
    %v134 = vunpack.c.l.b16 %v39
    %v135 = vunpack.c.h.b16 %v39
    %v136 = vunpack.c.l.b16 %v40
    %v137 = vunpack.c.h.b16 %v40
    %v138 = vunpack.c.l.b16 %v41
    %v139 = vunpack.c.h.b16 %v41
    %v140 = vunpack.c.l.b16 %v42
    %v141 = vunpack.c.h.b16 %v42
    %v142 = vunpack.c.l.b16 %v43
    %v143 = vunpack.c.h.b16 %v43
    %v144 = vunpack.c.l.b16 %v44
    %v145 = vunpack.c.h.b16 %v44
    %v146 = vunpack.c.l.b16 %v45
    %v147 = vunpack.c.h.b16 %v45
    %v148 = vunpack.c.l.b16 %v46
    %v149 = vunpack.c.h.b16 %v46
    %v150 = vunpack.c.l.b16 %v47
    %v151 = vunpack.c.h.b16 %v47
    %v152 = vunpack.c.l.b16 %v48
    %v153 = vunpack.c.h.b16 %v48
    %v154 = vunpack.c.l.b16 %v49
    %v155 = vunpack.c.h.b16 %v49
    %v156 = vunpack.c.l.b16 %v50
    %v157 = vunpack.c.h.b16 %v50
    %v158 = vunpack.c.l.b16 %v51
    %v159 = vunpack.c.h.b16 %v51
    %v160 = vunpack.c.l.b16 %v52
    %v161 = vunpack.c.h.b16 %v52
    %v162 = vunpack.c.l.b16 %v53
    %v163 = vunpack.c.h.b16 %v53
    %v164 = vunpack.c.l.b16 %v54
    %v165 = vunpack.c.h.b16 %v54
    %v166 = vunpack.c.l.b16 %v55
    %v167 = vunpack.c.h.b16 %v55
    %v168 = vunpack.c.l.b16 %v56
    %v169 = vunpack.c.h.b16 %v56
    %v170 = vunpack.c.l.b16 %v57
    %v171 = vunpack.c.h.b16 %v57
    %v172 = vunpack.c.l.b16 %v58
    %v173 = vunpack.c.h.b16 %v58
    %v174 = vunpack.c.l.b16 %v59
    %v175 = vunpack.c.h.b16 %v59
    %v176 = vunpack.c.l.b16 %v60
    %v177 = vunpack.c.h.b16 %v60
    %v178 = vunpack.c.l.b16 %v61
    %v179 = vunpack.c.h.b16 %v61
    %v180 = vpack.c.b16 %v118, %v116
    %v181 = vpack.c.b16 %v119, %v117
    %v182 = vpack.c.b16 %v122, %v120
    %v183 = vpack.c.b16 %v123, %v121
    %v184 = vpack.c.b16 %v126, %v124
    %v185 = vpack.c.b16 %v127, %v125
    %v186 = vpack.c.b16 %v130, %v128
    %v187 = vpack.c.b16 %v131, %v129
    %v188 = vpack.c.b16 %v134, %v132
    %v189 = vpack.c.b16 %v135, %v133
    %v190 = vpack.c.b16 %v138, %v136
    %v191 = vpack.c.b16 %v139, %v137
    %v192 = vpack.c.b16 %v142, %v140
    %v193 = vpack.c.b16 %v143, %v141
    %v194 = vpack.c.b16 %v146, %v144
    %v195 = vpack.c.b16 %v147, %v145
    %v196 = vpack.c.b16 %v150, %v148
    %v197 = vpack.c.b16 %v151, %v149
    %v198 = vpack.c.b16 %v154, %v152
    %v199 = vpack.c.b16 %v155, %v153
    %v200 = vpack.c.b16 %v158, %v156
    %v201 = vpack.c.b16 %v159, %v157
    %v202 = vpack.c.b16 %v162, %v160
    %v203 = vpack.c.b16 %v163, %v161
    %v204 = vpack.c.b16 %v166, %v164
    %v205 = vpack.c.b16 %v167, %v165
    %v206 = vpack.c.b16 %v170, %v168
    %v207 = vpack.c.b16 %v171, %v169
    %v208 = vpack.c.b16 %v174, %v172
    %v209 = vpack.c.b16 %v175, %v173
    %v210 = vpack.c.b16 %v178, %v176
    %v211 = vpack.c.b16 %v179, %v177
    %244 = vmatprep.subr.bf16.mxu0 %v195
    %245 = vmatpush1.bf16.msra.mxu0 %v194
    %246 = vmatprep.subr.bf16.mxu0 %v193
    %247 = vmatpush1.bf16.msra.mxu0 %v192
    %248 = vmatprep.subr.bf16.mxu0 %v191
    %249 = vmatpush1.bf16.msra.mxu0 %v190
    %250 = vmatprep.subr.bf16.mxu0 %v189
    %251 = vmatpush1.bf16.msra.mxu0 %v188
    %252 = vmatprep.subr.bf16.mxu0 %v187
    %253 = vmatpush1.bf16.msra.mxu0 %v186
    %254 = vmatprep.subr.bf16.mxu0 %v185
    %255 = vmatpush1.bf16.msra.mxu0 %v184
    %256 = vmatprep.subr.bf16.mxu0 %v183
    %257 = vmatpush1.bf16.msra.mxu0 %v182
    %258 = vmatprep.subr.bf16.mxu0 %v181
    %259 = vmatpush1.bf16.msra.mxu0 %v180
    %260 = vmatprep.subr.bf16.mxu0 %v211
    %261 = vmatpush2.bf16.msra.mxu0 %v210
    %262 = vmatprep.subr.bf16.mxu0 %v209
    %263 = vmatpush2.bf16.msra.mxu0 %v208
    %264 = vmatprep.subr.bf16.mxu0 %v207
    %265 = vmatpush2.bf16.msra.mxu0 %v206
    %266 = vmatprep.subr.bf16.mxu0 %v205
    %267 = vmatpush2.bf16.msra.mxu0 %v204
    %268 = vmatprep.subr.bf16.mxu0 %v203
    %269 = vmatpush2.bf16.msra.mxu0 %v202
    %270 = vmatprep.subr.bf16.mxu0 %v201
    %271 = vmatpush2.bf16.msra.mxu0 %v200
    %272 = vmatprep.subr.bf16.mxu0 %v199
    %273 = vmatpush2.bf16.msra.mxu0 %v198
    %274 = vmatprep.subr.bf16.mxu0 %v197
    %275 = vmatpush2.bf16.msra.mxu0 %v196
    %276 = vmatprep.mubr.bf16.mxu0 %v81
    %277 = vmatmul.mubr.bf16.gmra.mxu0 %v80
    %v278 = vpop.f32.mrf.mxu0
    %v279 = vadd.f32 %v67, %v278
    %v280 = vpop.f32.mrf.mxu0
    %v281 = vadd.f32 %v71, %v280
    %v282 = vpop.f32.mrf.mxu0
    %v283 = vadd.f32 %v67, %v282
    %v284 = vpop.f32.mrf.mxu0
    %v285 = vadd.f32 %v71, %v284
    %286 = vdwg.mxu0
    %vm287 = vcmp.gt.f32.partialorder %v279, 0.0
    %vm288 = vcmp.gt.f32.partialorder %v281, 0.0
    %vm289 = vcmp.gt.f32.partialorder %v283, 0.0
    %vm290 = vcmp.gt.f32.partialorder %v285, 0.0
    %v291 = vsel %vm287, %v279, 20.0
    %v292 = vsel %vm288, %v281, 20.0
    %v293 = vsel %vm289, %v283, 20.0
    %v294 = vsel %vm290, %v285, 20.0
    %v295 = vpack.c.bf16 %v293, %v291
    %v296 = vpack.c.bf16 %v294, %v292
    %v299 = vunpack.c.l.b16 %v295
    %v300 = vunpack.c.l.b16 %v296
    %v301 = vunpack.c.h.b16 %v295
    %v302 = vunpack.c.h.b16 %v296
    %v303 = vpack.c.b16 %v300, %v299
    %v304 = vpack.c.b16 %v302, %v301
    %307 = vst [vmem:[%s3] sm:$0xff] %v303
    %308 = vst [vmem:[%s3 + $0x8] sm:$0xff] %v304
    // Predicated region
    $region18: #{deepspeech_forward.9} parent=1 // pred_check
      _
    $region19: #{deepspeech_forward.9} parent=1 // pred_check_branch
      %310 = sbr.rel (0) target = $region21
    $region20: #{deepspeech_forward.9} parent=1 // pred_region
      _
    $region21: #{deepspeech_forward.9} parent=1 // pred_fallthru
      _
    // Predicated region
    $region22: #{deepspeech_forward.9} parent=1 // pred_check
      _
    $region23: #{deepspeech_forward.9} parent=1 // pred_check_branch
      %312 = sbr.rel (0) target = $region25
    $region24: #{deepspeech_forward.9} parent=1 // pred_region
      _
    $region25: #{deepspeech_forward.9} parent=1 // pred_fallthru
      _
    %313 = vsyncpa [#allocation3], 1

// kernel: deepspeech_forward.8
$region0: #{deepspeech_forward.8}
  #allocation0 [shape = 'u32[]', space=smem, size = 0x4, offset = 0x4, fixed_abs, tag = 'smem constant byte address 0x4 - core index']
  #allocation1 [shape = 'u32[144,128]{1,0:T(1,128)}', space=vmem, size = 0x12000, scoped, tag = 'internal scratch']
  %s0 = inlined_call_operand.vmem [shape: bf16[16,256], index: 0, kind: input, shape index: {}]
  %s1 = inlined_call_operand.hbm [shape: bf16[256,256], index: 1, kind: input, shape index: {}]
  %s2 = inlined_call_operand.hbm [shape: f32[1,256], index: 2, kind: input, shape index: {}]
  %s3 = inlined_call_operand.vmem [shape: bf16[16,256], index: 3, kind: output, shape index: {}]
  %s4 = sld [smem:[#allocation0]]
  $region30: #{deepspeech_forward.8} parent=0
    _
  %s6 = ssub.s32 1, %s4
  %s7 = scalar_select 0, %s6, %s4
  $region1: #{deepspeech_forward.8} parent=0
    #allocation2 [shape = 'u8[131072]{0}', space=vmem, size = 0x20000, scoped, tag = 'input window, operand 1, single buffered']
    #allocation3 [shape = 's32[1]{0}', space=sflag, size = 0x4, scoped, tag = 'scoped memory for deepspeech_forward.8']
    #allocation4 [shape = 'u8[1024]{0}', space=vmem, size = 0x400, scoped, tag = 'input window, operand 2, single buffered']
    #allocation5 [shape = 's32[1]{0}', space=sflag, size = 0x4, scoped, tag = 'scoped memory for deepspeech_forward.8']
    %8 = vsyncpa [#allocation3], 0
    %9 = vsyncpa [#allocation5], 0
    // Predicated region
    $region2: #{deepspeech_forward.8} parent=1 // pred_check
      _
    $region3: #{deepspeech_forward.8} parent=1 // pred_check_branch
      %11 = sbr.rel (0) target = $region5
    $region4: #{deepspeech_forward.8} parent=1 // pred_region
      _
    $region5: #{deepspeech_forward.8} parent=1 // pred_fallthru
      _
    // Predicated region
    $region6: #{deepspeech_forward.8} parent=1 // pred_check
      _
    $region7: #{deepspeech_forward.8} parent=1 // pred_check_branch
      %13 = sbr.rel (0) target = $region9
    $region8: #{deepspeech_forward.8} parent=1 // pred_region
      %s15 = ssub.s32 4096, 4096
      %16 = vsyncadd [#allocation3], %s15
      %s17 = sshll.u32 [#allocation2], 4
      %s18 = int_to_ptr.vmem [resolvable:$true] %s17
      %23 = dma.hbm_to_vmem [thread:$0]  %s1, 4096, %s18, [#allocation3], 128, 128, 8
    $region9: #{deepspeech_forward.8} parent=1 // pred_fallthru
      _
    // Predicated region
    $region10: #{deepspeech_forward.8} parent=1 // pred_check
      _
    $region11: #{deepspeech_forward.8} parent=1 // pred_check_branch
      %25 = sbr.rel (0) target = $region13
    $region12: #{deepspeech_forward.8} parent=1 // pred_region
      %s27 = ssub.s32 32, 32
      %28 = vsyncadd [#allocation5], %s27
      %s30 = sshll.u32 [#allocation4], 4
      %s31 = int_to_ptr.vmem [resolvable:$true] %s30
      %33 = dma.hbm_to_vmem [thread:$0]  %s2, 32, %s31, [#allocation5]
    $region13: #{deepspeech_forward.8} parent=1 // pred_fallthru
      _
    // Predicated region
    $region14: #{deepspeech_forward.8} parent=1 // pred_check
      _
    $region15: #{deepspeech_forward.8} parent=1 // pred_check_branch
      %35 = sbr.rel (0) target = $region17
    $region16: #{deepspeech_forward.8} parent=1 // pred_region
      %36 = dma.done [#allocation3], 4096
    $region17: #{deepspeech_forward.8} parent=1 // pred_fallthru
      _
    // Predicated region
    $region18: #{deepspeech_forward.8} parent=1 // pred_check
      _
    $region19: #{deepspeech_forward.8} parent=1 // pred_check_branch
      %38 = sbr.rel (0) target = $region21
    $region20: #{deepspeech_forward.8} parent=1 // pred_region
      %39 = dma.done [#allocation5], 32
    $region21: #{deepspeech_forward.8} parent=1 // pred_fallthru
      _
    %v40 = vld [vmem:[%s0] sm:$0xff]
    %v41 = vld [vmem:[%s0 + $0x8] sm:$0xff]
    %v42 = vld [vmem:[#allocation2] sm:$0xff]
    %v43 = vld [vmem:[#allocation2 + $0x8] sm:$0xff]
    %v44 = vld [vmem:[#allocation2 + $0x10] sm:$0xff]
    %v45 = vld [vmem:[#allocation2 + $0x18] sm:$0xff]
    %v46 = vld [vmem:[#allocation2 + $0x20] sm:$0xff]
    %v47 = vld [vmem:[#allocation2 + $0x28] sm:$0xff]
    %v48 = vld [vmem:[#allocation2 + $0x30] sm:$0xff]
    %v49 = vld [vmem:[#allocation2 + $0x38] sm:$0xff]
    %v50 = vld [vmem:[#allocation2 + $0x40] sm:$0xff]
    %v51 = vld [vmem:[#allocation2 + $0x48] sm:$0xff]
    %v52 = vld [vmem:[#allocation2 + $0x50] sm:$0xff]
    %v53 = vld [vmem:[#allocation2 + $0x58] sm:$0xff]
    %v54 = vld [vmem:[#allocation2 + $0x60] sm:$0xff]
    %v55 = vld [vmem:[#allocation2 + $0x68] sm:$0xff]
    %v56 = vld [vmem:[#allocation2 + $0x70] sm:$0xff]
    %v57 = vld [vmem:[#allocation2 + $0x78] sm:$0xff]
    %v58 = vld [vmem:[#allocation2 + $0x80] sm:$0xff]
    %v59 = vld [vmem:[#allocation2 + $0x88] sm:$0xff]
    %v60 = vld [vmem:[#allocation2 + $0x90] sm:$0xff]
    %v61 = vld [vmem:[#allocation2 + $0x98] sm:$0xff]
    %v62 = vld [vmem:[#allocation2 + $0xa0] sm:$0xff]
    %v63 = vld [vmem:[#allocation2 + $0xa8] sm:$0xff]
    %v64 = vld [vmem:[#allocation2 + $0xb0] sm:$0xff]
    %v65 = vld [vmem:[#allocation2 + $0xb8] sm:$0xff]
    %v66 = vld [vmem:[#allocation2 + $0xc0] sm:$0xff]
    %v67 = vld [vmem:[#allocation2 + $0xc8] sm:$0xff]
    %v68 = vld [vmem:[#allocation2 + $0xd0] sm:$0xff]
    %v69 = vld [vmem:[#allocation2 + $0xd8] sm:$0xff]
    %v70 = vld [vmem:[#allocation2 + $0xe0] sm:$0xff]
    %v71 = vld [vmem:[#allocation2 + $0xe8] sm:$0xff]
    %v72 = vld [vmem:[#allocation2 + $0xf0] sm:$0xff]
    %v73 = vld [vmem:[#allocation2 + $0xf8] sm:$0xff]
    %v74 = vld [vmem:[#allocation4] sm:$0x3]
    %v76 = vlaneseq
    %v77 = vshrl.u32 %v76, 7
    %v78 = vsub.s32 0, %v77
    %v79 = vrot.slane %v74, %v78
    %v80 = vlaneseq
    %v81 = vshrl.u32 %v80, 7
    %v82 = vsub.s32 1, %v81
    %v83 = vrot.slane %v74, %v82
    %v88 = vunpack.c.l.b16 %v40
    %v89 = vunpack.c.h.b16 %v40
    %v90 = vunpack.c.l.b16 %v41
    %v91 = vunpack.c.h.b16 %v41
    %v92 = vpack.c.b16 %v90, %v88
    %v93 = vpack.c.b16 %v91, %v89
    %v128 = vunpack.c.l.b16 %v42
    %v129 = vunpack.c.h.b16 %v42
    %v130 = vunpack.c.l.b16 %v43
    %v131 = vunpack.c.h.b16 %v43
    %v132 = vunpack.c.l.b16 %v44
    %v133 = vunpack.c.h.b16 %v44
    %v134 = vunpack.c.l.b16 %v45
    %v135 = vunpack.c.h.b16 %v45
    %v136 = vunpack.c.l.b16 %v46
    %v137 = vunpack.c.h.b16 %v46
    %v138 = vunpack.c.l.b16 %v47
    %v139 = vunpack.c.h.b16 %v47
    %v140 = vunpack.c.l.b16 %v48
    %v141 = vunpack.c.h.b16 %v48
    %v142 = vunpack.c.l.b16 %v49
    %v143 = vunpack.c.h.b16 %v49
    %v144 = vunpack.c.l.b16 %v50
    %v145 = vunpack.c.h.b16 %v50
    %v146 = vunpack.c.l.b16 %v51
    %v147 = vunpack.c.h.b16 %v51
    %v148 = vunpack.c.l.b16 %v52
    %v149 = vunpack.c.h.b16 %v52
    %v150 = vunpack.c.l.b16 %v53
    %v151 = vunpack.c.h.b16 %v53
    %v152 = vunpack.c.l.b16 %v54
    %v153 = vunpack.c.h.b16 %v54
    %v154 = vunpack.c.l.b16 %v55
    %v155 = vunpack.c.h.b16 %v55
    %v156 = vunpack.c.l.b16 %v56
    %v157 = vunpack.c.h.b16 %v56
    %v158 = vunpack.c.l.b16 %v57
    %v159 = vunpack.c.h.b16 %v57
    %v160 = vunpack.c.l.b16 %v58
    %v161 = vunpack.c.h.b16 %v58
    %v162 = vunpack.c.l.b16 %v59
    %v163 = vunpack.c.h.b16 %v59
    %v164 = vunpack.c.l.b16 %v60
    %v165 = vunpack.c.h.b16 %v60
    %v166 = vunpack.c.l.b16 %v61
    %v167 = vunpack.c.h.b16 %v61
    %v168 = vunpack.c.l.b16 %v62
    %v169 = vunpack.c.h.b16 %v62
    %v170 = vunpack.c.l.b16 %v63
    %v171 = vunpack.c.h.b16 %v63
    %v172 = vunpack.c.l.b16 %v64
    %v173 = vunpack.c.h.b16 %v64
    %v174 = vunpack.c.l.b16 %v65
    %v175 = vunpack.c.h.b16 %v65
    %v176 = vunpack.c.l.b16 %v66
    %v177 = vunpack.c.h.b16 %v66
    %v178 = vunpack.c.l.b16 %v67
    %v179 = vunpack.c.h.b16 %v67
    %v180 = vunpack.c.l.b16 %v68
    %v181 = vunpack.c.h.b16 %v68
    %v182 = vunpack.c.l.b16 %v69
    %v183 = vunpack.c.h.b16 %v69
    %v184 = vunpack.c.l.b16 %v70
    %v185 = vunpack.c.h.b16 %v70
    %v186 = vunpack.c.l.b16 %v71
    %v187 = vunpack.c.h.b16 %v71
    %v188 = vunpack.c.l.b16 %v72
    %v189 = vunpack.c.h.b16 %v72
    %v190 = vunpack.c.l.b16 %v73
    %v191 = vunpack.c.h.b16 %v73
    %v192 = vpack.c.b16 %v130, %v128
    %v193 = vpack.c.b16 %v131, %v129
    %v194 = vpack.c.b16 %v134, %v132
    %v195 = vpack.c.b16 %v135, %v133
    %v196 = vpack.c.b16 %v138, %v136
    %v197 = vpack.c.b16 %v139, %v137
    %v198 = vpack.c.b16 %v142, %v140
    %v199 = vpack.c.b16 %v143, %v141
    %v200 = vpack.c.b16 %v146, %v144
    %v201 = vpack.c.b16 %v147, %v145
    %v202 = vpack.c.b16 %v150, %v148
    %v203 = vpack.c.b16 %v151, %v149
    %v204 = vpack.c.b16 %v154, %v152
    %v205 = vpack.c.b16 %v155, %v153
    %v206 = vpack.c.b16 %v158, %v156
    %v207 = vpack.c.b16 %v159, %v157
    %v208 = vpack.c.b16 %v162, %v160
    %v209 = vpack.c.b16 %v163, %v161
    %v210 = vpack.c.b16 %v166, %v164
    %v211 = vpack.c.b16 %v167, %v165
    %v212 = vpack.c.b16 %v170, %v168
    %v213 = vpack.c.b16 %v171, %v169
    %v214 = vpack.c.b16 %v174, %v172
    %v215 = vpack.c.b16 %v175, %v173
    %v216 = vpack.c.b16 %v178, %v176
    %v217 = vpack.c.b16 %v179, %v177
    %v218 = vpack.c.b16 %v182, %v180
    %v219 = vpack.c.b16 %v183, %v181
    %v220 = vpack.c.b16 %v186, %v184
    %v221 = vpack.c.b16 %v187, %v185
    %v222 = vpack.c.b16 %v190, %v188
    %v223 = vpack.c.b16 %v191, %v189
    %256 = vmatprep.subr.bf16.mxu0 %v207
    %257 = vmatpush1.bf16.msra.mxu0 %v206
    %258 = vmatprep.subr.bf16.mxu0 %v205
    %259 = vmatpush1.bf16.msra.mxu0 %v204
    %260 = vmatprep.subr.bf16.mxu0 %v203
    %261 = vmatpush1.bf16.msra.mxu0 %v202
    %262 = vmatprep.subr.bf16.mxu0 %v201
    %263 = vmatpush1.bf16.msra.mxu0 %v200
    %264 = vmatprep.subr.bf16.mxu0 %v199
    %265 = vmatpush1.bf16.msra.mxu0 %v198
    %266 = vmatprep.subr.bf16.mxu0 %v197
    %267 = vmatpush1.bf16.msra.mxu0 %v196
    %268 = vmatprep.subr.bf16.mxu0 %v195
    %269 = vmatpush1.bf16.msra.mxu0 %v194
    %270 = vmatprep.subr.bf16.mxu0 %v193
    %271 = vmatpush1.bf16.msra.mxu0 %v192
    %272 = vmatprep.subr.bf16.mxu0 %v223
    %273 = vmatpush2.bf16.msra.mxu0 %v222
    %274 = vmatprep.subr.bf16.mxu0 %v221
    %275 = vmatpush2.bf16.msra.mxu0 %v220
    %276 = vmatprep.subr.bf16.mxu0 %v219
    %277 = vmatpush2.bf16.msra.mxu0 %v218
    %278 = vmatprep.subr.bf16.mxu0 %v217
    %279 = vmatpush2.bf16.msra.mxu0 %v216
    %280 = vmatprep.subr.bf16.mxu0 %v215
    %281 = vmatpush2.bf16.msra.mxu0 %v214
    %282 = vmatprep.subr.bf16.mxu0 %v213
    %283 = vmatpush2.bf16.msra.mxu0 %v212
    %284 = vmatprep.subr.bf16.mxu0 %v211
    %285 = vmatpush2.bf16.msra.mxu0 %v210
    %286 = vmatprep.subr.bf16.mxu0 %v209
    %287 = vmatpush2.bf16.msra.mxu0 %v208
    %288 = vmatprep.mubr.bf16.mxu0 %v93
    %289 = vmatmul.mubr.bf16.gmra.mxu0 %v92
    %v290 = vpop.f32.mrf.mxu0
    %v291 = vadd.f32 %v79, %v290
    %v292 = vpop.f32.mrf.mxu0
    %v293 = vadd.f32 %v83, %v292
    %v294 = vpop.f32.mrf.mxu0
    %v295 = vadd.f32 %v79, %v294
    %v296 = vpop.f32.mrf.mxu0
    %v297 = vadd.f32 %v83, %v296
    %298 = vdwg.mxu0
    %vm299 = vcmp.gt.f32.partialorder %v291, 0.0
    %vm300 = vcmp.gt.f32.partialorder %v293, 0.0
    %vm301 = vcmp.gt.f32.partialorder %v295, 0.0
    %vm302 = vcmp.gt.f32.partialorder %v297, 0.0
    %v303 = vsel %vm299, %v291, 20.0
    %v304 = vsel %vm300, %v293, 20.0
    %v305 = vsel %vm301, %v295, 20.0
    %v306 = vsel %vm302, %v297, 20.0
    %v307 = vpack.c.bf16 %v305, %v303
    %v308 = vpack.c.bf16 %v306, %v304
    %v311 = vunpack.c.l.b16 %v307
    %v312 = vunpack.c.l.b16 %v308
    %v313 = vunpack.c.h.b16 %v307
    %v314 = vunpack.c.h.b16 %v308
    %v315 = vpack.c.b16 %v312, %v311
    %v316 = vpack.c.b16 %v314, %v313
    %319 = vst [vmem:[%s3] sm:$0xff] %v315
    %320 = vst [vmem:[%s3 + $0x8] sm:$0xff] %v316
    // Predicated region
    $region22: #{deepspeech_forward.8} parent=1 // pred_check
      _
    $region23: #{deepspeech_forward.8} parent=1 // pred_check_branch
      %322 = sbr.rel (0) target = $region25
    $region24: #{deepspeech_forward.8} parent=1 // pred_region
      _
    $region25: #{deepspeech_forward.8} parent=1 // pred_fallthru
      _
    // Predicated region
    $region26: #{deepspeech_forward.8} parent=1 // pred_check
      _
    $region27: #{deepspeech_forward.8} parent=1 // pred_check_branch
      %324 = sbr.rel (0) target = $region29
    $region28: #{deepspeech_forward.8} parent=1 // pred_region
      _
    $region29: #{deepspeech_forward.8} parent=1 // pred_fallthru
      _
    %325 = vsyncpa [#allocation3], 1
    %326 = vsyncpa [#allocation5], 1

// kernel: deepspeech_forward.7
$region0: #{deepspeech_forward.7}
  #allocation0 [shape = 'u32[]', space=smem, size = 0x4, offset = 0x4, fixed_abs, tag = 'smem constant byte address 0x4 - core index']
  #allocation1 [shape = 'u32[144,128]{1,0:T(1,128)}', space=vmem, size = 0x12000, scoped, tag = 'internal scratch']
  %s0 = inlined_call_operand.vmem [shape: bf16[16,512], index: 0, kind: input, shape index: {}]
  %s1 = inlined_call_operand.hbm [shape: bf16[512,256], index: 1, kind: input, shape index: {}]
  %s2 = inlined_call_operand.hbm [shape: f32[1,256], index: 2, kind: input, shape index: {}]
  %s3 = inlined_call_operand.vmem [shape: bf16[16,256], index: 3, kind: output, shape index: {}]
  %s4 = sld [smem:[#allocation0]]
  $region30: #{deepspeech_forward.7} parent=0
    _
  %s6 = ssub.s32 1, %s4
  %s7 = scalar_select 0, %s6, %s4
  $region1: #{deepspeech_forward.7} parent=0
    #allocation2 [shape = 'u8[262144]{0}', space=vmem, size = 0x40000, scoped, tag = 'input window, operand 1, single buffered']
    #allocation3 [shape = 's32[1]{0}', space=sflag, size = 0x4, scoped, tag = 'scoped memory for deepspeech_forward.7']
    #allocation4 [shape = 'u8[1024]{0}', space=vmem, size = 0x400, scoped, tag = 'input window, operand 2, single buffered']
    #allocation5 [shape = 's32[1]{0}', space=sflag, size = 0x4, scoped, tag = 'scoped memory for deepspeech_forward.7']
    %8 = vsyncpa [#allocation3], 0
    %9 = vsyncpa [#allocation5], 0
    // Predicated region
    $region2: #{deepspeech_forward.7} parent=1 // pred_check
      _
    $region3: #{deepspeech_forward.7} parent=1 // pred_check_branch
      %11 = sbr.rel (0) target = $region5
    $region4: #{deepspeech_forward.7} parent=1 // pred_region
      _
    $region5: #{deepspeech_forward.7} parent=1 // pred_fallthru
      _
    // Predicated region
    $region6: #{deepspeech_forward.7} parent=1 // pred_check
      _
    $region7: #{deepspeech_forward.7} parent=1 // pred_check_branch
      %13 = sbr.rel (0) target = $region9
    $region8: #{deepspeech_forward.7} parent=1 // pred_region
      %s15 = ssub.s32 8192, 8192
      %16 = vsyncadd [#allocation3], %s15
      %s17 = sshll.u32 [#allocation2], 4
      %s18 = int_to_ptr.vmem [resolvable:$true] %s17
      %23 = dma.hbm_to_vmem [thread:$0]  %s1, 8192, %s18, [#allocation3], 128, 128, 8
    $region9: #{deepspeech_forward.7} parent=1 // pred_fallthru
      _
    // Predicated region
    $region10: #{deepspeech_forward.7} parent=1 // pred_check
      _
    $region11: #{deepspeech_forward.7} parent=1 // pred_check_branch
      %25 = sbr.rel (0) target = $region13
    $region12: #{deepspeech_forward.7} parent=1 // pred_region
      %s27 = ssub.s32 32, 32
      %28 = vsyncadd [#allocation5], %s27
      %s30 = sshll.u32 [#allocation4], 4
      %s31 = int_to_ptr.vmem [resolvable:$true] %s30
      %33 = dma.hbm_to_vmem [thread:$0]  %s2, 32, %s31, [#allocation5]
    $region13: #{deepspeech_forward.7} parent=1 // pred_fallthru
      _
    // Predicated region
    $region14: #{deepspeech_forward.7} parent=1 // pred_check
      _
    $region15: #{deepspeech_forward.7} parent=1 // pred_check_branch
      %35 = sbr.rel (0) target = $region17
    $region16: #{deepspeech_forward.7} parent=1 // pred_region
      %36 = dma.done [#allocation3], 8192
    $region17: #{deepspeech_forward.7} parent=1 // pred_fallthru
      _
    // Predicated region
    $region18: #{deepspeech_forward.7} parent=1 // pred_check
      _
    $region19: #{deepspeech_forward.7} parent=1 // pred_check_branch
      %38 = sbr.rel (0) target = $region21
    $region20: #{deepspeech_forward.7} parent=1 // pred_region
      %39 = dma.done [#allocation5], 32
    $region21: #{deepspeech_forward.7} parent=1 // pred_fallthru
      _
    %v40 = vld [vmem:[%s0] sm:$0xff]
    %v41 = vld [vmem:[%s0 + $0x8] sm:$0xff]
    %v42 = vld [vmem:[%s0 + $0x10] sm:$0xff]
    %v43 = vld [vmem:[%s0 + $0x18] sm:$0xff]
    %v44 = vld [vmem:[#allocation2] sm:$0xff]
    %v45 = vld [vmem:[#allocation2 + $0x8] sm:$0xff]
    %v46 = vld [vmem:[#allocation2 + $0x10] sm:$0xff]
    %v47 = vld [vmem:[#allocation2 + $0x18] sm:$0xff]
    %v48 = vld [vmem:[#allocation2 + $0x20] sm:$0xff]
    %v49 = vld [vmem:[#allocation2 + $0x28] sm:$0xff]
    %v50 = vld [vmem:[#allocation2 + $0x30] sm:$0xff]
    %v51 = vld [vmem:[#allocation2 + $0x38] sm:$0xff]
    %v52 = vld [vmem:[#allocation2 + $0x40] sm:$0xff]
    %v53 = vld [vmem:[#allocation2 + $0x48] sm:$0xff]
    %v54 = vld [vmem:[#allocation2 + $0x50] sm:$0xff]
    %v55 = vld [vmem:[#allocation2 + $0x58] sm:$0xff]
    %v56 = vld [vmem:[#allocation2 + $0x60] sm:$0xff]
    %v57 = vld [vmem:[#allocation2 + $0x68] sm:$0xff]
    %v58 = vld [vmem:[#allocation2 + $0x70] sm:$0xff]
    %v59 = vld [vmem:[#allocation2 + $0x78] sm:$0xff]
    %v60 = vld [vmem:[#allocation2 + $0x80] sm:$0xff]
    %v61 = vld [vmem:[#allocation2 + $0x88] sm:$0xff]
    %v62 = vld [vmem:[#allocation2 + $0x90] sm:$0xff]
    %v63 = vld [vmem:[#allocation2 + $0x98] sm:$0xff]
    %v64 = vld [vmem:[#allocation2 + $0xa0] sm:$0xff]
    %v65 = vld [vmem:[#allocation2 + $0xa8] sm:$0xff]
    %v66 = vld [vmem:[#allocation2 + $0xb0] sm:$0xff]
    %v67 = vld [vmem:[#allocation2 + $0xb8] sm:$0xff]
    %v68 = vld [vmem:[#allocation2 + $0xc0] sm:$0xff]
    %v69 = vld [vmem:[#allocation2 + $0xc8] sm:$0xff]
    %v70 = vld [vmem:[#allocation2 + $0xd0] sm:$0xff]
    %v71 = vld [vmem:[#allocation2 + $0xd8] sm:$0xff]
    %v72 = vld [vmem:[#allocation2 + $0xe0] sm:$0xff]
    %v73 = vld [vmem:[#allocation2 + $0xe8] sm:$0xff]
    %v74 = vld [vmem:[#allocation2 + $0xf0] sm:$0xff]
    %v75 = vld [vmem:[#allocation2 + $0xf8] sm:$0xff]
    %v76 = vld [vmem:[#allocation2 + $0x100] sm:$0xff]
    %v77 = vld [vmem:[#allocation2 + $0x108] sm:$0xff]
    %v78 = vld [vmem:[#allocation2 + $0x110] sm:$0xff]
    %v79 = vld [vmem:[#allocation2 + $0x118] sm:$0xff]
    %v80 = vld [vmem:[#allocation2 + $0x120] sm:$0xff]
    %v81 = vld [vmem:[#allocation2 + $0x128] sm:$0xff]
    %v82 = vld [vmem:[#allocation2 + $0x130] sm:$0xff]
    %v83 = vld [vmem:[#allocation2 + $0x138] sm:$0xff]
    %v84 = vld [vmem:[#allocation2 + $0x140] sm:$0xff]
    %v85 = vld [vmem:[#allocation2 + $0x148] sm:$0xff]
    %v86 = vld [vmem:[#allocation2 + $0x150] sm:$0xff]
    %v87 = vld [vmem:[#allocation2 + $0x158] sm:$0xff]
    %v88 = vld [vmem:[#allocation2 + $0x160] sm:$0xff]
    %v89 = vld [vmem:[#allocation2 + $0x168] sm:$0xff]
    %v90 = vld [vmem:[#allocation2 + $0x170] sm:$0xff]
    %v91 = vld [vmem:[#allocation2 + $0x178] sm:$0xff]
    %v92 = vld [vmem:[#allocation2 + $0x180] sm:$0xff]
    %v93 = vld [vmem:[#allocation2 + $0x188] sm:$0xff]
    %v94 = vld [vmem:[#allocation2 + $0x190] sm:$0xff]
    %v95 = vld [vmem:[#allocation2 + $0x198] sm:$0xff]
    %v96 = vld [vmem:[#allocation2 + $0x1a0] sm:$0xff]
    %v97 = vld [vmem:[#allocation2 + $0x1a8] sm:$0xff]
    %v98 = vld [vmem:[#allocation2 + $0x1b0] sm:$0xff]
    %v99 = vld [vmem:[#allocation2 + $0x1b8] sm:$0xff]
    %v100 = vld [vmem:[#allocation2 + $0x1c0] sm:$0xff]
    %v101 = vld [vmem:[#allocation2 + $0x1c8] sm:$0xff]
    %v102 = vld [vmem:[#allocation2 + $0x1d0] sm:$0xff]
    %v103 = vld [vmem:[#allocation2 + $0x1d8] sm:$0xff]
    %v104 = vld [vmem:[#allocation2 + $0x1e0] sm:$0xff]
    %v105 = vld [vmem:[#allocation2 + $0x1e8] sm:$0xff]
    %v106 = vld [vmem:[#allocation2 + $0x1f0] sm:$0xff]
    %v107 = vld [vmem:[#allocation2 + $0x1f8] sm:$0xff]
    %v108 = vld [vmem:[#allocation4] sm:$0x3]
    %v110 = vlaneseq
    %v111 = vshrl.u32 %v110, 7
    %v112 = vsub.s32 0, %v111
    %v113 = vrot.slane %v108, %v112
    %v114 = vlaneseq
    %v115 = vshrl.u32 %v114, 7
    %v116 = vsub.s32 1, %v115
    %v117 = vrot.slane %v108, %v116
    %v124 = vunpack.c.l.b16 %v40
    %v125 = vunpack.c.h.b16 %v40
    %v126 = vunpack.c.l.b16 %v41
    %v127 = vunpack.c.h.b16 %v41
    %v128 = vunpack.c.l.b16 %v42
    %v129 = vunpack.c.h.b16 %v42
    %v130 = vunpack.c.l.b16 %v43
    %v131 = vunpack.c.h.b16 %v43
    %v132 = vpack.c.b16 %v128, %v124
    %v133 = vpack.c.b16 %v129, %v125
    %v134 = vpack.c.b16 %v130, %v126
    %v135 = vpack.c.b16 %v131, %v127
    %v204 = vunpack.c.l.b16 %v44
    %v205 = vunpack.c.h.b16 %v44
    %v206 = vunpack.c.l.b16 %v45
    %v207 = vunpack.c.h.b16 %v45
    %v208 = vunpack.c.l.b16 %v46
    %v209 = vunpack.c.h.b16 %v46
    %v210 = vunpack.c.l.b16 %v47
    %v211 = vunpack.c.h.b16 %v47
    %v212 = vunpack.c.l.b16 %v48
    %v213 = vunpack.c.h.b16 %v48
    %v214 = vunpack.c.l.b16 %v49
    %v215 = vunpack.c.h.b16 %v49
    %v216 = vunpack.c.l.b16 %v50
    %v217 = vunpack.c.h.b16 %v50
    %v218 = vunpack.c.l.b16 %v51
    %v219 = vunpack.c.h.b16 %v51
    %v220 = vunpack.c.l.b16 %v52
    %v221 = vunpack.c.h.b16 %v52
    %v222 = vunpack.c.l.b16 %v53
    %v223 = vunpack.c.h.b16 %v53
    %v224 = vunpack.c.l.b16 %v54
    %v225 = vunpack.c.h.b16 %v54
    %v226 = vunpack.c.l.b16 %v55
    %v227 = vunpack.c.h.b16 %v55
    %v228 = vunpack.c.l.b16 %v56
    %v229 = vunpack.c.h.b16 %v56
    %v230 = vunpack.c.l.b16 %v57
    %v231 = vunpack.c.h.b16 %v57
    %v232 = vunpack.c.l.b16 %v58
    %v233 = vunpack.c.h.b16 %v58
    %v234 = vunpack.c.l.b16 %v59
    %v235 = vunpack.c.h.b16 %v59
    %v236 = vunpack.c.l.b16 %v60
    %v237 = vunpack.c.h.b16 %v60
    %v238 = vunpack.c.l.b16 %v61
    %v239 = vunpack.c.h.b16 %v61
    %v240 = vunpack.c.l.b16 %v62
    %v241 = vunpack.c.h.b16 %v62
    %v242 = vunpack.c.l.b16 %v63
    %v243 = vunpack.c.h.b16 %v63
    %v244 = vunpack.c.l.b16 %v64
    %v245 = vunpack.c.h.b16 %v64
    %v246 = vunpack.c.l.b16 %v65
    %v247 = vunpack.c.h.b16 %v65
    %v248 = vunpack.c.l.b16 %v66
    %v249 = vunpack.c.h.b16 %v66
    %v250 = vunpack.c.l.b16 %v67
    %v251 = vunpack.c.h.b16 %v67
    %v252 = vunpack.c.l.b16 %v68
    %v253 = vunpack.c.h.b16 %v68
    %v254 = vunpack.c.l.b16 %v69
    %v255 = vunpack.c.h.b16 %v69
    %v256 = vunpack.c.l.b16 %v70
    %v257 = vunpack.c.h.b16 %v70
    %v258 = vunpack.c.l.b16 %v71
    %v259 = vunpack.c.h.b16 %v71
    %v260 = vunpack.c.l.b16 %v72
    %v261 = vunpack.c.h.b16 %v72
    %v262 = vunpack.c.l.b16 %v73
    %v263 = vunpack.c.h.b16 %v73
    %v264 = vunpack.c.l.b16 %v74
    %v265 = vunpack.c.h.b16 %v74
    %v266 = vunpack.c.l.b16 %v75
    %v267 = vunpack.c.h.b16 %v75
    %v268 = vunpack.c.l.b16 %v76
    %v269 = vunpack.c.h.b16 %v76
    %v270 = vunpack.c.l.b16 %v77
    %v271 = vunpack.c.h.b16 %v77
    %v272 = vunpack.c.l.b16 %v78
    %v273 = vunpack.c.h.b16 %v78
    %v274 = vunpack.c.l.b16 %v79
    %v275 = vunpack.c.h.b16 %v79
    %v276 = vunpack.c.l.b16 %v80
    %v277 = vunpack.c.h.b16 %v80
    %v278 = vunpack.c.l.b16 %v81
    %v279 = vunpack.c.h.b16 %v81
    %v280 = vunpack.c.l.b16 %v82
    %v281 = vunpack.c.h.b16 %v82
    %v282 = vunpack.c.l.b16 %v83
    %v283 = vunpack.c.h.b16 %v83
    %v284 = vunpack.c.l.b16 %v84
    %v285 = vunpack.c.h.b16 %v84
    %v286 = vunpack.c.l.b16 %v85
    %v287 = vunpack.c.h.b16 %v85
    %v288 = vunpack.c.l.b16 %v86
    %v289 = vunpack.c.h.b16 %v86
    %v290 = vunpack.c.l.b16 %v87
    %v291 = vunpack.c.h.b16 %v87
    %v292 = vunpack.c.l.b16 %v88
    %v293 = vunpack.c.h.b16 %v88
    %v294 = vunpack.c.l.b16 %v89
    %v295 = vunpack.c.h.b16 %v89
    %v296 = vunpack.c.l.b16 %v90
    %v297 = vunpack.c.h.b16 %v90
    %v298 = vunpack.c.l.b16 %v91
    %v299 = vunpack.c.h.b16 %v91
    %v300 = vunpack.c.l.b16 %v92
    %v301 = vunpack.c.h.b16 %v92
    %v302 = vunpack.c.l.b16 %v93
    %v303 = vunpack.c.h.b16 %v93
    %v304 = vunpack.c.l.b16 %v94
    %v305 = vunpack.c.h.b16 %v94
    %v306 = vunpack.c.l.b16 %v95
    %v307 = vunpack.c.h.b16 %v95
    %v308 = vunpack.c.l.b16 %v96
    %v309 = vunpack.c.h.b16 %v96
    %v310 = vunpack.c.l.b16 %v97
    %v311 = vunpack.c.h.b16 %v97
    %v312 = vunpack.c.l.b16 %v98
    %v313 = vunpack.c.h.b16 %v98
    %v314 = vunpack.c.l.b16 %v99
    %v315 = vunpack.c.h.b16 %v99
    %v316 = vunpack.c.l.b16 %v100
    %v317 = vunpack.c.h.b16 %v100
    %v318 = vunpack.c.l.b16 %v101
    %v319 = vunpack.c.h.b16 %v101
    %v320 = vunpack.c.l.b16 %v102
    %v321 = vunpack.c.h.b16 %v102
    %v322 = vunpack.c.l.b16 %v103
    %v323 = vunpack.c.h.b16 %v103
    %v324 = vunpack.c.l.b16 %v104
    %v325 = vunpack.c.h.b16 %v104
    %v326 = vunpack.c.l.b16 %v105
    %v327 = vunpack.c.h.b16 %v105
    %v328 = vunpack.c.l.b16 %v106
    %v329 = vunpack.c.h.b16 %v106
    %v330 = vunpack.c.l.b16 %v107
    %v331 = vunpack.c.h.b16 %v107
    %v332 = vpack.c.b16 %v206, %v204
    %v333 = vpack.c.b16 %v207, %v205
    %v334 = vpack.c.b16 %v210, %v208
    %v335 = vpack.c.b16 %v211, %v209
    %v336 = vpack.c.b16 %v214, %v212
    %v337 = vpack.c.b16 %v215, %v213
    %v338 = vpack.c.b16 %v218, %v216
    %v339 = vpack.c.b16 %v219, %v217
    %v340 = vpack.c.b16 %v222, %v220
    %v341 = vpack.c.b16 %v223, %v221
    %v342 = vpack.c.b16 %v226, %v224
    %v343 = vpack.c.b16 %v227, %v225
    %v344 = vpack.c.b16 %v230, %v228
    %v345 = vpack.c.b16 %v231, %v229
    %v346 = vpack.c.b16 %v234, %v232
    %v347 = vpack.c.b16 %v235, %v233
    %v348 = vpack.c.b16 %v238, %v236
    %v349 = vpack.c.b16 %v239, %v237
    %v350 = vpack.c.b16 %v242, %v240
    %v351 = vpack.c.b16 %v243, %v241
    %v352 = vpack.c.b16 %v246, %v244
    %v353 = vpack.c.b16 %v247, %v245
    %v354 = vpack.c.b16 %v250, %v248
    %v355 = vpack.c.b16 %v251, %v249
    %v356 = vpack.c.b16 %v254, %v252
    %v357 = vpack.c.b16 %v255, %v253
    %v358 = vpack.c.b16 %v258, %v256
    %v359 = vpack.c.b16 %v259, %v257
    %v360 = vpack.c.b16 %v262, %v260
    %v361 = vpack.c.b16 %v263, %v261
    %v362 = vpack.c.b16 %v266, %v264
    %v363 = vpack.c.b16 %v267, %v265
    %v364 = vpack.c.b16 %v270, %v268
    %v365 = vpack.c.b16 %v271, %v269
    %v366 = vpack.c.b16 %v274, %v272
    %v367 = vpack.c.b16 %v275, %v273
    %v368 = vpack.c.b16 %v278, %v276
    %v369 = vpack.c.b16 %v279, %v277
    %v370 = vpack.c.b16 %v282, %v280
    %v371 = vpack.c.b16 %v283, %v281
    %v372 = vpack.c.b16 %v286, %v284
    %v373 = vpack.c.b16 %v287, %v285
    %v374 = vpack.c.b16 %v290, %v288
    %v375 = vpack.c.b16 %v291, %v289
    %v376 = vpack.c.b16 %v294, %v292
    %v377 = vpack.c.b16 %v295, %v293
    %v378 = vpack.c.b16 %v298, %v296
    %v379 = vpack.c.b16 %v299, %v297
    %v380 = vpack.c.b16 %v302, %v300
    %v381 = vpack.c.b16 %v303, %v301
    %v382 = vpack.c.b16 %v306, %v304
    %v383 = vpack.c.b16 %v307, %v305
    %v384 = vpack.c.b16 %v310, %v308
    %v385 = vpack.c.b16 %v311, %v309
    %v386 = vpack.c.b16 %v314, %v312
    %v387 = vpack.c.b16 %v315, %v313
    %v388 = vpack.c.b16 %v318, %v316
    %v389 = vpack.c.b16 %v319, %v317
    %v390 = vpack.c.b16 %v322, %v320
    %v391 = vpack.c.b16 %v323, %v321
    %v392 = vpack.c.b16 %v326, %v324
    %v393 = vpack.c.b16 %v327, %v325
    %v394 = vpack.c.b16 %v330, %v328
    %v395 = vpack.c.b16 %v331, %v329
    %460 = vmatprep.subr.bf16.mxu0 %v347
    %461 = vmatpush1.bf16.msra.mxu0 %v346
    %462 = vmatprep.subr.bf16.mxu0 %v345
    %463 = vmatpush1.bf16.msra.mxu0 %v344
    %464 = vmatprep.subr.bf16.mxu0 %v343
    %465 = vmatpush1.bf16.msra.mxu0 %v342
    %466 = vmatprep.subr.bf16.mxu0 %v341
    %467 = vmatpush1.bf16.msra.mxu0 %v340
    %468 = vmatprep.subr.bf16.mxu0 %v339
    %469 = vmatpush1.bf16.msra.mxu0 %v338
    %470 = vmatprep.subr.bf16.mxu0 %v337
    %471 = vmatpush1.bf16.msra.mxu0 %v336
    %472 = vmatprep.subr.bf16.mxu0 %v335
    %473 = vmatpush1.bf16.msra.mxu0 %v334
    %474 = vmatprep.subr.bf16.mxu0 %v333
    %475 = vmatpush1.bf16.msra.mxu0 %v332
    %476 = vmatprep.subr.bf16.mxu0 %v363
    %477 = vmatpush2.bf16.msra.mxu0 %v362
    %478 = vmatprep.subr.bf16.mxu0 %v361
    %479 = vmatpush2.bf16.msra.mxu0 %v360
    %480 = vmatprep.subr.bf16.mxu0 %v359
    %481 = vmatpush2.bf16.msra.mxu0 %v358
    %482 = vmatprep.subr.bf16.mxu0 %v357
    %483 = vmatpush2.bf16.msra.mxu0 %v356
    %484 = vmatprep.subr.bf16.mxu0 %v355
    %485 = vmatpush2.bf16.msra.mxu0 %v354
    %486 = vmatprep.subr.bf16.mxu0 %v353
    %487 = vmatpush2.bf16.msra.mxu0 %v352
    %488 = vmatprep.subr.bf16.mxu0 %v351
    %489 = vmatpush2.bf16.msra.mxu0 %v350
    %490 = vmatprep.subr.bf16.mxu0 %v349
    %491 = vmatpush2.bf16.msra.mxu0 %v348
    %492 = vmatprep.mubr.bf16.mxu0 %v133
    %493 = vmatmul.mubr.bf16.gmra.mxu0 %v132
    %v494 = vpop.f32.mrf.mxu0
    %v495 = vadd.f32 %v113, %v494
    %v496 = vpop.f32.mrf.mxu0
    %v497 = vadd.f32 %v117, %v496
    %v498 = vpop.f32.mrf.mxu0
    %v499 = vadd.f32 %v113, %v498
    %v500 = vpop.f32.mrf.mxu0
    %v501 = vadd.f32 %v117, %v500
    %502 = vdwg.mxu0
    %503 = vmatprep.subr.bf16.mxu0 %v379
    %504 = vmatpush1.bf16.msra.mxu0 %v378
    %505 = vmatprep.subr.bf16.mxu0 %v377
    %506 = vmatpush1.bf16.msra.mxu0 %v376
    %507 = vmatprep.subr.bf16.mxu0 %v375
    %508 = vmatpush1.bf16.msra.mxu0 %v374
    %509 = vmatprep.subr.bf16.mxu0 %v373
    %510 = vmatpush1.bf16.msra.mxu0 %v372
    %511 = vmatprep.subr.bf16.mxu0 %v371
    %512 = vmatpush1.bf16.msra.mxu0 %v370
    %513 = vmatprep.subr.bf16.mxu0 %v369
    %514 = vmatpush1.bf16.msra.mxu0 %v368
    %515 = vmatprep.subr.bf16.mxu0 %v367
    %516 = vmatpush1.bf16.msra.mxu0 %v366
    %517 = vmatprep.subr.bf16.mxu0 %v365
    %518 = vmatpush1.bf16.msra.mxu0 %v364
    %519 = vmatprep.subr.bf16.mxu0 %v395
    %520 = vmatpush2.bf16.msra.mxu0 %v394
    %521 = vmatprep.subr.bf16.mxu0 %v393
    %522 = vmatpush2.bf16.msra.mxu0 %v392
    %523 = vmatprep.subr.bf16.mxu0 %v391
    %524 = vmatpush2.bf16.msra.mxu0 %v390
    %525 = vmatprep.subr.bf16.mxu0 %v389
    %526 = vmatpush2.bf16.msra.mxu0 %v388
    %527 = vmatprep.subr.bf16.mxu0 %v387
    %528 = vmatpush2.bf16.msra.mxu0 %v386
    %529 = vmatprep.subr.bf16.mxu0 %v385
    %530 = vmatpush2.bf16.msra.mxu0 %v384
    %531 = vmatprep.subr.bf16.mxu0 %v383
    %532 = vmatpush2.bf16.msra.mxu0 %v382
    %533 = vmatprep.subr.bf16.mxu0 %v381
    %534 = vmatpush2.bf16.msra.mxu0 %v380
    %535 = vmatprep.mubr.bf16.mxu0 %v135
    %536 = vmatmul.mubr.bf16.gmra.mxu0 %v134
    %v537 = vpop.f32.mrf.mxu0
    %v538 = vadd.f32 %v495, %v537
    %v539 = vpop.f32.mrf.mxu0
    %v540 = vadd.f32 %v497, %v539
    %v541 = vpop.f32.mrf.mxu0
    %v542 = vadd.f32 %v499, %v541
    %v543 = vpop.f32.mrf.mxu0
    %v544 = vadd.f32 %v501, %v543
    %545 = vdwg.mxu0
    %vm546 = vcmp.gt.f32.partialorder %v538, 0.0
    %vm547 = vcmp.gt.f32.partialorder %v540, 0.0
    %vm548 = vcmp.gt.f32.partialorder %v542, 0.0
    %vm549 = vcmp.gt.f32.partialorder %v544, 0.0
    %v550 = vsel %vm546, %v538, 20.0
    %v551 = vsel %vm547, %v540, 20.0
    %v552 = vsel %vm548, %v542, 20.0
    %v553 = vsel %vm549, %v544, 20.0
    %v554 = vpack.c.bf16 %v552, %v550
    %v555 = vpack.c.bf16 %v553, %v551
    %v558 = vunpack.c.l.b16 %v554
    %v559 = vunpack.c.l.b16 %v555
    %v560 = vunpack.c.h.b16 %v554
    %v561 = vunpack.c.h.b16 %v555
    %v562 = vpack.c.b16 %v559, %v558
    %v563 = vpack.c.b16 %v561, %v560
    %566 = vst [vmem:[%s3] sm:$0xff] %v562
    %567 = vst [vmem:[%s3 + $0x8] sm:$0xff] %v563
    // Predicated region
    $region22: #{deepspeech_forward.7} parent=1 // pred_check
      _
    $region23: #{deepspeech_forward.7} parent=1 // pred_check_branch
      %569 = sbr.rel (0) target = $region25
    $region24: #{deepspeech_forward.7} parent=1 // pred_region
      _
    $region25: #{deepspeech_forward.7} parent=1 // pred_fallthru
      _
    // Predicated region
    $region26: #{deepspeech_forward.7} parent=1 // pred_check
      _
    $region27: #{deepspeech_forward.7} parent=1 // pred_check_branch
      %571 = sbr.rel (0) target = $region29
    $region28: #{deepspeech_forward.7} parent=1 // pred_region
      _
    $region29: #{deepspeech_forward.7} parent=1 // pred_fallthru
      _
    %572 = vsyncpa [#allocation3], 1
    %573 = vsyncpa [#allocation5], 1

// kernel: deepspeech_forward.10
$region0: #{deepspeech_forward.10}
  #allocation0 [shape = 'u32[]', space=smem, size = 0x4, offset = 0x4, fixed_abs, tag = 'smem constant byte address 0x4 - core index']
  #allocation1 [shape = 'u32[144,128]{1,0:T(1,128)}', space=vmem, size = 0x12000, scoped, tag = 'internal scratch']
  %s0 = inlined_call_operand.vmem [shape: bf16[16,256], index: 0, kind: input, shape index: {}]
  %s1 = inlined_call_operand.vmem [shape: bf16[256,1024], index: 1, kind: input, shape index: {}]
  %s2 = inlined_call_operand.vmem [shape: f32[1,1024], index: 2, kind: input, shape index: {}]
  %s3 = inlined_call_operand.vmem [shape: bf16[16,1024], index: 3, kind: output, shape index: {}]
  %s4 = sld [smem:[#allocation0]]
  $region22: #{deepspeech_forward.10} parent=0
    _
  %s6 = ssub.s32 1, %s4
  %s7 = scalar_select 0, %s6, %s4
  // Predicated region
  $region2: #{deepspeech_forward.10} parent=0 // pred_check
    _
  $region3: #{deepspeech_forward.10} parent=0 // pred_check_branch
    %9 = sbr.rel (0) target = $region5
  $region4: #{deepspeech_forward.10} parent=0 // pred_region
    _
  $region5: #{deepspeech_forward.10} parent=0 // pred_fallthru
    _
  // Predicated region
  $region6: #{deepspeech_forward.10} parent=0 // pred_check
    _
  $region7: #{deepspeech_forward.10} parent=0 // pred_check_branch
    %11 = sbr.rel (0) target = $region9
  $region8: #{deepspeech_forward.10} parent=0 // pred_region
    _
  $region9: #{deepspeech_forward.10} parent=0 // pred_fallthru
    _
  // Predicated region
  $region10: #{deepspeech_forward.10} parent=0 // pred_check
    _
  $region11: #{deepspeech_forward.10} parent=0 // pred_check_branch
    %13 = sbr.rel (0) target = $region13
  $region12: #{deepspeech_forward.10} parent=0 // pred_region
    _
  $region13: #{deepspeech_forward.10} parent=0 // pred_fallthru
    _
  %v14 = vld [vmem:[%s0] sm:$0xff]
  %v15 = vld [vmem:[%s0 + $0x8] sm:$0xff]
  %v16 = vld [vmem:[%s1] sm:$0xff]
  %v17 = vld [vmem:[%s1 + $0x8] sm:$0xff]
  %v18 = vld [vmem:[%s1 + $0x10] sm:$0xff]
  %v19 = vld [vmem:[%s1 + $0x18] sm:$0xff]
  %v20 = vld [vmem:[%s1 + $0x20] sm:$0xff]
  %v21 = vld [vmem:[%s1 + $0x28] sm:$0xff]
  %v22 = vld [vmem:[%s1 + $0x30] sm:$0xff]
  %v23 = vld [vmem:[%s1 + $0x38] sm:$0xff]
  %v24 = vld [vmem:[%s1 + $0x40] sm:$0xff]
  %v25 = vld [vmem:[%s1 + $0x48] sm:$0xff]
  %v26 = vld [vmem:[%s1 + $0x50] sm:$0xff]
  %v27 = vld [vmem:[%s1 + $0x58] sm:$0xff]
  %v28 = vld [vmem:[%s1 + $0x60] sm:$0xff]
  %v29 = vld [vmem:[%s1 + $0x68] sm:$0xff]
  %v30 = vld [vmem:[%s1 + $0x70] sm:$0xff]
  %v31 = vld [vmem:[%s1 + $0x78] sm:$0xff]
  %v32 = vld [vmem:[%s1 + $0x80] sm:$0xff]
  %v33 = vld [vmem:[%s1 + $0x88] sm:$0xff]
  %v34 = vld [vmem:[%s1 + $0x90] sm:$0xff]
  %v35 = vld [vmem:[%s1 + $0x98] sm:$0xff]
  %v36 = vld [vmem:[%s1 + $0xa0] sm:$0xff]
  %v37 = vld [vmem:[%s1 + $0xa8] sm:$0xff]
  %v38 = vld [vmem:[%s1 + $0xb0] sm:$0xff]
  %v39 = vld [vmem:[%s1 + $0xb8] sm:$0xff]
  %v40 = vld [vmem:[%s1 + $0xc0] sm:$0xff]
  %v41 = vld [vmem:[%s1 + $0xc8] sm:$0xff]
  %v42 = vld [vmem:[%s1 + $0xd0] sm:$0xff]
  %v43 = vld [vmem:[%s1 + $0xd8] sm:$0xff]
  %v44 = vld [vmem:[%s1 + $0xe0] sm:$0xff]
  %v45 = vld [vmem:[%s1 + $0xe8] sm:$0xff]
  %v46 = vld [vmem:[%s1 + $0xf0] sm:$0xff]
  %v47 = vld [vmem:[%s1 + $0xf8] sm:$0xff]
  %v48 = vld [vmem:[%s1 + $0x100] sm:$0xff]
  %v49 = vld [vmem:[%s1 + $0x108] sm:$0xff]
  %v50 = vld [vmem:[%s1 + $0x110] sm:$0xff]
  %v51 = vld [vmem:[%s1 + $0x118] sm:$0xff]
  %v52 = vld [vmem:[%s1 + $0x120] sm:$0xff]
  %v53 = vld [vmem:[%s1 + $0x128] sm:$0xff]
  %v54 = vld [vmem:[%s1 + $0x130] sm:$0xff]
  %v55 = vld [vmem:[%s1 + $0x138] sm:$0xff]
  %v56 = vld [vmem:[%s1 + $0x140] sm:$0xff]
  %v57 = vld [vmem:[%s1 + $0x148] sm:$0xff]
  %v58 = vld [vmem:[%s1 + $0x150] sm:$0xff]
  %v59 = vld [vmem:[%s1 + $0x158] sm:$0xff]
  %v60 = vld [vmem:[%s1 + $0x160] sm:$0xff]
  %v61 = vld [vmem:[%s1 + $0x168] sm:$0xff]
  %v62 = vld [vmem:[%s1 + $0x170] sm:$0xff]
  %v63 = vld [vmem:[%s1 + $0x178] sm:$0xff]
  %v64 = vld [vmem:[%s1 + $0x180] sm:$0xff]
  %v65 = vld [vmem:[%s1 + $0x188] sm:$0xff]
  %v66 = vld [vmem:[%s1 + $0x190] sm:$0xff]
  %v67 = vld [vmem:[%s1 + $0x198] sm:$0xff]
  %v68 = vld [vmem:[%s1 + $0x1a0] sm:$0xff]
  %v69 = vld [vmem:[%s1 + $0x1a8] sm:$0xff]
  %v70 = vld [vmem:[%s1 + $0x1b0] sm:$0xff]
  %v71 = vld [vmem:[%s1 + $0x1b8] sm:$0xff]
  %v72 = vld [vmem:[%s1 + $0x1c0] sm:$0xff]
  %v73 = vld [vmem:[%s1 + $0x1c8] sm:$0xff]
  %v74 = vld [vmem:[%s1 + $0x1d0] sm:$0xff]
  %v75 = vld [vmem:[%s1 + $0x1d8] sm:$0xff]
  %v76 = vld [vmem:[%s1 + $0x1e0] sm:$0xff]
  %v77 = vld [vmem:[%s1 + $0x1e8] sm:$0xff]
  %v78 = vld [vmem:[%s1 + $0x1f0] sm:$0xff]
  %v79 = vld [vmem:[%s1 + $0x1f8] sm:$0xff]
  %v80 = vld [vmem:[%s1 + $0x200] sm:$0xff]
  %v81 = vld [vmem:[%s1 + $0x208] sm:$0xff]
  %v82 = vld [vmem:[%s1 + $0x210] sm:$0xff]
  %v83 = vld [vmem:[%s1 + $0x218] sm:$0xff]
  %v84 = vld [vmem:[%s1 + $0x220] sm:$0xff]
  %v85 = vld [vmem:[%s1 + $0x228] sm:$0xff]
  %v86 = vld [vmem:[%s1 + $0x230] sm:$0xff]
  %v87 = vld [vmem:[%s1 + $0x238] sm:$0xff]
  %v88 = vld [vmem:[%s1 + $0x240] sm:$0xff]
  %v89 = vld [vmem:[%s1 + $0x248] sm:$0xff]
  %v90 = vld [vmem:[%s1 + $0x250] sm:$0xff]
  %v91 = vld [vmem:[%s1 + $0x258] sm:$0xff]
  %v92 = vld [vmem:[%s1 + $0x260] sm:$0xff]
  %v93 = vld [vmem:[%s1 + $0x268] sm:$0xff]
  %v94 = vld [vmem:[%s1 + $0x270] sm:$0xff]
  %v95 = vld [vmem:[%s1 + $0x278] sm:$0xff]
  %v96 = vld [vmem:[%s1 + $0x280] sm:$0xff]
  %v97 = vld [vmem:[%s1 + $0x288] sm:$0xff]
  %v98 = vld [vmem:[%s1 + $0x290] sm:$0xff]
  %v99 = vld [vmem:[%s1 + $0x298] sm:$0xff]
  %v100 = vld [vmem:[%s1 + $0x2a0] sm:$0xff]
  %v101 = vld [vmem:[%s1 + $0x2a8] sm:$0xff]
  %v102 = vld [vmem:[%s1 + $0x2b0] sm:$0xff]
  %v103 = vld [vmem:[%s1 + $0x2b8] sm:$0xff]
  %v104 = vld [vmem:[%s1 + $0x2c0] sm:$0xff]
  %v105 = vld [vmem:[%s1 + $0x2c8] sm:$0xff]
  %v106 = vld [vmem:[%s1 + $0x2d0] sm:$0xff]
  %v107 = vld [vmem:[%s1 + $0x2d8] sm:$0xff]
  %v108 = vld [vmem:[%s1 + $0x2e0] sm:$0xff]
  %v109 = vld [vmem:[%s1 + $0x2e8] sm:$0xff]
  %v110 = vld [vmem:[%s1 + $0x2f0] sm:$0xff]
  %v111 = vld [vmem:[%s1 + $0x2f8] sm:$0xff]
  %v112 = vld [vmem:[%s1 + $0x300] sm:$0xff]
  %v113 = vld [vmem:[%s1 + $0x308] sm:$0xff]
  %v114 = vld [vmem:[%s1 + $0x310] sm:$0xff]
  %v115 = vld [vmem:[%s1 + $0x318] sm:$0xff]
  %v116 = vld [vmem:[%s1 + $0x320] sm:$0xff]
  %v117 = vld [vmem:[%s1 + $0x328] sm:$0xff]
  %v118 = vld [vmem:[%s1 + $0x330] sm:$0xff]
  %v119 = vld [vmem:[%s1 + $0x338] sm:$0xff]
  %v120 = vld [vmem:[%s1 + $0x340] sm:$0xff]
  %v121 = vld [vmem:[%s1 + $0x348] sm:$0xff]
  %v122 = vld [vmem:[%s1 + $0x350] sm:$0xff]
  %v123 = vld [vmem:[%s1 + $0x358] sm:$0xff]
  %v124 = vld [vmem:[%s1 + $0x360] sm:$0xff]
  %v125 = vld [vmem:[%s1 + $0x368] sm:$0xff]
  %v126 = vld [vmem:[%s1 + $0x370] sm:$0xff]
  %v127 = vld [vmem:[%s1 + $0x378] sm:$0xff]
  %v128 = vld [vmem:[%s1 + $0x380] sm:$0xff]
  %v129 = vld [vmem:[%s1 + $0x388] sm:$0xff]
  %v130 = vld [vmem:[%s1 + $0x390] sm:$0xff]
  %v131 = vld [vmem:[%s1 + $0x398] sm:$0xff]
  %v132 = vld [vmem:[%s1 + $0x3a0] sm:$0xff]
  %v133 = vld [vmem:[%s1 + $0x3a8] sm:$0xff]
  %v134 = vld [vmem:[%s1 + $0x3b0] sm:$0xff]
  %v135 = vld [vmem:[%s1 + $0x3b8] sm:$0xff]
  %v136 = vld [vmem:[%s1 + $0x3c0] sm:$0xff]
  %v137 = vld [vmem:[%s1 + $0x3c8] sm:$0xff]
  %v138 = vld [vmem:[%s1 + $0x3d0] sm:$0xff]
  %v139 = vld [vmem:[%s1 + $0x3d8] sm:$0xff]
  %v140 = vld [vmem:[%s1 + $0x3e0] sm:$0xff]
  %v141 = vld [vmem:[%s1 + $0x3e8] sm:$0xff]
  %v142 = vld [vmem:[%s1 + $0x3f0] sm:$0xff]
  %v143 = vld [vmem:[%s1 + $0x3f8] sm:$0xff]
  %v144 = vld [vmem:[%s2] sm:$0xff]
  %v146 = vlaneseq
  %v147 = vshrl.u32 %v146, 7
  %v148 = vsub.s32 0, %v147
  %v149 = vrot.slane %v144, %v148
  %v150 = vlaneseq
  %v151 = vshrl.u32 %v150, 7
  %v152 = vsub.s32 1, %v151
  %v153 = vrot.slane %v144, %v152
  %v154 = vlaneseq
  %v155 = vshrl.u32 %v154, 7
  %v156 = vsub.s32 2, %v155
  %v157 = vrot.slane %v144, %v156
  %v158 = vlaneseq
  %v159 = vshrl.u32 %v158, 7
  %v160 = vsub.s32 3, %v159
  %v161 = vrot.slane %v144, %v160
  %v162 = vlaneseq
  %v163 = vshrl.u32 %v162, 7
  %v164 = vsub.s32 4, %v163
  %v165 = vrot.slane %v144, %v164
  %v166 = vlaneseq
  %v167 = vshrl.u32 %v166, 7
  %v168 = vsub.s32 5, %v167
  %v169 = vrot.slane %v144, %v168
  %v170 = vlaneseq
  %v171 = vshrl.u32 %v170, 7
  %v172 = vsub.s32 6, %v171
  %v173 = vrot.slane %v144, %v172
  %v174 = vlaneseq
  %v175 = vshrl.u32 %v174, 7
  %v176 = vsub.s32 7, %v175
  %v177 = vrot.slane %v144, %v176
  %v188 = vunpack.c.l.b16 %v14
  %v189 = vunpack.c.h.b16 %v14
  %v190 = vunpack.c.l.b16 %v15
  %v191 = vunpack.c.h.b16 %v15
  %v192 = vpack.c.b16 %v190, %v188
  %v193 = vpack.c.b16 %v191, %v189
  %v324 = vunpack.c.l.b16 %v16
  %v325 = vunpack.c.h.b16 %v16
  %v326 = vunpack.c.l.b16 %v17
  %v327 = vunpack.c.h.b16 %v17
  %v328 = vunpack.c.l.b16 %v18
  %v329 = vunpack.c.h.b16 %v18
  %v330 = vunpack.c.l.b16 %v19
  %v331 = vunpack.c.h.b16 %v19
  %v332 = vunpack.c.l.b16 %v20
  %v333 = vunpack.c.h.b16 %v20
  %v334 = vunpack.c.l.b16 %v21
  %v335 = vunpack.c.h.b16 %v21
  %v336 = vunpack.c.l.b16 %v22
  %v337 = vunpack.c.h.b16 %v22
  %v338 = vunpack.c.l.b16 %v23
  %v339 = vunpack.c.h.b16 %v23
  %v340 = vunpack.c.l.b16 %v24
  %v341 = vunpack.c.h.b16 %v24
  %v342 = vunpack.c.l.b16 %v25
  %v343 = vunpack.c.h.b16 %v25
  %v344 = vunpack.c.l.b16 %v26
  %v345 = vunpack.c.h.b16 %v26
  %v346 = vunpack.c.l.b16 %v27
  %v347 = vunpack.c.h.b16 %v27
  %v348 = vunpack.c.l.b16 %v28
  %v349 = vunpack.c.h.b16 %v28
  %v350 = vunpack.c.l.b16 %v29
  %v351 = vunpack.c.h.b16 %v29
  %v352 = vunpack.c.l.b16 %v30
  %v353 = vunpack.c.h.b16 %v30
  %v354 = vunpack.c.l.b16 %v31
  %v355 = vunpack.c.h.b16 %v31
  %v356 = vunpack.c.l.b16 %v32
  %v357 = vunpack.c.h.b16 %v32
  %v358 = vunpack.c.l.b16 %v33
  %v359 = vunpack.c.h.b16 %v33
  %v360 = vunpack.c.l.b16 %v34
  %v361 = vunpack.c.h.b16 %v34
  %v362 = vunpack.c.l.b16 %v35
  %v363 = vunpack.c.h.b16 %v35
  %v364 = vunpack.c.l.b16 %v36
  %v365 = vunpack.c.h.b16 %v36
  %v366 = vunpack.c.l.b16 %v37
  %v367 = vunpack.c.h.b16 %v37
  %v368 = vunpack.c.l.b16 %v38
  %v369 = vunpack.c.h.b16 %v38
  %v370 = vunpack.c.l.b16 %v39
  %v371 = vunpack.c.h.b16 %v39
  %v372 = vunpack.c.l.b16 %v40
  %v373 = vunpack.c.h.b16 %v40
  %v374 = vunpack.c.l.b16 %v41
  %v375 = vunpack.c.h.b16 %v41
  %v376 = vunpack.c.l.b16 %v42
  %v377 = vunpack.c.h.b16 %v42
  %v378 = vunpack.c.l.b16 %v43
  %v379 = vunpack.c.h.b16 %v43
  %v380 = vunpack.c.l.b16 %v44
  %v381 = vunpack.c.h.b16 %v44
  %v382 = vunpack.c.l.b16 %v45
  %v383 = vunpack.c.h.b16 %v45
  %v384 = vunpack.c.l.b16 %v46
  %v385 = vunpack.c.h.b16 %v46
  %v386 = vunpack.c.l.b16 %v47
  %v387 = vunpack.c.h.b16 %v47
  %v388 = vunpack.c.l.b16 %v48
  %v389 = vunpack.c.h.b16 %v48
  %v390 = vunpack.c.l.b16 %v49
  %v391 = vunpack.c.h.b16 %v49
  %v392 = vunpack.c.l.b16 %v50
  %v393 = vunpack.c.h.b16 %v50
  %v394 = vunpack.c.l.b16 %v51
  %v395 = vunpack.c.h.b16 %v51
  %v396 = vunpack.c.l.b16 %v52
  %v397 = vunpack.c.h.b16 %v52
  %v398 = vunpack.c.l.b16 %v53
  %v399 = vunpack.c.h.b16 %v53
  %v400 = vunpack.c.l.b16 %v54
  %v401 = vunpack.c.h.b16 %v54
  %v402 = vunpack.c.l.b16 %v55
  %v403 = vunpack.c.h.b16 %v55
  %v404 = vunpack.c.l.b16 %v56
  %v405 = vunpack.c.h.b16 %v56
  %v406 = vunpack.c.l.b16 %v57
  %v407 = vunpack.c.h.b16 %v57
  %v408 = vunpack.c.l.b16 %v58
  %v409 = vunpack.c.h.b16 %v58
  %v410 = vunpack.c.l.b16 %v59
  %v411 = vunpack.c.h.b16 %v59
  %v412 = vunpack.c.l.b16 %v60
  %v413 = vunpack.c.h.b16 %v60
  %v414 = vunpack.c.l.b16 %v61
  %v415 = vunpack.c.h.b16 %v61
  %v416 = vunpack.c.l.b16 %v62
  %v417 = vunpack.c.h.b16 %v62
  %v418 = vunpack.c.l.b16 %v63
  %v419 = vunpack.c.h.b16 %v63
  %v420 = vunpack.c.l.b16 %v64
  %v421 = vunpack.c.h.b16 %v64
  %v422 = vunpack.c.l.b16 %v65
  %v423 = vunpack.c.h.b16 %v65
  %v424 = vunpack.c.l.b16 %v66
  %v425 = vunpack.c.h.b16 %v66
  %v426 = vunpack.c.l.b16 %v67
  %v427 = vunpack.c.h.b16 %v67
  %v428 = vunpack.c.l.b16 %v68
  %v429 = vunpack.c.h.b16 %v68
  %v430 = vunpack.c.l.b16 %v69
  %v431 = vunpack.c.h.b16 %v69
  %v432 = vunpack.c.l.b16 %v70
  %v433 = vunpack.c.h.b16 %v70
  %v434 = vunpack.c.l.b16 %v71
  %v435 = vunpack.c.h.b16 %v71
  %v436 = vunpack.c.l.b16 %v72
  %v437 = vunpack.c.h.b16 %v72
  %v438 = vunpack.c.l.b16 %v73
  %v439 = vunpack.c.h.b16 %v73
  %v440 = vunpack.c.l.b16 %v74
  %v441 = vunpack.c.h.b16 %v74
  %v442 = vunpack.c.l.b16 %v75
  %v443 = vunpack.c.h.b16 %v75
  %v444 = vunpack.c.l.b16 %v76
  %v445 = vunpack.c.h.b16 %v76
  %v446 = vunpack.c.l.b16 %v77
  %v447 = vunpack.c.h.b16 %v77
  %v448 = vunpack.c.l.b16 %v78
  %v449 = vunpack.c.h.b16 %v78
  %v450 = vunpack.c.l.b16 %v79
  %v451 = vunpack.c.h.b16 %v79
  %v452 = vunpack.c.l.b16 %v80
  %v453 = vunpack.c.h.b16 %v80
  %v454 = vunpack.c.l.b16 %v81
  %v455 = vunpack.c.h.b16 %v81
  %v456 = vunpack.c.l.b16 %v82
  %v457 = vunpack.c.h.b16 %v82
  %v458 = vunpack.c.l.b16 %v83
  %v459 = vunpack.c.h.b16 %v83
  %v460 = vunpack.c.l.b16 %v84
  %v461 = vunpack.c.h.b16 %v84
  %v462 = vunpack.c.l.b16 %v85
  %v463 = vunpack.c.h.b16 %v85
  %v464 = vunpack.c.l.b16 %v86
  %v465 = vunpack.c.h.b16 %v86
  %v466 = vunpack.c.l.b16 %v87
  %v467 = vunpack.c.h.b16 %v87
  %v468 = vunpack.c.l.b16 %v88
  %v469 = vunpack.c.h.b16 %v88
  %v470 = vunpack.c.l.b16 %v89
  %v471 = vunpack.c.h.b16 %v89
  %v472 = vunpack.c.l.b16 %v90
  %v473 = vunpack.c.h.b16 %v90
  %v474 = vunpack.c.l.b16 %v91
  %v475 = vunpack.c.h.b16 %v91
  %v476 = vunpack.c.l.b16 %v92
  %v477 = vunpack.c.h.b16 %v92
  %v478 = vunpack.c.l.b16 %v93
  %v479 = vunpack.c.h.b16 %v93
  %v480 = vunpack.c.l.b16 %v94
  %v481 = vunpack.c.h.b16 %v94
  %v482 = vunpack.c.l.b16 %v95
  %v483 = vunpack.c.h.b16 %v95
  %v484 = vunpack.c.l.b16 %v96
  %v485 = vunpack.c.h.b16 %v96
  %v486 = vunpack.c.l.b16 %v97
  %v487 = vunpack.c.h.b16 %v97
  %v488 = vunpack.c.l.b16 %v98
  %v489 = vunpack.c.h.b16 %v98
  %v490 = vunpack.c.l.b16 %v99
  %v491 = vunpack.c.h.b16 %v99
  %v492 = vunpack.c.l.b16 %v100
  %v493 = vunpack.c.h.b16 %v100
  %v494 = vunpack.c.l.b16 %v101
  %v495 = vunpack.c.h.b16 %v101
  %v496 = vunpack.c.l.b16 %v102
  %v497 = vunpack.c.h.b16 %v102
  %v498 = vunpack.c.l.b16 %v103
  %v499 = vunpack.c.h.b16 %v103
  %v500 = vunpack.c.l.b16 %v104
  %v501 = vunpack.c.h.b16 %v104
  %v502 = vunpack.c.l.b16 %v105
  %v503 = vunpack.c.h.b16 %v105
  %v504 = vunpack.c.l.b16 %v106
  %v505 = vunpack.c.h.b16 %v106
  %v506 = vunpack.c.l.b16 %v107
  %v507 = vunpack.c.h.b16 %v107
  %v508 = vunpack.c.l.b16 %v108
  %v509 = vunpack.c.h.b16 %v108
  %v510 = vunpack.c.l.b16 %v109
  %v511 = vunpack.c.h.b16 %v109
  %v512 = vunpack.c.l.b16 %v110
  %v513 = vunpack.c.h.b16 %v110
  %v514 = vunpack.c.l.b16 %v111
  %v515 = vunpack.c.h.b16 %v111
  %v516 = vunpack.c.l.b16 %v112
  %v517 = vunpack.c.h.b16 %v112
  %v518 = vunpack.c.l.b16 %v113
  %v519 = vunpack.c.h.b16 %v113
  %v520 = vunpack.c.l.b16 %v114
  %v521 = vunpack.c.h.b16 %v114
  %v522 = vunpack.c.l.b16 %v115
  %v523 = vunpack.c.h.b16 %v115
  %v524 = vunpack.c.l.b16 %v116
  %v525 = vunpack.c.h.b16 %v116
  %v526 = vunpack.c.l.b16 %v117
  %v527 = vunpack.c.h.b16 %v117
  %v528 = vunpack.c.l.b16 %v118
  %v529 = vunpack.c.h.b16 %v118
  %v530 = vunpack.c.l.b16 %v119
  %v531 = vunpack.c.h.b16 %v119
  %v532 = vunpack.c.l.b16 %v120
  %v533 = vunpack.c.h.b16 %v120
  %v534 = vunpack.c.l.b16 %v121
  %v535 = vunpack.c.h.b16 %v121
  %v536 = vunpack.c.l.b16 %v122
  %v537 = vunpack.c.h.b16 %v122
  %v538 = vunpack.c.l.b16 %v123
  %v539 = vunpack.c.h.b16 %v123
  %v540 = vunpack.c.l.b16 %v124
  %v541 = vunpack.c.h.b16 %v124
  %v542 = vunpack.c.l.b16 %v125
  %v543 = vunpack.c.h.b16 %v125
  %v544 = vunpack.c.l.b16 %v126
  %v545 = vunpack.c.h.b16 %v126
  %v546 = vunpack.c.l.b16 %v127
  %v547 = vunpack.c.h.b16 %v127
  %v548 = vunpack.c.l.b16 %v128
  %v549 = vunpack.c.h.b16 %v128
  %v550 = vunpack.c.l.b16 %v129
  %v551 = vunpack.c.h.b16 %v129
  %v552 = vunpack.c.l.b16 %v130
  %v553 = vunpack.c.h.b16 %v130
  %v554 = vunpack.c.l.b16 %v131
  %v555 = vunpack.c.h.b16 %v131
  %v556 = vunpack.c.l.b16 %v132
  %v557 = vunpack.c.h.b16 %v132
  %v558 = vunpack.c.l.b16 %v133
  %v559 = vunpack.c.h.b16 %v133
  %v560 = vunpack.c.l.b16 %v134
  %v561 = vunpack.c.h.b16 %v134
  %v562 = vunpack.c.l.b16 %v135
  %v563 = vunpack.c.h.b16 %v135
  %v564 = vunpack.c.l.b16 %v136
  %v565 = vunpack.c.h.b16 %v136
  %v566 = vunpack.c.l.b16 %v137
  %v567 = vunpack.c.h.b16 %v137
  %v568 = vunpack.c.l.b16 %v138
  %v569 = vunpack.c.h.b16 %v138
  %v570 = vunpack.c.l.b16 %v139
  %v571 = vunpack.c.h.b16 %v139
  %v572 = vunpack.c.l.b16 %v140
  %v573 = vunpack.c.h.b16 %v140
  %v574 = vunpack.c.l.b16 %v141
  %v575 = vunpack.c.h.b16 %v141
  %v576 = vunpack.c.l.b16 %v142
  %v577 = vunpack.c.h.b16 %v142
  %v578 = vunpack.c.l.b16 %v143
  %v579 = vunpack.c.h.b16 %v143
  %v580 = vpack.c.b16 %v332, %v324
  %v581 = vpack.c.b16 %v333, %v325
  %v582 = vpack.c.b16 %v334, %v326
  %v583 = vpack.c.b16 %v335, %v327
  %v584 = vpack.c.b16 %v336, %v328
  %v585 = vpack.c.b16 %v337, %v329
  %v586 = vpack.c.b16 %v338, %v330
  %v587 = vpack.c.b16 %v339, %v331
  %v588 = vpack.c.b16 %v348, %v340
  %v589 = vpack.c.b16 %v349, %v341
  %v590 = vpack.c.b16 %v350, %v342
  %v591 = vpack.c.b16 %v351, %v343
  %v592 = vpack.c.b16 %v352, %v344
  %v593 = vpack.c.b16 %v353, %v345
  %v594 = vpack.c.b16 %v354, %v346
  %v595 = vpack.c.b16 %v355, %v347
  %v596 = vpack.c.b16 %v364, %v356
  %v597 = vpack.c.b16 %v365, %v357
  %v598 = vpack.c.b16 %v366, %v358
  %v599 = vpack.c.b16 %v367, %v359
  %v600 = vpack.c.b16 %v368, %v360
  %v601 = vpack.c.b16 %v369, %v361
  %v602 = vpack.c.b16 %v370, %v362
  %v603 = vpack.c.b16 %v371, %v363
  %v604 = vpack.c.b16 %v380, %v372
  %v605 = vpack.c.b16 %v381, %v373
  %v606 = vpack.c.b16 %v382, %v374
  %v607 = vpack.c.b16 %v383, %v375
  %v608 = vpack.c.b16 %v384, %v376
  %v609 = vpack.c.b16 %v385, %v377
  %v610 = vpack.c.b16 %v386, %v378
  %v611 = vpack.c.b16 %v387, %v379
  %v612 = vpack.c.b16 %v396, %v388
  %v613 = vpack.c.b16 %v397, %v389
  %v614 = vpack.c.b16 %v398, %v390
  %v615 = vpack.c.b16 %v399, %v391
  %v616 = vpack.c.b16 %v400, %v392
  %v617 = vpack.c.b16 %v401, %v393
  %v618 = vpack.c.b16 %v402, %v394
  %v619 = vpack.c.b16 %v403, %v395
  %v620 = vpack.c.b16 %v412, %v404
  %v621 = vpack.c.b16 %v413, %v405
  %v622 = vpack.c.b16 %v414, %v406
  %v623 = vpack.c.b16 %v415, %v407
  %v624 = vpack.c.b16 %v416, %v408
  %v625 = vpack.c.b16 %v417, %v409
  %v626 = vpack.c.b16 %v418, %v410
  %v627 = vpack.c.b16 %v419, %v411
  %v628 = vpack.c.b16 %v428, %v420
  %v629 = vpack.c.b16 %v429, %v421
  %v630 = vpack.c.b16 %v430, %v422
  %v631 = vpack.c.b16 %v431, %v423
  %v632 = vpack.c.b16 %v432, %v424
  %v633 = vpack.c.b16 %v433, %v425
  %v634 = vpack.c.b16 %v434, %v426
  %v635 = vpack.c.b16 %v435, %v427
  %v636 = vpack.c.b16 %v444, %v436
  %v637 = vpack.c.b16 %v445, %v437
  %v638 = vpack.c.b16 %v446, %v438
  %v639 = vpack.c.b16 %v447, %v439
  %v640 = vpack.c.b16 %v448, %v440
  %v641 = vpack.c.b16 %v449, %v441
  %v642 = vpack.c.b16 %v450, %v442
  %v643 = vpack.c.b16 %v451, %v443
  %v644 = vpack.c.b16 %v460, %v452
  %v645 = vpack.c.b16 %v461, %v453
  %v646 = vpack.c.b16 %v462, %v454
  %v647 = vpack.c.b16 %v463, %v455
  %v648 = vpack.c.b16 %v464, %v456
  %v649 = vpack.c.b16 %v465, %v457
  %v650 = vpack.c.b16 %v466, %v458
  %v651 = vpack.c.b16 %v467, %v459
  %v652 = vpack.c.b16 %v476, %v468
  %v653 = vpack.c.b16 %v477, %v469
  %v654 = vpack.c.b16 %v478, %v470
  %v655 = vpack.c.b16 %v479, %v471
  %v656 = vpack.c.b16 %v480, %v472
  %v657 = vpack.c.b16 %v481, %v473
  %v658 = vpack.c.b16 %v482, %v474
  %v659 = vpack.c.b16 %v483, %v475
  %v660 = vpack.c.b16 %v492, %v484
  %v661 = vpack.c.b16 %v493, %v485
  %v662 = vpack.c.b16 %v494, %v486
  %v663 = vpack.c.b16 %v495, %v487
  %v664 = vpack.c.b16 %v496, %v488
  %v665 = vpack.c.b16 %v497, %v489
  %v666 = vpack.c.b16 %v498, %v490
  %v667 = vpack.c.b16 %v499, %v491
  %v668 = vpack.c.b16 %v508, %v500
  %v669 = vpack.c.b16 %v509, %v501
  %v670 = vpack.c.b16 %v510, %v502
  %v671 = vpack.c.b16 %v511, %v503
  %v672 = vpack.c.b16 %v512, %v504
  %v673 = vpack.c.b16 %v513, %v505
  %v674 = vpack.c.b16 %v514, %v506
  %v675 = vpack.c.b16 %v515, %v507
  %v676 = vpack.c.b16 %v524, %v516
  %v677 = vpack.c.b16 %v525, %v517
  %v678 = vpack.c.b16 %v526, %v518
  %v679 = vpack.c.b16 %v527, %v519
  %v680 = vpack.c.b16 %v528, %v520
  %v681 = vpack.c.b16 %v529, %v521
  %v682 = vpack.c.b16 %v530, %v522
  %v683 = vpack.c.b16 %v531, %v523
  %v684 = vpack.c.b16 %v540, %v532
  %v685 = vpack.c.b16 %v541, %v533
  %v686 = vpack.c.b16 %v542, %v534
  %v687 = vpack.c.b16 %v543, %v535
  %v688 = vpack.c.b16 %v544, %v536
  %v689 = vpack.c.b16 %v545, %v537
  %v690 = vpack.c.b16 %v546, %v538
  %v691 = vpack.c.b16 %v547, %v539
  %v692 = vpack.c.b16 %v556, %v548
  %v693 = vpack.c.b16 %v557, %v549
  %v694 = vpack.c.b16 %v558, %v550
  %v695 = vpack.c.b16 %v559, %v551
  %v696 = vpack.c.b16 %v560, %v552
  %v697 = vpack.c.b16 %v561, %v553
  %v698 = vpack.c.b16 %v562, %v554
  %v699 = vpack.c.b16 %v563, %v555
  %v700 = vpack.c.b16 %v572, %v564
  %v701 = vpack.c.b16 %v573, %v565
  %v702 = vpack.c.b16 %v574, %v566
  %v703 = vpack.c.b16 %v575, %v567
  %v704 = vpack.c.b16 %v576, %v568
  %v705 = vpack.c.b16 %v577, %v569
  %v706 = vpack.c.b16 %v578, %v570
  %v707 = vpack.c.b16 %v579, %v571
  %836 = vmatprep.subr.bf16.mxu0 %v637
  %837 = vmatpush1.bf16.msra.mxu0 %v636
  %838 = vmatprep.subr.bf16.mxu0 %v629
  %839 = vmatpush1.bf16.msra.mxu0 %v628
  %840 = vmatprep.subr.bf16.mxu0 %v621
  %841 = vmatpush1.bf16.msra.mxu0 %v620
  %842 = vmatprep.subr.bf16.mxu0 %v613
  %843 = vmatpush1.bf16.msra.mxu0 %v612
  %844 = vmatprep.subr.bf16.mxu0 %v605
  %845 = vmatpush1.bf16.msra.mxu0 %v604
  %846 = vmatprep.subr.bf16.mxu0 %v597
  %847 = vmatpush1.bf16.msra.mxu0 %v596
  %848 = vmatprep.subr.bf16.mxu0 %v589
  %849 = vmatpush1.bf16.msra.mxu0 %v588
  %850 = vmatprep.subr.bf16.mxu0 %v581
  %851 = vmatpush1.bf16.msra.mxu0 %v580
  %852 = vmatprep.subr.bf16.mxu0 %v701
  %853 = vmatpush2.bf16.msra.mxu0 %v700
  %854 = vmatprep.subr.bf16.mxu0 %v693
  %855 = vmatpush2.bf16.msra.mxu0 %v692
  %856 = vmatprep.subr.bf16.mxu0 %v685
  %857 = vmatpush2.bf16.msra.mxu0 %v684
  %858 = vmatprep.subr.bf16.mxu0 %v677
  %859 = vmatpush2.bf16.msra.mxu0 %v676
  %860 = vmatprep.subr.bf16.mxu0 %v669
  %861 = vmatpush2.bf16.msra.mxu0 %v668
  %862 = vmatprep.subr.bf16.mxu0 %v661
  %863 = vmatpush2.bf16.msra.mxu0 %v660
  %864 = vmatprep.subr.bf16.mxu0 %v653
  %865 = vmatpush2.bf16.msra.mxu0 %v652
  %866 = vmatprep.subr.bf16.mxu0 %v645
  %867 = vmatpush2.bf16.msra.mxu0 %v644
  %868 = vmatprep.mubr.bf16.mxu0 %v193
  %869 = vmatmul.mubr.bf16.gmra.mxu0 %v192
  %v870 = vpop.f32.mrf.mxu0
  %v871 = vadd.f32 %v149, %v870
  %v872 = vpop.f32.mrf.mxu0
  %v873 = vadd.f32 %v153, %v872
  %v874 = vpop.f32.mrf.mxu0
  %v875 = vadd.f32 %v149, %v874
  %v876 = vpop.f32.mrf.mxu0
  %v877 = vadd.f32 %v153, %v876
  %878 = vdwg.mxu0
  %879 = vmatprep.subr.bf16.mxu0 %v639
  %880 = vmatpush1.bf16.msra.mxu0 %v638
  %881 = vmatprep.subr.bf16.mxu0 %v631
  %882 = vmatpush1.bf16.msra.mxu0 %v630
  %883 = vmatprep.subr.bf16.mxu0 %v623
  %884 = vmatpush1.bf16.msra.mxu0 %v622
  %885 = vmatprep.subr.bf16.mxu0 %v615
  %886 = vmatpush1.bf16.msra.mxu0 %v614
  %887 = vmatprep.subr.bf16.mxu0 %v607
  %888 = vmatpush1.bf16.msra.mxu0 %v606
  %889 = vmatprep.subr.bf16.mxu0 %v599
  %890 = vmatpush1.bf16.msra.mxu0 %v598
  %891 = vmatprep.subr.bf16.mxu0 %v591
  %892 = vmatpush1.bf16.msra.mxu0 %v590
  %893 = vmatprep.subr.bf16.mxu0 %v583
  %894 = vmatpush1.bf16.msra.mxu0 %v582
  %895 = vmatprep.subr.bf16.mxu0 %v703
  %896 = vmatpush2.bf16.msra.mxu0 %v702
  %897 = vmatprep.subr.bf16.mxu0 %v695
  %898 = vmatpush2.bf16.msra.mxu0 %v694
  %899 = vmatprep.subr.bf16.mxu0 %v687
  %900 = vmatpush2.bf16.msra.mxu0 %v686
  %901 = vmatprep.subr.bf16.mxu0 %v679
  %902 = vmatpush2.bf16.msra.mxu0 %v678
  %903 = vmatprep.subr.bf16.mxu0 %v671
  %904 = vmatpush2.bf16.msra.mxu0 %v670
  %905 = vmatprep.subr.bf16.mxu0 %v663
  %906 = vmatpush2.bf16.msra.mxu0 %v662
  %907 = vmatprep.subr.bf16.mxu0 %v655
  %908 = vmatpush2.bf16.msra.mxu0 %v654
  %909 = vmatprep.subr.bf16.mxu0 %v647
  %910 = vmatpush2.bf16.msra.mxu0 %v646
  %911 = vmatprep.mubr.bf16.mxu0 %v193
  %912 = vmatmul.mubr.bf16.gmra.mxu0 %v192
  %v913 = vpop.f32.mrf.mxu0
  %v914 = vadd.f32 %v157, %v913
  %v915 = vpop.f32.mrf.mxu0
  %v916 = vadd.f32 %v161, %v915
  %v917 = vpop.f32.mrf.mxu0
  %v918 = vadd.f32 %v157, %v917
  %v919 = vpop.f32.mrf.mxu0
  %v920 = vadd.f32 %v161, %v919
  %921 = vdwg.mxu0
  %922 = vmatprep.subr.bf16.mxu0 %v641
  %923 = vmatpush1.bf16.msra.mxu0 %v640
  %924 = vmatprep.subr.bf16.mxu0 %v633
  %925 = vmatpush1.bf16.msra.mxu0 %v632
  %926 = vmatprep.subr.bf16.mxu0 %v625
  %927 = vmatpush1.bf16.msra.mxu0 %v624
  %928 = vmatprep.subr.bf16.mxu0 %v617
  %929 = vmatpush1.bf16.msra.mxu0 %v616
  %930 = vmatprep.subr.bf16.mxu0 %v609
  %931 = vmatpush1.bf16.msra.mxu0 %v608
  %932 = vmatprep.subr.bf16.mxu0 %v601
  %933 = vmatpush1.bf16.msra.mxu0 %v600
  %934 = vmatprep.subr.bf16.mxu0 %v593
  %935 = vmatpush1.bf16.msra.mxu0 %v592
  %936 = vmatprep.subr.bf16.mxu0 %v585
  %937 = vmatpush1.bf16.msra.mxu0 %v584
  %938 = vmatprep.subr.bf16.mxu0 %v705
  %939 = vmatpush2.bf16.msra.mxu0 %v704
  %940 = vmatprep.subr.bf16.mxu0 %v697
  %941 = vmatpush2.bf16.msra.mxu0 %v696
  %942 = vmatprep.subr.bf16.mxu0 %v689
  %943 = vmatpush2.bf16.msra.mxu0 %v688
  %944 = vmatprep.subr.bf16.mxu0 %v681
  %945 = vmatpush2.bf16.msra.mxu0 %v680
  %946 = vmatprep.subr.bf16.mxu0 %v673
  %947 = vmatpush2.bf16.msra.mxu0 %v672
  %948 = vmatprep.subr.bf16.mxu0 %v665
  %949 = vmatpush2.bf16.msra.mxu0 %v664
  %950 = vmatprep.subr.bf16.mxu0 %v657
  %951 = vmatpush2.bf16.msra.mxu0 %v656
  %952 = vmatprep.subr.bf16.mxu0 %v649
  %953 = vmatpush2.bf16.msra.mxu0 %v648
  %954 = vmatprep.mubr.bf16.mxu0 %v193
  %955 = vmatmul.mubr.bf16.gmra.mxu0 %v192
  %v956 = vpop.f32.mrf.mxu0
  %v957 = vadd.f32 %v165, %v956
  %v958 = vpop.f32.mrf.mxu0
  %v959 = vadd.f32 %v169, %v958
  %v960 = vpop.f32.mrf.mxu0
  %v961 = vadd.f32 %v165, %v960
  %v962 = vpop.f32.mrf.mxu0
  %v963 = vadd.f32 %v169, %v962
  %964 = vdwg.mxu0
  %965 = vmatprep.subr.bf16.mxu0 %v643
  %966 = vmatpush1.bf16.msra.mxu0 %v642
  %967 = vmatprep.subr.bf16.mxu0 %v635
  %968 = vmatpush1.bf16.msra.mxu0 %v634
  %969 = vmatprep.subr.bf16.mxu0 %v627
  %970 = vmatpush1.bf16.msra.mxu0 %v626
  %971 = vmatprep.subr.bf16.mxu0 %v619
  %972 = vmatpush1.bf16.msra.mxu0 %v618
  %973 = vmatprep.subr.bf16.mxu0 %v611
  %974 = vmatpush1.bf16.msra.mxu0 %v610
  %975 = vmatprep.subr.bf16.mxu0 %v603
  %976 = vmatpush1.bf16.msra.mxu0 %v602
  %977 = vmatprep.subr.bf16.mxu0 %v595
  %978 = vmatpush1.bf16.msra.mxu0 %v594
  %979 = vmatprep.subr.bf16.mxu0 %v587
  %980 = vmatpush1.bf16.msra.mxu0 %v586
  %981 = vmatprep.subr.bf16.mxu0 %v707
  %982 = vmatpush2.bf16.msra.mxu0 %v706
  %983 = vmatprep.subr.bf16.mxu0 %v699
  %984 = vmatpush2.bf16.msra.mxu0 %v698
  %985 = vmatprep.subr.bf16.mxu0 %v691
  %986 = vmatpush2.bf16.msra.mxu0 %v690
  %987 = vmatprep.subr.bf16.mxu0 %v683
  %988 = vmatpush2.bf16.msra.mxu0 %v682
  %989 = vmatprep.subr.bf16.mxu0 %v675
  %990 = vmatpush2.bf16.msra.mxu0 %v674
  %991 = vmatprep.subr.bf16.mxu0 %v667
  %992 = vmatpush2.bf16.msra.mxu0 %v666
  %993 = vmatprep.subr.bf16.mxu0 %v659
  %994 = vmatpush2.bf16.msra.mxu0 %v658
  %995 = vmatprep.subr.bf16.mxu0 %v651
  %996 = vmatpush2.bf16.msra.mxu0 %v650
  %997 = vmatprep.mubr.bf16.mxu0 %v193
  %998 = vmatmul.mubr.bf16.gmra.mxu0 %v192
  %v999 = vpop.f32.mrf.mxu0
  %v1000 = vadd.f32 %v173, %v999
  %v1001 = vpop.f32.mrf.mxu0
  %v1002 = vadd.f32 %v177, %v1001
  %v1003 = vpop.f32.mrf.mxu0
  %v1004 = vadd.f32 %v173, %v1003
  %v1005 = vpop.f32.mrf.mxu0
  %v1006 = vadd.f32 %v177, %v1005
  %1007 = vdwg.mxu0
  %v1008 = vpack.c.bf16 %v875, %v871
  %v1009 = vpack.c.bf16 %v877, %v873
  %v1010 = vpack.c.bf16 %v918, %v914
  %v1011 = vpack.c.bf16 %v920, %v916
  %v1012 = vpack.c.bf16 %v961, %v957
  %v1013 = vpack.c.bf16 %v963, %v959
  %v1014 = vpack.c.bf16 %v1004, %v1000
  %v1015 = vpack.c.bf16 %v1006, %v1002
  %v1024 = vunpack.c.l.b16 %v1008
  %v1025 = vunpack.c.l.b16 %v1009
  %v1026 = vunpack.c.l.b16 %v1010
  %v1027 = vunpack.c.l.b16 %v1011
  %v1028 = vunpack.c.l.b16 %v1012
  %v1029 = vunpack.c.l.b16 %v1013
  %v1030 = vunpack.c.l.b16 %v1014
  %v1031 = vunpack.c.l.b16 %v1015
  %v1032 = vunpack.c.h.b16 %v1008
  %v1033 = vunpack.c.h.b16 %v1009
  %v1034 = vunpack.c.h.b16 %v1010
  %v1035 = vunpack.c.h.b16 %v1011
  %v1036 = vunpack.c.h.b16 %v1012
  %v1037 = vunpack.c.h.b16 %v1013
  %v1038 = vunpack.c.h.b16 %v1014
  %v1039 = vunpack.c.h.b16 %v1015
  %v1040 = vpack.c.b16 %v1025, %v1024
  %v1041 = vpack.c.b16 %v1027, %v1026
  %v1042 = vpack.c.b16 %v1029, %v1028
  %v1043 = vpack.c.b16 %v1031, %v1030
  %v1044 = vpack.c.b16 %v1033, %v1032
  %v1045 = vpack.c.b16 %v1035, %v1034
  %v1046 = vpack.c.b16 %v1037, %v1036
  %v1047 = vpack.c.b16 %v1039, %v1038
  %1056 = vst [vmem:[%s3] sm:$0xff] %v1040
  %1057 = vst [vmem:[%s3 + $0x8] sm:$0xff] %v1041
  %1058 = vst [vmem:[%s3 + $0x10] sm:$0xff] %v1042
  %1059 = vst [vmem:[%s3 + $0x18] sm:$0xff] %v1043
  %1060 = vst [vmem:[%s3 + $0x20] sm:$0xff] %v1044
  %1061 = vst [vmem:[%s3 + $0x28] sm:$0xff] %v1045
  %1062 = vst [vmem:[%s3 + $0x30] sm:$0xff] %v1046
  %1063 = vst [vmem:[%s3 + $0x38] sm:$0xff] %v1047
  // Predicated region
  $region14: #{deepspeech_forward.10} parent=0 // pred_check
    _
  $region15: #{deepspeech_forward.10} parent=0 // pred_check_branch
    %1065 = sbr.rel (0) target = $region17
  $region16: #{deepspeech_forward.10} parent=0 // pred_region
    _
  $region17: #{deepspeech_forward.10} parent=0 // pred_fallthru
    _
  // Predicated region
  $region18: #{deepspeech_forward.10} parent=0 // pred_check
    _
  $region19: #{deepspeech_forward.10} parent=0 // pred_check_branch
    %1067 = sbr.rel (0) target = $region21
  $region20: #{deepspeech_forward.10} parent=0 // pred_region
    _
  $region21: #{deepspeech_forward.10} parent=0 // pred_fallthru
    _

// kernel: deepspeech_forward.13
$region0: #{deepspeech_forward.13}
  #allocation0 [shape = 'u32[]', space=smem, size = 0x4, offset = 0x4, fixed_abs, tag = 'smem constant byte address 0x4 - core index']
  #allocation1 [shape = 'u32[144,128]{1,0:T(1,128)}', space=vmem, size = 0x12000, scoped, tag = 'internal scratch']
  %s0 = inlined_call_operand.vmem [shape: bf16[16,256], index: 0, kind: input, shape index: {}]
  %s1 = inlined_call_operand.vmem [shape: bf16[256,128], index: 1, kind: input, shape index: {}]
  %s2 = inlined_call_operand.vmem [shape: f32[1,128], index: 2, kind: input, shape index: {}]
  %s3 = inlined_call_operand.vmem [shape: f32[16,128], index: 3, kind: output, shape index: {}]
  %s4 = sld [smem:[#allocation0]]
  $region22: #{deepspeech_forward.13} parent=0
    _
  %s6 = ssub.s32 1, %s4
  %s7 = scalar_select 0, %s6, %s4
  // Predicated region
  $region2: #{deepspeech_forward.13} parent=0 // pred_check
    _
  $region3: #{deepspeech_forward.13} parent=0 // pred_check_branch
    %9 = sbr.rel (0) target = $region5
  $region4: #{deepspeech_forward.13} parent=0 // pred_region
    _
  $region5: #{deepspeech_forward.13} parent=0 // pred_fallthru
    _
  // Predicated region
  $region6: #{deepspeech_forward.13} parent=0 // pred_check
    _
  $region7: #{deepspeech_forward.13} parent=0 // pred_check_branch
    %11 = sbr.rel (0) target = $region9
  $region8: #{deepspeech_forward.13} parent=0 // pred_region
    _
  $region9: #{deepspeech_forward.13} parent=0 // pred_fallthru
    _
  // Predicated region
  $region10: #{deepspeech_forward.13} parent=0 // pred_check
    _
  $region11: #{deepspeech_forward.13} parent=0 // pred_check_branch
    %13 = sbr.rel (0) target = $region13
  $region12: #{deepspeech_forward.13} parent=0 // pred_region
    _
  $region13: #{deepspeech_forward.13} parent=0 // pred_fallthru
    _
  %v15 = vld [vmem:[%s0] sm:$0xff]
  %v16 = vld [vmem:[%s0 + $0x8] sm:$0xff]
  %v17 = vld [vmem:[%s1] sm:$0xf]
  %v18 = vld [vmem:[%s1 + $0x4] sm:$0xf]
  %v19 = vld [vmem:[%s1 + $0x8] sm:$0xf]
  %v20 = vld [vmem:[%s1 + $0xc] sm:$0xf]
  %v21 = vld [vmem:[%s1 + $0x10] sm:$0xf]
  %v22 = vld [vmem:[%s1 + $0x14] sm:$0xf]
  %v23 = vld [vmem:[%s1 + $0x18] sm:$0xf]
  %v24 = vld [vmem:[%s1 + $0x1c] sm:$0xf]
  %v25 = vld [vmem:[%s1 + $0x20] sm:$0xf]
  %v26 = vld [vmem:[%s1 + $0x24] sm:$0xf]
  %v27 = vld [vmem:[%s1 + $0x28] sm:$0xf]
  %v28 = vld [vmem:[%s1 + $0x2c] sm:$0xf]
  %v29 = vld [vmem:[%s1 + $0x30] sm:$0xf]
  %v30 = vld [vmem:[%s1 + $0x34] sm:$0xf]
  %v31 = vld [vmem:[%s1 + $0x38] sm:$0xf]
  %v32 = vld [vmem:[%s1 + $0x3c] sm:$0xf]
  %v33 = vld [vmem:[%s1 + $0x40] sm:$0xf]
  %v34 = vld [vmem:[%s1 + $0x44] sm:$0xf]
  %v35 = vld [vmem:[%s1 + $0x48] sm:$0xf]
  %v36 = vld [vmem:[%s1 + $0x4c] sm:$0xf]
  %v37 = vld [vmem:[%s1 + $0x50] sm:$0xf]
  %v38 = vld [vmem:[%s1 + $0x54] sm:$0xf]
  %v39 = vld [vmem:[%s1 + $0x58] sm:$0xf]
  %v40 = vld [vmem:[%s1 + $0x5c] sm:$0xf]
  %v41 = vld [vmem:[%s1 + $0x60] sm:$0xf]
  %v42 = vld [vmem:[%s1 + $0x64] sm:$0xf]
  %v43 = vld [vmem:[%s1 + $0x68] sm:$0xf]
  %v44 = vld [vmem:[%s1 + $0x6c] sm:$0xf]
  %v45 = vld [vmem:[%s1 + $0x70] sm:$0xf]
  %v46 = vld [vmem:[%s1 + $0x74] sm:$0xf]
  %v47 = vld [vmem:[%s1 + $0x78] sm:$0xf]
  %v48 = vld [vmem:[%s1 + $0x7c] sm:$0xf]
  %v49 = vld [vmem:[%s2] sm:$0x1]
  %v51 = vlaneseq
  %v52 = vshrl.u32 %v51, 7
  %v53 = vsub.s32 0, %v52
  %v54 = vrot.slane %v49, %v53
  %v58 = vunpack.c.l.b16 %v15
  %v59 = vunpack.c.h.b16 %v15
  %v60 = vunpack.c.l.b16 %v16
  %v61 = vunpack.c.h.b16 %v16
  %v62 = vpack.c.b16 %v60, %v58
  %v63 = vpack.c.b16 %v61, %v59
  %v98 = vunpack.c.l.b16 %v17
  %v99 = vunpack.c.l.b16 %v18
  %v100 = vunpack.c.l.b16 %v19
  %v101 = vunpack.c.l.b16 %v20
  %v102 = vunpack.c.l.b16 %v21
  %v103 = vunpack.c.l.b16 %v22
  %v104 = vunpack.c.l.b16 %v23
  %v105 = vunpack.c.l.b16 %v24
  %v106 = vunpack.c.l.b16 %v25
  %v107 = vunpack.c.l.b16 %v26
  %v108 = vunpack.c.l.b16 %v27
  %v109 = vunpack.c.l.b16 %v28
  %v110 = vunpack.c.l.b16 %v29
  %v111 = vunpack.c.l.b16 %v30
  %v112 = vunpack.c.l.b16 %v31
  %v113 = vunpack.c.l.b16 %v32
  %v114 = vunpack.c.l.b16 %v33
  %v115 = vunpack.c.l.b16 %v34
  %v116 = vunpack.c.l.b16 %v35
  %v117 = vunpack.c.l.b16 %v36
  %v118 = vunpack.c.l.b16 %v37
  %v119 = vunpack.c.l.b16 %v38
  %v120 = vunpack.c.l.b16 %v39
  %v121 = vunpack.c.l.b16 %v40
  %v122 = vunpack.c.l.b16 %v41
  %v123 = vunpack.c.l.b16 %v42
  %v124 = vunpack.c.l.b16 %v43
  %v125 = vunpack.c.l.b16 %v44
  %v126 = vunpack.c.l.b16 %v45
  %v127 = vunpack.c.l.b16 %v46
  %v128 = vunpack.c.l.b16 %v47
  %v129 = vunpack.c.l.b16 %v48
  %v130 = vpack.c.b16 %v99, %v98
  %v131 = vpack.c.b16 %v101, %v100
  %v132 = vpack.c.b16 %v103, %v102
  %v133 = vpack.c.b16 %v105, %v104
  %v134 = vpack.c.b16 %v107, %v106
  %v135 = vpack.c.b16 %v109, %v108
  %v136 = vpack.c.b16 %v111, %v110
  %v137 = vpack.c.b16 %v113, %v112
  %v138 = vpack.c.b16 %v115, %v114
  %v139 = vpack.c.b16 %v117, %v116
  %v140 = vpack.c.b16 %v119, %v118
  %v141 = vpack.c.b16 %v121, %v120
  %v142 = vpack.c.b16 %v123, %v122
  %v143 = vpack.c.b16 %v125, %v124
  %v144 = vpack.c.b16 %v127, %v126
  %v145 = vpack.c.b16 %v129, %v128
  %162 = vmatprep.subr.bf16.mxu0 0
  %163 = vmatpush1.bf16.msra.mxu0 %v137
  %164 = vmatprep.subr.bf16.mxu0 0
  %165 = vmatpush1.bf16.msra.mxu0 %v136
  %166 = vmatprep.subr.bf16.mxu0 0
  %167 = vmatpush1.bf16.msra.mxu0 %v135
  %168 = vmatprep.subr.bf16.mxu0 0
  %169 = vmatpush1.bf16.msra.mxu0 %v134
  %170 = vmatprep.subr.bf16.mxu0 0
  %171 = vmatpush1.bf16.msra.mxu0 %v133
  %172 = vmatprep.subr.bf16.mxu0 0
  %173 = vmatpush1.bf16.msra.mxu0 %v132
  %174 = vmatprep.subr.bf16.mxu0 0
  %175 = vmatpush1.bf16.msra.mxu0 %v131
  %176 = vmatprep.subr.bf16.mxu0 0
  %177 = vmatpush1.bf16.msra.mxu0 %v130
  %178 = vmatprep.subr.bf16.mxu0 0
  %179 = vmatpush2.bf16.msra.mxu0 %v145
  %180 = vmatprep.subr.bf16.mxu0 0
  %181 = vmatpush2.bf16.msra.mxu0 %v144
  %182 = vmatprep.subr.bf16.mxu0 0
  %183 = vmatpush2.bf16.msra.mxu0 %v143
  %184 = vmatprep.subr.bf16.mxu0 0
  %185 = vmatpush2.bf16.msra.mxu0 %v142
  %186 = vmatprep.subr.bf16.mxu0 0
  %187 = vmatpush2.bf16.msra.mxu0 %v141
  %188 = vmatprep.subr.bf16.mxu0 0
  %189 = vmatpush2.bf16.msra.mxu0 %v140
  %190 = vmatprep.subr.bf16.mxu0 0
  %191 = vmatpush2.bf16.msra.mxu0 %v139
  %192 = vmatprep.subr.bf16.mxu0 0
  %193 = vmatpush2.bf16.msra.mxu0 %v138
  %194 = vmatprep.mubr.bf16.mxu0 %v63
  %195 = vmatmul.mubr.bf16.gmra.mxu0 %v62
  %v196 = vpop.f32.mrf.mxu0
  %v197 = vadd.f32 %v54, %v196
  %v198 = vpop.f32.mrf.mxu0
  %v199 = vpop.f32.mrf.mxu0
  %v200 = vadd.f32 %v54, %v199
  %v201 = vpop.f32.mrf.mxu0
  %202 = vdwg.mxu0
  %203 = vmax.xlane.f32.xlu0 %v197
  %v204 = vpop.xlane.xlu0 %203
  %205 = vmax.xlane.f32.xlu0 %v200
  %v206 = vpop.xlane.xlu0 %205
  %v207 = vsub.f32 %v197, %v204
  %v208 = vsub.f32 %v200, %v206
  %v209 = vmul.f32 %v207, 1.442695
  %v210 = vpow.pop %v209
  %v211 = vmul.f32 %v208, 1.442695
  %v212 = vpow.pop %v211
  %213 = vadd.xlane.f32.xlu0 %v210
  %v214 = vpop.xlane.xlu0 %213
  %215 = vadd.xlane.f32.xlu0 %v212
  %v216 = vpop.xlane.xlu0 %215
  %v217 = vlog2.pop %v214
  %v218 = vmul.f32 %v217, 0.6931472
  %v219 = vlog2.pop %v216
  %v220 = vmul.f32 %v219, 0.6931472
  %v221 = vsub.f32 %v207, %v218
  %v222 = vsub.f32 %v208, %v220
  %223 = vst [vmem:[%s3] sm:$0xff] %v221
  %224 = vst [vmem:[%s3 + $0x8] sm:$0xff] %v222
  // Predicated region
  $region14: #{deepspeech_forward.13} parent=0 // pred_check
    _
  $region15: #{deepspeech_forward.13} parent=0 // pred_check_branch
    %226 = sbr.rel (0) target = $region17
  $region16: #{deepspeech_forward.13} parent=0 // pred_region
    _
  $region17: #{deepspeech_forward.13} parent=0 // pred_fallthru
    _
  // Predicated region
  $region18: #{deepspeech_forward.13} parent=0 // pred_check
    _
  $region19: #{deepspeech_forward.13} parent=0 // pred_check_branch
    %228 = sbr.rel (0) target = $region21
  $region20: #{deepspeech_forward.13} parent=0 // pred_region
    _
  $region21: #{deepspeech_forward.13} parent=0 // pred_fallthru
    _

// kernel: deepspeech_forward.12
$region0: #{deepspeech_forward.12}
  #allocation0 [shape = 'u32[]', space=smem, size = 0x4, offset = 0x4, fixed_abs, tag = 'smem constant byte address 0x4 - core index']
  #allocation1 [shape = 'u32[144,128]{1,0:T(1,128)}', space=vmem, size = 0x12000, scoped, tag = 'internal scratch']
  %s0 = inlined_call_operand.vmem [shape: bf16[16,256], index: 0, kind: input, shape index: {}]
  %s1 = inlined_call_operand.vmem [shape: bf16[256,256], index: 1, kind: input, shape index: {}]
  %s2 = inlined_call_operand.vmem [shape: f32[1,256], index: 2, kind: input, shape index: {}]
  %s3 = inlined_call_operand.vmem [shape: bf16[16,256], index: 3, kind: output, shape index: {}]
  %s4 = sld [smem:[#allocation0]]
  $region22: #{deepspeech_forward.12} parent=0
    _
  %s6 = ssub.s32 1, %s4
  %s7 = scalar_select 0, %s6, %s4
  // Predicated region
  $region2: #{deepspeech_forward.12} parent=0 // pred_check
    _
  $region3: #{deepspeech_forward.12} parent=0 // pred_check_branch
    %9 = sbr.rel (0) target = $region5
  $region4: #{deepspeech_forward.12} parent=0 // pred_region
    _
  $region5: #{deepspeech_forward.12} parent=0 // pred_fallthru
    _
  // Predicated region
  $region6: #{deepspeech_forward.12} parent=0 // pred_check
    _
  $region7: #{deepspeech_forward.12} parent=0 // pred_check_branch
    %11 = sbr.rel (0) target = $region9
  $region8: #{deepspeech_forward.12} parent=0 // pred_region
    _
  $region9: #{deepspeech_forward.12} parent=0 // pred_fallthru
    _
  // Predicated region
  $region10: #{deepspeech_forward.12} parent=0 // pred_check
    _
  $region11: #{deepspeech_forward.12} parent=0 // pred_check_branch
    %13 = sbr.rel (0) target = $region13
  $region12: #{deepspeech_forward.12} parent=0 // pred_region
    _
  $region13: #{deepspeech_forward.12} parent=0 // pred_fallthru
    _
  %v14 = vld [vmem:[%s0] sm:$0xff]
  %v15 = vld [vmem:[%s0 + $0x8] sm:$0xff]
  %v16 = vld [vmem:[%s1] sm:$0xff]
  %v17 = vld [vmem:[%s1 + $0x8] sm:$0xff]
  %v18 = vld [vmem:[%s1 + $0x10] sm:$0xff]
  %v19 = vld [vmem:[%s1 + $0x18] sm:$0xff]
  %v20 = vld [vmem:[%s1 + $0x20] sm:$0xff]
  %v21 = vld [vmem:[%s1 + $0x28] sm:$0xff]
  %v22 = vld [vmem:[%s1 + $0x30] sm:$0xff]
  %v23 = vld [vmem:[%s1 + $0x38] sm:$0xff]
  %v24 = vld [vmem:[%s1 + $0x40] sm:$0xff]
  %v25 = vld [vmem:[%s1 + $0x48] sm:$0xff]
  %v26 = vld [vmem:[%s1 + $0x50] sm:$0xff]
  %v27 = vld [vmem:[%s1 + $0x58] sm:$0xff]
  %v28 = vld [vmem:[%s1 + $0x60] sm:$0xff]
  %v29 = vld [vmem:[%s1 + $0x68] sm:$0xff]
  %v30 = vld [vmem:[%s1 + $0x70] sm:$0xff]
  %v31 = vld [vmem:[%s1 + $0x78] sm:$0xff]
  %v32 = vld [vmem:[%s1 + $0x80] sm:$0xff]
  %v33 = vld [vmem:[%s1 + $0x88] sm:$0xff]
  %v34 = vld [vmem:[%s1 + $0x90] sm:$0xff]
  %v35 = vld [vmem:[%s1 + $0x98] sm:$0xff]
  %v36 = vld [vmem:[%s1 + $0xa0] sm:$0xff]
  %v37 = vld [vmem:[%s1 + $0xa8] sm:$0xff]
  %v38 = vld [vmem:[%s1 + $0xb0] sm:$0xff]
  %v39 = vld [vmem:[%s1 + $0xb8] sm:$0xff]
  %v40 = vld [vmem:[%s1 + $0xc0] sm:$0xff]
  %v41 = vld [vmem:[%s1 + $0xc8] sm:$0xff]
  %v42 = vld [vmem:[%s1 + $0xd0] sm:$0xff]
  %v43 = vld [vmem:[%s1 + $0xd8] sm:$0xff]
  %v44 = vld [vmem:[%s1 + $0xe0] sm:$0xff]
  %v45 = vld [vmem:[%s1 + $0xe8] sm:$0xff]
  %v46 = vld [vmem:[%s1 + $0xf0] sm:$0xff]
  %v47 = vld [vmem:[%s1 + $0xf8] sm:$0xff]
  %v48 = vld [vmem:[%s2] sm:$0x3]
  %v50 = vlaneseq
  %v51 = vshrl.u32 %v50, 7
  %v52 = vsub.s32 0, %v51
  %v53 = vrot.slane %v48, %v52
  %v54 = vlaneseq
  %v55 = vshrl.u32 %v54, 7
  %v56 = vsub.s32 1, %v55
  %v57 = vrot.slane %v48, %v56
  %v62 = vunpack.c.l.b16 %v14
  %v63 = vunpack.c.h.b16 %v14
  %v64 = vunpack.c.l.b16 %v15
  %v65 = vunpack.c.h.b16 %v15
  %v66 = vpack.c.b16 %v64, %v62
  %v67 = vpack.c.b16 %v65, %v63
  %v102 = vunpack.c.l.b16 %v16
  %v103 = vunpack.c.h.b16 %v16
  %v104 = vunpack.c.l.b16 %v17
  %v105 = vunpack.c.h.b16 %v17
  %v106 = vunpack.c.l.b16 %v18
  %v107 = vunpack.c.h.b16 %v18
  %v108 = vunpack.c.l.b16 %v19
  %v109 = vunpack.c.h.b16 %v19
  %v110 = vunpack.c.l.b16 %v20
  %v111 = vunpack.c.h.b16 %v20
  %v112 = vunpack.c.l.b16 %v21
  %v113 = vunpack.c.h.b16 %v21
  %v114 = vunpack.c.l.b16 %v22
  %v115 = vunpack.c.h.b16 %v22
  %v116 = vunpack.c.l.b16 %v23
  %v117 = vunpack.c.h.b16 %v23
  %v118 = vunpack.c.l.b16 %v24
  %v119 = vunpack.c.h.b16 %v24
  %v120 = vunpack.c.l.b16 %v25
  %v121 = vunpack.c.h.b16 %v25
  %v122 = vunpack.c.l.b16 %v26
  %v123 = vunpack.c.h.b16 %v26
  %v124 = vunpack.c.l.b16 %v27
  %v125 = vunpack.c.h.b16 %v27
  %v126 = vunpack.c.l.b16 %v28
  %v127 = vunpack.c.h.b16 %v28
  %v128 = vunpack.c.l.b16 %v29
  %v129 = vunpack.c.h.b16 %v29
  %v130 = vunpack.c.l.b16 %v30
  %v131 = vunpack.c.h.b16 %v30
  %v132 = vunpack.c.l.b16 %v31
  %v133 = vunpack.c.h.b16 %v31
  %v134 = vunpack.c.l.b16 %v32
  %v135 = vunpack.c.h.b16 %v32
  %v136 = vunpack.c.l.b16 %v33
  %v137 = vunpack.c.h.b16 %v33
  %v138 = vunpack.c.l.b16 %v34
  %v139 = vunpack.c.h.b16 %v34
  %v140 = vunpack.c.l.b16 %v35
  %v141 = vunpack.c.h.b16 %v35
  %v142 = vunpack.c.l.b16 %v36
  %v143 = vunpack.c.h.b16 %v36
  %v144 = vunpack.c.l.b16 %v37
  %v145 = vunpack.c.h.b16 %v37
  %v146 = vunpack.c.l.b16 %v38
  %v147 = vunpack.c.h.b16 %v38
  %v148 = vunpack.c.l.b16 %v39
  %v149 = vunpack.c.h.b16 %v39
  %v150 = vunpack.c.l.b16 %v40
  %v151 = vunpack.c.h.b16 %v40
  %v152 = vunpack.c.l.b16 %v41
  %v153 = vunpack.c.h.b16 %v41
  %v154 = vunpack.c.l.b16 %v42
  %v155 = vunpack.c.h.b16 %v42
  %v156 = vunpack.c.l.b16 %v43
  %v157 = vunpack.c.h.b16 %v43
  %v158 = vunpack.c.l.b16 %v44
  %v159 = vunpack.c.h.b16 %v44
  %v160 = vunpack.c.l.b16 %v45
  %v161 = vunpack.c.h.b16 %v45
  %v162 = vunpack.c.l.b16 %v46
  %v163 = vunpack.c.h.b16 %v46
  %v164 = vunpack.c.l.b16 %v47
  %v165 = vunpack.c.h.b16 %v47
  %v166 = vpack.c.b16 %v104, %v102
  %v167 = vpack.c.b16 %v105, %v103
  %v168 = vpack.c.b16 %v108, %v106
  %v169 = vpack.c.b16 %v109, %v107
  %v170 = vpack.c.b16 %v112, %v110
  %v171 = vpack.c.b16 %v113, %v111
  %v172 = vpack.c.b16 %v116, %v114
  %v173 = vpack.c.b16 %v117, %v115
  %v174 = vpack.c.b16 %v120, %v118
  %v175 = vpack.c.b16 %v121, %v119
  %v176 = vpack.c.b16 %v124, %v122
  %v177 = vpack.c.b16 %v125, %v123
  %v178 = vpack.c.b16 %v128, %v126
  %v179 = vpack.c.b16 %v129, %v127
  %v180 = vpack.c.b16 %v132, %v130
  %v181 = vpack.c.b16 %v133, %v131
  %v182 = vpack.c.b16 %v136, %v134
  %v183 = vpack.c.b16 %v137, %v135
  %v184 = vpack.c.b16 %v140, %v138
  %v185 = vpack.c.b16 %v141, %v139
  %v186 = vpack.c.b16 %v144, %v142
  %v187 = vpack.c.b16 %v145, %v143
  %v188 = vpack.c.b16 %v148, %v146
  %v189 = vpack.c.b16 %v149, %v147
  %v190 = vpack.c.b16 %v152, %v150
  %v191 = vpack.c.b16 %v153, %v151
  %v192 = vpack.c.b16 %v156, %v154
  %v193 = vpack.c.b16 %v157, %v155
  %v194 = vpack.c.b16 %v160, %v158
  %v195 = vpack.c.b16 %v161, %v159
  %v196 = vpack.c.b16 %v164, %v162
  %v197 = vpack.c.b16 %v165, %v163
  %230 = vmatprep.subr.bf16.mxu0 %v181
  %231 = vmatpush1.bf16.msra.mxu0 %v180
  %232 = vmatprep.subr.bf16.mxu0 %v179
  %233 = vmatpush1.bf16.msra.mxu0 %v178
  %234 = vmatprep.subr.bf16.mxu0 %v177
  %235 = vmatpush1.bf16.msra.mxu0 %v176
  %236 = vmatprep.subr.bf16.mxu0 %v175
  %237 = vmatpush1.bf16.msra.mxu0 %v174
  %238 = vmatprep.subr.bf16.mxu0 %v173
  %239 = vmatpush1.bf16.msra.mxu0 %v172
  %240 = vmatprep.subr.bf16.mxu0 %v171
  %241 = vmatpush1.bf16.msra.mxu0 %v170
  %242 = vmatprep.subr.bf16.mxu0 %v169
  %243 = vmatpush1.bf16.msra.mxu0 %v168
  %244 = vmatprep.subr.bf16.mxu0 %v167
  %245 = vmatpush1.bf16.msra.mxu0 %v166
  %246 = vmatprep.subr.bf16.mxu0 %v197
  %247 = vmatpush2.bf16.msra.mxu0 %v196
  %248 = vmatprep.subr.bf16.mxu0 %v195
  %249 = vmatpush2.bf16.msra.mxu0 %v194
  %250 = vmatprep.subr.bf16.mxu0 %v193
  %251 = vmatpush2.bf16.msra.mxu0 %v192
  %252 = vmatprep.subr.bf16.mxu0 %v191
  %253 = vmatpush2.bf16.msra.mxu0 %v190
  %254 = vmatprep.subr.bf16.mxu0 %v189
  %255 = vmatpush2.bf16.msra.mxu0 %v188
  %256 = vmatprep.subr.bf16.mxu0 %v187
  %257 = vmatpush2.bf16.msra.mxu0 %v186
  %258 = vmatprep.subr.bf16.mxu0 %v185
  %259 = vmatpush2.bf16.msra.mxu0 %v184
  %260 = vmatprep.subr.bf16.mxu0 %v183
  %261 = vmatpush2.bf16.msra.mxu0 %v182
  %262 = vmatprep.mubr.bf16.mxu0 %v67
  %263 = vmatmul.mubr.bf16.gmra.mxu0 %v66
  %v264 = vpop.f32.mrf.mxu0
  %v265 = vadd.f32 %v53, %v264
  %v266 = vpop.f32.mrf.mxu0
  %v267 = vadd.f32 %v57, %v266
  %v268 = vpop.f32.mrf.mxu0
  %v269 = vadd.f32 %v53, %v268
  %v270 = vpop.f32.mrf.mxu0
  %v271 = vadd.f32 %v57, %v270
  %272 = vdwg.mxu0
  %vm273 = vcmp.gt.f32.partialorder %v265, 0.0
  %vm274 = vcmp.gt.f32.partialorder %v267, 0.0
  %vm275 = vcmp.gt.f32.partialorder %v269, 0.0
  %vm276 = vcmp.gt.f32.partialorder %v271, 0.0
  %v277 = vsel %vm273, %v265, 20.0
  %v278 = vsel %vm274, %v267, 20.0
  %v279 = vsel %vm275, %v269, 20.0
  %v280 = vsel %vm276, %v271, 20.0
  %v281 = vpack.c.bf16 %v279, %v277
  %v282 = vpack.c.bf16 %v280, %v278
  %v285 = vunpack.c.l.b16 %v281
  %v286 = vunpack.c.l.b16 %v282
  %v287 = vunpack.c.h.b16 %v281
  %v288 = vunpack.c.h.b16 %v282
  %v289 = vpack.c.b16 %v286, %v285
  %v290 = vpack.c.b16 %v288, %v287
  %293 = vst [vmem:[%s3] sm:$0xff] %v289
  %294 = vst [vmem:[%s3 + $0x8] sm:$0xff] %v290
  // Predicated region
  $region14: #{deepspeech_forward.12} parent=0 // pred_check
    _
  $region15: #{deepspeech_forward.12} parent=0 // pred_check_branch
    %296 = sbr.rel (0) target = $region17
  $region16: #{deepspeech_forward.12} parent=0 // pred_region
    _
  $region17: #{deepspeech_forward.12} parent=0 // pred_fallthru
    _
  // Predicated region
  $region18: #{deepspeech_forward.12} parent=0 // pred_check
    _
  $region19: #{deepspeech_forward.12} parent=0 // pred_check_branch
    %298 = sbr.rel (0) target = $region21
  $region20: #{deepspeech_forward.12} parent=0 // pred_region
    _
  $region21: #{deepspeech_forward.12} parent=0 // pred_fallthru
    _

// kernel: deepspeech_forward.11
$region0: #{deepspeech_forward.11}
  #allocation0 [shape = 'u32[]', space=smem, size = 0x4, offset = 0x4, fixed_abs, tag = 'smem constant byte address 0x4 - core index']
  #allocation1 [shape = 'u32[144,128]{1,0:T(1,128)}', space=vmem, size = 0x12000, scoped, tag = 'internal scratch']
  #allocation2 [shape = 'f32[2,256]{1,0:T(2,128)}', space=vmem, size = 0x800, scoped, tag = 'scratch operand']
  #allocation3 [shape = 'f32[2,256]{1,0:T(2,128)}', space=vmem, size = 0x800, scoped, tag = 'scratch operand']
  %s0 = inlined_call_operand.vmem [shape: bf16[2,8,1024], index: 0, kind: input, shape index: {}]
  %s1 = inlined_call_operand.vmem [shape: bf16[256,1024], index: 1, kind: input, shape index: {}]
  %s2 = inlined_call_operand.vmem [shape: f32[2,256], index: 2, kind: input, shape index: {}]
  %s3 = inlined_call_operand.vmem [shape: f32[2,256], index: 3, kind: input, shape index: {}]
  %s4 = inlined_call_operand.vmem [shape: bf16[2,8,256], index: 4, kind: output, shape index: {0}]
  %s5 = inlined_call_operand.hbm [shape: f32[2,256], index: 5, kind: output, shape index: {1}]
  %s6 = inlined_call_operand.hbm [shape: f32[2,256], index: 6, kind: output, shape index: {2}]
  %7 = xla_tuple %s4, %s5, %s6
  %s8 = sld [smem:[#allocation0]]
  $region50: #{deepspeech_forward.11} parent=0
    _
  %s10 = ssub.s32 1, %s8
  %s11 = scalar_select 0, %s10, %s8
  $region1: #{deepspeech_forward.11} parent=0
    #allocation4 [shape = 'u8[2048]{0}', space=vmem, size = 0x800, scoped, tag = 'output window, operand 1, single buffered']
    #allocation5 [shape = 's32[1]{0}', space=sflag, size = 0x4, scoped, tag = 'scoped memory for deepspeech_forward.11']
    #allocation6 [shape = 'u8[2048]{0}', space=vmem, size = 0x800, scoped, tag = 'output window, operand 2, single buffered']
    #allocation7 [shape = 's32[1]{0}', space=sflag, size = 0x4, scoped, tag = 'scoped memory for deepspeech_forward.11']
    %12 = vsyncpa [#allocation5], 0
    %13 = vsyncpa [#allocation7], 0
    // Predicated region
    $region2: #{deepspeech_forward.11} parent=1 // pred_check
      _
    $region3: #{deepspeech_forward.11} parent=1 // pred_check_branch
      %15 = sbr.rel (0) target = $region5
    $region4: #{deepspeech_forward.11} parent=1 // pred_region
      _
    $region5: #{deepspeech_forward.11} parent=1 // pred_fallthru
      _
    // Predicated region
    $region6: #{deepspeech_forward.11} parent=1 // pred_check
      _
    $region7: #{deepspeech_forward.11} parent=1 // pred_check_branch
      %17 = sbr.rel (0) target = $region9
    $region8: #{deepspeech_forward.11} parent=1 // pred_region
      _
    $region9: #{deepspeech_forward.11} parent=1 // pred_fallthru
      _
    // Predicated region
    $region10: #{deepspeech_forward.11} parent=1 // pred_check
      _
    $region11: #{deepspeech_forward.11} parent=1 // pred_check_branch
      %19 = sbr.rel (0) target = $region13
    $region12: #{deepspeech_forward.11} parent=1 // pred_region
      _
    $region13: #{deepspeech_forward.11} parent=1 // pred_fallthru
      _
    // Predicated region
    $region14: #{deepspeech_forward.11} parent=1 // pred_check
      _
    $region15: #{deepspeech_forward.11} parent=1 // pred_check_branch
      %21 = sbr.rel (0) target = $region17
    $region16: #{deepspeech_forward.11} parent=1 // pred_region
      _
    $region17: #{deepspeech_forward.11} parent=1 // pred_fallthru
      _
    %p22 = scmp.eq.s32.totalorder 0, 0
    // Predicated region
    $region18: #{deepspeech_forward.11} parent=1 // pred_check
      %p23 = pneg %p22
    $region19: #{deepspeech_forward.11} parent=1 // pred_check_branch
      %25 = sbr.rel (%p23) target = $region21
    $region20: #{deepspeech_forward.11} parent=1 // pred_region
      %v26 = vld [vmem:[%s2] sm:$0xf]
      %27 = vst [vmem:[#allocation2] sm:$0xf] %v26
      %v28 = vld [vmem:[%s3] sm:$0xf]
      %29 = vst [vmem:[#allocation3] sm:$0xf] %v28
    $region21: #{deepspeech_forward.11} parent=1 // pred_fallthru
      _
    %v30 = vld [vmem:[%s1] sm:$0xff]
    %v31 = vld [vmem:[%s1 + $0x8] sm:$0xff]
    %v32 = vld [vmem:[%s1 + $0x10] sm:$0xff]
    %v33 = vld [vmem:[%s1 + $0x18] sm:$0xff]
    %v34 = vld [vmem:[%s1 + $0x20] sm:$0xff]
    %v35 = vld [vmem:[%s1 + $0x28] sm:$0xff]
    %v36 = vld [vmem:[%s1 + $0x30] sm:$0xff]
    %v37 = vld [vmem:[%s1 + $0x38] sm:$0xff]
    %v38 = vld [vmem:[%s1 + $0x40] sm:$0xff]
    %v39 = vld [vmem:[%s1 + $0x48] sm:$0xff]
    %v40 = vld [vmem:[%s1 + $0x50] sm:$0xff]
    %v41 = vld [vmem:[%s1 + $0x58] sm:$0xff]
    %v42 = vld [vmem:[%s1 + $0x60] sm:$0xff]
    %v43 = vld [vmem:[%s1 + $0x68] sm:$0xff]
    %v44 = vld [vmem:[%s1 + $0x70] sm:$0xff]
    %v45 = vld [vmem:[%s1 + $0x78] sm:$0xff]
    %v46 = vld [vmem:[%s1 + $0x80] sm:$0xff]
    %v47 = vld [vmem:[%s1 + $0x88] sm:$0xff]
    %v48 = vld [vmem:[%s1 + $0x90] sm:$0xff]
    %v49 = vld [vmem:[%s1 + $0x98] sm:$0xff]
    %v50 = vld [vmem:[%s1 + $0xa0] sm:$0xff]
    %v51 = vld [vmem:[%s1 + $0xa8] sm:$0xff]
    %v52 = vld [vmem:[%s1 + $0xb0] sm:$0xff]
    %v53 = vld [vmem:[%s1 + $0xb8] sm:$0xff]
    %v54 = vld [vmem:[%s1 + $0xc0] sm:$0xff]
    %v55 = vld [vmem:[%s1 + $0xc8] sm:$0xff]
    %v56 = vld [vmem:[%s1 + $0xd0] sm:$0xff]
    %v57 = vld [vmem:[%s1 + $0xd8] sm:$0xff]
    %v58 = vld [vmem:[%s1 + $0xe0] sm:$0xff]
    %v59 = vld [vmem:[%s1 + $0xe8] sm:$0xff]
    %v60 = vld [vmem:[%s1 + $0xf0] sm:$0xff]
    %v61 = vld [vmem:[%s1 + $0xf8] sm:$0xff]
    %v62 = vld [vmem:[%s1 + $0x100] sm:$0xff]
    %v63 = vld [vmem:[%s1 + $0x108] sm:$0xff]
    %v64 = vld [vmem:[%s1 + $0x110] sm:$0xff]
    %v65 = vld [vmem:[%s1 + $0x118] sm:$0xff]
    %v66 = vld [vmem:[%s1 + $0x120] sm:$0xff]
    %v67 = vld [vmem:[%s1 + $0x128] sm:$0xff]
    %v68 = vld [vmem:[%s1 + $0x130] sm:$0xff]
    %v69 = vld [vmem:[%s1 + $0x138] sm:$0xff]
    %v70 = vld [vmem:[%s1 + $0x140] sm:$0xff]
    %v71 = vld [vmem:[%s1 + $0x148] sm:$0xff]
    %v72 = vld [vmem:[%s1 + $0x150] sm:$0xff]
    %v73 = vld [vmem:[%s1 + $0x158] sm:$0xff]
    %v74 = vld [vmem:[%s1 + $0x160] sm:$0xff]
    %v75 = vld [vmem:[%s1 + $0x168] sm:$0xff]
    %v76 = vld [vmem:[%s1 + $0x170] sm:$0xff]
    %v77 = vld [vmem:[%s1 + $0x178] sm:$0xff]
    %v78 = vld [vmem:[%s1 + $0x180] sm:$0xff]
    %v79 = vld [vmem:[%s1 + $0x188] sm:$0xff]
    %v80 = vld [vmem:[%s1 + $0x190] sm:$0xff]
    %v81 = vld [vmem:[%s1 + $0x198] sm:$0xff]
    %v82 = vld [vmem:[%s1 + $0x1a0] sm:$0xff]
    %v83 = vld [vmem:[%s1 + $0x1a8] sm:$0xff]
    %v84 = vld [vmem:[%s1 + $0x1b0] sm:$0xff]
    %v85 = vld [vmem:[%s1 + $0x1b8] sm:$0xff]
    %v86 = vld [vmem:[%s1 + $0x1c0] sm:$0xff]
    %v87 = vld [vmem:[%s1 + $0x1c8] sm:$0xff]
    %v88 = vld [vmem:[%s1 + $0x1d0] sm:$0xff]
    %v89 = vld [vmem:[%s1 + $0x1d8] sm:$0xff]
    %v90 = vld [vmem:[%s1 + $0x1e0] sm:$0xff]
    %v91 = vld [vmem:[%s1 + $0x1e8] sm:$0xff]
    %v92 = vld [vmem:[%s1 + $0x1f0] sm:$0xff]
    %v93 = vld [vmem:[%s1 + $0x1f8] sm:$0xff]
    %v94 = vld [vmem:[%s1 + $0x200] sm:$0xff]
    %v95 = vld [vmem:[%s1 + $0x208] sm:$0xff]
    %v96 = vld [vmem:[%s1 + $0x210] sm:$0xff]
    %v97 = vld [vmem:[%s1 + $0x218] sm:$0xff]
    %v98 = vld [vmem:[%s1 + $0x220] sm:$0xff]
    %v99 = vld [vmem:[%s1 + $0x228] sm:$0xff]
    %v100 = vld [vmem:[%s1 + $0x230] sm:$0xff]
    %v101 = vld [vmem:[%s1 + $0x238] sm:$0xff]
    %v102 = vld [vmem:[%s1 + $0x240] sm:$0xff]
    %v103 = vld [vmem:[%s1 + $0x248] sm:$0xff]
    %v104 = vld [vmem:[%s1 + $0x250] sm:$0xff]
    %v105 = vld [vmem:[%s1 + $0x258] sm:$0xff]
    %v106 = vld [vmem:[%s1 + $0x260] sm:$0xff]
    %v107 = vld [vmem:[%s1 + $0x268] sm:$0xff]
    %v108 = vld [vmem:[%s1 + $0x270] sm:$0xff]
    %v109 = vld [vmem:[%s1 + $0x278] sm:$0xff]
    %v110 = vld [vmem:[%s1 + $0x280] sm:$0xff]
    %v111 = vld [vmem:[%s1 + $0x288] sm:$0xff]
    %v112 = vld [vmem:[%s1 + $0x290] sm:$0xff]
    %v113 = vld [vmem:[%s1 + $0x298] sm:$0xff]
    %v114 = vld [vmem:[%s1 + $0x2a0] sm:$0xff]
    %v115 = vld [vmem:[%s1 + $0x2a8] sm:$0xff]
    %v116 = vld [vmem:[%s1 + $0x2b0] sm:$0xff]
    %v117 = vld [vmem:[%s1 + $0x2b8] sm:$0xff]
    %v118 = vld [vmem:[%s1 + $0x2c0] sm:$0xff]
    %v119 = vld [vmem:[%s1 + $0x2c8] sm:$0xff]
    %v120 = vld [vmem:[%s1 + $0x2d0] sm:$0xff]
    %v121 = vld [vmem:[%s1 + $0x2d8] sm:$0xff]
    %v122 = vld [vmem:[%s1 + $0x2e0] sm:$0xff]
    %v123 = vld [vmem:[%s1 + $0x2e8] sm:$0xff]
    %v124 = vld [vmem:[%s1 + $0x2f0] sm:$0xff]
    %v125 = vld [vmem:[%s1 + $0x2f8] sm:$0xff]
    %v126 = vld [vmem:[%s1 + $0x300] sm:$0xff]
    %v127 = vld [vmem:[%s1 + $0x308] sm:$0xff]
    %v128 = vld [vmem:[%s1 + $0x310] sm:$0xff]
    %v129 = vld [vmem:[%s1 + $0x318] sm:$0xff]
    %v130 = vld [vmem:[%s1 + $0x320] sm:$0xff]
    %v131 = vld [vmem:[%s1 + $0x328] sm:$0xff]
    %v132 = vld [vmem:[%s1 + $0x330] sm:$0xff]
    %v133 = vld [vmem:[%s1 + $0x338] sm:$0xff]
    %v134 = vld [vmem:[%s1 + $0x340] sm:$0xff]
    %v135 = vld [vmem:[%s1 + $0x348] sm:$0xff]
    %v136 = vld [vmem:[%s1 + $0x350] sm:$0xff]
    %v137 = vld [vmem:[%s1 + $0x358] sm:$0xff]
    %v138 = vld [vmem:[%s1 + $0x360] sm:$0xff]
    %v139 = vld [vmem:[%s1 + $0x368] sm:$0xff]
    %v140 = vld [vmem:[%s1 + $0x370] sm:$0xff]
    %v141 = vld [vmem:[%s1 + $0x378] sm:$0xff]
    %v142 = vld [vmem:[%s1 + $0x380] sm:$0xff]
    %v143 = vld [vmem:[%s1 + $0x388] sm:$0xff]
    %v144 = vld [vmem:[%s1 + $0x390] sm:$0xff]
    %v145 = vld [vmem:[%s1 + $0x398] sm:$0xff]
    %v146 = vld [vmem:[%s1 + $0x3a0] sm:$0xff]
    %v147 = vld [vmem:[%s1 + $0x3a8] sm:$0xff]
    %v148 = vld [vmem:[%s1 + $0x3b0] sm:$0xff]
    %v149 = vld [vmem:[%s1 + $0x3b8] sm:$0xff]
    %v150 = vld [vmem:[%s1 + $0x3c0] sm:$0xff]
    %v151 = vld [vmem:[%s1 + $0x3c8] sm:$0xff]
    %v152 = vld [vmem:[%s1 + $0x3d0] sm:$0xff]
    %v153 = vld [vmem:[%s1 + $0x3d8] sm:$0xff]
    %v154 = vld [vmem:[%s1 + $0x3e0] sm:$0xff]
    %v155 = vld [vmem:[%s1 + $0x3e8] sm:$0xff]
    %v156 = vld [vmem:[%s1 + $0x3f0] sm:$0xff]
    %v157 = vld [vmem:[%s1 + $0x3f8] sm:$0xff]
    %v158 = vld [vmem:[#allocation2] sm:$0xf]
    %v159 = vld [vmem:[#allocation3] sm:$0xf]
    %v160 = vld [vmem:[%s0] sm:$0x11]
    %v161 = vld [vmem:[%s0 + $0x8] sm:$0x11]
    %v162 = vld [vmem:[%s0 + $0x10] sm:$0x11]
    %v163 = vld [vmem:[%s0 + $0x18] sm:$0x11]
    %v164 = vld [vmem:[%s0 + $0x20] sm:$0x11]
    %v165 = vld [vmem:[%s0 + $0x28] sm:$0x11]
    %v166 = vld [vmem:[%s0 + $0x30] sm:$0x11]
    %v167 = vld [vmem:[%s0 + $0x38] sm:$0x11]
    %v168 = vunpack.c.l.bf16 %v160
    %v169 = vunpack.c.h.bf16 %v160
    %v170 = vunpack.c.l.bf16 %v161
    %v171 = vunpack.c.h.bf16 %v161
    %v172 = vunpack.c.l.bf16 %v162
    %v173 = vunpack.c.h.bf16 %v162
    %v174 = vunpack.c.l.bf16 %v163
    %v175 = vunpack.c.h.bf16 %v163
    %v176 = vunpack.c.l.bf16 %v164
    %v177 = vunpack.c.h.bf16 %v164
    %v178 = vunpack.c.l.bf16 %v165
    %v179 = vunpack.c.h.bf16 %v165
    %v180 = vunpack.c.l.bf16 %v166
    %v181 = vunpack.c.h.bf16 %v166
    %v182 = vunpack.c.l.bf16 %v167
    %v183 = vunpack.c.h.bf16 %v167
    %v186 = vunpack.c.l.s4 1983009808
    %v187 = vunpack.c.0.s8 %v186
    %v188 = vlaneseq
    %v189 = vshrl.u32 %v188, 7
    %v190 = vsub.s32 %v187, %v189
    %v191 = vrot.slane %v158, %v190
    %v192 = vcombine.high %v191, %v191
    %v195 = vpack.c.bf16 %v191, %v191
    %v196 = vpack.c.bf16 %v192, %v192
    %v325 = vunpack.c.l.b16 %v30
    %v326 = vunpack.c.h.b16 %v30
    %v327 = vunpack.c.l.b16 %v31
    %v328 = vunpack.c.h.b16 %v31
    %v329 = vunpack.c.l.b16 %v32
    %v330 = vunpack.c.h.b16 %v32
    %v331 = vunpack.c.l.b16 %v33
    %v332 = vunpack.c.h.b16 %v33
    %v333 = vunpack.c.l.b16 %v34
    %v334 = vunpack.c.h.b16 %v34
    %v335 = vunpack.c.l.b16 %v35
    %v336 = vunpack.c.h.b16 %v35
    %v337 = vunpack.c.l.b16 %v36
    %v338 = vunpack.c.h.b16 %v36
    %v339 = vunpack.c.l.b16 %v37
    %v340 = vunpack.c.h.b16 %v37
    %v341 = vunpack.c.l.b16 %v38
    %v342 = vunpack.c.h.b16 %v38
    %v343 = vunpack.c.l.b16 %v39
    %v344 = vunpack.c.h.b16 %v39
    %v345 = vunpack.c.l.b16 %v40
    %v346 = vunpack.c.h.b16 %v40
    %v347 = vunpack.c.l.b16 %v41
    %v348 = vunpack.c.h.b16 %v41
    %v349 = vunpack.c.l.b16 %v42
    %v350 = vunpack.c.h.b16 %v42
    %v351 = vunpack.c.l.b16 %v43
    %v352 = vunpack.c.h.b16 %v43
    %v353 = vunpack.c.l.b16 %v44
    %v354 = vunpack.c.h.b16 %v44
    %v355 = vunpack.c.l.b16 %v45
    %v356 = vunpack.c.h.b16 %v45
    %v357 = vunpack.c.l.b16 %v46
    %v358 = vunpack.c.h.b16 %v46
    %v359 = vunpack.c.l.b16 %v47
    %v360 = vunpack.c.h.b16 %v47
    %v361 = vunpack.c.l.b16 %v48
    %v362 = vunpack.c.h.b16 %v48
    %v363 = vunpack.c.l.b16 %v49
    %v364 = vunpack.c.h.b16 %v49
    %v365 = vunpack.c.l.b16 %v50
    %v366 = vunpack.c.h.b16 %v50
    %v367 = vunpack.c.l.b16 %v51
    %v368 = vunpack.c.h.b16 %v51
    %v369 = vunpack.c.l.b16 %v52
    %v370 = vunpack.c.h.b16 %v52
    %v371 = vunpack.c.l.b16 %v53
    %v372 = vunpack.c.h.b16 %v53
    %v373 = vunpack.c.l.b16 %v54
    %v374 = vunpack.c.h.b16 %v54
    %v375 = vunpack.c.l.b16 %v55
    %v376 = vunpack.c.h.b16 %v55
    %v377 = vunpack.c.l.b16 %v56
    %v378 = vunpack.c.h.b16 %v56
    %v379 = vunpack.c.l.b16 %v57
    %v380 = vunpack.c.h.b16 %v57
    %v381 = vunpack.c.l.b16 %v58
    %v382 = vunpack.c.h.b16 %v58
    %v383 = vunpack.c.l.b16 %v59
    %v384 = vunpack.c.h.b16 %v59
    %v385 = vunpack.c.l.b16 %v60
    %v386 = vunpack.c.h.b16 %v60
    %v387 = vunpack.c.l.b16 %v61
    %v388 = vunpack.c.h.b16 %v61
    %v389 = vunpack.c.l.b16 %v62
    %v390 = vunpack.c.h.b16 %v62
    %v391 = vunpack.c.l.b16 %v63
    %v392 = vunpack.c.h.b16 %v63
    %v393 = vunpack.c.l.b16 %v64
    %v394 = vunpack.c.h.b16 %v64
    %v395 = vunpack.c.l.b16 %v65
    %v396 = vunpack.c.h.b16 %v65
    %v397 = vunpack.c.l.b16 %v66
    %v398 = vunpack.c.h.b16 %v66
    %v399 = vunpack.c.l.b16 %v67
    %v400 = vunpack.c.h.b16 %v67
    %v401 = vunpack.c.l.b16 %v68
    %v402 = vunpack.c.h.b16 %v68
    %v403 = vunpack.c.l.b16 %v69
    %v404 = vunpack.c.h.b16 %v69
    %v405 = vunpack.c.l.b16 %v70
    %v406 = vunpack.c.h.b16 %v70
    %v407 = vunpack.c.l.b16 %v71
    %v408 = vunpack.c.h.b16 %v71
    %v409 = vunpack.c.l.b16 %v72
    %v410 = vunpack.c.h.b16 %v72
    %v411 = vunpack.c.l.b16 %v73
    %v412 = vunpack.c.h.b16 %v73
    %v413 = vunpack.c.l.b16 %v74
    %v414 = vunpack.c.h.b16 %v74
    %v415 = vunpack.c.l.b16 %v75
    %v416 = vunpack.c.h.b16 %v75
    %v417 = vunpack.c.l.b16 %v76
    %v418 = vunpack.c.h.b16 %v76
    %v419 = vunpack.c.l.b16 %v77
    %v420 = vunpack.c.h.b16 %v77
    %v421 = vunpack.c.l.b16 %v78
    %v422 = vunpack.c.h.b16 %v78
    %v423 = vunpack.c.l.b16 %v79
    %v424 = vunpack.c.h.b16 %v79
    %v425 = vunpack.c.l.b16 %v80
    %v426 = vunpack.c.h.b16 %v80
    %v427 = vunpack.c.l.b16 %v81
    %v428 = vunpack.c.h.b16 %v81
    %v429 = vunpack.c.l.b16 %v82
    %v430 = vunpack.c.h.b16 %v82
    %v431 = vunpack.c.l.b16 %v83
    %v432 = vunpack.c.h.b16 %v83
    %v433 = vunpack.c.l.b16 %v84
    %v434 = vunpack.c.h.b16 %v84
    %v435 = vunpack.c.l.b16 %v85
    %v436 = vunpack.c.h.b16 %v85
    %v437 = vunpack.c.l.b16 %v86
    %v438 = vunpack.c.h.b16 %v86
    %v439 = vunpack.c.l.b16 %v87
    %v440 = vunpack.c.h.b16 %v87
    %v441 = vunpack.c.l.b16 %v88
    %v442 = vunpack.c.h.b16 %v88
    %v443 = vunpack.c.l.b16 %v89
    %v444 = vunpack.c.h.b16 %v89
    %v445 = vunpack.c.l.b16 %v90
    %v446 = vunpack.c.h.b16 %v90
    %v447 = vunpack.c.l.b16 %v91
    %v448 = vunpack.c.h.b16 %v91
    %v449 = vunpack.c.l.b16 %v92
    %v450 = vunpack.c.h.b16 %v92
    %v451 = vunpack.c.l.b16 %v93
    %v452 = vunpack.c.h.b16 %v93
    %v453 = vunpack.c.l.b16 %v94
    %v454 = vunpack.c.h.b16 %v94
    %v455 = vunpack.c.l.b16 %v95
    %v456 = vunpack.c.h.b16 %v95
    %v457 = vunpack.c.l.b16 %v96
    %v458 = vunpack.c.h.b16 %v96
    %v459 = vunpack.c.l.b16 %v97
    %v460 = vunpack.c.h.b16 %v97
    %v461 = vunpack.c.l.b16 %v98
    %v462 = vunpack.c.h.b16 %v98
    %v463 = vunpack.c.l.b16 %v99
    %v464 = vunpack.c.h.b16 %v99
    %v465 = vunpack.c.l.b16 %v100
    %v466 = vunpack.c.h.b16 %v100
    %v467 = vunpack.c.l.b16 %v101
    %v468 = vunpack.c.h.b16 %v101
    %v469 = vunpack.c.l.b16 %v102
    %v470 = vunpack.c.h.b16 %v102
    %v471 = vunpack.c.l.b16 %v103
    %v472 = vunpack.c.h.b16 %v103
    %v473 = vunpack.c.l.b16 %v104
    %v474 = vunpack.c.h.b16 %v104
    %v475 = vunpack.c.l.b16 %v105
    %v476 = vunpack.c.h.b16 %v105
    %v477 = vunpack.c.l.b16 %v106
    %v478 = vunpack.c.h.b16 %v106
    %v479 = vunpack.c.l.b16 %v107
    %v480 = vunpack.c.h.b16 %v107
    %v481 = vunpack.c.l.b16 %v108
    %v482 = vunpack.c.h.b16 %v108
    %v483 = vunpack.c.l.b16 %v109
    %v484 = vunpack.c.h.b16 %v109
    %v485 = vunpack.c.l.b16 %v110
    %v486 = vunpack.c.h.b16 %v110
    %v487 = vunpack.c.l.b16 %v111
    %v488 = vunpack.c.h.b16 %v111
    %v489 = vunpack.c.l.b16 %v112
    %v490 = vunpack.c.h.b16 %v112
    %v491 = vunpack.c.l.b16 %v113
    %v492 = vunpack.c.h.b16 %v113
    %v493 = vunpack.c.l.b16 %v114
    %v494 = vunpack.c.h.b16 %v114
    %v495 = vunpack.c.l.b16 %v115
    %v496 = vunpack.c.h.b16 %v115
    %v497 = vunpack.c.l.b16 %v116
    %v498 = vunpack.c.h.b16 %v116
    %v499 = vunpack.c.l.b16 %v117
    %v500 = vunpack.c.h.b16 %v117
    %v501 = vunpack.c.l.b16 %v118
    %v502 = vunpack.c.h.b16 %v118
    %v503 = vunpack.c.l.b16 %v119
    %v504 = vunpack.c.h.b16 %v119
    %v505 = vunpack.c.l.b16 %v120
    %v506 = vunpack.c.h.b16 %v120
    %v507 = vunpack.c.l.b16 %v121
    %v508 = vunpack.c.h.b16 %v121
    %v509 = vunpack.c.l.b16 %v122
    %v510 = vunpack.c.h.b16 %v122
    %v511 = vunpack.c.l.b16 %v123
    %v512 = vunpack.c.h.b16 %v123
    %v513 = vunpack.c.l.b16 %v124
    %v514 = vunpack.c.h.b16 %v124
    %v515 = vunpack.c.l.b16 %v125
    %v516 = vunpack.c.h.b16 %v125
    %v517 = vunpack.c.l.b16 %v126
    %v518 = vunpack.c.h.b16 %v126
    %v519 = vunpack.c.l.b16 %v127
    %v520 = vunpack.c.h.b16 %v127
    %v521 = vunpack.c.l.b16 %v128
    %v522 = vunpack.c.h.b16 %v128
    %v523 = vunpack.c.l.b16 %v129
    %v524 = vunpack.c.h.b16 %v129
    %v525 = vunpack.c.l.b16 %v130
    %v526 = vunpack.c.h.b16 %v130
    %v527 = vunpack.c.l.b16 %v131
    %v528 = vunpack.c.h.b16 %v131
    %v529 = vunpack.c.l.b16 %v132
    %v530 = vunpack.c.h.b16 %v132
    %v531 = vunpack.c.l.b16 %v133
    %v532 = vunpack.c.h.b16 %v133
    %v533 = vunpack.c.l.b16 %v134
    %v534 = vunpack.c.h.b16 %v134
    %v535 = vunpack.c.l.b16 %v135
    %v536 = vunpack.c.h.b16 %v135
    %v537 = vunpack.c.l.b16 %v136
    %v538 = vunpack.c.h.b16 %v136
    %v539 = vunpack.c.l.b16 %v137
    %v540 = vunpack.c.h.b16 %v137
    %v541 = vunpack.c.l.b16 %v138
    %v542 = vunpack.c.h.b16 %v138
    %v543 = vunpack.c.l.b16 %v139
    %v544 = vunpack.c.h.b16 %v139
    %v545 = vunpack.c.l.b16 %v140
    %v546 = vunpack.c.h.b16 %v140
    %v547 = vunpack.c.l.b16 %v141
    %v548 = vunpack.c.h.b16 %v141
    %v549 = vunpack.c.l.b16 %v142
    %v550 = vunpack.c.h.b16 %v142
    %v551 = vunpack.c.l.b16 %v143
    %v552 = vunpack.c.h.b16 %v143
    %v553 = vunpack.c.l.b16 %v144
    %v554 = vunpack.c.h.b16 %v144
    %v555 = vunpack.c.l.b16 %v145
    %v556 = vunpack.c.h.b16 %v145
    %v557 = vunpack.c.l.b16 %v146
    %v558 = vunpack.c.h.b16 %v146
    %v559 = vunpack.c.l.b16 %v147
    %v560 = vunpack.c.h.b16 %v147
    %v561 = vunpack.c.l.b16 %v148
    %v562 = vunpack.c.h.b16 %v148
    %v563 = vunpack.c.l.b16 %v149
    %v564 = vunpack.c.h.b16 %v149
    %v565 = vunpack.c.l.b16 %v150
    %v566 = vunpack.c.h.b16 %v150
    %v567 = vunpack.c.l.b16 %v151
    %v568 = vunpack.c.h.b16 %v151
    %v569 = vunpack.c.l.b16 %v152
    %v570 = vunpack.c.h.b16 %v152
    %v571 = vunpack.c.l.b16 %v153
    %v572 = vunpack.c.h.b16 %v153
    %v573 = vunpack.c.l.b16 %v154
    %v574 = vunpack.c.h.b16 %v154
    %v575 = vunpack.c.l.b16 %v155
    %v576 = vunpack.c.h.b16 %v155
    %v577 = vunpack.c.l.b16 %v156
    %v578 = vunpack.c.h.b16 %v156
    %v579 = vunpack.c.l.b16 %v157
    %v580 = vunpack.c.h.b16 %v157
    %v581 = vpack.c.b16 %v333, %v325
    %v582 = vpack.c.b16 %v334, %v326
    %v583 = vpack.c.b16 %v335, %v327
    %v584 = vpack.c.b16 %v336, %v328
    %v585 = vpack.c.b16 %v337, %v329
    %v586 = vpack.c.b16 %v338, %v330
    %v587 = vpack.c.b16 %v339, %v331
    %v588 = vpack.c.b16 %v340, %v332
    %v589 = vpack.c.b16 %v349, %v341
    %v590 = vpack.c.b16 %v350, %v342
    %v591 = vpack.c.b16 %v351, %v343
    %v592 = vpack.c.b16 %v352, %v344
    %v593 = vpack.c.b16 %v353, %v345
    %v594 = vpack.c.b16 %v354, %v346
    %v595 = vpack.c.b16 %v355, %v347
    %v596 = vpack.c.b16 %v356, %v348
    %v597 = vpack.c.b16 %v365, %v357
    %v598 = vpack.c.b16 %v366, %v358
    %v599 = vpack.c.b16 %v367, %v359
    %v600 = vpack.c.b16 %v368, %v360
    %v601 = vpack.c.b16 %v369, %v361
    %v602 = vpack.c.b16 %v370, %v362
    %v603 = vpack.c.b16 %v371, %v363
    %v604 = vpack.c.b16 %v372, %v364
    %v605 = vpack.c.b16 %v381, %v373
    %v606 = vpack.c.b16 %v382, %v374
    %v607 = vpack.c.b16 %v383, %v375
    %v608 = vpack.c.b16 %v384, %v376
    %v609 = vpack.c.b16 %v385, %v377
    %v610 = vpack.c.b16 %v386, %v378
    %v611 = vpack.c.b16 %v387, %v379
    %v612 = vpack.c.b16 %v388, %v380
    %v613 = vpack.c.b16 %v397, %v389
    %v614 = vpack.c.b16 %v398, %v390
    %v615 = vpack.c.b16 %v399, %v391
    %v616 = vpack.c.b16 %v400, %v392
    %v617 = vpack.c.b16 %v401, %v393
    %v618 = vpack.c.b16 %v402, %v394
    %v619 = vpack.c.b16 %v403, %v395
    %v620 = vpack.c.b16 %v404, %v396
    %v621 = vpack.c.b16 %v413, %v405
    %v622 = vpack.c.b16 %v414, %v406
    %v623 = vpack.c.b16 %v415, %v407
    %v624 = vpack.c.b16 %v416, %v408
    %v625 = vpack.c.b16 %v417, %v409
    %v626 = vpack.c.b16 %v418, %v410
    %v627 = vpack.c.b16 %v419, %v411
    %v628 = vpack.c.b16 %v420, %v412
    %v629 = vpack.c.b16 %v429, %v421
    %v630 = vpack.c.b16 %v430, %v422
    %v631 = vpack.c.b16 %v431, %v423
    %v632 = vpack.c.b16 %v432, %v424
    %v633 = vpack.c.b16 %v433, %v425
    %v634 = vpack.c.b16 %v434, %v426
    %v635 = vpack.c.b16 %v435, %v427
    %v636 = vpack.c.b16 %v436, %v428
    %v637 = vpack.c.b16 %v445, %v437
    %v638 = vpack.c.b16 %v446, %v438
    %v639 = vpack.c.b16 %v447, %v439
    %v640 = vpack.c.b16 %v448, %v440
    %v641 = vpack.c.b16 %v449, %v441
    %v642 = vpack.c.b16 %v450, %v442
    %v643 = vpack.c.b16 %v451, %v443
    %v644 = vpack.c.b16 %v452, %v444
    %v645 = vpack.c.b16 %v461, %v453
    %v646 = vpack.c.b16 %v462, %v454
    %v647 = vpack.c.b16 %v463, %v455
    %v648 = vpack.c.b16 %v464, %v456
    %v649 = vpack.c.b16 %v465, %v457
    %v650 = vpack.c.b16 %v466, %v458
    %v651 = vpack.c.b16 %v467, %v459
    %v652 = vpack.c.b16 %v468, %v460
    %v653 = vpack.c.b16 %v477, %v469
    %v654 = vpack.c.b16 %v478, %v470
    %v655 = vpack.c.b16 %v479, %v471
    %v656 = vpack.c.b16 %v480, %v472
    %v657 = vpack.c.b16 %v481, %v473
    %v658 = vpack.c.b16 %v482, %v474
    %v659 = vpack.c.b16 %v483, %v475
    %v660 = vpack.c.b16 %v484, %v476
    %v661 = vpack.c.b16 %v493, %v485
    %v662 = vpack.c.b16 %v494, %v486
    %v663 = vpack.c.b16 %v495, %v487
    %v664 = vpack.c.b16 %v496, %v488
    %v665 = vpack.c.b16 %v497, %v489
    %v666 = vpack.c.b16 %v498, %v490
    %v667 = vpack.c.b16 %v499, %v491
    %v668 = vpack.c.b16 %v500, %v492
    %v669 = vpack.c.b16 %v509, %v501
    %v670 = vpack.c.b16 %v510, %v502
    %v671 = vpack.c.b16 %v511, %v503
    %v672 = vpack.c.b16 %v512, %v504
    %v673 = vpack.c.b16 %v513, %v505
    %v674 = vpack.c.b16 %v514, %v506
    %v675 = vpack.c.b16 %v515, %v507
    %v676 = vpack.c.b16 %v516, %v508
    %v677 = vpack.c.b16 %v525, %v517
    %v678 = vpack.c.b16 %v526, %v518
    %v679 = vpack.c.b16 %v527, %v519
    %v680 = vpack.c.b16 %v528, %v520
    %v681 = vpack.c.b16 %v529, %v521
    %v682 = vpack.c.b16 %v530, %v522
    %v683 = vpack.c.b16 %v531, %v523
    %v684 = vpack.c.b16 %v532, %v524
    %v685 = vpack.c.b16 %v541, %v533
    %v686 = vpack.c.b16 %v542, %v534
    %v687 = vpack.c.b16 %v543, %v535
    %v688 = vpack.c.b16 %v544, %v536
    %v689 = vpack.c.b16 %v545, %v537
    %v690 = vpack.c.b16 %v546, %v538
    %v691 = vpack.c.b16 %v547, %v539
    %v692 = vpack.c.b16 %v548, %v540
    %v693 = vpack.c.b16 %v557, %v549
    %v694 = vpack.c.b16 %v558, %v550
    %v695 = vpack.c.b16 %v559, %v551
    %v696 = vpack.c.b16 %v560, %v552
    %v697 = vpack.c.b16 %v561, %v553
    %v698 = vpack.c.b16 %v562, %v554
    %v699 = vpack.c.b16 %v563, %v555
    %v700 = vpack.c.b16 %v564, %v556
    %v701 = vpack.c.b16 %v573, %v565
    %v702 = vpack.c.b16 %v574, %v566
    %v703 = vpack.c.b16 %v575, %v567
    %v704 = vpack.c.b16 %v576, %v568
    %v705 = vpack.c.b16 %v577, %v569
    %v706 = vpack.c.b16 %v578, %v570
    %v707 = vpack.c.b16 %v579, %v571
    %v708 = vpack.c.b16 %v580, %v572
    %837 = vmatprep.subr.bf16.mxu0 %v638
    %838 = vmatpush1.bf16.msra.mxu0 %v637
    %839 = vmatprep.subr.bf16.mxu0 %v630
    %840 = vmatpush1.bf16.msra.mxu0 %v629
    %841 = vmatprep.subr.bf16.mxu0 %v622
    %842 = vmatpush1.bf16.msra.mxu0 %v621
    %843 = vmatprep.subr.bf16.mxu0 %v614
    %844 = vmatpush1.bf16.msra.mxu0 %v613
    %845 = vmatprep.subr.bf16.mxu0 %v606
    %846 = vmatpush1.bf16.msra.mxu0 %v605
    %847 = vmatprep.subr.bf16.mxu0 %v598
    %848 = vmatpush1.bf16.msra.mxu0 %v597
    %849 = vmatprep.subr.bf16.mxu0 %v590
    %850 = vmatpush1.bf16.msra.mxu0 %v589
    %851 = vmatprep.subr.bf16.mxu0 %v582
    %852 = vmatpush1.bf16.msra.mxu0 %v581
    %853 = vmatprep.subr.bf16.mxu0 %v702
    %854 = vmatpush2.bf16.msra.mxu0 %v701
    %855 = vmatprep.subr.bf16.mxu0 %v694
    %856 = vmatpush2.bf16.msra.mxu0 %v693
    %857 = vmatprep.subr.bf16.mxu0 %v686
    %858 = vmatpush2.bf16.msra.mxu0 %v685
    %859 = vmatprep.subr.bf16.mxu0 %v678
    %860 = vmatpush2.bf16.msra.mxu0 %v677
    %861 = vmatprep.subr.bf16.mxu0 %v670
    %862 = vmatpush2.bf16.msra.mxu0 %v669
    %863 = vmatprep.subr.bf16.mxu0 %v662
    %864 = vmatpush2.bf16.msra.mxu0 %v661
    %865 = vmatprep.subr.bf16.mxu0 %v654
    %866 = vmatpush2.bf16.msra.mxu0 %v653
    %867 = vmatprep.subr.bf16.mxu0 %v646
    %868 = vmatpush2.bf16.msra.mxu0 %v645
    %869 = vmatprep.mubr.bf16.mxu0 %v196
    %870 = vmatmul.mubr.bf16.gmra.mxu0 %v195
    %v871 = vpop.f32.mrf.mxu0
    %v872 = vadd.f32 0.0, %v871
    %v873 = vpop.f32.mrf.mxu0
    %v874 = vadd.f32 0.0, %v873
    %v875 = vpop.f32.mrf.mxu0
    %v876 = vpop.f32.mrf.mxu0
    %877 = vdwg.mxu0
    %878 = vmatprep.subr.bf16.mxu0 %v640
    %879 = vmatpush1.bf16.msra.mxu0 %v639
    %880 = vmatprep.subr.bf16.mxu0 %v632
    %881 = vmatpush1.bf16.msra.mxu0 %v631
    %882 = vmatprep.subr.bf16.mxu0 %v624
    %883 = vmatpush1.bf16.msra.mxu0 %v623
    %884 = vmatprep.subr.bf16.mxu0 %v616
    %885 = vmatpush1.bf16.msra.mxu0 %v615
    %886 = vmatprep.subr.bf16.mxu0 %v608
    %887 = vmatpush1.bf16.msra.mxu0 %v607
    %888 = vmatprep.subr.bf16.mxu0 %v600
    %889 = vmatpush1.bf16.msra.mxu0 %v599
    %890 = vmatprep.subr.bf16.mxu0 %v592
    %891 = vmatpush1.bf16.msra.mxu0 %v591
    %892 = vmatprep.subr.bf16.mxu0 %v584
    %893 = vmatpush1.bf16.msra.mxu0 %v583
    %894 = vmatprep.subr.bf16.mxu0 %v704
    %895 = vmatpush2.bf16.msra.mxu0 %v703
    %896 = vmatprep.subr.bf16.mxu0 %v696
    %897 = vmatpush2.bf16.msra.mxu0 %v695
    %898 = vmatprep.subr.bf16.mxu0 %v688
    %899 = vmatpush2.bf16.msra.mxu0 %v687
    %900 = vmatprep.subr.bf16.mxu0 %v680
    %901 = vmatpush2.bf16.msra.mxu0 %v679
    %902 = vmatprep.subr.bf16.mxu0 %v672
    %903 = vmatpush2.bf16.msra.mxu0 %v671
    %904 = vmatprep.subr.bf16.mxu0 %v664
    %905 = vmatpush2.bf16.msra.mxu0 %v663
    %906 = vmatprep.subr.bf16.mxu0 %v656
    %907 = vmatpush2.bf16.msra.mxu0 %v655
    %908 = vmatprep.subr.bf16.mxu0 %v648
    %909 = vmatpush2.bf16.msra.mxu0 %v647
    %910 = vmatprep.mubr.bf16.mxu0 %v196
    %911 = vmatmul.mubr.bf16.gmra.mxu0 %v195
    %v912 = vpop.f32.mrf.mxu0
    %v913 = vadd.f32 0.0, %v912
    %v914 = vpop.f32.mrf.mxu0
    %v915 = vadd.f32 0.0, %v914
    %v916 = vpop.f32.mrf.mxu0
    %v917 = vpop.f32.mrf.mxu0
    %918 = vdwg.mxu0
    %919 = vmatprep.subr.bf16.mxu0 %v642
    %920 = vmatpush1.bf16.msra.mxu0 %v641
    %921 = vmatprep.subr.bf16.mxu0 %v634
    %922 = vmatpush1.bf16.msra.mxu0 %v633
    %923 = vmatprep.subr.bf16.mxu0 %v626
    %924 = vmatpush1.bf16.msra.mxu0 %v625
    %925 = vmatprep.subr.bf16.mxu0 %v618
    %926 = vmatpush1.bf16.msra.mxu0 %v617
    %927 = vmatprep.subr.bf16.mxu0 %v610
    %928 = vmatpush1.bf16.msra.mxu0 %v609
    %929 = vmatprep.subr.bf16.mxu0 %v602
    %930 = vmatpush1.bf16.msra.mxu0 %v601
    %931 = vmatprep.subr.bf16.mxu0 %v594
    %932 = vmatpush1.bf16.msra.mxu0 %v593
    %933 = vmatprep.subr.bf16.mxu0 %v586
    %934 = vmatpush1.bf16.msra.mxu0 %v585
    %935 = vmatprep.subr.bf16.mxu0 %v706
    %936 = vmatpush2.bf16.msra.mxu0 %v705
    %937 = vmatprep.subr.bf16.mxu0 %v698
    %938 = vmatpush2.bf16.msra.mxu0 %v697
    %939 = vmatprep.subr.bf16.mxu0 %v690
    %940 = vmatpush2.bf16.msra.mxu0 %v689
    %941 = vmatprep.subr.bf16.mxu0 %v682
    %942 = vmatpush2.bf16.msra.mxu0 %v681
    %943 = vmatprep.subr.bf16.mxu0 %v674
    %944 = vmatpush2.bf16.msra.mxu0 %v673
    %945 = vmatprep.subr.bf16.mxu0 %v666
    %946 = vmatpush2.bf16.msra.mxu0 %v665
    %947 = vmatprep.subr.bf16.mxu0 %v658
    %948 = vmatpush2.bf16.msra.mxu0 %v657
    %949 = vmatprep.subr.bf16.mxu0 %v650
    %950 = vmatpush2.bf16.msra.mxu0 %v649
    %951 = vmatprep.mubr.bf16.mxu0 %v196
    %952 = vmatmul.mubr.bf16.gmra.mxu0 %v195
    %v953 = vpop.f32.mrf.mxu0
    %v954 = vadd.f32 0.0, %v953
    %v955 = vpop.f32.mrf.mxu0
    %v956 = vadd.f32 0.0, %v955
    %v957 = vpop.f32.mrf.mxu0
    %v958 = vpop.f32.mrf.mxu0
    %959 = vdwg.mxu0
    %960 = vmatprep.subr.bf16.mxu0 %v644
    %961 = vmatpush1.bf16.msra.mxu0 %v643
    %962 = vmatprep.subr.bf16.mxu0 %v636
    %963 = vmatpush1.bf16.msra.mxu0 %v635
    %964 = vmatprep.subr.bf16.mxu0 %v628
    %965 = vmatpush1.bf16.msra.mxu0 %v627
    %966 = vmatprep.subr.bf16.mxu0 %v620
    %967 = vmatpush1.bf16.msra.mxu0 %v619
    %968 = vmatprep.subr.bf16.mxu0 %v612
    %969 = vmatpush1.bf16.msra.mxu0 %v611
    %970 = vmatprep.subr.bf16.mxu0 %v604
    %971 = vmatpush1.bf16.msra.mxu0 %v603
    %972 = vmatprep.subr.bf16.mxu0 %v596
    %973 = vmatpush1.bf16.msra.mxu0 %v595
    %974 = vmatprep.subr.bf16.mxu0 %v588
    %975 = vmatpush1.bf16.msra.mxu0 %v587
    %976 = vmatprep.subr.bf16.mxu0 %v708
    %977 = vmatpush2.bf16.msra.mxu0 %v707
    %978 = vmatprep.subr.bf16.mxu0 %v700
    %979 = vmatpush2.bf16.msra.mxu0 %v699
    %980 = vmatprep.subr.bf16.mxu0 %v692
    %981 = vmatpush2.bf16.msra.mxu0 %v691
    %982 = vmatprep.subr.bf16.mxu0 %v684
    %983 = vmatpush2.bf16.msra.mxu0 %v683
    %984 = vmatprep.subr.bf16.mxu0 %v676
    %985 = vmatpush2.bf16.msra.mxu0 %v675
    %986 = vmatprep.subr.bf16.mxu0 %v668
    %987 = vmatpush2.bf16.msra.mxu0 %v667
    %988 = vmatprep.subr.bf16.mxu0 %v660
    %989 = vmatpush2.bf16.msra.mxu0 %v659
    %990 = vmatprep.subr.bf16.mxu0 %v652
    %991 = vmatpush2.bf16.msra.mxu0 %v651
    %992 = vmatprep.mubr.bf16.mxu0 %v196
    %993 = vmatmul.mubr.bf16.gmra.mxu0 %v195
    %v994 = vpop.f32.mrf.mxu0
    %v995 = vadd.f32 0.0, %v994
    %v996 = vpop.f32.mrf.mxu0
    %v997 = vadd.f32 0.0, %v996
    %v998 = vpop.f32.mrf.mxu0
    %v999 = vpop.f32.mrf.mxu0
    %1000 = vdwg.mxu0
    %v1009 = vrot.slane %v872, 1
    %v1010 = vrot.slane %v874, 1
    %v1011 = vrot.slane %v913, 1
    %v1012 = vrot.slane %v915, 1
    %v1013 = vrot.slane %v954, 1
    %v1014 = vrot.slane %v956, 1
    %v1015 = vrot.slane %v995, 1
    %v1016 = vrot.slane %v997, 1
    %v1033 = vadd.f32 %v168, %v872
    %v1034 = vadd.f32 %v169, %v874
    %v1035 = vadd.f32 %v170, %v913
    %v1036 = vadd.f32 %v171, %v915
    %v1037 = vadd.f32 %v172, %v954
    %v1038 = vadd.f32 %v173, %v956
    %v1039 = vadd.f32 %v174, %v995
    %v1040 = vadd.f32 %v175, %v997
    %v1041 = vadd.f32 %v176, %v1009
    %v1042 = vadd.f32 %v177, %v1010
    %v1043 = vadd.f32 %v178, %v1011
    %v1044 = vadd.f32 %v179, %v1012
    %v1045 = vadd.f32 %v180, %v1013
    %v1046 = vadd.f32 %v181, %v1014
    %v1047 = vadd.f32 %v182, %v1015
    %v1048 = vadd.f32 %v183, %v1016
    %v1049 = vxor.u32 %v1033, 2147483648
    %v1050 = vxor.u32 %v1034, 2147483648
    %v1051 = vxor.u32 %v1035, 2147483648
    %v1052 = vxor.u32 %v1036, 2147483648
    %v1053 = vxor.u32 %v1037, 2147483648
    %v1054 = vxor.u32 %v1038, 2147483648
    %v1055 = vxor.u32 %v1041, 2147483648
    %v1056 = vxor.u32 %v1042, 2147483648
    %v1057 = vxor.u32 %v1043, 2147483648
    %v1058 = vxor.u32 %v1044, 2147483648
    %v1059 = vxor.u32 %v1045, 2147483648
    %v1060 = vxor.u32 %v1046, 2147483648
    %v1061 = vmul.f32 %v1049, 1.442695
    %v1062 = vpow.pop %v1061
    %v1063 = vmul.f32 %v1050, 1.442695
    %v1064 = vpow.pop %v1063
    %v1065 = vmul.f32 %v1051, 1.442695
    %v1066 = vpow.pop %v1065
    %v1067 = vmul.f32 %v1052, 1.442695
    %v1068 = vpow.pop %v1067
    %v1069 = vmul.f32 %v1053, 1.442695
    %v1070 = vpow.pop %v1069
    %v1071 = vmul.f32 %v1054, 1.442695
    %v1072 = vpow.pop %v1071
    %v1073 = vmul.f32 %v1055, 1.442695
    %v1074 = vpow.pop %v1073
    %v1075 = vmul.f32 %v1056, 1.442695
    %v1076 = vpow.pop %v1075
    %v1077 = vmul.f32 %v1057, 1.442695
    %v1078 = vpow.pop %v1077
    %v1079 = vmul.f32 %v1058, 1.442695
    %v1080 = vpow.pop %v1079
    %v1081 = vmul.f32 %v1059, 1.442695
    %v1082 = vpow.pop %v1081
    %v1083 = vmul.f32 %v1060, 1.442695
    %v1084 = vpow.pop %v1083
    %v1085 = vadd.f32 %v1062, 1.0
    %v1086 = vadd.f32 %v1064, 1.0
    %v1087 = vadd.f32 %v1066, 1.0
    %v1088 = vadd.f32 %v1068, 1.0
    %v1089 = vadd.f32 %v1070, 1.0
    %v1090 = vadd.f32 %v1072, 1.0
    %v1091 = vadd.f32 %v1074, 1.0
    %v1092 = vadd.f32 %v1076, 1.0
    %v1093 = vadd.f32 %v1078, 1.0
    %v1094 = vadd.f32 %v1080, 1.0
    %v1095 = vadd.f32 %v1082, 1.0
    %v1096 = vadd.f32 %v1084, 1.0
    %v1097 = vrcp.pop %v1085
    %v1098 = vmul.f32 1.0, %v1097
    %v1099 = vrcp.pop %v1086
    %v1100 = vmul.f32 1.0, %v1099
    %v1101 = vrcp.pop %v1087
    %v1102 = vmul.f32 1.0, %v1101
    %v1103 = vrcp.pop %v1088
    %v1104 = vmul.f32 1.0, %v1103
    %v1105 = vrcp.pop %v1089
    %v1106 = vmul.f32 1.0, %v1105
    %v1107 = vrcp.pop %v1090
    %v1108 = vmul.f32 1.0, %v1107
    %v1109 = vrcp.pop %v1091
    %v1110 = vmul.f32 1.0, %v1109
    %v1111 = vrcp.pop %v1092
    %v1112 = vmul.f32 1.0, %v1111
    %v1113 = vrcp.pop %v1093
    %v1114 = vmul.f32 1.0, %v1113
    %v1115 = vrcp.pop %v1094
    %v1116 = vmul.f32 1.0, %v1115
    %v1117 = vrcp.pop %v1095
    %v1118 = vmul.f32 1.0, %v1117
    %v1119 = vrcp.pop %v1096
    %v1120 = vmul.f32 1.0, %v1119
    %v1121 = vtanh.pop %v1039
    %v1122 = vtanh.pop %v1040
    %v1123 = vtanh.pop %v1047
    %v1124 = vtanh.pop %v1048
    %v1127 = vunpack.c.l.s4 1983009808
    %v1128 = vunpack.c.0.s8 %v1127
    %v1129 = vlaneseq
    %v1130 = vshrl.u32 %v1129, 7
    %v1131 = vsub.s32 %v1128, %v1130
    %v1132 = vrot.slane %v159, %v1131
    %v1133 = vcombine.high %v1132, %v1132
    %v1134 = vrot.slane %v1132, 1
    %v1135 = vrot.slane %v1133, 1
    %v1140 = vmul.f32 %v1102, %v1132
    %v1141 = vmul.f32 %v1104, %v1133
    %v1142 = vmul.f32 %v1114, %v1134
    %v1143 = vmul.f32 %v1116, %v1135
    %v1144 = vmul.f32 %v1098, %v1121
    %v1145 = vmul.f32 %v1100, %v1122
    %v1146 = vmul.f32 %v1110, %v1123
    %v1147 = vmul.f32 %v1112, %v1124
    %v1148 = vadd.f32 %v1140, %v1144
    %v1149 = vadd.f32 %v1141, %v1145
    %v1150 = vadd.f32 %v1142, %v1146
    %v1151 = vadd.f32 %v1143, %v1147
    %v1152 = vtanh.pop %v1148
    %v1153 = vtanh.pop %v1149
    %v1154 = vtanh.pop %v1150
    %v1155 = vtanh.pop %v1151
    %v1156 = vmul.f32 %v1106, %v1152
    %v1157 = vmul.f32 %v1108, %v1153
    %v1158 = vmul.f32 %v1118, %v1154
    %v1159 = vmul.f32 %v1120, %v1155
    %v1160 = vpack.c.bf16 %v1156, %v1156
    %v1161 = vpack.c.bf16 %v1157, %v1157
    %v1162 = vpack.c.bf16 %v1158, %v1158
    %v1163 = vpack.c.bf16 %v1159, %v1159
    %v1168 = vunpack.c.l.b16 %v1160
    %v1169 = vunpack.c.l.b16 %v1161
    %v1170 = vunpack.c.l.b16 %v1162
    %v1171 = vunpack.c.l.b16 %v1163
    %v1172 = vpack.c.b16 %v1169, %v1168
    %v1173 = vpack.c.b16 %v1171, %v1170
    %vm1176 = vcmask 1040384
    %vm1177 = vsmask.f32 256
    %vm1178 = vmand %vm1176, %vm1177
    %vm1179 = vcmask 1044484
    %vm1180 = vsmask.f32 4352
    %vm1181 = vmand %vm1179, %vm1180
    %vm1182 = vmor %vm1181, %vm1178
    %v1183 = vld [vmem:[%s4] sm:$0x11]
    %v1184 = vsel %vm1182, %v1172, %v1183
    %1185 = vst [vmem:[%s4] sm:$0x11] %v1184
    %v1186 = vld [vmem:[%s4 + $0x8] sm:$0x11]
    %v1187 = vsel %vm1182, %v1173, %v1186
    %1188 = vst [vmem:[%s4 + $0x8] sm:$0x11] %v1187
    %v1189 = vld [vmem:[%s0] sm:$0x11]
    %v1190 = vld [vmem:[%s0 + $0x8] sm:$0x11]
    %v1191 = vld [vmem:[%s0 + $0x10] sm:$0x11]
    %v1192 = vld [vmem:[%s0 + $0x18] sm:$0x11]
    %v1193 = vld [vmem:[%s0 + $0x20] sm:$0x11]
    %v1194 = vld [vmem:[%s0 + $0x28] sm:$0x11]
    %v1195 = vld [vmem:[%s0 + $0x30] sm:$0x11]
    %v1196 = vld [vmem:[%s0 + $0x38] sm:$0x11]
    %v1197 = vunpack.c.l.bf16 %v1189
    %v1198 = vunpack.c.h.bf16 %v1189
    %v1199 = vunpack.c.l.bf16 %v1190
    %v1200 = vunpack.c.h.bf16 %v1190
    %v1201 = vunpack.c.l.bf16 %v1191
    %v1202 = vunpack.c.h.bf16 %v1191
    %v1203 = vunpack.c.l.bf16 %v1192
    %v1204 = vunpack.c.h.bf16 %v1192
    %v1205 = vunpack.c.l.bf16 %v1193
    %v1206 = vunpack.c.h.bf16 %v1193
    %v1207 = vunpack.c.l.bf16 %v1194
    %v1208 = vunpack.c.h.bf16 %v1194
    %v1209 = vunpack.c.l.bf16 %v1195
    %v1210 = vunpack.c.h.bf16 %v1195
    %v1211 = vunpack.c.l.bf16 %v1196
    %v1212 = vunpack.c.h.bf16 %v1196
    %v1213 = vrot.slane %v1170, 7
    %vm1214 = vcmask 1041409
    %v1215 = vsel %vm1214, %v1213, %v1168
    %v1216 = vrot.slane %v1171, 7
    %v1217 = vsel %vm1214, %v1216, %v1169
    %v1218 = vpack.c.b16 %v1215, %v1215
    %v1219 = vpack.c.b16 %v1217, %v1217
    %1222 = vmatprep.subr.bf16.mxu0 %v638
    %1223 = vmatpush1.bf16.msra.mxu0 %v637
    %1224 = vmatprep.subr.bf16.mxu0 %v630
    %1225 = vmatpush1.bf16.msra.mxu0 %v629
    %1226 = vmatprep.subr.bf16.mxu0 %v622
    %1227 = vmatpush1.bf16.msra.mxu0 %v621
    %1228 = vmatprep.subr.bf16.mxu0 %v614
    %1229 = vmatpush1.bf16.msra.mxu0 %v613
    %1230 = vmatprep.subr.bf16.mxu0 %v606
    %1231 = vmatpush1.bf16.msra.mxu0 %v605
    %1232 = vmatprep.subr.bf16.mxu0 %v598
    %1233 = vmatpush1.bf16.msra.mxu0 %v597
    %1234 = vmatprep.subr.bf16.mxu0 %v590
    %1235 = vmatpush1.bf16.msra.mxu0 %v589
    %1236 = vmatprep.subr.bf16.mxu0 %v582
    %1237 = vmatpush1.bf16.msra.mxu0 %v581
    %1238 = vmatprep.subr.bf16.mxu0 %v702
    %1239 = vmatpush2.bf16.msra.mxu0 %v701
    %1240 = vmatprep.subr.bf16.mxu0 %v694
    %1241 = vmatpush2.bf16.msra.mxu0 %v693
    %1242 = vmatprep.subr.bf16.mxu0 %v686
    %1243 = vmatpush2.bf16.msra.mxu0 %v685
    %1244 = vmatprep.subr.bf16.mxu0 %v678
    %1245 = vmatpush2.bf16.msra.mxu0 %v677
    %1246 = vmatprep.subr.bf16.mxu0 %v670
    %1247 = vmatpush2.bf16.msra.mxu0 %v669
    %1248 = vmatprep.subr.bf16.mxu0 %v662
    %1249 = vmatpush2.bf16.msra.mxu0 %v661
    %1250 = vmatprep.subr.bf16.mxu0 %v654
    %1251 = vmatpush2.bf16.msra.mxu0 %v653
    %1252 = vmatprep.subr.bf16.mxu0 %v646
    %1253 = vmatpush2.bf16.msra.mxu0 %v645
    %1254 = vmatprep.mubr.bf16.mxu0 %v1219
    %1255 = vmatmul.mubr.bf16.gmra.mxu0 %v1218
    %v1256 = vpop.f32.mrf.mxu0
    %v1257 = vadd.f32 0.0, %v1256
    %v1258 = vpop.f32.mrf.mxu0
    %v1259 = vadd.f32 0.0, %v1258
    %v1260 = vpop.f32.mrf.mxu0
    %v1261 = vpop.f32.mrf.mxu0
    %1262 = vdwg.mxu0
    %1263 = vmatprep.subr.bf16.mxu0 %v640
    %1264 = vmatpush1.bf16.msra.mxu0 %v639
    %1265 = vmatprep.subr.bf16.mxu0 %v632
    %1266 = vmatpush1.bf16.msra.mxu0 %v631
    %1267 = vmatprep.subr.bf16.mxu0 %v624
    %1268 = vmatpush1.bf16.msra.mxu0 %v623
    %1269 = vmatprep.subr.bf16.mxu0 %v616
    %1270 = vmatpush1.bf16.msra.mxu0 %v615
    %1271 = vmatprep.subr.bf16.mxu0 %v608
    %1272 = vmatpush1.bf16.msra.mxu0 %v607
    %1273 = vmatprep.subr.bf16.mxu0 %v600
    %1274 = vmatpush1.bf16.msra.mxu0 %v599
    %1275 = vmatprep.subr.bf16.mxu0 %v592
    %1276 = vmatpush1.bf16.msra.mxu0 %v591
    %1277 = vmatprep.subr.bf16.mxu0 %v584
    %1278 = vmatpush1.bf16.msra.mxu0 %v583
    %1279 = vmatprep.subr.bf16.mxu0 %v704
    %1280 = vmatpush2.bf16.msra.mxu0 %v703
    %1281 = vmatprep.subr.bf16.mxu0 %v696
    %1282 = vmatpush2.bf16.msra.mxu0 %v695
    %1283 = vmatprep.subr.bf16.mxu0 %v688
    %1284 = vmatpush2.bf16.msra.mxu0 %v687
    %1285 = vmatprep.subr.bf16.mxu0 %v680
    %1286 = vmatpush2.bf16.msra.mxu0 %v679
    %1287 = vmatprep.subr.bf16.mxu0 %v672
    %1288 = vmatpush2.bf16.msra.mxu0 %v671
    %1289 = vmatprep.subr.bf16.mxu0 %v664
    %1290 = vmatpush2.bf16.msra.mxu0 %v663
    %1291 = vmatprep.subr.bf16.mxu0 %v656
    %1292 = vmatpush2.bf16.msra.mxu0 %v655
    %1293 = vmatprep.subr.bf16.mxu0 %v648
    %1294 = vmatpush2.bf16.msra.mxu0 %v647
    %1295 = vmatprep.mubr.bf16.mxu0 %v1219
    %1296 = vmatmul.mubr.bf16.gmra.mxu0 %v1218
    %v1297 = vpop.f32.mrf.mxu0
    %v1298 = vadd.f32 0.0, %v1297
    %v1299 = vpop.f32.mrf.mxu0
    %v1300 = vadd.f32 0.0, %v1299
    %v1301 = vpop.f32.mrf.mxu0
    %v1302 = vpop.f32.mrf.mxu0
    %1303 = vdwg.mxu0
    %1304 = vmatprep.subr.bf16.mxu0 %v642
    %1305 = vmatpush1.bf16.msra.mxu0 %v641
    %1306 = vmatprep.subr.bf16.mxu0 %v634
    %1307 = vmatpush1.bf16.msra.mxu0 %v633
    %1308 = vmatprep.subr.bf16.mxu0 %v626
    %1309 = vmatpush1.bf16.msra.mxu0 %v625
    %1310 = vmatprep.subr.bf16.mxu0 %v618
    %1311 = vmatpush1.bf16.msra.mxu0 %v617
    %1312 = vmatprep.subr.bf16.mxu0 %v610
    %1313 = vmatpush1.bf16.msra.mxu0 %v609
    %1314 = vmatprep.subr.bf16.mxu0 %v602
    %1315 = vmatpush1.bf16.msra.mxu0 %v601
    %1316 = vmatprep.subr.bf16.mxu0 %v594
    %1317 = vmatpush1.bf16.msra.mxu0 %v593
    %1318 = vmatprep.subr.bf16.mxu0 %v586
    %1319 = vmatpush1.bf16.msra.mxu0 %v585
    %1320 = vmatprep.subr.bf16.mxu0 %v706
    %1321 = vmatpush2.bf16.msra.mxu0 %v705
    %1322 = vmatprep.subr.bf16.mxu0 %v698
    %1323 = vmatpush2.bf16.msra.mxu0 %v697
    %1324 = vmatprep.subr.bf16.mxu0 %v690
    %1325 = vmatpush2.bf16.msra.mxu0 %v689
    %1326 = vmatprep.subr.bf16.mxu0 %v682
    %1327 = vmatpush2.bf16.msra.mxu0 %v681
    %1328 = vmatprep.subr.bf16.mxu0 %v674
    %1329 = vmatpush2.bf16.msra.mxu0 %v673
    %1330 = vmatprep.subr.bf16.mxu0 %v666
    %1331 = vmatpush2.bf16.msra.mxu0 %v665
    %1332 = vmatprep.subr.bf16.mxu0 %v658
    %1333 = vmatpush2.bf16.msra.mxu0 %v657
    %1334 = vmatprep.subr.bf16.mxu0 %v650
    %1335 = vmatpush2.bf16.msra.mxu0 %v649
    %1336 = vmatprep.mubr.bf16.mxu0 %v1219
    %1337 = vmatmul.mubr.bf16.gmra.mxu0 %v1218
    %v1338 = vpop.f32.mrf.mxu0
    %v1339 = vadd.f32 0.0, %v1338
    %v1340 = vpop.f32.mrf.mxu0
    %v1341 = vadd.f32 0.0, %v1340
    %v1342 = vpop.f32.mrf.mxu0
    %v1343 = vpop.f32.mrf.mxu0
    %1344 = vdwg.mxu0
    %1345 = vmatprep.subr.bf16.mxu0 %v644
    %1346 = vmatpush1.bf16.msra.mxu0 %v643
    %1347 = vmatprep.subr.bf16.mxu0 %v636
    %1348 = vmatpush1.bf16.msra.mxu0 %v635
    %1349 = vmatprep.subr.bf16.mxu0 %v628
    %1350 = vmatpush1.bf16.msra.mxu0 %v627
    %1351 = vmatprep.subr.bf16.mxu0 %v620
    %1352 = vmatpush1.bf16.msra.mxu0 %v619
    %1353 = vmatprep.subr.bf16.mxu0 %v612
    %1354 = vmatpush1.bf16.msra.mxu0 %v611
    %1355 = vmatprep.subr.bf16.mxu0 %v604
    %1356 = vmatpush1.bf16.msra.mxu0 %v603
    %1357 = vmatprep.subr.bf16.mxu0 %v596
    %1358 = vmatpush1.bf16.msra.mxu0 %v595
    %1359 = vmatprep.subr.bf16.mxu0 %v588
    %1360 = vmatpush1.bf16.msra.mxu0 %v587
    %1361 = vmatprep.subr.bf16.mxu0 %v708
    %1362 = vmatpush2.bf16.msra.mxu0 %v707
    %1363 = vmatprep.subr.bf16.mxu0 %v700
    %1364 = vmatpush2.bf16.msra.mxu0 %v699
    %1365 = vmatprep.subr.bf16.mxu0 %v692
    %1366 = vmatpush2.bf16.msra.mxu0 %v691
    %1367 = vmatprep.subr.bf16.mxu0 %v684
    %1368 = vmatpush2.bf16.msra.mxu0 %v683
    %1369 = vmatprep.subr.bf16.mxu0 %v676
    %1370 = vmatpush2.bf16.msra.mxu0 %v675
    %1371 = vmatprep.subr.bf16.mxu0 %v668
    %1372 = vmatpush2.bf16.msra.mxu0 %v667
    %1373 = vmatprep.subr.bf16.mxu0 %v660
    %1374 = vmatpush2.bf16.msra.mxu0 %v659
    %1375 = vmatprep.subr.bf16.mxu0 %v652
    %1376 = vmatpush2.bf16.msra.mxu0 %v651
    %1377 = vmatprep.mubr.bf16.mxu0 %v1219
    %1378 = vmatmul.mubr.bf16.gmra.mxu0 %v1218
    %v1379 = vpop.f32.mrf.mxu0
    %v1380 = vadd.f32 0.0, %v1379
    %v1381 = vpop.f32.mrf.mxu0
    %v1382 = vadd.f32 0.0, %v1381
    %v1383 = vpop.f32.mrf.mxu0
    %v1384 = vpop.f32.mrf.mxu0
    %1385 = vdwg.mxu0
    %v1394 = vrot.slane %v1257, 7
    %v1395 = vrot.slane %v1259, 7
    %v1396 = vrot.slane %v1298, 7
    %v1397 = vrot.slane %v1300, 7
    %v1398 = vrot.slane %v1339, 7
    %v1399 = vrot.slane %v1341, 7
    %v1400 = vrot.slane %v1380, 7
    %v1401 = vrot.slane %v1382, 7
    %v1418 = vadd.f32 %v1197, %v1394
    %v1419 = vadd.f32 %v1198, %v1395
    %v1420 = vadd.f32 %v1199, %v1396
    %v1421 = vadd.f32 %v1200, %v1397
    %v1422 = vadd.f32 %v1201, %v1398
    %v1423 = vadd.f32 %v1202, %v1399
    %v1424 = vadd.f32 %v1203, %v1400
    %v1425 = vadd.f32 %v1204, %v1401
    %v1426 = vadd.f32 %v1205, %v1257
    %v1427 = vadd.f32 %v1206, %v1259
    %v1428 = vadd.f32 %v1207, %v1298
    %v1429 = vadd.f32 %v1208, %v1300
    %v1430 = vadd.f32 %v1209, %v1339
    %v1431 = vadd.f32 %v1210, %v1341
    %v1432 = vadd.f32 %v1211, %v1380
    %v1433 = vadd.f32 %v1212, %v1382
    %v1434 = vxor.u32 %v1418, 2147483648
    %v1435 = vxor.u32 %v1419, 2147483648
    %v1436 = vxor.u32 %v1420, 2147483648
    %v1437 = vxor.u32 %v1421, 2147483648
    %v1438 = vxor.u32 %v1422, 2147483648
    %v1439 = vxor.u32 %v1423, 2147483648
    %v1440 = vxor.u32 %v1426, 2147483648
    %v1441 = vxor.u32 %v1427, 2147483648
    %v1442 = vxor.u32 %v1428, 2147483648
    %v1443 = vxor.u32 %v1429, 2147483648
    %v1444 = vxor.u32 %v1430, 2147483648
    %v1445 = vxor.u32 %v1431, 2147483648
    %v1446 = vmul.f32 %v1434, 1.442695
    %v1447 = vpow.pop %v1446
    %v1448 = vmul.f32 %v1435, 1.442695
    %v1449 = vpow.pop %v1448
    %v1450 = vmul.f32 %v1436, 1.442695
    %v1451 = vpow.pop %v1450
    %v1452 = vmul.f32 %v1437, 1.442695
    %v1453 = vpow.pop %v1452
    %v1454 = vmul.f32 %v1438, 1.442695
    %v1455 = vpow.pop %v1454
    %v1456 = vmul.f32 %v1439, 1.442695
    %v1457 = vpow.pop %v1456
    %v1458 = vmul.f32 %v1440, 1.442695
    %v1459 = vpow.pop %v1458
    %v1460 = vmul.f32 %v1441, 1.442695
    %v1461 = vpow.pop %v1460
    %v1462 = vmul.f32 %v1442, 1.442695
    %v1463 = vpow.pop %v1462
    %v1464 = vmul.f32 %v1443, 1.442695
    %v1465 = vpow.pop %v1464
    %v1466 = vmul.f32 %v1444, 1.442695
    %v1467 = vpow.pop %v1466
    %v1468 = vmul.f32 %v1445, 1.442695
    %v1469 = vpow.pop %v1468
    %v1470 = vadd.f32 %v1447, 1.0
    %v1471 = vadd.f32 %v1449, 1.0
    %v1472 = vadd.f32 %v1451, 1.0
    %v1473 = vadd.f32 %v1453, 1.0
    %v1474 = vadd.f32 %v1455, 1.0
    %v1475 = vadd.f32 %v1457, 1.0
    %v1476 = vadd.f32 %v1459, 1.0
    %v1477 = vadd.f32 %v1461, 1.0
    %v1478 = vadd.f32 %v1463, 1.0
    %v1479 = vadd.f32 %v1465, 1.0
    %v1480 = vadd.f32 %v1467, 1.0
    %v1481 = vadd.f32 %v1469, 1.0
    %v1482 = vrcp.pop %v1470
    %v1483 = vmul.f32 1.0, %v1482
    %v1484 = vrcp.pop %v1471
    %v1485 = vmul.f32 1.0, %v1484
    %v1486 = vrcp.pop %v1472
    %v1487 = vmul.f32 1.0, %v1486
    %v1488 = vrcp.pop %v1473
    %v1489 = vmul.f32 1.0, %v1488
    %v1490 = vrcp.pop %v1474
    %v1491 = vmul.f32 1.0, %v1490
    %v1492 = vrcp.pop %v1475
    %v1493 = vmul.f32 1.0, %v1492
    %v1494 = vrcp.pop %v1476
    %v1495 = vmul.f32 1.0, %v1494
    %v1496 = vrcp.pop %v1477
    %v1497 = vmul.f32 1.0, %v1496
    %v1498 = vrcp.pop %v1478
    %v1499 = vmul.f32 1.0, %v1498
    %v1500 = vrcp.pop %v1479
    %v1501 = vmul.f32 1.0, %v1500
    %v1502 = vrcp.pop %v1480
    %v1503 = vmul.f32 1.0, %v1502
    %v1504 = vrcp.pop %v1481
    %v1505 = vmul.f32 1.0, %v1504
    %v1506 = vtanh.pop %v1424
    %v1507 = vtanh.pop %v1425
    %v1508 = vtanh.pop %v1432
    %v1509 = vtanh.pop %v1433
    %v1514 = vrot.slane %v1148, 7
    %v1515 = vrot.slane %v1149, 7
    %v1516 = vrot.slane %v1150, 7
    %v1517 = vrot.slane %v1151, 7
    %v1522 = vmul.f32 %v1487, %v1514
    %v1523 = vmul.f32 %v1489, %v1515
    %v1524 = vmul.f32 %v1499, %v1516
    %v1525 = vmul.f32 %v1501, %v1517
    %v1526 = vmul.f32 %v1483, %v1506
    %v1527 = vmul.f32 %v1485, %v1507
    %v1528 = vmul.f32 %v1495, %v1508
    %v1529 = vmul.f32 %v1497, %v1509
    %v1530 = vadd.f32 %v1522, %v1526
    %v1531 = vadd.f32 %v1523, %v1527
    %v1532 = vadd.f32 %v1524, %v1528
    %v1533 = vadd.f32 %v1525, %v1529
    %v1534 = vtanh.pop %v1530
    %v1535 = vtanh.pop %v1531
    %v1536 = vtanh.pop %v1532
    %v1537 = vtanh.pop %v1533
    %v1538 = vmul.f32 %v1491, %v1534
    %v1539 = vmul.f32 %v1493, %v1535
    %v1540 = vmul.f32 %v1503, %v1536
    %v1541 = vmul.f32 %v1505, %v1537
    %v1542 = vpack.c.bf16 %v1538, %v1538
    %v1543 = vpack.c.bf16 %v1539, %v1539
    %v1544 = vpack.c.bf16 %v1540, %v1540
    %v1545 = vpack.c.bf16 %v1541, %v1541
    %v1550 = vunpack.c.l.b16 %v1542
    %v1551 = vunpack.c.l.b16 %v1543
    %v1552 = vunpack.c.l.b16 %v1544
    %v1553 = vunpack.c.l.b16 %v1545
    %v1554 = vpack.c.b16 %v1551, %v1550
    %v1555 = vpack.c.b16 %v1553, %v1552
    %vm1558 = vsmask.f32 7938
    %vm1559 = vmand %vm1176, %vm1558
    %vm1560 = vsmask.f32 7954
    %vm1561 = vmand %vm1179, %vm1560
    %vm1562 = vmor %vm1561, %vm1559
    %v1563 = vld [vmem:[%s4] sm:$0x11]
    %v1564 = vsel %vm1562, %v1554, %v1563
    %1565 = vst [vmem:[%s4] sm:$0x11] %v1564
    %v1566 = vld [vmem:[%s4 + $0x8] sm:$0x11]
    %v1567 = vsel %vm1562, %v1555, %v1566
    %1568 = vst [vmem:[%s4 + $0x8] sm:$0x11] %v1567
    %v1569 = vld [vmem:[%s0] sm:$0x22]
    %v1570 = vld [vmem:[%s0 + $0x8] sm:$0x22]
    %v1571 = vld [vmem:[%s0 + $0x10] sm:$0x22]
    %v1572 = vld [vmem:[%s0 + $0x18] sm:$0x22]
    %v1573 = vld [vmem:[%s0 + $0x20] sm:$0x22]
    %v1574 = vld [vmem:[%s0 + $0x28] sm:$0x22]
    %v1575 = vld [vmem:[%s0 + $0x30] sm:$0x22]
    %v1576 = vld [vmem:[%s0 + $0x38] sm:$0x22]
    %v1577 = vunpack.c.l.bf16 %v1569
    %v1578 = vunpack.c.h.bf16 %v1569
    %v1579 = vunpack.c.l.bf16 %v1570
    %v1580 = vunpack.c.h.bf16 %v1570
    %v1581 = vunpack.c.l.bf16 %v1571
    %v1582 = vunpack.c.h.bf16 %v1571
    %v1583 = vunpack.c.l.bf16 %v1572
    %v1584 = vunpack.c.h.bf16 %v1572
    %v1585 = vunpack.c.l.bf16 %v1573
    %v1586 = vunpack.c.h.bf16 %v1573
    %v1587 = vunpack.c.l.bf16 %v1574
    %v1588 = vunpack.c.h.bf16 %v1574
    %v1589 = vunpack.c.l.bf16 %v1575
    %v1590 = vunpack.c.h.bf16 %v1575
    %v1591 = vunpack.c.l.bf16 %v1576
    %v1592 = vunpack.c.h.bf16 %v1576
    %v1593 = vrot.slane %v1550, 1
    %v1594 = vsel %vm1214, %v1552, %v1593
    %v1595 = vrot.slane %v1551, 1
    %v1596 = vsel %vm1214, %v1553, %v1595
    %v1597 = vpack.c.b16 %v1594, %v1594
    %v1598 = vpack.c.b16 %v1596, %v1596
    %1601 = vmatprep.subr.bf16.mxu0 %v638
    %1602 = vmatpush1.bf16.msra.mxu0 %v637
    %1603 = vmatprep.subr.bf16.mxu0 %v630
    %1604 = vmatpush1.bf16.msra.mxu0 %v629
    %1605 = vmatprep.subr.bf16.mxu0 %v622
    %1606 = vmatpush1.bf16.msra.mxu0 %v621
    %1607 = vmatprep.subr.bf16.mxu0 %v614
    %1608 = vmatpush1.bf16.msra.mxu0 %v613
    %1609 = vmatprep.subr.bf16.mxu0 %v606
    %1610 = vmatpush1.bf16.msra.mxu0 %v605
    %1611 = vmatprep.subr.bf16.mxu0 %v598
    %1612 = vmatpush1.bf16.msra.mxu0 %v597
    %1613 = vmatprep.subr.bf16.mxu0 %v590
    %1614 = vmatpush1.bf16.msra.mxu0 %v589
    %1615 = vmatprep.subr.bf16.mxu0 %v582
    %1616 = vmatpush1.bf16.msra.mxu0 %v581
    %1617 = vmatprep.subr.bf16.mxu0 %v702
    %1618 = vmatpush2.bf16.msra.mxu0 %v701
    %1619 = vmatprep.subr.bf16.mxu0 %v694
    %1620 = vmatpush2.bf16.msra.mxu0 %v693
    %1621 = vmatprep.subr.bf16.mxu0 %v686
    %1622 = vmatpush2.bf16.msra.mxu0 %v685
    %1623 = vmatprep.subr.bf16.mxu0 %v678
    %1624 = vmatpush2.bf16.msra.mxu0 %v677
    %1625 = vmatprep.subr.bf16.mxu0 %v670
    %1626 = vmatpush2.bf16.msra.mxu0 %v669
    %1627 = vmatprep.subr.bf16.mxu0 %v662
    %1628 = vmatpush2.bf16.msra.mxu0 %v661
    %1629 = vmatprep.subr.bf16.mxu0 %v654
    %1630 = vmatpush2.bf16.msra.mxu0 %v653
    %1631 = vmatprep.subr.bf16.mxu0 %v646
    %1632 = vmatpush2.bf16.msra.mxu0 %v645
    %1633 = vmatprep.mubr.bf16.mxu0 %v1598
    %1634 = vmatmul.mubr.bf16.gmra.mxu0 %v1597
    %v1635 = vpop.f32.mrf.mxu0
    %v1636 = vadd.f32 0.0, %v1635
    %v1637 = vpop.f32.mrf.mxu0
    %v1638 = vadd.f32 0.0, %v1637
    %v1639 = vpop.f32.mrf.mxu0
    %v1640 = vpop.f32.mrf.mxu0
    %1641 = vdwg.mxu0
    %1642 = vmatprep.subr.bf16.mxu0 %v640
    %1643 = vmatpush1.bf16.msra.mxu0 %v639
    %1644 = vmatprep.subr.bf16.mxu0 %v632
    %1645 = vmatpush1.bf16.msra.mxu0 %v631
    %1646 = vmatprep.subr.bf16.mxu0 %v624
    %1647 = vmatpush1.bf16.msra.mxu0 %v623
    %1648 = vmatprep.subr.bf16.mxu0 %v616
    %1649 = vmatpush1.bf16.msra.mxu0 %v615
    %1650 = vmatprep.subr.bf16.mxu0 %v608
    %1651 = vmatpush1.bf16.msra.mxu0 %v607
    %1652 = vmatprep.subr.bf16.mxu0 %v600
    %1653 = vmatpush1.bf16.msra.mxu0 %v599
    %1654 = vmatprep.subr.bf16.mxu0 %v592
    %1655 = vmatpush1.bf16.msra.mxu0 %v591
    %1656 = vmatprep.subr.bf16.mxu0 %v584
    %1657 = vmatpush1.bf16.msra.mxu0 %v583
    %1658 = vmatprep.subr.bf16.mxu0 %v704
    %1659 = vmatpush2.bf16.msra.mxu0 %v703
    %1660 = vmatprep.subr.bf16.mxu0 %v696
    %1661 = vmatpush2.bf16.msra.mxu0 %v695
    %1662 = vmatprep.subr.bf16.mxu0 %v688
    %1663 = vmatpush2.bf16.msra.mxu0 %v687
    %1664 = vmatprep.subr.bf16.mxu0 %v680
    %1665 = vmatpush2.bf16.msra.mxu0 %v679
    %1666 = vmatprep.subr.bf16.mxu0 %v672
    %1667 = vmatpush2.bf16.msra.mxu0 %v671
    %1668 = vmatprep.subr.bf16.mxu0 %v664
    %1669 = vmatpush2.bf16.msra.mxu0 %v663
    %1670 = vmatprep.subr.bf16.mxu0 %v656
    %1671 = vmatpush2.bf16.msra.mxu0 %v655
    %1672 = vmatprep.subr.bf16.mxu0 %v648
    %1673 = vmatpush2.bf16.msra.mxu0 %v647
    %1674 = vmatprep.mubr.bf16.mxu0 %v1598
    %1675 = vmatmul.mubr.bf16.gmra.mxu0 %v1597
    %v1676 = vpop.f32.mrf.mxu0
    %v1677 = vadd.f32 0.0, %v1676
    %v1678 = vpop.f32.mrf.mxu0
    %v1679 = vadd.f32 0.0, %v1678
    %v1680 = vpop.f32.mrf.mxu0
    %v1681 = vpop.f32.mrf.mxu0
    %1682 = vdwg.mxu0
    %1683 = vmatprep.subr.bf16.mxu0 %v642
    %1684 = vmatpush1.bf16.msra.mxu0 %v641
    %1685 = vmatprep.subr.bf16.mxu0 %v634
    %1686 = vmatpush1.bf16.msra.mxu0 %v633
    %1687 = vmatprep.subr.bf16.mxu0 %v626
    %1688 = vmatpush1.bf16.msra.mxu0 %v625
    %1689 = vmatprep.subr.bf16.mxu0 %v618
    %1690 = vmatpush1.bf16.msra.mxu0 %v617
    %1691 = vmatprep.subr.bf16.mxu0 %v610
    %1692 = vmatpush1.bf16.msra.mxu0 %v609
    %1693 = vmatprep.subr.bf16.mxu0 %v602
    %1694 = vmatpush1.bf16.msra.mxu0 %v601
    %1695 = vmatprep.subr.bf16.mxu0 %v594
    %1696 = vmatpush1.bf16.msra.mxu0 %v593
    %1697 = vmatprep.subr.bf16.mxu0 %v586
    %1698 = vmatpush1.bf16.msra.mxu0 %v585
    %1699 = vmatprep.subr.bf16.mxu0 %v706
    %1700 = vmatpush2.bf16.msra.mxu0 %v705
    %1701 = vmatprep.subr.bf16.mxu0 %v698
    %1702 = vmatpush2.bf16.msra.mxu0 %v697
    %1703 = vmatprep.subr.bf16.mxu0 %v690
    %1704 = vmatpush2.bf16.msra.mxu0 %v689
    %1705 = vmatprep.subr.bf16.mxu0 %v682
    %1706 = vmatpush2.bf16.msra.mxu0 %v681
    %1707 = vmatprep.subr.bf16.mxu0 %v674
    %1708 = vmatpush2.bf16.msra.mxu0 %v673
    %1709 = vmatprep.subr.bf16.mxu0 %v666
    %1710 = vmatpush2.bf16.msra.mxu0 %v665
    %1711 = vmatprep.subr.bf16.mxu0 %v658
    %1712 = vmatpush2.bf16.msra.mxu0 %v657
    %1713 = vmatprep.subr.bf16.mxu0 %v650
    %1714 = vmatpush2.bf16.msra.mxu0 %v649
    %1715 = vmatprep.mubr.bf16.mxu0 %v1598
    %1716 = vmatmul.mubr.bf16.gmra.mxu0 %v1597
    %v1717 = vpop.f32.mrf.mxu0
    %v1718 = vadd.f32 0.0, %v1717
    %v1719 = vpop.f32.mrf.mxu0
    %v1720 = vadd.f32 0.0, %v1719
    %v1721 = vpop.f32.mrf.mxu0
    %v1722 = vpop.f32.mrf.mxu0
    %1723 = vdwg.mxu0
    %1724 = vmatprep.subr.bf16.mxu0 %v644
    %1725 = vmatpush1.bf16.msra.mxu0 %v643
    %1726 = vmatprep.subr.bf16.mxu0 %v636
    %1727 = vmatpush1.bf16.msra.mxu0 %v635
    %1728 = vmatprep.subr.bf16.mxu0 %v628
    %1729 = vmatpush1.bf16.msra.mxu0 %v627
    %1730 = vmatprep.subr.bf16.mxu0 %v620
    %1731 = vmatpush1.bf16.msra.mxu0 %v619
    %1732 = vmatprep.subr.bf16.mxu0 %v612
    %1733 = vmatpush1.bf16.msra.mxu0 %v611
    %1734 = vmatprep.subr.bf16.mxu0 %v604
    %1735 = vmatpush1.bf16.msra.mxu0 %v603
    %1736 = vmatprep.subr.bf16.mxu0 %v596
    %1737 = vmatpush1.bf16.msra.mxu0 %v595
    %1738 = vmatprep.subr.bf16.mxu0 %v588
    %1739 = vmatpush1.bf16.msra.mxu0 %v587
    %1740 = vmatprep.subr.bf16.mxu0 %v708
    %1741 = vmatpush2.bf16.msra.mxu0 %v707
    %1742 = vmatprep.subr.bf16.mxu0 %v700
    %1743 = vmatpush2.bf16.msra.mxu0 %v699
    %1744 = vmatprep.subr.bf16.mxu0 %v692
    %1745 = vmatpush2.bf16.msra.mxu0 %v691
    %1746 = vmatprep.subr.bf16.mxu0 %v684
    %1747 = vmatpush2.bf16.msra.mxu0 %v683
    %1748 = vmatprep.subr.bf16.mxu0 %v676
    %1749 = vmatpush2.bf16.msra.mxu0 %v675
    %1750 = vmatprep.subr.bf16.mxu0 %v668
    %1751 = vmatpush2.bf16.msra.mxu0 %v667
    %1752 = vmatprep.subr.bf16.mxu0 %v660
    %1753 = vmatpush2.bf16.msra.mxu0 %v659
    %1754 = vmatprep.subr.bf16.mxu0 %v652
    %1755 = vmatpush2.bf16.msra.mxu0 %v651
    %1756 = vmatprep.mubr.bf16.mxu0 %v1598
    %1757 = vmatmul.mubr.bf16.gmra.mxu0 %v1597
    %v1758 = vpop.f32.mrf.mxu0
    %v1759 = vadd.f32 0.0, %v1758
    %v1760 = vpop.f32.mrf.mxu0
    %v1761 = vadd.f32 0.0, %v1760
    %v1762 = vpop.f32.mrf.mxu0
    %v1763 = vpop.f32.mrf.mxu0
    %1764 = vdwg.mxu0
    %v1773 = vrot.slane %v1636, 6
    %v1774 = vrot.slane %v1638, 6
    %v1775 = vrot.slane %v1677, 6
    %v1776 = vrot.slane %v1679, 6
    %v1777 = vrot.slane %v1718, 6
    %v1778 = vrot.slane %v1720, 6
    %v1779 = vrot.slane %v1759, 6
    %v1780 = vrot.slane %v1761, 6
    %v1781 = vrot.slane %v1636, 7
    %v1782 = vrot.slane %v1638, 7
    %v1783 = vrot.slane %v1677, 7
    %v1784 = vrot.slane %v1679, 7
    %v1785 = vrot.slane %v1718, 7
    %v1786 = vrot.slane %v1720, 7
    %v1787 = vrot.slane %v1759, 7
    %v1788 = vrot.slane %v1761, 7
    %v1805 = vadd.f32 %v1577, %v1773
    %v1806 = vadd.f32 %v1578, %v1774
    %v1807 = vadd.f32 %v1579, %v1775
    %v1808 = vadd.f32 %v1580, %v1776
    %v1809 = vadd.f32 %v1581, %v1777
    %v1810 = vadd.f32 %v1582, %v1778
    %v1811 = vadd.f32 %v1583, %v1779
    %v1812 = vadd.f32 %v1584, %v1780
    %v1813 = vadd.f32 %v1585, %v1781
    %v1814 = vadd.f32 %v1586, %v1782
    %v1815 = vadd.f32 %v1587, %v1783
    %v1816 = vadd.f32 %v1588, %v1784
    %v1817 = vadd.f32 %v1589, %v1785
    %v1818 = vadd.f32 %v1590, %v1786
    %v1819 = vadd.f32 %v1591, %v1787
    %v1820 = vadd.f32 %v1592, %v1788
    %v1821 = vxor.u32 %v1805, 2147483648
    %v1822 = vxor.u32 %v1806, 2147483648
    %v1823 = vxor.u32 %v1807, 2147483648
    %v1824 = vxor.u32 %v1808, 2147483648
    %v1825 = vxor.u32 %v1809, 2147483648
    %v1826 = vxor.u32 %v1810, 2147483648
    %v1827 = vxor.u32 %v1813, 2147483648
    %v1828 = vxor.u32 %v1814, 2147483648
    %v1829 = vxor.u32 %v1815, 2147483648
    %v1830 = vxor.u32 %v1816, 2147483648
    %v1831 = vxor.u32 %v1817, 2147483648
    %v1832 = vxor.u32 %v1818, 2147483648
    %v1833 = vmul.f32 %v1821, 1.442695
    %v1834 = vpow.pop %v1833
    %v1835 = vmul.f32 %v1822, 1.442695
    %v1836 = vpow.pop %v1835
    %v1837 = vmul.f32 %v1823, 1.442695
    %v1838 = vpow.pop %v1837
    %v1839 = vmul.f32 %v1824, 1.442695
    %v1840 = vpow.pop %v1839
    %v1841 = vmul.f32 %v1825, 1.442695
    %v1842 = vpow.pop %v1841
    %v1843 = vmul.f32 %v1826, 1.442695
    %v1844 = vpow.pop %v1843
    %v1845 = vmul.f32 %v1827, 1.442695
    %v1846 = vpow.pop %v1845
    %v1847 = vmul.f32 %v1828, 1.442695
    %v1848 = vpow.pop %v1847
    %v1849 = vmul.f32 %v1829, 1.442695
    %v1850 = vpow.pop %v1849
    %v1851 = vmul.f32 %v1830, 1.442695
    %v1852 = vpow.pop %v1851
    %v1853 = vmul.f32 %v1831, 1.442695
    %v1854 = vpow.pop %v1853
    %v1855 = vmul.f32 %v1832, 1.442695
    %v1856 = vpow.pop %v1855
    %v1857 = vadd.f32 %v1834, 1.0
    %v1858 = vadd.f32 %v1836, 1.0
    %v1859 = vadd.f32 %v1838, 1.0
    %v1860 = vadd.f32 %v1840, 1.0
    %v1861 = vadd.f32 %v1842, 1.0
    %v1862 = vadd.f32 %v1844, 1.0
    %v1863 = vadd.f32 %v1846, 1.0
    %v1864 = vadd.f32 %v1848, 1.0
    %v1865 = vadd.f32 %v1850, 1.0
    %v1866 = vadd.f32 %v1852, 1.0
    %v1867 = vadd.f32 %v1854, 1.0
    %v1868 = vadd.f32 %v1856, 1.0
    %v1869 = vrcp.pop %v1857
    %v1870 = vmul.f32 1.0, %v1869
    %v1871 = vrcp.pop %v1858
    %v1872 = vmul.f32 1.0, %v1871
    %v1873 = vrcp.pop %v1859
    %v1874 = vmul.f32 1.0, %v1873
    %v1875 = vrcp.pop %v1860
    %v1876 = vmul.f32 1.0, %v1875
    %v1877 = vrcp.pop %v1861
    %v1878 = vmul.f32 1.0, %v1877
    %v1879 = vrcp.pop %v1862
    %v1880 = vmul.f32 1.0, %v1879
    %v1881 = vrcp.pop %v1863
    %v1882 = vmul.f32 1.0, %v1881
    %v1883 = vrcp.pop %v1864
    %v1884 = vmul.f32 1.0, %v1883
    %v1885 = vrcp.pop %v1865
    %v1886 = vmul.f32 1.0, %v1885
    %v1887 = vrcp.pop %v1866
    %v1888 = vmul.f32 1.0, %v1887
    %v1889 = vrcp.pop %v1867
    %v1890 = vmul.f32 1.0, %v1889
    %v1891 = vrcp.pop %v1868
    %v1892 = vmul.f32 1.0, %v1891
    %v1893 = vtanh.pop %v1811
    %v1894 = vtanh.pop %v1812
    %v1895 = vtanh.pop %v1819
    %v1896 = vtanh.pop %v1820
    %v1901 = vrot.slane %v1530, 7
    %v1902 = vrot.slane %v1531, 7
    %v1903 = vrot.slane %v1532, 7
    %v1904 = vrot.slane %v1533, 7
    %v1909 = vmul.f32 %v1874, %v1901
    %v1910 = vmul.f32 %v1876, %v1902
    %v1911 = vmul.f32 %v1886, %v1903
    %v1912 = vmul.f32 %v1888, %v1904
    %v1913 = vmul.f32 %v1870, %v1893
    %v1914 = vmul.f32 %v1872, %v1894
    %v1915 = vmul.f32 %v1882, %v1895
    %v1916 = vmul.f32 %v1884, %v1896
    %v1917 = vadd.f32 %v1909, %v1913
    %v1918 = vadd.f32 %v1910, %v1914
    %v1919 = vadd.f32 %v1911, %v1915
    %v1920 = vadd.f32 %v1912, %v1916
    %v1921 = vtanh.pop %v1917
    %v1922 = vtanh.pop %v1918
    %v1923 = vtanh.pop %v1919
    %v1924 = vtanh.pop %v1920
    %v1925 = vmul.f32 %v1878, %v1921
    %v1926 = vmul.f32 %v1880, %v1922
    %v1927 = vmul.f32 %v1890, %v1923
    %v1928 = vmul.f32 %v1892, %v1924
    %v1929 = vpack.c.bf16 %v1925, %v1925
    %v1930 = vpack.c.bf16 %v1926, %v1926
    %v1931 = vpack.c.bf16 %v1927, %v1927
    %v1932 = vpack.c.bf16 %v1928, %v1928
    %v1937 = vunpack.c.l.b16 %v1929
    %v1938 = vunpack.c.l.b16 %v1930
    %v1939 = vunpack.c.l.b16 %v1931
    %v1940 = vunpack.c.l.b16 %v1932
    %v1941 = vpack.c.b16 %v1938, %v1937
    %v1942 = vpack.c.b16 %v1940, %v1939
    %vm1945 = vcmask 1041409
    %vm1946 = vsmask.f32 1280
    %vm1947 = vmand %vm1945, %vm1946
    %vm1948 = vcmask 1045509
    %vm1949 = vsmask.f32 5376
    %vm1950 = vmand %vm1948, %vm1949
    %vm1951 = vmor %vm1950, %vm1947
    %v1952 = vld [vmem:[%s4] sm:$0x22]
    %v1953 = vsel %vm1951, %v1941, %v1952
    %1954 = vst [vmem:[%s4] sm:$0x22] %v1953
    %v1955 = vld [vmem:[%s4 + $0x8] sm:$0x22]
    %v1956 = vsel %vm1951, %v1942, %v1955
    %1957 = vst [vmem:[%s4 + $0x8] sm:$0x22] %v1956
    %v1958 = vld [vmem:[%s0] sm:$0x22]
    %v1959 = vld [vmem:[%s0 + $0x8] sm:$0x22]
    %v1960 = vld [vmem:[%s0 + $0x10] sm:$0x22]
    %v1961 = vld [vmem:[%s0 + $0x18] sm:$0x22]
    %v1962 = vld [vmem:[%s0 + $0x20] sm:$0x22]
    %v1963 = vld [vmem:[%s0 + $0x28] sm:$0x22]
    %v1964 = vld [vmem:[%s0 + $0x30] sm:$0x22]
    %v1965 = vld [vmem:[%s0 + $0x38] sm:$0x22]
    %v1966 = vunpack.c.l.bf16 %v1958
    %v1967 = vunpack.c.h.bf16 %v1958
    %v1968 = vunpack.c.l.bf16 %v1959
    %v1969 = vunpack.c.h.bf16 %v1959
    %v1970 = vunpack.c.l.bf16 %v1960
    %v1971 = vunpack.c.h.bf16 %v1960
    %v1972 = vunpack.c.l.bf16 %v1961
    %v1973 = vunpack.c.h.bf16 %v1961
    %v1974 = vunpack.c.l.bf16 %v1962
    %v1975 = vunpack.c.h.bf16 %v1962
    %v1976 = vunpack.c.l.bf16 %v1963
    %v1977 = vunpack.c.h.bf16 %v1963
    %v1978 = vunpack.c.l.bf16 %v1964
    %v1979 = vunpack.c.h.bf16 %v1964
    %v1980 = vunpack.c.l.bf16 %v1965
    %v1981 = vunpack.c.h.bf16 %v1965
    %v1982 = vrot.slane %v1937, 2
    %v1983 = vrot.slane %v1939, 1
    %v1984 = vsel %vm1214, %v1983, %v1982
    %v1985 = vrot.slane %v1938, 2
    %v1986 = vrot.slane %v1940, 1
    %v1987 = vsel %vm1214, %v1986, %v1985
    %v1988 = vpack.c.b16 %v1984, %v1984
    %v1989 = vpack.c.b16 %v1987, %v1987
    %1992 = vmatprep.subr.bf16.mxu0 %v638
    %1993 = vmatpush1.bf16.msra.mxu0 %v637
    %1994 = vmatprep.subr.bf16.mxu0 %v630
    %1995 = vmatpush1.bf16.msra.mxu0 %v629
    %1996 = vmatprep.subr.bf16.mxu0 %v622
    %1997 = vmatpush1.bf16.msra.mxu0 %v621
    %1998 = vmatprep.subr.bf16.mxu0 %v614
    %1999 = vmatpush1.bf16.msra.mxu0 %v613
    %2000 = vmatprep.subr.bf16.mxu0 %v606
    %2001 = vmatpush1.bf16.msra.mxu0 %v605
    %2002 = vmatprep.subr.bf16.mxu0 %v598
    %2003 = vmatpush1.bf16.msra.mxu0 %v597
    %2004 = vmatprep.subr.bf16.mxu0 %v590
    %2005 = vmatpush1.bf16.msra.mxu0 %v589
    %2006 = vmatprep.subr.bf16.mxu0 %v582
    %2007 = vmatpush1.bf16.msra.mxu0 %v581
    %2008 = vmatprep.subr.bf16.mxu0 %v702
    %2009 = vmatpush2.bf16.msra.mxu0 %v701
    %2010 = vmatprep.subr.bf16.mxu0 %v694
    %2011 = vmatpush2.bf16.msra.mxu0 %v693
    %2012 = vmatprep.subr.bf16.mxu0 %v686
    %2013 = vmatpush2.bf16.msra.mxu0 %v685
    %2014 = vmatprep.subr.bf16.mxu0 %v678
    %2015 = vmatpush2.bf16.msra.mxu0 %v677
    %2016 = vmatprep.subr.bf16.mxu0 %v670
    %2017 = vmatpush2.bf16.msra.mxu0 %v669
    %2018 = vmatprep.subr.bf16.mxu0 %v662
    %2019 = vmatpush2.bf16.msra.mxu0 %v661
    %2020 = vmatprep.subr.bf16.mxu0 %v654
    %2021 = vmatpush2.bf16.msra.mxu0 %v653
    %2022 = vmatprep.subr.bf16.mxu0 %v646
    %2023 = vmatpush2.bf16.msra.mxu0 %v645
    %2024 = vmatprep.mubr.bf16.mxu0 %v1989
    %2025 = vmatmul.mubr.bf16.gmra.mxu0 %v1988
    %v2026 = vpop.f32.mrf.mxu0
    %v2027 = vadd.f32 0.0, %v2026
    %v2028 = vpop.f32.mrf.mxu0
    %v2029 = vadd.f32 0.0, %v2028
    %v2030 = vpop.f32.mrf.mxu0
    %v2031 = vpop.f32.mrf.mxu0
    %2032 = vdwg.mxu0
    %2033 = vmatprep.subr.bf16.mxu0 %v640
    %2034 = vmatpush1.bf16.msra.mxu0 %v639
    %2035 = vmatprep.subr.bf16.mxu0 %v632
    %2036 = vmatpush1.bf16.msra.mxu0 %v631
    %2037 = vmatprep.subr.bf16.mxu0 %v624
    %2038 = vmatpush1.bf16.msra.mxu0 %v623
    %2039 = vmatprep.subr.bf16.mxu0 %v616
    %2040 = vmatpush1.bf16.msra.mxu0 %v615
    %2041 = vmatprep.subr.bf16.mxu0 %v608
    %2042 = vmatpush1.bf16.msra.mxu0 %v607
    %2043 = vmatprep.subr.bf16.mxu0 %v600
    %2044 = vmatpush1.bf16.msra.mxu0 %v599
    %2045 = vmatprep.subr.bf16.mxu0 %v592
    %2046 = vmatpush1.bf16.msra.mxu0 %v591
    %2047 = vmatprep.subr.bf16.mxu0 %v584
    %2048 = vmatpush1.bf16.msra.mxu0 %v583
    %2049 = vmatprep.subr.bf16.mxu0 %v704
    %2050 = vmatpush2.bf16.msra.mxu0 %v703
    %2051 = vmatprep.subr.bf16.mxu0 %v696
    %2052 = vmatpush2.bf16.msra.mxu0 %v695
    %2053 = vmatprep.subr.bf16.mxu0 %v688
    %2054 = vmatpush2.bf16.msra.mxu0 %v687
    %2055 = vmatprep.subr.bf16.mxu0 %v680
    %2056 = vmatpush2.bf16.msra.mxu0 %v679
    %2057 = vmatprep.subr.bf16.mxu0 %v672
    %2058 = vmatpush2.bf16.msra.mxu0 %v671
    %2059 = vmatprep.subr.bf16.mxu0 %v664
    %2060 = vmatpush2.bf16.msra.mxu0 %v663
    %2061 = vmatprep.subr.bf16.mxu0 %v656
    %2062 = vmatpush2.bf16.msra.mxu0 %v655
    %2063 = vmatprep.subr.bf16.mxu0 %v648
    %2064 = vmatpush2.bf16.msra.mxu0 %v647
    %2065 = vmatprep.mubr.bf16.mxu0 %v1989
    %2066 = vmatmul.mubr.bf16.gmra.mxu0 %v1988
    %v2067 = vpop.f32.mrf.mxu0
    %v2068 = vadd.f32 0.0, %v2067
    %v2069 = vpop.f32.mrf.mxu0
    %v2070 = vadd.f32 0.0, %v2069
    %v2071 = vpop.f32.mrf.mxu0
    %v2072 = vpop.f32.mrf.mxu0
    %2073 = vdwg.mxu0
    %2074 = vmatprep.subr.bf16.mxu0 %v642
    %2075 = vmatpush1.bf16.msra.mxu0 %v641
    %2076 = vmatprep.subr.bf16.mxu0 %v634
    %2077 = vmatpush1.bf16.msra.mxu0 %v633
    %2078 = vmatprep.subr.bf16.mxu0 %v626
    %2079 = vmatpush1.bf16.msra.mxu0 %v625
    %2080 = vmatprep.subr.bf16.mxu0 %v618
    %2081 = vmatpush1.bf16.msra.mxu0 %v617
    %2082 = vmatprep.subr.bf16.mxu0 %v610
    %2083 = vmatpush1.bf16.msra.mxu0 %v609
    %2084 = vmatprep.subr.bf16.mxu0 %v602
    %2085 = vmatpush1.bf16.msra.mxu0 %v601
    %2086 = vmatprep.subr.bf16.mxu0 %v594
    %2087 = vmatpush1.bf16.msra.mxu0 %v593
    %2088 = vmatprep.subr.bf16.mxu0 %v586
    %2089 = vmatpush1.bf16.msra.mxu0 %v585
    %2090 = vmatprep.subr.bf16.mxu0 %v706
    %2091 = vmatpush2.bf16.msra.mxu0 %v705
    %2092 = vmatprep.subr.bf16.mxu0 %v698
    %2093 = vmatpush2.bf16.msra.mxu0 %v697
    %2094 = vmatprep.subr.bf16.mxu0 %v690
    %2095 = vmatpush2.bf16.msra.mxu0 %v689
    %2096 = vmatprep.subr.bf16.mxu0 %v682
    %2097 = vmatpush2.bf16.msra.mxu0 %v681
    %2098 = vmatprep.subr.bf16.mxu0 %v674
    %2099 = vmatpush2.bf16.msra.mxu0 %v673
    %2100 = vmatprep.subr.bf16.mxu0 %v666
    %2101 = vmatpush2.bf16.msra.mxu0 %v665
    %2102 = vmatprep.subr.bf16.mxu0 %v658
    %2103 = vmatpush2.bf16.msra.mxu0 %v657
    %2104 = vmatprep.subr.bf16.mxu0 %v650
    %2105 = vmatpush2.bf16.msra.mxu0 %v649
    %2106 = vmatprep.mubr.bf16.mxu0 %v1989
    %2107 = vmatmul.mubr.bf16.gmra.mxu0 %v1988
    %v2108 = vpop.f32.mrf.mxu0
    %v2109 = vadd.f32 0.0, %v2108
    %v2110 = vpop.f32.mrf.mxu0
    %v2111 = vadd.f32 0.0, %v2110
    %v2112 = vpop.f32.mrf.mxu0
    %v2113 = vpop.f32.mrf.mxu0
    %2114 = vdwg.mxu0
    %2115 = vmatprep.subr.bf16.mxu0 %v644
    %2116 = vmatpush1.bf16.msra.mxu0 %v643
    %2117 = vmatprep.subr.bf16.mxu0 %v636
    %2118 = vmatpush1.bf16.msra.mxu0 %v635
    %2119 = vmatprep.subr.bf16.mxu0 %v628
    %2120 = vmatpush1.bf16.msra.mxu0 %v627
    %2121 = vmatprep.subr.bf16.mxu0 %v620
    %2122 = vmatpush1.bf16.msra.mxu0 %v619
    %2123 = vmatprep.subr.bf16.mxu0 %v612
    %2124 = vmatpush1.bf16.msra.mxu0 %v611
    %2125 = vmatprep.subr.bf16.mxu0 %v604
    %2126 = vmatpush1.bf16.msra.mxu0 %v603
    %2127 = vmatprep.subr.bf16.mxu0 %v596
    %2128 = vmatpush1.bf16.msra.mxu0 %v595
    %2129 = vmatprep.subr.bf16.mxu0 %v588
    %2130 = vmatpush1.bf16.msra.mxu0 %v587
    %2131 = vmatprep.subr.bf16.mxu0 %v708
    %2132 = vmatpush2.bf16.msra.mxu0 %v707
    %2133 = vmatprep.subr.bf16.mxu0 %v700
    %2134 = vmatpush2.bf16.msra.mxu0 %v699
    %2135 = vmatprep.subr.bf16.mxu0 %v692
    %2136 = vmatpush2.bf16.msra.mxu0 %v691
    %2137 = vmatprep.subr.bf16.mxu0 %v684
    %2138 = vmatpush2.bf16.msra.mxu0 %v683
    %2139 = vmatprep.subr.bf16.mxu0 %v676
    %2140 = vmatpush2.bf16.msra.mxu0 %v675
    %2141 = vmatprep.subr.bf16.mxu0 %v668
    %2142 = vmatpush2.bf16.msra.mxu0 %v667
    %2143 = vmatprep.subr.bf16.mxu0 %v660
    %2144 = vmatpush2.bf16.msra.mxu0 %v659
    %2145 = vmatprep.subr.bf16.mxu0 %v652
    %2146 = vmatpush2.bf16.msra.mxu0 %v651
    %2147 = vmatprep.mubr.bf16.mxu0 %v1989
    %2148 = vmatmul.mubr.bf16.gmra.mxu0 %v1988
    %v2149 = vpop.f32.mrf.mxu0
    %v2150 = vadd.f32 0.0, %v2149
    %v2151 = vpop.f32.mrf.mxu0
    %v2152 = vadd.f32 0.0, %v2151
    %v2153 = vpop.f32.mrf.mxu0
    %v2154 = vpop.f32.mrf.mxu0
    %2155 = vdwg.mxu0
    %v2164 = vrot.slane %v2027, 5
    %v2165 = vrot.slane %v2029, 5
    %v2166 = vrot.slane %v2068, 5
    %v2167 = vrot.slane %v2070, 5
    %v2168 = vrot.slane %v2109, 5
    %v2169 = vrot.slane %v2111, 5
    %v2170 = vrot.slane %v2150, 5
    %v2171 = vrot.slane %v2152, 5
    %v2172 = vrot.slane %v2027, 6
    %v2173 = vrot.slane %v2029, 6
    %v2174 = vrot.slane %v2068, 6
    %v2175 = vrot.slane %v2070, 6
    %v2176 = vrot.slane %v2109, 6
    %v2177 = vrot.slane %v2111, 6
    %v2178 = vrot.slane %v2150, 6
    %v2179 = vrot.slane %v2152, 6
    %v2196 = vadd.f32 %v1966, %v2164
    %v2197 = vadd.f32 %v1967, %v2165
    %v2198 = vadd.f32 %v1968, %v2166
    %v2199 = vadd.f32 %v1969, %v2167
    %v2200 = vadd.f32 %v1970, %v2168
    %v2201 = vadd.f32 %v1971, %v2169
    %v2202 = vadd.f32 %v1972, %v2170
    %v2203 = vadd.f32 %v1973, %v2171
    %v2204 = vadd.f32 %v1974, %v2172
    %v2205 = vadd.f32 %v1975, %v2173
    %v2206 = vadd.f32 %v1976, %v2174
    %v2207 = vadd.f32 %v1977, %v2175
    %v2208 = vadd.f32 %v1978, %v2176
    %v2209 = vadd.f32 %v1979, %v2177
    %v2210 = vadd.f32 %v1980, %v2178
    %v2211 = vadd.f32 %v1981, %v2179
    %v2212 = vxor.u32 %v2196, 2147483648
    %v2213 = vxor.u32 %v2197, 2147483648
    %v2214 = vxor.u32 %v2198, 2147483648
    %v2215 = vxor.u32 %v2199, 2147483648
    %v2216 = vxor.u32 %v2200, 2147483648
    %v2217 = vxor.u32 %v2201, 2147483648
    %v2218 = vxor.u32 %v2204, 2147483648
    %v2219 = vxor.u32 %v2205, 2147483648
    %v2220 = vxor.u32 %v2206, 2147483648
    %v2221 = vxor.u32 %v2207, 2147483648
    %v2222 = vxor.u32 %v2208, 2147483648
    %v2223 = vxor.u32 %v2209, 2147483648
    %v2224 = vmul.f32 %v2212, 1.442695
    %v2225 = vpow.pop %v2224
    %v2226 = vmul.f32 %v2213, 1.442695
    %v2227 = vpow.pop %v2226
    %v2228 = vmul.f32 %v2214, 1.442695
    %v2229 = vpow.pop %v2228
    %v2230 = vmul.f32 %v2215, 1.442695
    %v2231 = vpow.pop %v2230
    %v2232 = vmul.f32 %v2216, 1.442695
    %v2233 = vpow.pop %v2232
    %v2234 = vmul.f32 %v2217, 1.442695
    %v2235 = vpow.pop %v2234
    %v2236 = vmul.f32 %v2218, 1.442695
    %v2237 = vpow.pop %v2236
    %v2238 = vmul.f32 %v2219, 1.442695
    %v2239 = vpow.pop %v2238
    %v2240 = vmul.f32 %v2220, 1.442695
    %v2241 = vpow.pop %v2240
    %v2242 = vmul.f32 %v2221, 1.442695
    %v2243 = vpow.pop %v2242
    %v2244 = vmul.f32 %v2222, 1.442695
    %v2245 = vpow.pop %v2244
    %v2246 = vmul.f32 %v2223, 1.442695
    %v2247 = vpow.pop %v2246
    %v2248 = vadd.f32 %v2225, 1.0
    %v2249 = vadd.f32 %v2227, 1.0
    %v2250 = vadd.f32 %v2229, 1.0
    %v2251 = vadd.f32 %v2231, 1.0
    %v2252 = vadd.f32 %v2233, 1.0
    %v2253 = vadd.f32 %v2235, 1.0
    %v2254 = vadd.f32 %v2237, 1.0
    %v2255 = vadd.f32 %v2239, 1.0
    %v2256 = vadd.f32 %v2241, 1.0
    %v2257 = vadd.f32 %v2243, 1.0
    %v2258 = vadd.f32 %v2245, 1.0
    %v2259 = vadd.f32 %v2247, 1.0
    %v2260 = vrcp.pop %v2248
    %v2261 = vmul.f32 1.0, %v2260
    %v2262 = vrcp.pop %v2249
    %v2263 = vmul.f32 1.0, %v2262
    %v2264 = vrcp.pop %v2250
    %v2265 = vmul.f32 1.0, %v2264
    %v2266 = vrcp.pop %v2251
    %v2267 = vmul.f32 1.0, %v2266
    %v2268 = vrcp.pop %v2252
    %v2269 = vmul.f32 1.0, %v2268
    %v2270 = vrcp.pop %v2253
    %v2271 = vmul.f32 1.0, %v2270
    %v2272 = vrcp.pop %v2254
    %v2273 = vmul.f32 1.0, %v2272
    %v2274 = vrcp.pop %v2255
    %v2275 = vmul.f32 1.0, %v2274
    %v2276 = vrcp.pop %v2256
    %v2277 = vmul.f32 1.0, %v2276
    %v2278 = vrcp.pop %v2257
    %v2279 = vmul.f32 1.0, %v2278
    %v2280 = vrcp.pop %v2258
    %v2281 = vmul.f32 1.0, %v2280
    %v2282 = vrcp.pop %v2259
    %v2283 = vmul.f32 1.0, %v2282
    %v2284 = vtanh.pop %v2202
    %v2285 = vtanh.pop %v2203
    %v2286 = vtanh.pop %v2210
    %v2287 = vtanh.pop %v2211
    %v2292 = vrot.slane %v1917, 7
    %v2293 = vrot.slane %v1918, 7
    %v2294 = vrot.slane %v1919, 7
    %v2295 = vrot.slane %v1920, 7
    %v2300 = vmul.f32 %v2265, %v2292
    %v2301 = vmul.f32 %v2267, %v2293
    %v2302 = vmul.f32 %v2277, %v2294
    %v2303 = vmul.f32 %v2279, %v2295
    %v2304 = vmul.f32 %v2261, %v2284
    %v2305 = vmul.f32 %v2263, %v2285
    %v2306 = vmul.f32 %v2273, %v2286
    %v2307 = vmul.f32 %v2275, %v2287
    %v2308 = vadd.f32 %v2300, %v2304
    %v2309 = vadd.f32 %v2301, %v2305
    %v2310 = vadd.f32 %v2302, %v2306
    %v2311 = vadd.f32 %v2303, %v2307
    %v2312 = vtanh.pop %v2308
    %v2313 = vtanh.pop %v2309
    %v2314 = vtanh.pop %v2310
    %v2315 = vtanh.pop %v2311
    %v2316 = vmul.f32 %v2269, %v2312
    %v2317 = vmul.f32 %v2271, %v2313
    %v2318 = vmul.f32 %v2281, %v2314
    %v2319 = vmul.f32 %v2283, %v2315
    %v2320 = vpack.c.bf16 %v2316, %v2316
    %v2321 = vpack.c.bf16 %v2317, %v2317
    %v2322 = vpack.c.bf16 %v2318, %v2318
    %v2323 = vpack.c.bf16 %v2319, %v2319
    %v2328 = vunpack.c.l.b16 %v2320
    %v2329 = vunpack.c.l.b16 %v2321
    %v2330 = vunpack.c.l.b16 %v2322
    %v2331 = vunpack.c.l.b16 %v2323
    %v2332 = vpack.c.b16 %v2329, %v2328
    %v2333 = vpack.c.b16 %v2331, %v2330
    %vm2336 = vsmask.f32 7942
    %vm2337 = vmand %vm1945, %vm2336
    %vm2338 = vsmask.f32 7958
    %vm2339 = vmand %vm1948, %vm2338
    %vm2340 = vmor %vm2339, %vm2337
    %v2341 = vld [vmem:[%s4] sm:$0x22]
    %v2342 = vsel %vm2340, %v2332, %v2341
    %2343 = vst [vmem:[%s4] sm:$0x22] %v2342
    %v2344 = vld [vmem:[%s4 + $0x8] sm:$0x22]
    %v2345 = vsel %vm2340, %v2333, %v2344
    %2346 = vst [vmem:[%s4 + $0x8] sm:$0x22] %v2345
    %v2347 = vld [vmem:[%s0] sm:$0x44]
    %v2348 = vld [vmem:[%s0 + $0x8] sm:$0x44]
    %v2349 = vld [vmem:[%s0 + $0x10] sm:$0x44]
    %v2350 = vld [vmem:[%s0 + $0x18] sm:$0x44]
    %v2351 = vld [vmem:[%s0 + $0x20] sm:$0x44]
    %v2352 = vld [vmem:[%s0 + $0x28] sm:$0x44]
    %v2353 = vld [vmem:[%s0 + $0x30] sm:$0x44]
    %v2354 = vld [vmem:[%s0 + $0x38] sm:$0x44]
    %v2355 = vunpack.c.l.bf16 %v2347
    %v2356 = vunpack.c.h.bf16 %v2347
    %v2357 = vunpack.c.l.bf16 %v2348
    %v2358 = vunpack.c.h.bf16 %v2348
    %v2359 = vunpack.c.l.bf16 %v2349
    %v2360 = vunpack.c.h.bf16 %v2349
    %v2361 = vunpack.c.l.bf16 %v2350
    %v2362 = vunpack.c.h.bf16 %v2350
    %v2363 = vunpack.c.l.bf16 %v2351
    %v2364 = vunpack.c.h.bf16 %v2351
    %v2365 = vunpack.c.l.bf16 %v2352
    %v2366 = vunpack.c.h.bf16 %v2352
    %v2367 = vunpack.c.l.bf16 %v2353
    %v2368 = vunpack.c.h.bf16 %v2353
    %v2369 = vunpack.c.l.bf16 %v2354
    %v2370 = vunpack.c.h.bf16 %v2354
    %v2371 = vrot.slane %v2328, 3
    %v2372 = vrot.slane %v2330, 2
    %v2373 = vsel %vm1214, %v2372, %v2371
    %v2374 = vrot.slane %v2329, 3
    %v2375 = vrot.slane %v2331, 2
    %v2376 = vsel %vm1214, %v2375, %v2374
    %v2377 = vpack.c.b16 %v2373, %v2373
    %v2378 = vpack.c.b16 %v2376, %v2376
    %2381 = vmatprep.subr.bf16.mxu0 %v638
    %2382 = vmatpush1.bf16.msra.mxu0 %v637
    %2383 = vmatprep.subr.bf16.mxu0 %v630
    %2384 = vmatpush1.bf16.msra.mxu0 %v629
    %2385 = vmatprep.subr.bf16.mxu0 %v622
    %2386 = vmatpush1.bf16.msra.mxu0 %v621
    %2387 = vmatprep.subr.bf16.mxu0 %v614
    %2388 = vmatpush1.bf16.msra.mxu0 %v613
    %2389 = vmatprep.subr.bf16.mxu0 %v606
    %2390 = vmatpush1.bf16.msra.mxu0 %v605
    %2391 = vmatprep.subr.bf16.mxu0 %v598
    %2392 = vmatpush1.bf16.msra.mxu0 %v597
    %2393 = vmatprep.subr.bf16.mxu0 %v590
    %2394 = vmatpush1.bf16.msra.mxu0 %v589
    %2395 = vmatprep.subr.bf16.mxu0 %v582
    %2396 = vmatpush1.bf16.msra.mxu0 %v581
    %2397 = vmatprep.subr.bf16.mxu0 %v702
    %2398 = vmatpush2.bf16.msra.mxu0 %v701
    %2399 = vmatprep.subr.bf16.mxu0 %v694
    %2400 = vmatpush2.bf16.msra.mxu0 %v693
    %2401 = vmatprep.subr.bf16.mxu0 %v686
    %2402 = vmatpush2.bf16.msra.mxu0 %v685
    %2403 = vmatprep.subr.bf16.mxu0 %v678
    %2404 = vmatpush2.bf16.msra.mxu0 %v677
    %2405 = vmatprep.subr.bf16.mxu0 %v670
    %2406 = vmatpush2.bf16.msra.mxu0 %v669
    %2407 = vmatprep.subr.bf16.mxu0 %v662
    %2408 = vmatpush2.bf16.msra.mxu0 %v661
    %2409 = vmatprep.subr.bf16.mxu0 %v654
    %2410 = vmatpush2.bf16.msra.mxu0 %v653
    %2411 = vmatprep.subr.bf16.mxu0 %v646
    %2412 = vmatpush2.bf16.msra.mxu0 %v645
    %2413 = vmatprep.mubr.bf16.mxu0 %v2378
    %2414 = vmatmul.mubr.bf16.gmra.mxu0 %v2377
    %v2415 = vpop.f32.mrf.mxu0
    %v2416 = vadd.f32 0.0, %v2415
    %v2417 = vpop.f32.mrf.mxu0
    %v2418 = vadd.f32 0.0, %v2417
    %v2419 = vpop.f32.mrf.mxu0
    %v2420 = vpop.f32.mrf.mxu0
    %2421 = vdwg.mxu0
    %2422 = vmatprep.subr.bf16.mxu0 %v640
    %2423 = vmatpush1.bf16.msra.mxu0 %v639
    %2424 = vmatprep.subr.bf16.mxu0 %v632
    %2425 = vmatpush1.bf16.msra.mxu0 %v631
    %2426 = vmatprep.subr.bf16.mxu0 %v624
    %2427 = vmatpush1.bf16.msra.mxu0 %v623
    %2428 = vmatprep.subr.bf16.mxu0 %v616
    %2429 = vmatpush1.bf16.msra.mxu0 %v615
    %2430 = vmatprep.subr.bf16.mxu0 %v608
    %2431 = vmatpush1.bf16.msra.mxu0 %v607
    %2432 = vmatprep.subr.bf16.mxu0 %v600
    %2433 = vmatpush1.bf16.msra.mxu0 %v599
    %2434 = vmatprep.subr.bf16.mxu0 %v592
    %2435 = vmatpush1.bf16.msra.mxu0 %v591
    %2436 = vmatprep.subr.bf16.mxu0 %v584
    %2437 = vmatpush1.bf16.msra.mxu0 %v583
    %2438 = vmatprep.subr.bf16.mxu0 %v704
    %2439 = vmatpush2.bf16.msra.mxu0 %v703
    %2440 = vmatprep.subr.bf16.mxu0 %v696
    %2441 = vmatpush2.bf16.msra.mxu0 %v695
    %2442 = vmatprep.subr.bf16.mxu0 %v688
    %2443 = vmatpush2.bf16.msra.mxu0 %v687
    %2444 = vmatprep.subr.bf16.mxu0 %v680
    %2445 = vmatpush2.bf16.msra.mxu0 %v679
    %2446 = vmatprep.subr.bf16.mxu0 %v672
    %2447 = vmatpush2.bf16.msra.mxu0 %v671
    %2448 = vmatprep.subr.bf16.mxu0 %v664
    %2449 = vmatpush2.bf16.msra.mxu0 %v663
    %2450 = vmatprep.subr.bf16.mxu0 %v656
    %2451 = vmatpush2.bf16.msra.mxu0 %v655
    %2452 = vmatprep.subr.bf16.mxu0 %v648
    %2453 = vmatpush2.bf16.msra.mxu0 %v647
    %2454 = vmatprep.mubr.bf16.mxu0 %v2378
    %2455 = vmatmul.mubr.bf16.gmra.mxu0 %v2377
    %v2456 = vpop.f32.mrf.mxu0
    %v2457 = vadd.f32 0.0, %v2456
    %v2458 = vpop.f32.mrf.mxu0
    %v2459 = vadd.f32 0.0, %v2458
    %v2460 = vpop.f32.mrf.mxu0
    %v2461 = vpop.f32.mrf.mxu0
    %2462 = vdwg.mxu0
    %2463 = vmatprep.subr.bf16.mxu0 %v642
    %2464 = vmatpush1.bf16.msra.mxu0 %v641
    %2465 = vmatprep.subr.bf16.mxu0 %v634
    %2466 = vmatpush1.bf16.msra.mxu0 %v633
    %2467 = vmatprep.subr.bf16.mxu0 %v626
    %2468 = vmatpush1.bf16.msra.mxu0 %v625
    %2469 = vmatprep.subr.bf16.mxu0 %v618
    %2470 = vmatpush1.bf16.msra.mxu0 %v617
    %2471 = vmatprep.subr.bf16.mxu0 %v610
    %2472 = vmatpush1.bf16.msra.mxu0 %v609
    %2473 = vmatprep.subr.bf16.mxu0 %v602
    %2474 = vmatpush1.bf16.msra.mxu0 %v601
    %2475 = vmatprep.subr.bf16.mxu0 %v594
    %2476 = vmatpush1.bf16.msra.mxu0 %v593
    %2477 = vmatprep.subr.bf16.mxu0 %v586
    %2478 = vmatpush1.bf16.msra.mxu0 %v585
    %2479 = vmatprep.subr.bf16.mxu0 %v706
    %2480 = vmatpush2.bf16.msra.mxu0 %v705
    %2481 = vmatprep.subr.bf16.mxu0 %v698
    %2482 = vmatpush2.bf16.msra.mxu0 %v697
    %2483 = vmatprep.subr.bf16.mxu0 %v690
    %2484 = vmatpush2.bf16.msra.mxu0 %v689
    %2485 = vmatprep.subr.bf16.mxu0 %v682
    %2486 = vmatpush2.bf16.msra.mxu0 %v681
    %2487 = vmatprep.subr.bf16.mxu0 %v674
    %2488 = vmatpush2.bf16.msra.mxu0 %v673
    %2489 = vmatprep.subr.bf16.mxu0 %v666
    %2490 = vmatpush2.bf16.msra.mxu0 %v665
    %2491 = vmatprep.subr.bf16.mxu0 %v658
    %2492 = vmatpush2.bf16.msra.mxu0 %v657
    %2493 = vmatprep.subr.bf16.mxu0 %v650
    %2494 = vmatpush2.bf16.msra.mxu0 %v649
    %2495 = vmatprep.mubr.bf16.mxu0 %v2378
    %2496 = vmatmul.mubr.bf16.gmra.mxu0 %v2377
    %v2497 = vpop.f32.mrf.mxu0
    %v2498 = vadd.f32 0.0, %v2497
    %v2499 = vpop.f32.mrf.mxu0
    %v2500 = vadd.f32 0.0, %v2499
    %v2501 = vpop.f32.mrf.mxu0
    %v2502 = vpop.f32.mrf.mxu0
    %2503 = vdwg.mxu0
    %2504 = vmatprep.subr.bf16.mxu0 %v644
    %2505 = vmatpush1.bf16.msra.mxu0 %v643
    %2506 = vmatprep.subr.bf16.mxu0 %v636
    %2507 = vmatpush1.bf16.msra.mxu0 %v635
    %2508 = vmatprep.subr.bf16.mxu0 %v628
    %2509 = vmatpush1.bf16.msra.mxu0 %v627
    %2510 = vmatprep.subr.bf16.mxu0 %v620
    %2511 = vmatpush1.bf16.msra.mxu0 %v619
    %2512 = vmatprep.subr.bf16.mxu0 %v612
    %2513 = vmatpush1.bf16.msra.mxu0 %v611
    %2514 = vmatprep.subr.bf16.mxu0 %v604
    %2515 = vmatpush1.bf16.msra.mxu0 %v603
    %2516 = vmatprep.subr.bf16.mxu0 %v596
    %2517 = vmatpush1.bf16.msra.mxu0 %v595
    %2518 = vmatprep.subr.bf16.mxu0 %v588
    %2519 = vmatpush1.bf16.msra.mxu0 %v587
    %2520 = vmatprep.subr.bf16.mxu0 %v708
    %2521 = vmatpush2.bf16.msra.mxu0 %v707
    %2522 = vmatprep.subr.bf16.mxu0 %v700
    %2523 = vmatpush2.bf16.msra.mxu0 %v699
    %2524 = vmatprep.subr.bf16.mxu0 %v692
    %2525 = vmatpush2.bf16.msra.mxu0 %v691
    %2526 = vmatprep.subr.bf16.mxu0 %v684
    %2527 = vmatpush2.bf16.msra.mxu0 %v683
    %2528 = vmatprep.subr.bf16.mxu0 %v676
    %2529 = vmatpush2.bf16.msra.mxu0 %v675
    %2530 = vmatprep.subr.bf16.mxu0 %v668
    %2531 = vmatpush2.bf16.msra.mxu0 %v667
    %2532 = vmatprep.subr.bf16.mxu0 %v660
    %2533 = vmatpush2.bf16.msra.mxu0 %v659
    %2534 = vmatprep.subr.bf16.mxu0 %v652
    %2535 = vmatpush2.bf16.msra.mxu0 %v651
    %2536 = vmatprep.mubr.bf16.mxu0 %v2378
    %2537 = vmatmul.mubr.bf16.gmra.mxu0 %v2377
    %v2538 = vpop.f32.mrf.mxu0
    %v2539 = vadd.f32 0.0, %v2538
    %v2540 = vpop.f32.mrf.mxu0
    %v2541 = vadd.f32 0.0, %v2540
    %v2542 = vpop.f32.mrf.mxu0
    %v2543 = vpop.f32.mrf.mxu0
    %2544 = vdwg.mxu0
    %v2553 = vrot.slane %v2416, 4
    %v2554 = vrot.slane %v2418, 4
    %v2555 = vrot.slane %v2457, 4
    %v2556 = vrot.slane %v2459, 4
    %v2557 = vrot.slane %v2498, 4
    %v2558 = vrot.slane %v2500, 4
    %v2559 = vrot.slane %v2539, 4
    %v2560 = vrot.slane %v2541, 4
    %v2561 = vrot.slane %v2416, 5
    %v2562 = vrot.slane %v2418, 5
    %v2563 = vrot.slane %v2457, 5
    %v2564 = vrot.slane %v2459, 5
    %v2565 = vrot.slane %v2498, 5
    %v2566 = vrot.slane %v2500, 5
    %v2567 = vrot.slane %v2539, 5
    %v2568 = vrot.slane %v2541, 5
    %v2585 = vadd.f32 %v2355, %v2553
    %v2586 = vadd.f32 %v2356, %v2554
    %v2587 = vadd.f32 %v2357, %v2555
    %v2588 = vadd.f32 %v2358, %v2556
    %v2589 = vadd.f32 %v2359, %v2557
    %v2590 = vadd.f32 %v2360, %v2558
    %v2591 = vadd.f32 %v2361, %v2559
    %v2592 = vadd.f32 %v2362, %v2560
    %v2593 = vadd.f32 %v2363, %v2561
    %v2594 = vadd.f32 %v2364, %v2562
    %v2595 = vadd.f32 %v2365, %v2563
    %v2596 = vadd.f32 %v2366, %v2564
    %v2597 = vadd.f32 %v2367, %v2565
    %v2598 = vadd.f32 %v2368, %v2566
    %v2599 = vadd.f32 %v2369, %v2567
    %v2600 = vadd.f32 %v2370, %v2568
    %v2601 = vxor.u32 %v2585, 2147483648
    %v2602 = vxor.u32 %v2586, 2147483648
    %v2603 = vxor.u32 %v2587, 2147483648
    %v2604 = vxor.u32 %v2588, 2147483648
    %v2605 = vxor.u32 %v2589, 2147483648
    %v2606 = vxor.u32 %v2590, 2147483648
    %v2607 = vxor.u32 %v2593, 2147483648
    %v2608 = vxor.u32 %v2594, 2147483648
    %v2609 = vxor.u32 %v2595, 2147483648
    %v2610 = vxor.u32 %v2596, 2147483648
    %v2611 = vxor.u32 %v2597, 2147483648
    %v2612 = vxor.u32 %v2598, 2147483648
    %v2613 = vmul.f32 %v2601, 1.442695
    %v2614 = vpow.pop %v2613
    %v2615 = vmul.f32 %v2602, 1.442695
    %v2616 = vpow.pop %v2615
    %v2617 = vmul.f32 %v2603, 1.442695
    %v2618 = vpow.pop %v2617
    %v2619 = vmul.f32 %v2604, 1.442695
    %v2620 = vpow.pop %v2619
    %v2621 = vmul.f32 %v2605, 1.442695
    %v2622 = vpow.pop %v2621
    %v2623 = vmul.f32 %v2606, 1.442695
    %v2624 = vpow.pop %v2623
    %v2625 = vmul.f32 %v2607, 1.442695
    %v2626 = vpow.pop %v2625
    %v2627 = vmul.f32 %v2608, 1.442695
    %v2628 = vpow.pop %v2627
    %v2629 = vmul.f32 %v2609, 1.442695
    %v2630 = vpow.pop %v2629
    %v2631 = vmul.f32 %v2610, 1.442695
    %v2632 = vpow.pop %v2631
    %v2633 = vmul.f32 %v2611, 1.442695
    %v2634 = vpow.pop %v2633
    %v2635 = vmul.f32 %v2612, 1.442695
    %v2636 = vpow.pop %v2635
    %v2637 = vadd.f32 %v2614, 1.0
    %v2638 = vadd.f32 %v2616, 1.0
    %v2639 = vadd.f32 %v2618, 1.0
    %v2640 = vadd.f32 %v2620, 1.0
    %v2641 = vadd.f32 %v2622, 1.0
    %v2642 = vadd.f32 %v2624, 1.0
    %v2643 = vadd.f32 %v2626, 1.0
    %v2644 = vadd.f32 %v2628, 1.0
    %v2645 = vadd.f32 %v2630, 1.0
    %v2646 = vadd.f32 %v2632, 1.0
    %v2647 = vadd.f32 %v2634, 1.0
    %v2648 = vadd.f32 %v2636, 1.0
    %v2649 = vrcp.pop %v2637
    %v2650 = vmul.f32 1.0, %v2649
    %v2651 = vrcp.pop %v2638
    %v2652 = vmul.f32 1.0, %v2651
    %v2653 = vrcp.pop %v2639
    %v2654 = vmul.f32 1.0, %v2653
    %v2655 = vrcp.pop %v2640
    %v2656 = vmul.f32 1.0, %v2655
    %v2657 = vrcp.pop %v2641
    %v2658 = vmul.f32 1.0, %v2657
    %v2659 = vrcp.pop %v2642
    %v2660 = vmul.f32 1.0, %v2659
    %v2661 = vrcp.pop %v2643
    %v2662 = vmul.f32 1.0, %v2661
    %v2663 = vrcp.pop %v2644
    %v2664 = vmul.f32 1.0, %v2663
    %v2665 = vrcp.pop %v2645
    %v2666 = vmul.f32 1.0, %v2665
    %v2667 = vrcp.pop %v2646
    %v2668 = vmul.f32 1.0, %v2667
    %v2669 = vrcp.pop %v2647
    %v2670 = vmul.f32 1.0, %v2669
    %v2671 = vrcp.pop %v2648
    %v2672 = vmul.f32 1.0, %v2671
    %v2673 = vtanh.pop %v2591
    %v2674 = vtanh.pop %v2592
    %v2675 = vtanh.pop %v2599
    %v2676 = vtanh.pop %v2600
    %v2681 = vrot.slane %v2308, 7
    %v2682 = vrot.slane %v2309, 7
    %v2683 = vrot.slane %v2310, 7
    %v2684 = vrot.slane %v2311, 7
    %v2689 = vmul.f32 %v2654, %v2681
    %v2690 = vmul.f32 %v2656, %v2682
    %v2691 = vmul.f32 %v2666, %v2683
    %v2692 = vmul.f32 %v2668, %v2684
    %v2693 = vmul.f32 %v2650, %v2673
    %v2694 = vmul.f32 %v2652, %v2674
    %v2695 = vmul.f32 %v2662, %v2675
    %v2696 = vmul.f32 %v2664, %v2676
    %v2697 = vadd.f32 %v2689, %v2693
    %v2698 = vadd.f32 %v2690, %v2694
    %v2699 = vadd.f32 %v2691, %v2695
    %v2700 = vadd.f32 %v2692, %v2696
    %v2701 = vtanh.pop %v2697
    %v2702 = vtanh.pop %v2698
    %v2703 = vtanh.pop %v2699
    %v2704 = vtanh.pop %v2700
    %v2705 = vmul.f32 %v2658, %v2701
    %v2706 = vmul.f32 %v2660, %v2702
    %v2707 = vmul.f32 %v2670, %v2703
    %v2708 = vmul.f32 %v2672, %v2704
    %v2709 = vpack.c.bf16 %v2705, %v2705
    %v2710 = vpack.c.bf16 %v2706, %v2706
    %v2711 = vpack.c.bf16 %v2707, %v2707
    %v2712 = vpack.c.bf16 %v2708, %v2708
    %v2717 = vunpack.c.l.b16 %v2709
    %v2718 = vunpack.c.l.b16 %v2710
    %v2719 = vunpack.c.l.b16 %v2711
    %v2720 = vunpack.c.l.b16 %v2712
    %v2721 = vpack.c.b16 %v2718, %v2717
    %v2722 = vpack.c.b16 %v2720, %v2719
    %vm2725 = vcmask 1042434
    %vm2726 = vsmask.f32 2304
    %vm2727 = vmand %vm2725, %vm2726
    %vm2728 = vcmask 1046534
    %vm2729 = vsmask.f32 6400
    %vm2730 = vmand %vm2728, %vm2729
    %vm2731 = vmor %vm2730, %vm2727
    %v2732 = vld [vmem:[%s4] sm:$0x44]
    %v2733 = vsel %vm2731, %v2721, %v2732
    %2734 = vst [vmem:[%s4] sm:$0x44] %v2733
    %v2735 = vld [vmem:[%s4 + $0x8] sm:$0x44]
    %v2736 = vsel %vm2731, %v2722, %v2735
    %2737 = vst [vmem:[%s4 + $0x8] sm:$0x44] %v2736
    %v2738 = vld [vmem:[%s0] sm:$0x44]
    %v2739 = vld [vmem:[%s0 + $0x8] sm:$0x44]
    %v2740 = vld [vmem:[%s0 + $0x10] sm:$0x44]
    %v2741 = vld [vmem:[%s0 + $0x18] sm:$0x44]
    %v2742 = vld [vmem:[%s0 + $0x20] sm:$0x44]
    %v2743 = vld [vmem:[%s0 + $0x28] sm:$0x44]
    %v2744 = vld [vmem:[%s0 + $0x30] sm:$0x44]
    %v2745 = vld [vmem:[%s0 + $0x38] sm:$0x44]
    %v2746 = vunpack.c.l.bf16 %v2738
    %v2747 = vunpack.c.h.bf16 %v2738
    %v2748 = vunpack.c.l.bf16 %v2739
    %v2749 = vunpack.c.h.bf16 %v2739
    %v2750 = vunpack.c.l.bf16 %v2740
    %v2751 = vunpack.c.h.bf16 %v2740
    %v2752 = vunpack.c.l.bf16 %v2741
    %v2753 = vunpack.c.h.bf16 %v2741
    %v2754 = vunpack.c.l.bf16 %v2742
    %v2755 = vunpack.c.h.bf16 %v2742
    %v2756 = vunpack.c.l.bf16 %v2743
    %v2757 = vunpack.c.h.bf16 %v2743
    %v2758 = vunpack.c.l.bf16 %v2744
    %v2759 = vunpack.c.h.bf16 %v2744
    %v2760 = vunpack.c.l.bf16 %v2745
    %v2761 = vunpack.c.h.bf16 %v2745
    %v2762 = vrot.slane %v2717, 4
    %v2763 = vrot.slane %v2719, 3
    %v2764 = vsel %vm1214, %v2763, %v2762
    %v2765 = vrot.slane %v2718, 4
    %v2766 = vrot.slane %v2720, 3
    %v2767 = vsel %vm1214, %v2766, %v2765
    %v2768 = vpack.c.b16 %v2764, %v2764
    %v2769 = vpack.c.b16 %v2767, %v2767
    %2772 = vmatprep.subr.bf16.mxu0 %v638
    %2773 = vmatpush1.bf16.msra.mxu0 %v637
    %2774 = vmatprep.subr.bf16.mxu0 %v630
    %2775 = vmatpush1.bf16.msra.mxu0 %v629
    %2776 = vmatprep.subr.bf16.mxu0 %v622
    %2777 = vmatpush1.bf16.msra.mxu0 %v621
    %2778 = vmatprep.subr.bf16.mxu0 %v614
    %2779 = vmatpush1.bf16.msra.mxu0 %v613
    %2780 = vmatprep.subr.bf16.mxu0 %v606
    %2781 = vmatpush1.bf16.msra.mxu0 %v605
    %2782 = vmatprep.subr.bf16.mxu0 %v598
    %2783 = vmatpush1.bf16.msra.mxu0 %v597
    %2784 = vmatprep.subr.bf16.mxu0 %v590
    %2785 = vmatpush1.bf16.msra.mxu0 %v589
    %2786 = vmatprep.subr.bf16.mxu0 %v582
    %2787 = vmatpush1.bf16.msra.mxu0 %v581
    %2788 = vmatprep.subr.bf16.mxu0 %v702
    %2789 = vmatpush2.bf16.msra.mxu0 %v701
    %2790 = vmatprep.subr.bf16.mxu0 %v694
    %2791 = vmatpush2.bf16.msra.mxu0 %v693
    %2792 = vmatprep.subr.bf16.mxu0 %v686
    %2793 = vmatpush2.bf16.msra.mxu0 %v685
    %2794 = vmatprep.subr.bf16.mxu0 %v678
    %2795 = vmatpush2.bf16.msra.mxu0 %v677
    %2796 = vmatprep.subr.bf16.mxu0 %v670
    %2797 = vmatpush2.bf16.msra.mxu0 %v669
    %2798 = vmatprep.subr.bf16.mxu0 %v662
    %2799 = vmatpush2.bf16.msra.mxu0 %v661
    %2800 = vmatprep.subr.bf16.mxu0 %v654
    %2801 = vmatpush2.bf16.msra.mxu0 %v653
    %2802 = vmatprep.subr.bf16.mxu0 %v646
    %2803 = vmatpush2.bf16.msra.mxu0 %v645
    %2804 = vmatprep.mubr.bf16.mxu0 %v2769
    %2805 = vmatmul.mubr.bf16.gmra.mxu0 %v2768
    %v2806 = vpop.f32.mrf.mxu0
    %v2807 = vadd.f32 0.0, %v2806
    %v2808 = vpop.f32.mrf.mxu0
    %v2809 = vadd.f32 0.0, %v2808
    %v2810 = vpop.f32.mrf.mxu0
    %v2811 = vpop.f32.mrf.mxu0
    %2812 = vdwg.mxu0
    %2813 = vmatprep.subr.bf16.mxu0 %v640
    %2814 = vmatpush1.bf16.msra.mxu0 %v639
    %2815 = vmatprep.subr.bf16.mxu0 %v632
    %2816 = vmatpush1.bf16.msra.mxu0 %v631
    %2817 = vmatprep.subr.bf16.mxu0 %v624
    %2818 = vmatpush1.bf16.msra.mxu0 %v623
    %2819 = vmatprep.subr.bf16.mxu0 %v616
    %2820 = vmatpush1.bf16.msra.mxu0 %v615
    %2821 = vmatprep.subr.bf16.mxu0 %v608
    %2822 = vmatpush1.bf16.msra.mxu0 %v607
    %2823 = vmatprep.subr.bf16.mxu0 %v600
    %2824 = vmatpush1.bf16.msra.mxu0 %v599
    %2825 = vmatprep.subr.bf16.mxu0 %v592
    %2826 = vmatpush1.bf16.msra.mxu0 %v591
    %2827 = vmatprep.subr.bf16.mxu0 %v584
    %2828 = vmatpush1.bf16.msra.mxu0 %v583
    %2829 = vmatprep.subr.bf16.mxu0 %v704
    %2830 = vmatpush2.bf16.msra.mxu0 %v703
    %2831 = vmatprep.subr.bf16.mxu0 %v696
    %2832 = vmatpush2.bf16.msra.mxu0 %v695
    %2833 = vmatprep.subr.bf16.mxu0 %v688
    %2834 = vmatpush2.bf16.msra.mxu0 %v687
    %2835 = vmatprep.subr.bf16.mxu0 %v680
    %2836 = vmatpush2.bf16.msra.mxu0 %v679
    %2837 = vmatprep.subr.bf16.mxu0 %v672
    %2838 = vmatpush2.bf16.msra.mxu0 %v671
    %2839 = vmatprep.subr.bf16.mxu0 %v664
    %2840 = vmatpush2.bf16.msra.mxu0 %v663
    %2841 = vmatprep.subr.bf16.mxu0 %v656
    %2842 = vmatpush2.bf16.msra.mxu0 %v655
    %2843 = vmatprep.subr.bf16.mxu0 %v648
    %2844 = vmatpush2.bf16.msra.mxu0 %v647
    %2845 = vmatprep.mubr.bf16.mxu0 %v2769
    %2846 = vmatmul.mubr.bf16.gmra.mxu0 %v2768
    %v2847 = vpop.f32.mrf.mxu0
    %v2848 = vadd.f32 0.0, %v2847
    %v2849 = vpop.f32.mrf.mxu0
    %v2850 = vadd.f32 0.0, %v2849
    %v2851 = vpop.f32.mrf.mxu0
    %v2852 = vpop.f32.mrf.mxu0
    %2853 = vdwg.mxu0
    %2854 = vmatprep.subr.bf16.mxu0 %v642
    %2855 = vmatpush1.bf16.msra.mxu0 %v641
    %2856 = vmatprep.subr.bf16.mxu0 %v634
    %2857 = vmatpush1.bf16.msra.mxu0 %v633
    %2858 = vmatprep.subr.bf16.mxu0 %v626
    %2859 = vmatpush1.bf16.msra.mxu0 %v625
    %2860 = vmatprep.subr.bf16.mxu0 %v618
    %2861 = vmatpush1.bf16.msra.mxu0 %v617
    %2862 = vmatprep.subr.bf16.mxu0 %v610
    %2863 = vmatpush1.bf16.msra.mxu0 %v609
    %2864 = vmatprep.subr.bf16.mxu0 %v602
    %2865 = vmatpush1.bf16.msra.mxu0 %v601
    %2866 = vmatprep.subr.bf16.mxu0 %v594
    %2867 = vmatpush1.bf16.msra.mxu0 %v593
    %2868 = vmatprep.subr.bf16.mxu0 %v586
    %2869 = vmatpush1.bf16.msra.mxu0 %v585
    %2870 = vmatprep.subr.bf16.mxu0 %v706
    %2871 = vmatpush2.bf16.msra.mxu0 %v705
    %2872 = vmatprep.subr.bf16.mxu0 %v698
    %2873 = vmatpush2.bf16.msra.mxu0 %v697
    %2874 = vmatprep.subr.bf16.mxu0 %v690
    %2875 = vmatpush2.bf16.msra.mxu0 %v689
    %2876 = vmatprep.subr.bf16.mxu0 %v682
    %2877 = vmatpush2.bf16.msra.mxu0 %v681
    %2878 = vmatprep.subr.bf16.mxu0 %v674
    %2879 = vmatpush2.bf16.msra.mxu0 %v673
    %2880 = vmatprep.subr.bf16.mxu0 %v666
    %2881 = vmatpush2.bf16.msra.mxu0 %v665
    %2882 = vmatprep.subr.bf16.mxu0 %v658
    %2883 = vmatpush2.bf16.msra.mxu0 %v657
    %2884 = vmatprep.subr.bf16.mxu0 %v650
    %2885 = vmatpush2.bf16.msra.mxu0 %v649
    %2886 = vmatprep.mubr.bf16.mxu0 %v2769
    %2887 = vmatmul.mubr.bf16.gmra.mxu0 %v2768
    %v2888 = vpop.f32.mrf.mxu0
    %v2889 = vadd.f32 0.0, %v2888
    %v2890 = vpop.f32.mrf.mxu0
    %v2891 = vadd.f32 0.0, %v2890
    %v2892 = vpop.f32.mrf.mxu0
    %v2893 = vpop.f32.mrf.mxu0
    %2894 = vdwg.mxu0
    %2895 = vmatprep.subr.bf16.mxu0 %v644
    %2896 = vmatpush1.bf16.msra.mxu0 %v643
    %2897 = vmatprep.subr.bf16.mxu0 %v636
    %2898 = vmatpush1.bf16.msra.mxu0 %v635
    %2899 = vmatprep.subr.bf16.mxu0 %v628
    %2900 = vmatpush1.bf16.msra.mxu0 %v627
    %2901 = vmatprep.subr.bf16.mxu0 %v620
    %2902 = vmatpush1.bf16.msra.mxu0 %v619
    %2903 = vmatprep.subr.bf16.mxu0 %v612
    %2904 = vmatpush1.bf16.msra.mxu0 %v611
    %2905 = vmatprep.subr.bf16.mxu0 %v604
    %2906 = vmatpush1.bf16.msra.mxu0 %v603
    %2907 = vmatprep.subr.bf16.mxu0 %v596
    %2908 = vmatpush1.bf16.msra.mxu0 %v595
    %2909 = vmatprep.subr.bf16.mxu0 %v588
    %2910 = vmatpush1.bf16.msra.mxu0 %v587
    %2911 = vmatprep.subr.bf16.mxu0 %v708
    %2912 = vmatpush2.bf16.msra.mxu0 %v707
    %2913 = vmatprep.subr.bf16.mxu0 %v700
    %2914 = vmatpush2.bf16.msra.mxu0 %v699
    %2915 = vmatprep.subr.bf16.mxu0 %v692
    %2916 = vmatpush2.bf16.msra.mxu0 %v691
    %2917 = vmatprep.subr.bf16.mxu0 %v684
    %2918 = vmatpush2.bf16.msra.mxu0 %v683
    %2919 = vmatprep.subr.bf16.mxu0 %v676
    %2920 = vmatpush2.bf16.msra.mxu0 %v675
    %2921 = vmatprep.subr.bf16.mxu0 %v668
    %2922 = vmatpush2.bf16.msra.mxu0 %v667
    %2923 = vmatprep.subr.bf16.mxu0 %v660
    %2924 = vmatpush2.bf16.msra.mxu0 %v659
    %2925 = vmatprep.subr.bf16.mxu0 %v652
    %2926 = vmatpush2.bf16.msra.mxu0 %v651
    %2927 = vmatprep.mubr.bf16.mxu0 %v2769
    %2928 = vmatmul.mubr.bf16.gmra.mxu0 %v2768
    %v2929 = vpop.f32.mrf.mxu0
    %v2930 = vadd.f32 0.0, %v2929
    %v2931 = vpop.f32.mrf.mxu0
    %v2932 = vadd.f32 0.0, %v2931
    %v2933 = vpop.f32.mrf.mxu0
    %v2934 = vpop.f32.mrf.mxu0
    %2935 = vdwg.mxu0
    %v2944 = vrot.slane %v2807, 3
    %v2945 = vrot.slane %v2809, 3
    %v2946 = vrot.slane %v2848, 3
    %v2947 = vrot.slane %v2850, 3
    %v2948 = vrot.slane %v2889, 3
    %v2949 = vrot.slane %v2891, 3
    %v2950 = vrot.slane %v2930, 3
    %v2951 = vrot.slane %v2932, 3
    %v2952 = vrot.slane %v2807, 4
    %v2953 = vrot.slane %v2809, 4
    %v2954 = vrot.slane %v2848, 4
    %v2955 = vrot.slane %v2850, 4
    %v2956 = vrot.slane %v2889, 4
    %v2957 = vrot.slane %v2891, 4
    %v2958 = vrot.slane %v2930, 4
    %v2959 = vrot.slane %v2932, 4
    %v2976 = vadd.f32 %v2746, %v2944
    %v2977 = vadd.f32 %v2747, %v2945
    %v2978 = vadd.f32 %v2748, %v2946
    %v2979 = vadd.f32 %v2749, %v2947
    %v2980 = vadd.f32 %v2750, %v2948
    %v2981 = vadd.f32 %v2751, %v2949
    %v2982 = vadd.f32 %v2752, %v2950
    %v2983 = vadd.f32 %v2753, %v2951
    %v2984 = vadd.f32 %v2754, %v2952
    %v2985 = vadd.f32 %v2755, %v2953
    %v2986 = vadd.f32 %v2756, %v2954
    %v2987 = vadd.f32 %v2757, %v2955
    %v2988 = vadd.f32 %v2758, %v2956
    %v2989 = vadd.f32 %v2759, %v2957
    %v2990 = vadd.f32 %v2760, %v2958
    %v2991 = vadd.f32 %v2761, %v2959
    %v2992 = vxor.u32 %v2976, 2147483648
    %v2993 = vxor.u32 %v2977, 2147483648
    %v2994 = vxor.u32 %v2978, 2147483648
    %v2995 = vxor.u32 %v2979, 2147483648
    %v2996 = vxor.u32 %v2980, 2147483648
    %v2997 = vxor.u32 %v2981, 2147483648
    %v2998 = vxor.u32 %v2984, 2147483648
    %v2999 = vxor.u32 %v2985, 2147483648
    %v3000 = vxor.u32 %v2986, 2147483648
    %v3001 = vxor.u32 %v2987, 2147483648
    %v3002 = vxor.u32 %v2988, 2147483648
    %v3003 = vxor.u32 %v2989, 2147483648
    %v3004 = vmul.f32 %v2992, 1.442695
    %v3005 = vpow.pop %v3004
    %v3006 = vmul.f32 %v2993, 1.442695
    %v3007 = vpow.pop %v3006
    %v3008 = vmul.f32 %v2994, 1.442695
    %v3009 = vpow.pop %v3008
    %v3010 = vmul.f32 %v2995, 1.442695
    %v3011 = vpow.pop %v3010
    %v3012 = vmul.f32 %v2996, 1.442695
    %v3013 = vpow.pop %v3012
    %v3014 = vmul.f32 %v2997, 1.442695
    %v3015 = vpow.pop %v3014
    %v3016 = vmul.f32 %v2998, 1.442695
    %v3017 = vpow.pop %v3016
    %v3018 = vmul.f32 %v2999, 1.442695
    %v3019 = vpow.pop %v3018
    %v3020 = vmul.f32 %v3000, 1.442695
    %v3021 = vpow.pop %v3020
    %v3022 = vmul.f32 %v3001, 1.442695
    %v3023 = vpow.pop %v3022
    %v3024 = vmul.f32 %v3002, 1.442695
    %v3025 = vpow.pop %v3024
    %v3026 = vmul.f32 %v3003, 1.442695
    %v3027 = vpow.pop %v3026
    %v3028 = vadd.f32 %v3005, 1.0
    %v3029 = vadd.f32 %v3007, 1.0
    %v3030 = vadd.f32 %v3009, 1.0
    %v3031 = vadd.f32 %v3011, 1.0
    %v3032 = vadd.f32 %v3013, 1.0
    %v3033 = vadd.f32 %v3015, 1.0
    %v3034 = vadd.f32 %v3017, 1.0
    %v3035 = vadd.f32 %v3019, 1.0
    %v3036 = vadd.f32 %v3021, 1.0
    %v3037 = vadd.f32 %v3023, 1.0
    %v3038 = vadd.f32 %v3025, 1.0
    %v3039 = vadd.f32 %v3027, 1.0
    %v3040 = vrcp.pop %v3028
    %v3041 = vmul.f32 1.0, %v3040
    %v3042 = vrcp.pop %v3029
    %v3043 = vmul.f32 1.0, %v3042
    %v3044 = vrcp.pop %v3030
    %v3045 = vmul.f32 1.0, %v3044
    %v3046 = vrcp.pop %v3031
    %v3047 = vmul.f32 1.0, %v3046
    %v3048 = vrcp.pop %v3032
    %v3049 = vmul.f32 1.0, %v3048
    %v3050 = vrcp.pop %v3033
    %v3051 = vmul.f32 1.0, %v3050
    %v3052 = vrcp.pop %v3034
    %v3053 = vmul.f32 1.0, %v3052
    %v3054 = vrcp.pop %v3035
    %v3055 = vmul.f32 1.0, %v3054
    %v3056 = vrcp.pop %v3036
    %v3057 = vmul.f32 1.0, %v3056
    %v3058 = vrcp.pop %v3037
    %v3059 = vmul.f32 1.0, %v3058
    %v3060 = vrcp.pop %v3038
    %v3061 = vmul.f32 1.0, %v3060
    %v3062 = vrcp.pop %v3039
    %v3063 = vmul.f32 1.0, %v3062
    %v3064 = vtanh.pop %v2982
    %v3065 = vtanh.pop %v2983
    %v3066 = vtanh.pop %v2990
    %v3067 = vtanh.pop %v2991
    %v3072 = vrot.slane %v2697, 7
    %v3073 = vrot.slane %v2698, 7
    %v3074 = vrot.slane %v2699, 7
    %v3075 = vrot.slane %v2700, 7
    %v3080 = vmul.f32 %v3045, %v3072
    %v3081 = vmul.f32 %v3047, %v3073
    %v3082 = vmul.f32 %v3057, %v3074
    %v3083 = vmul.f32 %v3059, %v3075
    %v3084 = vmul.f32 %v3041, %v3064
    %v3085 = vmul.f32 %v3043, %v3065
    %v3086 = vmul.f32 %v3053, %v3066
    %v3087 = vmul.f32 %v3055, %v3067
    %v3088 = vadd.f32 %v3080, %v3084
    %v3089 = vadd.f32 %v3081, %v3085
    %v3090 = vadd.f32 %v3082, %v3086
    %v3091 = vadd.f32 %v3083, %v3087
    %v3092 = vtanh.pop %v3088
    %v3093 = vtanh.pop %v3089
    %v3094 = vtanh.pop %v3090
    %v3095 = vtanh.pop %v3091
    %v3096 = vmul.f32 %v3049, %v3092
    %v3097 = vmul.f32 %v3051, %v3093
    %v3098 = vmul.f32 %v3061, %v3094
    %v3099 = vmul.f32 %v3063, %v3095
    %v3100 = vpack.c.bf16 %v3096, %v3096
    %v3101 = vpack.c.bf16 %v3097, %v3097
    %v3102 = vpack.c.bf16 %v3098, %v3098
    %v3103 = vpack.c.bf16 %v3099, %v3099
    %v3108 = vunpack.c.l.b16 %v3100
    %v3109 = vunpack.c.l.b16 %v3101
    %v3110 = vunpack.c.l.b16 %v3102
    %v3111 = vunpack.c.l.b16 %v3103
    %v3112 = vpack.c.b16 %v3109, %v3108
    %v3113 = vpack.c.b16 %v3111, %v3110
    %vm3116 = vsmask.f32 7946
    %vm3117 = vmand %vm2725, %vm3116
    %vm3118 = vsmask.f32 7962
    %vm3119 = vmand %vm2728, %vm3118
    %vm3120 = vmor %vm3119, %vm3117
    %v3121 = vld [vmem:[%s4] sm:$0x44]
    %v3122 = vsel %vm3120, %v3112, %v3121
    %3123 = vst [vmem:[%s4] sm:$0x44] %v3122
    %v3124 = vld [vmem:[%s4 + $0x8] sm:$0x44]
    %v3125 = vsel %vm3120, %v3113, %v3124
    %3126 = vst [vmem:[%s4 + $0x8] sm:$0x44] %v3125
    %v3127 = vld [vmem:[%s0] sm:$0x88]
    %v3128 = vld [vmem:[%s0 + $0x8] sm:$0x88]
    %v3129 = vld [vmem:[%s0 + $0x10] sm:$0x88]
    %v3130 = vld [vmem:[%s0 + $0x18] sm:$0x88]
    %v3131 = vld [vmem:[%s0 + $0x20] sm:$0x88]
    %v3132 = vld [vmem:[%s0 + $0x28] sm:$0x88]
    %v3133 = vld [vmem:[%s0 + $0x30] sm:$0x88]
    %v3134 = vld [vmem:[%s0 + $0x38] sm:$0x88]
    %v3135 = vunpack.c.l.bf16 %v3127
    %v3136 = vunpack.c.h.bf16 %v3127
    %v3137 = vunpack.c.l.bf16 %v3128
    %v3138 = vunpack.c.h.bf16 %v3128
    %v3139 = vunpack.c.l.bf16 %v3129
    %v3140 = vunpack.c.h.bf16 %v3129
    %v3141 = vunpack.c.l.bf16 %v3130
    %v3142 = vunpack.c.h.bf16 %v3130
    %v3143 = vunpack.c.l.bf16 %v3131
    %v3144 = vunpack.c.h.bf16 %v3131
    %v3145 = vunpack.c.l.bf16 %v3132
    %v3146 = vunpack.c.h.bf16 %v3132
    %v3147 = vunpack.c.l.bf16 %v3133
    %v3148 = vunpack.c.h.bf16 %v3133
    %v3149 = vunpack.c.l.bf16 %v3134
    %v3150 = vunpack.c.h.bf16 %v3134
    %v3151 = vrot.slane %v3108, 5
    %v3152 = vrot.slane %v3110, 4
    %v3153 = vsel %vm1214, %v3152, %v3151
    %v3154 = vrot.slane %v3109, 5
    %v3155 = vrot.slane %v3111, 4
    %v3156 = vsel %vm1214, %v3155, %v3154
    %v3157 = vpack.c.b16 %v3153, %v3153
    %v3158 = vpack.c.b16 %v3156, %v3156
    %3161 = vmatprep.subr.bf16.mxu0 %v638
    %3162 = vmatpush1.bf16.msra.mxu0 %v637
    %3163 = vmatprep.subr.bf16.mxu0 %v630
    %3164 = vmatpush1.bf16.msra.mxu0 %v629
    %3165 = vmatprep.subr.bf16.mxu0 %v622
    %3166 = vmatpush1.bf16.msra.mxu0 %v621
    %3167 = vmatprep.subr.bf16.mxu0 %v614
    %3168 = vmatpush1.bf16.msra.mxu0 %v613
    %3169 = vmatprep.subr.bf16.mxu0 %v606
    %3170 = vmatpush1.bf16.msra.mxu0 %v605
    %3171 = vmatprep.subr.bf16.mxu0 %v598
    %3172 = vmatpush1.bf16.msra.mxu0 %v597
    %3173 = vmatprep.subr.bf16.mxu0 %v590
    %3174 = vmatpush1.bf16.msra.mxu0 %v589
    %3175 = vmatprep.subr.bf16.mxu0 %v582
    %3176 = vmatpush1.bf16.msra.mxu0 %v581
    %3177 = vmatprep.subr.bf16.mxu0 %v702
    %3178 = vmatpush2.bf16.msra.mxu0 %v701
    %3179 = vmatprep.subr.bf16.mxu0 %v694
    %3180 = vmatpush2.bf16.msra.mxu0 %v693
    %3181 = vmatprep.subr.bf16.mxu0 %v686
    %3182 = vmatpush2.bf16.msra.mxu0 %v685
    %3183 = vmatprep.subr.bf16.mxu0 %v678
    %3184 = vmatpush2.bf16.msra.mxu0 %v677
    %3185 = vmatprep.subr.bf16.mxu0 %v670
    %3186 = vmatpush2.bf16.msra.mxu0 %v669
    %3187 = vmatprep.subr.bf16.mxu0 %v662
    %3188 = vmatpush2.bf16.msra.mxu0 %v661
    %3189 = vmatprep.subr.bf16.mxu0 %v654
    %3190 = vmatpush2.bf16.msra.mxu0 %v653
    %3191 = vmatprep.subr.bf16.mxu0 %v646
    %3192 = vmatpush2.bf16.msra.mxu0 %v645
    %3193 = vmatprep.mubr.bf16.mxu0 %v3158
    %3194 = vmatmul.mubr.bf16.gmra.mxu0 %v3157
    %v3195 = vpop.f32.mrf.mxu0
    %v3196 = vadd.f32 0.0, %v3195
    %v3197 = vpop.f32.mrf.mxu0
    %v3198 = vadd.f32 0.0, %v3197
    %v3199 = vpop.f32.mrf.mxu0
    %v3200 = vpop.f32.mrf.mxu0
    %3201 = vdwg.mxu0
    %3202 = vmatprep.subr.bf16.mxu0 %v640
    %3203 = vmatpush1.bf16.msra.mxu0 %v639
    %3204 = vmatprep.subr.bf16.mxu0 %v632
    %3205 = vmatpush1.bf16.msra.mxu0 %v631
    %3206 = vmatprep.subr.bf16.mxu0 %v624
    %3207 = vmatpush1.bf16.msra.mxu0 %v623
    %3208 = vmatprep.subr.bf16.mxu0 %v616
    %3209 = vmatpush1.bf16.msra.mxu0 %v615
    %3210 = vmatprep.subr.bf16.mxu0 %v608
    %3211 = vmatpush1.bf16.msra.mxu0 %v607
    %3212 = vmatprep.subr.bf16.mxu0 %v600
    %3213 = vmatpush1.bf16.msra.mxu0 %v599
    %3214 = vmatprep.subr.bf16.mxu0 %v592
    %3215 = vmatpush1.bf16.msra.mxu0 %v591
    %3216 = vmatprep.subr.bf16.mxu0 %v584
    %3217 = vmatpush1.bf16.msra.mxu0 %v583
    %3218 = vmatprep.subr.bf16.mxu0 %v704
    %3219 = vmatpush2.bf16.msra.mxu0 %v703
    %3220 = vmatprep.subr.bf16.mxu0 %v696
    %3221 = vmatpush2.bf16.msra.mxu0 %v695
    %3222 = vmatprep.subr.bf16.mxu0 %v688
    %3223 = vmatpush2.bf16.msra.mxu0 %v687
    %3224 = vmatprep.subr.bf16.mxu0 %v680
    %3225 = vmatpush2.bf16.msra.mxu0 %v679
    %3226 = vmatprep.subr.bf16.mxu0 %v672
    %3227 = vmatpush2.bf16.msra.mxu0 %v671
    %3228 = vmatprep.subr.bf16.mxu0 %v664
    %3229 = vmatpush2.bf16.msra.mxu0 %v663
    %3230 = vmatprep.subr.bf16.mxu0 %v656
    %3231 = vmatpush2.bf16.msra.mxu0 %v655
    %3232 = vmatprep.subr.bf16.mxu0 %v648
    %3233 = vmatpush2.bf16.msra.mxu0 %v647
    %3234 = vmatprep.mubr.bf16.mxu0 %v3158
    %3235 = vmatmul.mubr.bf16.gmra.mxu0 %v3157
    %v3236 = vpop.f32.mrf.mxu0
    %v3237 = vadd.f32 0.0, %v3236
    %v3238 = vpop.f32.mrf.mxu0
    %v3239 = vadd.f32 0.0, %v3238
    %v3240 = vpop.f32.mrf.mxu0
    %v3241 = vpop.f32.mrf.mxu0
    %3242 = vdwg.mxu0
    %3243 = vmatprep.subr.bf16.mxu0 %v642
    %3244 = vmatpush1.bf16.msra.mxu0 %v641
    %3245 = vmatprep.subr.bf16.mxu0 %v634
    %3246 = vmatpush1.bf16.msra.mxu0 %v633
    %3247 = vmatprep.subr.bf16.mxu0 %v626
    %3248 = vmatpush1.bf16.msra.mxu0 %v625
    %3249 = vmatprep.subr.bf16.mxu0 %v618
    %3250 = vmatpush1.bf16.msra.mxu0 %v617
    %3251 = vmatprep.subr.bf16.mxu0 %v610
    %3252 = vmatpush1.bf16.msra.mxu0 %v609
    %3253 = vmatprep.subr.bf16.mxu0 %v602
    %3254 = vmatpush1.bf16.msra.mxu0 %v601
    %3255 = vmatprep.subr.bf16.mxu0 %v594
    %3256 = vmatpush1.bf16.msra.mxu0 %v593
    %3257 = vmatprep.subr.bf16.mxu0 %v586
    %3258 = vmatpush1.bf16.msra.mxu0 %v585
    %3259 = vmatprep.subr.bf16.mxu0 %v706
    %3260 = vmatpush2.bf16.msra.mxu0 %v705
    %3261 = vmatprep.subr.bf16.mxu0 %v698
    %3262 = vmatpush2.bf16.msra.mxu0 %v697
    %3263 = vmatprep.subr.bf16.mxu0 %v690
    %3264 = vmatpush2.bf16.msra.mxu0 %v689
    %3265 = vmatprep.subr.bf16.mxu0 %v682
    %3266 = vmatpush2.bf16.msra.mxu0 %v681
    %3267 = vmatprep.subr.bf16.mxu0 %v674
    %3268 = vmatpush2.bf16.msra.mxu0 %v673
    %3269 = vmatprep.subr.bf16.mxu0 %v666
    %3270 = vmatpush2.bf16.msra.mxu0 %v665
    %3271 = vmatprep.subr.bf16.mxu0 %v658
    %3272 = vmatpush2.bf16.msra.mxu0 %v657
    %3273 = vmatprep.subr.bf16.mxu0 %v650
    %3274 = vmatpush2.bf16.msra.mxu0 %v649
    %3275 = vmatprep.mubr.bf16.mxu0 %v3158
    %3276 = vmatmul.mubr.bf16.gmra.mxu0 %v3157
    %v3277 = vpop.f32.mrf.mxu0
    %v3278 = vadd.f32 0.0, %v3277
    %v3279 = vpop.f32.mrf.mxu0
    %v3280 = vadd.f32 0.0, %v3279
    %v3281 = vpop.f32.mrf.mxu0
    %v3282 = vpop.f32.mrf.mxu0
    %3283 = vdwg.mxu0
    %3284 = vmatprep.subr.bf16.mxu0 %v644
    %3285 = vmatpush1.bf16.msra.mxu0 %v643
    %3286 = vmatprep.subr.bf16.mxu0 %v636
    %3287 = vmatpush1.bf16.msra.mxu0 %v635
    %3288 = vmatprep.subr.bf16.mxu0 %v628
    %3289 = vmatpush1.bf16.msra.mxu0 %v627
    %3290 = vmatprep.subr.bf16.mxu0 %v620
    %3291 = vmatpush1.bf16.msra.mxu0 %v619
    %3292 = vmatprep.subr.bf16.mxu0 %v612
    %3293 = vmatpush1.bf16.msra.mxu0 %v611
    %3294 = vmatprep.subr.bf16.mxu0 %v604
    %3295 = vmatpush1.bf16.msra.mxu0 %v603
    %3296 = vmatprep.subr.bf16.mxu0 %v596
    %3297 = vmatpush1.bf16.msra.mxu0 %v595
    %3298 = vmatprep.subr.bf16.mxu0 %v588
    %3299 = vmatpush1.bf16.msra.mxu0 %v587
    %3300 = vmatprep.subr.bf16.mxu0 %v708
    %3301 = vmatpush2.bf16.msra.mxu0 %v707
    %3302 = vmatprep.subr.bf16.mxu0 %v700
    %3303 = vmatpush2.bf16.msra.mxu0 %v699
    %3304 = vmatprep.subr.bf16.mxu0 %v692
    %3305 = vmatpush2.bf16.msra.mxu0 %v691
    %3306 = vmatprep.subr.bf16.mxu0 %v684
    %3307 = vmatpush2.bf16.msra.mxu0 %v683
    %3308 = vmatprep.subr.bf16.mxu0 %v676
    %3309 = vmatpush2.bf16.msra.mxu0 %v675
    %3310 = vmatprep.subr.bf16.mxu0 %v668
    %3311 = vmatpush2.bf16.msra.mxu0 %v667
    %3312 = vmatprep.subr.bf16.mxu0 %v660
    %3313 = vmatpush2.bf16.msra.mxu0 %v659
    %3314 = vmatprep.subr.bf16.mxu0 %v652
    %3315 = vmatpush2.bf16.msra.mxu0 %v651
    %3316 = vmatprep.mubr.bf16.mxu0 %v3158
    %3317 = vmatmul.mubr.bf16.gmra.mxu0 %v3157
    %v3318 = vpop.f32.mrf.mxu0
    %v3319 = vadd.f32 0.0, %v3318
    %v3320 = vpop.f32.mrf.mxu0
    %v3321 = vadd.f32 0.0, %v3320
    %v3322 = vpop.f32.mrf.mxu0
    %v3323 = vpop.f32.mrf.mxu0
    %3324 = vdwg.mxu0
    %v3333 = vrot.slane %v3196, 2
    %v3334 = vrot.slane %v3198, 2
    %v3335 = vrot.slane %v3237, 2
    %v3336 = vrot.slane %v3239, 2
    %v3337 = vrot.slane %v3278, 2
    %v3338 = vrot.slane %v3280, 2
    %v3339 = vrot.slane %v3319, 2
    %v3340 = vrot.slane %v3321, 2
    %v3341 = vrot.slane %v3196, 3
    %v3342 = vrot.slane %v3198, 3
    %v3343 = vrot.slane %v3237, 3
    %v3344 = vrot.slane %v3239, 3
    %v3345 = vrot.slane %v3278, 3
    %v3346 = vrot.slane %v3280, 3
    %v3347 = vrot.slane %v3319, 3
    %v3348 = vrot.slane %v3321, 3
    %v3365 = vadd.f32 %v3135, %v3333
    %v3366 = vadd.f32 %v3136, %v3334
    %v3367 = vadd.f32 %v3137, %v3335
    %v3368 = vadd.f32 %v3138, %v3336
    %v3369 = vadd.f32 %v3139, %v3337
    %v3370 = vadd.f32 %v3140, %v3338
    %v3371 = vadd.f32 %v3141, %v3339
    %v3372 = vadd.f32 %v3142, %v3340
    %v3373 = vadd.f32 %v3143, %v3341
    %v3374 = vadd.f32 %v3144, %v3342
    %v3375 = vadd.f32 %v3145, %v3343
    %v3376 = vadd.f32 %v3146, %v3344
    %v3377 = vadd.f32 %v3147, %v3345
    %v3378 = vadd.f32 %v3148, %v3346
    %v3379 = vadd.f32 %v3149, %v3347
    %v3380 = vadd.f32 %v3150, %v3348
    %v3381 = vxor.u32 %v3365, 2147483648
    %v3382 = vxor.u32 %v3366, 2147483648
    %v3383 = vxor.u32 %v3367, 2147483648
    %v3384 = vxor.u32 %v3368, 2147483648
    %v3385 = vxor.u32 %v3369, 2147483648
    %v3386 = vxor.u32 %v3370, 2147483648
    %v3387 = vxor.u32 %v3373, 2147483648
    %v3388 = vxor.u32 %v3374, 2147483648
    %v3389 = vxor.u32 %v3375, 2147483648
    %v3390 = vxor.u32 %v3376, 2147483648
    %v3391 = vxor.u32 %v3377, 2147483648
    %v3392 = vxor.u32 %v3378, 2147483648
    %v3393 = vmul.f32 %v3381, 1.442695
    %v3394 = vpow.pop %v3393
    %v3395 = vmul.f32 %v3382, 1.442695
    %v3396 = vpow.pop %v3395
    %v3397 = vmul.f32 %v3383, 1.442695
    %v3398 = vpow.pop %v3397
    %v3399 = vmul.f32 %v3384, 1.442695
    %v3400 = vpow.pop %v3399
    %v3401 = vmul.f32 %v3385, 1.442695
    %v3402 = vpow.pop %v3401
    %v3403 = vmul.f32 %v3386, 1.442695
    %v3404 = vpow.pop %v3403
    %v3405 = vmul.f32 %v3387, 1.442695
    %v3406 = vpow.pop %v3405
    %v3407 = vmul.f32 %v3388, 1.442695
    %v3408 = vpow.pop %v3407
    %v3409 = vmul.f32 %v3389, 1.442695
    %v3410 = vpow.pop %v3409
    %v3411 = vmul.f32 %v3390, 1.442695
    %v3412 = vpow.pop %v3411
    %v3413 = vmul.f32 %v3391, 1.442695
    %v3414 = vpow.pop %v3413
    %v3415 = vmul.f32 %v3392, 1.442695
    %v3416 = vpow.pop %v3415
    %v3417 = vadd.f32 %v3394, 1.0
    %v3418 = vadd.f32 %v3396, 1.0
    %v3419 = vadd.f32 %v3398, 1.0
    %v3420 = vadd.f32 %v3400, 1.0
    %v3421 = vadd.f32 %v3402, 1.0
    %v3422 = vadd.f32 %v3404, 1.0
    %v3423 = vadd.f32 %v3406, 1.0
    %v3424 = vadd.f32 %v3408, 1.0
    %v3425 = vadd.f32 %v3410, 1.0
    %v3426 = vadd.f32 %v3412, 1.0
    %v3427 = vadd.f32 %v3414, 1.0
    %v3428 = vadd.f32 %v3416, 1.0
    %v3429 = vrcp.pop %v3417
    %v3430 = vmul.f32 1.0, %v3429
    %v3431 = vrcp.pop %v3418
    %v3432 = vmul.f32 1.0, %v3431
    %v3433 = vrcp.pop %v3419
    %v3434 = vmul.f32 1.0, %v3433
    %v3435 = vrcp.pop %v3420
    %v3436 = vmul.f32 1.0, %v3435
    %v3437 = vrcp.pop %v3421
    %v3438 = vmul.f32 1.0, %v3437
    %v3439 = vrcp.pop %v3422
    %v3440 = vmul.f32 1.0, %v3439
    %v3441 = vrcp.pop %v3423
    %v3442 = vmul.f32 1.0, %v3441
    %v3443 = vrcp.pop %v3424
    %v3444 = vmul.f32 1.0, %v3443
    %v3445 = vrcp.pop %v3425
    %v3446 = vmul.f32 1.0, %v3445
    %v3447 = vrcp.pop %v3426
    %v3448 = vmul.f32 1.0, %v3447
    %v3449 = vrcp.pop %v3427
    %v3450 = vmul.f32 1.0, %v3449
    %v3451 = vrcp.pop %v3428
    %v3452 = vmul.f32 1.0, %v3451
    %v3453 = vtanh.pop %v3371
    %v3454 = vtanh.pop %v3372
    %v3455 = vtanh.pop %v3379
    %v3456 = vtanh.pop %v3380
    %v3461 = vrot.slane %v3088, 7
    %v3462 = vrot.slane %v3089, 7
    %v3463 = vrot.slane %v3090, 7
    %v3464 = vrot.slane %v3091, 7
    %v3469 = vmul.f32 %v3434, %v3461
    %v3470 = vmul.f32 %v3436, %v3462
    %v3471 = vmul.f32 %v3446, %v3463
    %v3472 = vmul.f32 %v3448, %v3464
    %v3473 = vmul.f32 %v3430, %v3453
    %v3474 = vmul.f32 %v3432, %v3454
    %v3475 = vmul.f32 %v3442, %v3455
    %v3476 = vmul.f32 %v3444, %v3456
    %v3477 = vadd.f32 %v3469, %v3473
    %v3478 = vadd.f32 %v3470, %v3474
    %v3479 = vadd.f32 %v3471, %v3475
    %v3480 = vadd.f32 %v3472, %v3476
    %v3481 = vtanh.pop %v3477
    %v3482 = vtanh.pop %v3478
    %v3483 = vtanh.pop %v3479
    %v3484 = vtanh.pop %v3480
    %v3485 = vmul.f32 %v3438, %v3481
    %v3486 = vmul.f32 %v3440, %v3482
    %v3487 = vmul.f32 %v3450, %v3483
    %v3488 = vmul.f32 %v3452, %v3484
    %v3489 = vpack.c.bf16 %v3485, %v3485
    %v3490 = vpack.c.bf16 %v3486, %v3486
    %v3491 = vpack.c.bf16 %v3487, %v3487
    %v3492 = vpack.c.bf16 %v3488, %v3488
    %v3497 = vunpack.c.l.b16 %v3489
    %v3498 = vunpack.c.l.b16 %v3490
    %v3499 = vunpack.c.l.b16 %v3491
    %v3500 = vunpack.c.l.b16 %v3492
    %v3501 = vpack.c.b16 %v3498, %v3497
    %v3502 = vpack.c.b16 %v3500, %v3499
    %vm3505 = vcmask 1043459
    %vm3506 = vsmask.f32 3328
    %vm3507 = vmand %vm3505, %vm3506
    %vm3508 = vcmask 1047559
    %vm3509 = vsmask.f32 7424
    %vm3510 = vmand %vm3508, %vm3509
    %vm3511 = vmor %vm3510, %vm3507
    %v3512 = vld [vmem:[%s4] sm:$0x88]
    %v3513 = vsel %vm3511, %v3501, %v3512
    %3514 = vst [vmem:[%s4] sm:$0x88] %v3513
    %v3515 = vld [vmem:[%s4 + $0x8] sm:$0x88]
    %v3516 = vsel %vm3511, %v3502, %v3515
    %3517 = vst [vmem:[%s4 + $0x8] sm:$0x88] %v3516
    %v3518 = vld [vmem:[%s0] sm:$0x88]
    %v3519 = vld [vmem:[%s0 + $0x8] sm:$0x88]
    %v3520 = vld [vmem:[%s0 + $0x10] sm:$0x88]
    %v3521 = vld [vmem:[%s0 + $0x18] sm:$0x88]
    %v3522 = vld [vmem:[%s0 + $0x20] sm:$0x88]
    %v3523 = vld [vmem:[%s0 + $0x28] sm:$0x88]
    %v3524 = vld [vmem:[%s0 + $0x30] sm:$0x88]
    %v3525 = vld [vmem:[%s0 + $0x38] sm:$0x88]
    %v3526 = vunpack.c.l.bf16 %v3518
    %v3527 = vunpack.c.h.bf16 %v3518
    %v3528 = vunpack.c.l.bf16 %v3519
    %v3529 = vunpack.c.h.bf16 %v3519
    %v3530 = vunpack.c.l.bf16 %v3520
    %v3531 = vunpack.c.h.bf16 %v3520
    %v3532 = vunpack.c.l.bf16 %v3521
    %v3533 = vunpack.c.h.bf16 %v3521
    %v3534 = vunpack.c.l.bf16 %v3522
    %v3535 = vunpack.c.h.bf16 %v3522
    %v3536 = vunpack.c.l.bf16 %v3523
    %v3537 = vunpack.c.h.bf16 %v3523
    %v3538 = vunpack.c.l.bf16 %v3524
    %v3539 = vunpack.c.h.bf16 %v3524
    %v3540 = vunpack.c.l.bf16 %v3525
    %v3541 = vunpack.c.h.bf16 %v3525
    %v3542 = vrot.slane %v3497, 6
    %v3543 = vrot.slane %v3499, 5
    %v3544 = vsel %vm1214, %v3543, %v3542
    %v3545 = vrot.slane %v3498, 6
    %v3546 = vrot.slane %v3500, 5
    %v3547 = vsel %vm1214, %v3546, %v3545
    %v3548 = vpack.c.b16 %v3544, %v3544
    %v3549 = vpack.c.b16 %v3547, %v3547
    %3552 = vmatprep.subr.bf16.mxu0 %v638
    %3553 = vmatpush1.bf16.msra.mxu0 %v637
    %3554 = vmatprep.subr.bf16.mxu0 %v630
    %3555 = vmatpush1.bf16.msra.mxu0 %v629
    %3556 = vmatprep.subr.bf16.mxu0 %v622
    %3557 = vmatpush1.bf16.msra.mxu0 %v621
    %3558 = vmatprep.subr.bf16.mxu0 %v614
    %3559 = vmatpush1.bf16.msra.mxu0 %v613
    %3560 = vmatprep.subr.bf16.mxu0 %v606
    %3561 = vmatpush1.bf16.msra.mxu0 %v605
    %3562 = vmatprep.subr.bf16.mxu0 %v598
    %3563 = vmatpush1.bf16.msra.mxu0 %v597
    %3564 = vmatprep.subr.bf16.mxu0 %v590
    %3565 = vmatpush1.bf16.msra.mxu0 %v589
    %3566 = vmatprep.subr.bf16.mxu0 %v582
    %3567 = vmatpush1.bf16.msra.mxu0 %v581
    %3568 = vmatprep.subr.bf16.mxu0 %v702
    %3569 = vmatpush2.bf16.msra.mxu0 %v701
    %3570 = vmatprep.subr.bf16.mxu0 %v694
    %3571 = vmatpush2.bf16.msra.mxu0 %v693
    %3572 = vmatprep.subr.bf16.mxu0 %v686
    %3573 = vmatpush2.bf16.msra.mxu0 %v685
    %3574 = vmatprep.subr.bf16.mxu0 %v678
    %3575 = vmatpush2.bf16.msra.mxu0 %v677
    %3576 = vmatprep.subr.bf16.mxu0 %v670
    %3577 = vmatpush2.bf16.msra.mxu0 %v669
    %3578 = vmatprep.subr.bf16.mxu0 %v662
    %3579 = vmatpush2.bf16.msra.mxu0 %v661
    %3580 = vmatprep.subr.bf16.mxu0 %v654
    %3581 = vmatpush2.bf16.msra.mxu0 %v653
    %3582 = vmatprep.subr.bf16.mxu0 %v646
    %3583 = vmatpush2.bf16.msra.mxu0 %v645
    %3584 = vmatprep.mubr.bf16.mxu0 %v3549
    %3585 = vmatmul.mubr.bf16.gmra.mxu0 %v3548
    %v3586 = vpop.f32.mrf.mxu0
    %v3587 = vadd.f32 0.0, %v3586
    %v3588 = vpop.f32.mrf.mxu0
    %v3589 = vadd.f32 0.0, %v3588
    %v3590 = vpop.f32.mrf.mxu0
    %v3591 = vpop.f32.mrf.mxu0
    %3592 = vdwg.mxu0
    %3593 = vmatprep.subr.bf16.mxu0 %v640
    %3594 = vmatpush1.bf16.msra.mxu0 %v639
    %3595 = vmatprep.subr.bf16.mxu0 %v632
    %3596 = vmatpush1.bf16.msra.mxu0 %v631
    %3597 = vmatprep.subr.bf16.mxu0 %v624
    %3598 = vmatpush1.bf16.msra.mxu0 %v623
    %3599 = vmatprep.subr.bf16.mxu0 %v616
    %3600 = vmatpush1.bf16.msra.mxu0 %v615
    %3601 = vmatprep.subr.bf16.mxu0 %v608
    %3602 = vmatpush1.bf16.msra.mxu0 %v607
    %3603 = vmatprep.subr.bf16.mxu0 %v600
    %3604 = vmatpush1.bf16.msra.mxu0 %v599
    %3605 = vmatprep.subr.bf16.mxu0 %v592
    %3606 = vmatpush1.bf16.msra.mxu0 %v591
    %3607 = vmatprep.subr.bf16.mxu0 %v584
    %3608 = vmatpush1.bf16.msra.mxu0 %v583
    %3609 = vmatprep.subr.bf16.mxu0 %v704
    %3610 = vmatpush2.bf16.msra.mxu0 %v703
    %3611 = vmatprep.subr.bf16.mxu0 %v696
    %3612 = vmatpush2.bf16.msra.mxu0 %v695
    %3613 = vmatprep.subr.bf16.mxu0 %v688
    %3614 = vmatpush2.bf16.msra.mxu0 %v687
    %3615 = vmatprep.subr.bf16.mxu0 %v680
    %3616 = vmatpush2.bf16.msra.mxu0 %v679
    %3617 = vmatprep.subr.bf16.mxu0 %v672
    %3618 = vmatpush2.bf16.msra.mxu0 %v671
    %3619 = vmatprep.subr.bf16.mxu0 %v664
    %3620 = vmatpush2.bf16.msra.mxu0 %v663
    %3621 = vmatprep.subr.bf16.mxu0 %v656
    %3622 = vmatpush2.bf16.msra.mxu0 %v655
    %3623 = vmatprep.subr.bf16.mxu0 %v648
    %3624 = vmatpush2.bf16.msra.mxu0 %v647
    %3625 = vmatprep.mubr.bf16.mxu0 %v3549
    %3626 = vmatmul.mubr.bf16.gmra.mxu0 %v3548
    %v3627 = vpop.f32.mrf.mxu0
    %v3628 = vadd.f32 0.0, %v3627
    %v3629 = vpop.f32.mrf.mxu0
    %v3630 = vadd.f32 0.0, %v3629
    %v3631 = vpop.f32.mrf.mxu0
    %v3632 = vpop.f32.mrf.mxu0
    %3633 = vdwg.mxu0
    %3634 = vmatprep.subr.bf16.mxu0 %v642
    %3635 = vmatpush1.bf16.msra.mxu0 %v641
    %3636 = vmatprep.subr.bf16.mxu0 %v634
    %3637 = vmatpush1.bf16.msra.mxu0 %v633
    %3638 = vmatprep.subr.bf16.mxu0 %v626
    %3639 = vmatpush1.bf16.msra.mxu0 %v625
    %3640 = vmatprep.subr.bf16.mxu0 %v618
    %3641 = vmatpush1.bf16.msra.mxu0 %v617
    %3642 = vmatprep.subr.bf16.mxu0 %v610
    %3643 = vmatpush1.bf16.msra.mxu0 %v609
    %3644 = vmatprep.subr.bf16.mxu0 %v602
    %3645 = vmatpush1.bf16.msra.mxu0 %v601
    %3646 = vmatprep.subr.bf16.mxu0 %v594
    %3647 = vmatpush1.bf16.msra.mxu0 %v593
    %3648 = vmatprep.subr.bf16.mxu0 %v586
    %3649 = vmatpush1.bf16.msra.mxu0 %v585
    %3650 = vmatprep.subr.bf16.mxu0 %v706
    %3651 = vmatpush2.bf16.msra.mxu0 %v705
    %3652 = vmatprep.subr.bf16.mxu0 %v698
    %3653 = vmatpush2.bf16.msra.mxu0 %v697
    %3654 = vmatprep.subr.bf16.mxu0 %v690
    %3655 = vmatpush2.bf16.msra.mxu0 %v689
    %3656 = vmatprep.subr.bf16.mxu0 %v682
    %3657 = vmatpush2.bf16.msra.mxu0 %v681
    %3658 = vmatprep.subr.bf16.mxu0 %v674
    %3659 = vmatpush2.bf16.msra.mxu0 %v673
    %3660 = vmatprep.subr.bf16.mxu0 %v666
    %3661 = vmatpush2.bf16.msra.mxu0 %v665
    %3662 = vmatprep.subr.bf16.mxu0 %v658
    %3663 = vmatpush2.bf16.msra.mxu0 %v657
    %3664 = vmatprep.subr.bf16.mxu0 %v650
    %3665 = vmatpush2.bf16.msra.mxu0 %v649
    %3666 = vmatprep.mubr.bf16.mxu0 %v3549
    %3667 = vmatmul.mubr.bf16.gmra.mxu0 %v3548
    %v3668 = vpop.f32.mrf.mxu0
    %v3669 = vadd.f32 0.0, %v3668
    %v3670 = vpop.f32.mrf.mxu0
    %v3671 = vadd.f32 0.0, %v3670
    %v3672 = vpop.f32.mrf.mxu0
    %v3673 = vpop.f32.mrf.mxu0
    %3674 = vdwg.mxu0
    %3675 = vmatprep.subr.bf16.mxu0 %v644
    %3676 = vmatpush1.bf16.msra.mxu0 %v643
    %3677 = vmatprep.subr.bf16.mxu0 %v636
    %3678 = vmatpush1.bf16.msra.mxu0 %v635
    %3679 = vmatprep.subr.bf16.mxu0 %v628
    %3680 = vmatpush1.bf16.msra.mxu0 %v627
    %3681 = vmatprep.subr.bf16.mxu0 %v620
    %3682 = vmatpush1.bf16.msra.mxu0 %v619
    %3683 = vmatprep.subr.bf16.mxu0 %v612
    %3684 = vmatpush1.bf16.msra.mxu0 %v611
    %3685 = vmatprep.subr.bf16.mxu0 %v604
    %3686 = vmatpush1.bf16.msra.mxu0 %v603
    %3687 = vmatprep.subr.bf16.mxu0 %v596
    %3688 = vmatpush1.bf16.msra.mxu0 %v595
    %3689 = vmatprep.subr.bf16.mxu0 %v588
    %3690 = vmatpush1.bf16.msra.mxu0 %v587
    %3691 = vmatprep.subr.bf16.mxu0 %v708
    %3692 = vmatpush2.bf16.msra.mxu0 %v707
    %3693 = vmatprep.subr.bf16.mxu0 %v700
    %3694 = vmatpush2.bf16.msra.mxu0 %v699
    %3695 = vmatprep.subr.bf16.mxu0 %v692
    %3696 = vmatpush2.bf16.msra.mxu0 %v691
    %3697 = vmatprep.subr.bf16.mxu0 %v684
    %3698 = vmatpush2.bf16.msra.mxu0 %v683
    %3699 = vmatprep.subr.bf16.mxu0 %v676
    %3700 = vmatpush2.bf16.msra.mxu0 %v675
    %3701 = vmatprep.subr.bf16.mxu0 %v668
    %3702 = vmatpush2.bf16.msra.mxu0 %v667
    %3703 = vmatprep.subr.bf16.mxu0 %v660
    %3704 = vmatpush2.bf16.msra.mxu0 %v659
    %3705 = vmatprep.subr.bf16.mxu0 %v652
    %3706 = vmatpush2.bf16.msra.mxu0 %v651
    %3707 = vmatprep.mubr.bf16.mxu0 %v3549
    %3708 = vmatmul.mubr.bf16.gmra.mxu0 %v3548
    %v3709 = vpop.f32.mrf.mxu0
    %v3710 = vadd.f32 0.0, %v3709
    %v3711 = vpop.f32.mrf.mxu0
    %v3712 = vadd.f32 0.0, %v3711
    %v3713 = vpop.f32.mrf.mxu0
    %v3714 = vpop.f32.mrf.mxu0
    %3715 = vdwg.mxu0
    %v3724 = vrot.slane %v3587, 1
    %v3725 = vrot.slane %v3589, 1
    %v3726 = vrot.slane %v3628, 1
    %v3727 = vrot.slane %v3630, 1
    %v3728 = vrot.slane %v3669, 1
    %v3729 = vrot.slane %v3671, 1
    %v3730 = vrot.slane %v3710, 1
    %v3731 = vrot.slane %v3712, 1
    %v3732 = vrot.slane %v3587, 2
    %v3733 = vrot.slane %v3589, 2
    %v3734 = vrot.slane %v3628, 2
    %v3735 = vrot.slane %v3630, 2
    %v3736 = vrot.slane %v3669, 2
    %v3737 = vrot.slane %v3671, 2
    %v3738 = vrot.slane %v3710, 2
    %v3739 = vrot.slane %v3712, 2
    %v3756 = vadd.f32 %v3526, %v3724
    %v3757 = vadd.f32 %v3527, %v3725
    %v3758 = vadd.f32 %v3528, %v3726
    %v3759 = vadd.f32 %v3529, %v3727
    %v3760 = vadd.f32 %v3530, %v3728
    %v3761 = vadd.f32 %v3531, %v3729
    %v3762 = vadd.f32 %v3532, %v3730
    %v3763 = vadd.f32 %v3533, %v3731
    %v3764 = vadd.f32 %v3534, %v3732
    %v3765 = vadd.f32 %v3535, %v3733
    %v3766 = vadd.f32 %v3536, %v3734
    %v3767 = vadd.f32 %v3537, %v3735
    %v3768 = vadd.f32 %v3538, %v3736
    %v3769 = vadd.f32 %v3539, %v3737
    %v3770 = vadd.f32 %v3540, %v3738
    %v3771 = vadd.f32 %v3541, %v3739
    %v3772 = vxor.u32 %v3756, 2147483648
    %v3773 = vxor.u32 %v3757, 2147483648
    %v3774 = vxor.u32 %v3758, 2147483648
    %v3775 = vxor.u32 %v3759, 2147483648
    %v3776 = vxor.u32 %v3760, 2147483648
    %v3777 = vxor.u32 %v3761, 2147483648
    %v3778 = vxor.u32 %v3764, 2147483648
    %v3779 = vxor.u32 %v3765, 2147483648
    %v3780 = vxor.u32 %v3766, 2147483648
    %v3781 = vxor.u32 %v3767, 2147483648
    %v3782 = vxor.u32 %v3768, 2147483648
    %v3783 = vxor.u32 %v3769, 2147483648
    %v3784 = vmul.f32 %v3772, 1.442695
    %v3785 = vpow.pop %v3784
    %v3786 = vmul.f32 %v3773, 1.442695
    %v3787 = vpow.pop %v3786
    %v3788 = vmul.f32 %v3774, 1.442695
    %v3789 = vpow.pop %v3788
    %v3790 = vmul.f32 %v3775, 1.442695
    %v3791 = vpow.pop %v3790
    %v3792 = vmul.f32 %v3776, 1.442695
    %v3793 = vpow.pop %v3792
    %v3794 = vmul.f32 %v3777, 1.442695
    %v3795 = vpow.pop %v3794
    %v3796 = vmul.f32 %v3778, 1.442695
    %v3797 = vpow.pop %v3796
    %v3798 = vmul.f32 %v3779, 1.442695
    %v3799 = vpow.pop %v3798
    %v3800 = vmul.f32 %v3780, 1.442695
    %v3801 = vpow.pop %v3800
    %v3802 = vmul.f32 %v3781, 1.442695
    %v3803 = vpow.pop %v3802
    %v3804 = vmul.f32 %v3782, 1.442695
    %v3805 = vpow.pop %v3804
    %v3806 = vmul.f32 %v3783, 1.442695
    %v3807 = vpow.pop %v3806
    %v3808 = vadd.f32 %v3785, 1.0
    %v3809 = vadd.f32 %v3787, 1.0
    %v3810 = vadd.f32 %v3789, 1.0
    %v3811 = vadd.f32 %v3791, 1.0
    %v3812 = vadd.f32 %v3793, 1.0
    %v3813 = vadd.f32 %v3795, 1.0
    %v3814 = vadd.f32 %v3797, 1.0
    %v3815 = vadd.f32 %v3799, 1.0
    %v3816 = vadd.f32 %v3801, 1.0
    %v3817 = vadd.f32 %v3803, 1.0
    %v3818 = vadd.f32 %v3805, 1.0
    %v3819 = vadd.f32 %v3807, 1.0
    %v3820 = vrcp.pop %v3808
    %v3821 = vmul.f32 1.0, %v3820
    %v3822 = vrcp.pop %v3809
    %v3823 = vmul.f32 1.0, %v3822
    %v3824 = vrcp.pop %v3810
    %v3825 = vmul.f32 1.0, %v3824
    %v3826 = vrcp.pop %v3811
    %v3827 = vmul.f32 1.0, %v3826
    %v3828 = vrcp.pop %v3812
    %v3829 = vmul.f32 1.0, %v3828
    %v3830 = vrcp.pop %v3813
    %v3831 = vmul.f32 1.0, %v3830
    %v3832 = vrcp.pop %v3814
    %v3833 = vmul.f32 1.0, %v3832
    %v3834 = vrcp.pop %v3815
    %v3835 = vmul.f32 1.0, %v3834
    %v3836 = vrcp.pop %v3816
    %v3837 = vmul.f32 1.0, %v3836
    %v3838 = vrcp.pop %v3817
    %v3839 = vmul.f32 1.0, %v3838
    %v3840 = vrcp.pop %v3818
    %v3841 = vmul.f32 1.0, %v3840
    %v3842 = vrcp.pop %v3819
    %v3843 = vmul.f32 1.0, %v3842
    %v3844 = vtanh.pop %v3762
    %v3845 = vtanh.pop %v3763
    %v3846 = vtanh.pop %v3770
    %v3847 = vtanh.pop %v3771
    %v3852 = vrot.slane %v3477, 7
    %v3853 = vrot.slane %v3478, 7
    %v3854 = vrot.slane %v3479, 7
    %v3855 = vrot.slane %v3480, 7
    %v3860 = vmul.f32 %v3825, %v3852
    %v3861 = vmul.f32 %v3827, %v3853
    %v3862 = vmul.f32 %v3837, %v3854
    %v3863 = vmul.f32 %v3839, %v3855
    %v3864 = vmul.f32 %v3821, %v3844
    %v3865 = vmul.f32 %v3823, %v3845
    %v3866 = vmul.f32 %v3833, %v3846
    %v3867 = vmul.f32 %v3835, %v3847
    %v3868 = vadd.f32 %v3860, %v3864
    %v3869 = vadd.f32 %v3861, %v3865
    %v3870 = vadd.f32 %v3862, %v3866
    %v3871 = vadd.f32 %v3863, %v3867
    %v3872 = vtanh.pop %v3868
    %v3873 = vtanh.pop %v3869
    %v3874 = vtanh.pop %v3870
    %v3875 = vtanh.pop %v3871
    %v3876 = vmul.f32 %v3829, %v3872
    %v3877 = vmul.f32 %v3831, %v3873
    %v3878 = vmul.f32 %v3841, %v3874
    %v3879 = vmul.f32 %v3843, %v3875
    %v3880 = vpack.c.bf16 %v3876, %v3876
    %v3881 = vpack.c.bf16 %v3877, %v3877
    %v3882 = vpack.c.bf16 %v3878, %v3878
    %v3883 = vpack.c.bf16 %v3879, %v3879
    %v3888 = vunpack.c.l.b16 %v3880
    %v3889 = vunpack.c.l.b16 %v3881
    %v3890 = vunpack.c.l.b16 %v3882
    %v3891 = vunpack.c.l.b16 %v3883
    %v3892 = vpack.c.b16 %v3889, %v3888
    %v3893 = vpack.c.b16 %v3891, %v3890
    %vm3896 = vsmask.f32 7950
    %vm3897 = vmand %vm3505, %vm3896
    %vm3898 = vsmask.f32 7966
    %vm3899 = vmand %vm3508, %vm3898
    %vm3900 = vmor %vm3899, %vm3897
    %v3901 = vld [vmem:[%s4] sm:$0x88]
    %v3902 = vsel %vm3900, %v3892, %v3901
    %3903 = vst [vmem:[%s4] sm:$0x88] %v3902
    %v3904 = vld [vmem:[%s4 + $0x8] sm:$0x88]
    %v3905 = vsel %vm3900, %v3893, %v3904
    %3906 = vst [vmem:[%s4 + $0x8] sm:$0x88] %v3905
    %v3911 = vcombine.high %v3876, %v3877
    %v3913 = vunpack.c.l.s4 1983009808
    %v3914 = vunpack.c.0.s8 %v3913
    %v3915 = vlaneseq
    %v3916 = vshrl.u32 %v3915, 7
    %v3917 = vsub.s32 %v3914, %v3916
    %v3918 = vrot.slane %v3911, %v3917
    %v3919 = vcombine.high %v3918, %v3918
    %v3920 = vcombine.high %v3878, %v3879
    %v3922 = vunpack.c.l.s4 1983009808
    %v3923 = vunpack.c.0.s8 %v3922
    %v3924 = vlaneseq
    %v3925 = vshrl.u32 %v3924, 7
    %v3926 = vsub.s32 %v3923, %v3925
    %v3927 = vrot.slane %v3920, %v3926
    %v3928 = vcombine.high %v3927, %v3927
    %v3929 = vrot.slane %v3919, 1
    %vm3930 = vcmask 1044484
    %v3931 = vsel %vm3930, %v3929, %v3929
    %vm3932 = vcmask 1046534
    %v3933 = vsel %vm3932, %v3929, %v3931
    %v3934 = vsel %vm1214, %v3928, %v3933
    %vm3935 = vcmask 1043459
    %v3936 = vsel %vm3935, %v3928, %v3934
    %vm3937 = vcmask 1045509
    %v3938 = vsel %vm3937, %v3928, %v3936
    %vm3939 = vcmask 1047559
    %v3940 = vsel %vm3939, %v3928, %v3938
    %3942 = vst [vmem:[#allocation2] sm:$0xf] %v3940
    %v3947 = vcombine.high %v3868, %v3869
    %v3949 = vunpack.c.l.s4 1983009808
    %v3950 = vunpack.c.0.s8 %v3949
    %v3951 = vlaneseq
    %v3952 = vshrl.u32 %v3951, 7
    %v3953 = vsub.s32 %v3950, %v3952
    %v3954 = vrot.slane %v3947, %v3953
    %v3955 = vcombine.high %v3954, %v3954
    %v3956 = vcombine.high %v3870, %v3871
    %v3958 = vunpack.c.l.s4 1983009808
    %v3959 = vunpack.c.0.s8 %v3958
    %v3960 = vlaneseq
    %v3961 = vshrl.u32 %v3960, 7
    %v3962 = vsub.s32 %v3959, %v3961
    %v3963 = vrot.slane %v3956, %v3962
    %v3964 = vcombine.high %v3963, %v3963
    %v3965 = vrot.slane %v3955, 1
    %v3966 = vsel %vm3930, %v3965, %v3965
    %v3967 = vsel %vm3932, %v3965, %v3966
    %v3968 = vsel %vm1214, %v3964, %v3967
    %v3969 = vsel %vm3935, %v3964, %v3968
    %v3970 = vsel %vm3937, %v3964, %v3969
    %v3971 = vsel %vm3939, %v3964, %v3970
    %3973 = vst [vmem:[#allocation3] sm:$0xf] %v3971
    // Predicated region
    $region22: #{deepspeech_forward.11} parent=1 // pred_check
      %p3974 = pneg %p22
    $region23: #{deepspeech_forward.11} parent=1 // pred_check_branch
      %3976 = sbr.rel (%p3974) target = $region25
    $region24: #{deepspeech_forward.11} parent=1 // pred_region
      %3977 = vst [vmem:[#allocation4] sm:$0xf] %v3940
      %3978 = vst [vmem:[#allocation6] sm:$0xf] %v3971
    $region25: #{deepspeech_forward.11} parent=1 // pred_fallthru
      _
    // Predicated region
    $region26: #{deepspeech_forward.11} parent=1 // pred_check
      _
    $region27: #{deepspeech_forward.11} parent=1 // pred_check_branch
      %3980 = sbr.rel (0) target = $region29
    $region28: #{deepspeech_forward.11} parent=1 // pred_region
      _
    $region29: #{deepspeech_forward.11} parent=1 // pred_fallthru
      _
    // Predicated region
    $region30: #{deepspeech_forward.11} parent=1 // pred_check
      _
    $region31: #{deepspeech_forward.11} parent=1 // pred_check_branch
      %3982 = sbr.rel (0) target = $region33
    $region32: #{deepspeech_forward.11} parent=1 // pred_region
      %s3984 = ssub.s32 64, 64
      %3985 = vsyncadd [#allocation5], %s3984
      %s3987 = sshll.u32 [#allocation4], 4
      %s3988 = int_to_ptr.vmem [resolvable:$true] %s3987
      %3990 = dma.vmem_to_hbm [thread:$0]  %s3988, 64, %s5, [#allocation5]
    $region33: #{deepspeech_forward.11} parent=1 // pred_fallthru
      _
    // Predicated region
    $region34: #{deepspeech_forward.11} parent=1 // pred_check
      _
    $region35: #{deepspeech_forward.11} parent=1 // pred_check_branch
      %3992 = sbr.rel (0) target = $region37
    $region36: #{deepspeech_forward.11} parent=1 // pred_region
      %s3994 = ssub.s32 64, 64
      %3995 = vsyncadd [#allocation7], %s3994
      %s3997 = sshll.u32 [#allocation6], 4
      %s3998 = int_to_ptr.vmem [resolvable:$true] %s3997
      %4000 = dma.vmem_to_hbm [thread:$0]  %s3998, 64, %s6, [#allocation7]
    $region37: #{deepspeech_forward.11} parent=1 // pred_fallthru
      _
    // Predicated region
    $region38: #{deepspeech_forward.11} parent=1 // pred_check
      _
    $region39: #{deepspeech_forward.11} parent=1 // pred_check_branch
      %4002 = sbr.rel (0) target = $region41
    $region40: #{deepspeech_forward.11} parent=1 // pred_region
      _
    $region41: #{deepspeech_forward.11} parent=1 // pred_fallthru
      _
    // Predicated region
    $region42: #{deepspeech_forward.11} parent=1 // pred_check
      _
    $region43: #{deepspeech_forward.11} parent=1 // pred_check_branch
      %4004 = sbr.rel (0) target = $region45
    $region44: #{deepspeech_forward.11} parent=1 // pred_region
      %4005 = dma.done [#allocation5], 64
    $region45: #{deepspeech_forward.11} parent=1 // pred_fallthru
      _
    // Predicated region
    $region46: #{deepspeech_forward.11} parent=1 // pred_check
      _
    $region47: #{deepspeech_forward.11} parent=1 // pred_check_branch
      %4007 = sbr.rel (0) target = $region49
    $region48: #{deepspeech_forward.11} parent=1 // pred_region
      %4008 = dma.done [#allocation7], 64
    $region49: #{deepspeech_forward.11} parent=1 // pred_fallthru
      _
    %4009 = vsyncpa [#allocation5], 1
    %4010 = vsyncpa [#allocation7], 1

</llo_original>
